<compile_context>
chip_gen: v7x
topology: tpu7x:2x2x1
jax: 0.10.0
libtpu: 0.0.40
codegen_flags: <defaults>
</compile_context>

<pallas_src>
import functools

import jax
import jax.numpy as jnp
import numpy as np
from jax import lax
from jax.experimental import pallas as pl
from jax.experimental.pallas import tpu as pltpu


def _pool_kernel(bid_ref, feat_ref, sum_ref, cnt_ref, max_ref, *,
                 batch_size, tile_n, n_voxels, tiles_per_split):
    """Per-batch sum / count / max over voxel tiles (channels-first layout).

    grid = (pool_splits, tiles_per_split). Axis 0 is 'parallel' (each split owns its own
    partial accumulator slice), axis 1 is the 'arbitrary' reduction over voxel tiles.
    """
    @pl.when(pl.program_id(1) == 0)
    def _():
        sum_ref[...] = jnp.zeros_like(sum_ref)
        cnt_ref[...] = jnp.zeros_like(cnt_ref)
        max_ref[...] = jnp.full_like(max_ref, -jnp.inf)

    # Ragged-tail handling: mask columns whose global voxel index >= n_voxels.  The last tile
    # may overhang the array (garbage reads), and fully-out-of-range tile indices are clamped
    # by the index_map -- the mask below (computed from the *unclamped* tile index) kills both.
    tile_idx = pl.program_id(0) * tiles_per_split + pl.program_id(1)
    base = tile_idx * tile_n
    col = lax.broadcasted_iota(jnp.int32, (1, tile_n), 1)
    valid = (base + col) < n_voxels                                  # [1, TN] bool

    bid = bid_ref[...]                                               # [1, TN] int32
    feat = feat_ref[...].astype(jnp.float32)                         # [C, TN]

    # One-hot [B, TN] (batch on sublanes, voxels on lanes): all per-batch sums & counts come
    # from one MXU matmul / one lane reduce instead of per-batch reduction sweeps.
    b_iota = lax.broadcasted_iota(jnp.int32, (batch_size, tile_n), 0)
    onehot_b = jnp.logical_and(bid == b_iota, valid)                 # [B, TN] bool
    one_hot = onehot_b.astype(jnp.float32)                           # [B, TN]

    # Zero (not just one_hot-mask) the overhang columns before the matmul: 0 * NaN = NaN would
    # otherwise poison the accumulated sums if the stale VMEM tail happens to hold NaN/Inf.
    feat_z = jnp.where(valid, feat, 0.0)                             # [C, TN]

    # sum_cb[C, B] = feat_z[C, TN] . one_hot[B, TN]^T  (contract lane dims on both operands).
    sum_ref[...] += lax.dot_general(feat_z, one_hot, (((1,), (1,)), ((), ())),
                                    preferred_element_type=jnp.float32)      # [C, B]
    cnt_ref[...] += jnp.sum(one_hot, axis=1, keepdims=True)                  # [B, 1]

    # Max: small static loop over batches (max has no matmul form; B is tiny).  Reuse the
    # one-hot rows (they already include the validity mask) and lane-reduce in the XLU.
    neg_inf = jnp.float32(-jnp.inf)
    maxs = [jnp.max(jnp.where(onehot_b[b:b + 1, :], feat, neg_inf), axis=1, keepdims=True)
            for b in range(batch_size)]                              # B x [C, 1]
    max_ref[...] = jnp.maximum(max_ref[...], jnp.concatenate(maxs, axis=1))  # [C, B]


def _apply_kernel(bid_ref, feat_ref, gate_ref, out_ref, *, batch_size):
    """out = features * gate[batch_id]; per-voxel gate gathered via a one-hot matmul."""
    bid = bid_ref[...]                                               # [1, TN] int32
    gate = gate_ref[...]                                             # [C, B]
    tn = bid.shape[1]
    b_iota = lax.broadcasted_iota(jnp.int32, (batch_size, tn), 0)
    one_hot = (bid == b_iota).astype(jnp.float32)                    # [B, TN]
    gmul = jnp.dot(gate, one_hot, preferred_element_type=jnp.float32)        # [C, TN]
    out_ref[...] = (feat_ref[...] * gmul).astype(out_ref.dtype)      # overhang cols are clipped


@functools.partial(jax.jit, static_argnames=("batch_size", "tile_n", "pool_splits"))
def channel_attention_3d(features_cn, batch_ids, w1, w2, batch_size, *,
                         tile_n=4096, pool_splits=1):
    """features_cn: [C, N] f32 (channels-first), batch_ids: [N] int32,
    w1: [C//8, C] (fc1), w2: [C, C//8] (fc2).  Returns [C, N]."""
    C, N = features_cn.shape
    bid2 = batch_ids.reshape(1, N).astype(jnp.int32)                 # lane-major batch ids

    total_tiles = pl.cdiv(N, tile_n)
    tiles_per_split = pl.cdiv(total_tiles, pool_splits)
    last_tile = total_tiles - 1

    # Clamp fully-out-of-range tile indices to the last tile; the in-kernel column mask (built
    # from the unclamped index) zeroes their contribution.
    def col_map(c, i):
        return (0, jnp.minimum(c * tiles_per_split + i, last_tile))

    # ---- pass 1: per-batch sum / count / max pooling (partials per split, combined below) ----
    pool = pl.pallas_call(
        functools.partial(_pool_kernel, batch_size=batch_size, tile_n=tile_n,
                          n_voxels=N, tiles_per_split=tiles_per_split),
        out_shape=(jax.ShapeDtypeStruct((pool_splits, C, batch_size), jnp.float32),
                   jax.ShapeDtypeStruct((pool_splits, batch_size, 1), jnp.float32),
                   jax.ShapeDtypeStruct((pool_splits, C, batch_size), jnp.float32)),
        grid=(pool_splits, tiles_per_split),
        in_specs=[pl.BlockSpec((1, tile_n), col_map),
                  pl.BlockSpec((C, tile_n), col_map)],
        out_specs=(pl.BlockSpec((None, C, batch_size), lambda c, i: (c, 0, 0)),
                   pl.BlockSpec((None, batch_size, 1), lambda c, i: (c, 0, 0)),
                   pl.BlockSpec((None, C, batch_size), lambda c, i: (c, 0, 0))),
        compiler_params=pltpu.CompilerParams(
            dimension_semantics=("parallel", "arbitrary")),
    )
    part_sum, part_cnt, part_max = pool(bid2, features_cn)

    seg_sum = part_sum.sum(axis=0)                 # [C, B]
    seg_cnt = part_cnt.sum(axis=0).T               # [1, B]
    seg_max = part_max.max(axis=0)                 # [C, B]

    # Empty-batch guard (PyTorch would NaN / error there anyway; non-empty batches unchanged).
    seg_avg = seg_sum / jnp.maximum(seg_cnt, 1.0)                    # [C, B]
    seg_max = jnp.where(seg_cnt > 0, seg_max, 0.0)                   # [C, B]

    # ---- tiny gate MLP hoisted to plain JAX (computed once, not once per grid step) ----
    def mlp_cb(v):                                  # 1x1 convs == matmuls over the channel dim
        return w2 @ jnp.maximum(w1 @ v, 0.0)        # [C, B]

    gate_cb = jax.nn.sigmoid(mlp_cb(seg_avg) + mlp_cb(seg_max)).astype(jnp.float32)  # [C, B]

    # ---- pass 2: mem-bound per-voxel gather-and-multiply (lane-dense output) ----
    apply_fn = pl.pallas_call(
        functools.partial(_apply_kernel, batch_size=batch_size),
        out_shape=jax.ShapeDtypeStruct((C, N), features_cn.dtype),
        grid=(total_tiles,),
        in_specs=[pl.BlockSpec((1, tile_n), lambda i: (0, i)),
                  pl.BlockSpec((C, tile_n), lambda i: (0, i)),
                  pl.BlockSpec((C, batch_size), lambda i: (0, 0))],
        out_specs=pl.BlockSpec((C, tile_n), lambda i: (0, i)),
        compiler_params=pltpu.CompilerParams(dimension_semantics=("parallel",)),
    )
    return apply_fn(bid2, features_cn, gate_cb)


def _reference(features_nc, batch_ids, w1, w2, batch_size):
    """Pure numpy reference of the PyTorch forward (on [N, C] features)."""
    f = np.asarray(features_nc, dtype=np.float64)
    b_ids = np.asarray(batch_ids)
    w1 = np.asarray(w1, dtype=np.float64)
    w2 = np.asarray(w2, dtype=np.float64)

    def mlp(v):
        return np.maximum(v @ w1.T, 0.0) @ w2.T

    gates = []
    for b in range(batch_size):
        fb = f[b_ids == b]
        avg = fb.mean(axis=0)
        mx = fb.max(axis=0)
        logits = mlp(avg) + mlp(mx)
        gates.append(1.0 / (1.0 + np.exp(-logits)))
    gates = np.stack(gates)                        # [B, C]
    return f * gates[b_ids]                        # [N, C]


if __name__ == "__main__":
    key = jax.random.PRNGKey(0)
    in_planes = 16            # C
    hidden = in_planes // 8   # C // 8
    batch_size = 3
    n_voxels = 9000           # not a multiple of the tile -> exercises tail masking & accumulation

    k_feat, k_w1, k_w2, k_perm = jax.random.split(key, 4)
    features_nc = jax.random.normal(k_feat, (n_voxels, in_planes), dtype=jnp.float32)  # [N, C]
    # deterministic voxel->batch assignment (3000 / 3500 / 2500 voxels, shuffled)
    base_ids = jnp.concatenate([jnp.zeros((3000,), jnp.int32),
                                jnp.ones((3500,), jnp.int32),
                                jnp.full((2500,), 2, jnp.int32)])
    batch_ids = base_ids[jax.random.permutation(k_perm, n_voxels)]

    # nn.Conv2d(C, C//8, 1, bias=False) / nn.Conv2d(C//8, C, 1, bias=False) weights squeezed to 2D
    w1 = 0.5 * jax.random.normal(k_w1, (hidden, in_planes), dtype=jnp.float32)   # fc1
    w2 = 0.5 * jax.random.normal(k_w2, (in_planes, hidden), dtype=jnp.float32)   # fc2

    # channels-first layout for the kernel (lane-dense: voxels on the 128-lane axis)
    features_cn = jnp.asarray(features_nc.T)                                     # [C, N]

    ref = _reference(features_nc, batch_ids, w1, w2, batch_size)

    # default config: tile_n=4096 -> 3 tiles with a ragged tail, single pool split
    out_cn = channel_attention_3d(features_cn, batch_ids, w1, w2, batch_size=batch_size)
    out_cn = jax.block_until_ready(out_cn)
    np.testing.assert_allclose(np.asarray(out_cn).T, ref, rtol=1e-3, atol=1e-5)

    # also exercise the split-accumulator path + clamped (fully masked) trailing tile
    out2_cn = channel_attention_3d(features_cn, batch_ids, w1, w2, batch_size=batch_size,
                                   tile_n=1024, pool_splits=2)
    out2_cn = jax.block_until_ready(out2_cn)
    np.testing.assert_allclose(np.asarray(out2_cn).T, ref, rtol=1e-3, atol=1e-5)

    print("KERNEL_OK")
</pallas_src>

<mosaic_0001>
module attributes {stable_mosaic.version = 11 : i64} {
  func.func @_pool_kernel(%arg0: i32, %arg1: i32, %arg2: memref<1x4096xi32, #tpu.memory_space<vmem>>, %arg3: memref<16x4096xf32, #tpu.memory_space<vmem>>, %arg4: memref<1x16x3xf32, #tpu.memory_space<vmem>>, %arg5: memref<1x3x1xf32, #tpu.memory_space<vmem>>, %arg6: memref<1x16x3xf32, #tpu.memory_space<vmem>>) attributes {dimension_semantics = [#tpu.dimension_semantics<parallel>, #tpu.dimension_semantics<arbitrary>], iteration_bounds = array<i64: 1, 3>, scalar_prefetch = 0 : i64, scratch_operands = 0 : i64, tpu.core_type = #tpu.core_type<tc>, window_params = [{transform_indices = @transform_0, window_bounds = array<i64: 1, 4096>}, {transform_indices = @transform_1, window_bounds = array<i64: 16, 4096>}, {transform_indices = @transform_2, window_bounds = array<i64: 1, 16, 3>}, {transform_indices = @transform_3, window_bounds = array<i64: 1, 3, 1>}, {transform_indices = @transform_4, window_bounds = array<i64: 1, 16, 3>}]} {
    %c0_i32 = arith.constant 0 : i32
    %0 = arith.cmpi eq, %arg1, %c0_i32 : i32
    %1 = arith.extui %0 : i1 to i32
    %c0_i32_0 = arith.constant 0 : i32
    %2 = arith.cmpi ne, %1, %c0_i32_0 : i32
    scf.if %2 {
      %cst_30 = arith.constant 0.000000e+00 : f32
      %67 = vector.broadcast %cst_30 : f32 to vector<16x3xf32>
      %c0_31 = arith.constant 0 : index
      %c0_32 = arith.constant 0 : index
      %c0_33 = arith.constant 0 : index
      %68 = vector.load %arg4[%c0_31, %c0_32, %c0_33] : memref<1x16x3xf32, #tpu.memory_space<vmem>>, vector<1x16x3xf32>
      %69 = vector.shape_cast %68 : vector<1x16x3xf32> to vector<16x3xf32>
      %70 = vector.shape_cast %67 : vector<16x3xf32> to vector<1x16x3xf32>
      tpu.vector_store %arg4[%c0_31, %c0_32, %c0_33], %70 {strides = array<i32>} : memref<1x16x3xf32, #tpu.memory_space<vmem>>, vector<1x16x3xf32>,
      %cst_34 = arith.constant 0.000000e+00 : f32
      %71 = vector.broadcast %cst_34 : f32 to vector<3x1xf32>
      %c0_35 = arith.constant 0 : index
      %c0_36 = arith.constant 0 : index
      %c0_37 = arith.constant 0 : index
      %72 = vector.load %arg5[%c0_35, %c0_36, %c0_37] : memref<1x3x1xf32, #tpu.memory_space<vmem>>, vector<1x3x1xf32>
      %73 = vector.shape_cast %72 : vector<1x3x1xf32> to vector<3x1xf32>
      %74 = vector.shape_cast %71 : vector<3x1xf32> to vector<1x3x1xf32>
      tpu.vector_store %arg5[%c0_35, %c0_36, %c0_37], %74 {strides = array<i32>} : memref<1x3x1xf32, #tpu.memory_space<vmem>>, vector<1x3x1xf32>,
      %cst_38 = arith.constant 0xFF800000 : f32
      %75 = vector.broadcast %cst_38 : f32 to vector<16x3xf32>
      %c0_39 = arith.constant 0 : index
      %c0_40 = arith.constant 0 : index
      %c0_41 = arith.constant 0 : index
      %76 = vector.load %arg6[%c0_39, %c0_40, %c0_41] : memref<1x16x3xf32, #tpu.memory_space<vmem>>, vector<1x16x3xf32>
      %77 = vector.shape_cast %76 : vector<1x16x3xf32> to vector<16x3xf32>
      %78 = vector.shape_cast %75 : vector<16x3xf32> to vector<1x16x3xf32>
      tpu.vector_store %arg6[%c0_39, %c0_40, %c0_41], %78 {strides = array<i32>} : memref<1x16x3xf32, #tpu.memory_space<vmem>>, vector<1x16x3xf32>,
    } else {
    }
    %c3_i32 = arith.constant 3 : i32
    %3 = arith.muli %arg0, %c3_i32 : i32
    %4 = arith.addi %3, %arg1 : i32
    %c4096_i32 = arith.constant 4096 : i32
    %5 = arith.muli %4, %c4096_i32 : i32
    %6 = tpu.iota {dimensions = array<i32: 1>} : vector<1x4096xi32>
    %7 = vector.broadcast %5 : i32 to vector<1x4096xi32>
    %8 = arith.addi %7, %6 : vector<1x4096xi32>
    %c9000_i32 = arith.constant 9000 : i32
    %9 = vector.broadcast %c9000_i32 : i32 to vector<1x4096xi32>
    %10 = arith.cmpi slt, %8, %9 : vector<1x4096xi32>
    %c0 = arith.constant 0 : index
    %c0_1 = arith.constant 0 : index
    %11 = vector.load %arg2[%c0, %c0_1] : memref<1x4096xi32, #tpu.memory_space<vmem>>, vector<1x4096xi32>
    %c0_2 = arith.constant 0 : index
    %c0_3 = arith.constant 0 : index
    %12 = vector.load %arg3[%c0_2, %c0_3] : memref<16x4096xf32, #tpu.memory_space<vmem>>, vector<16x4096xf32>
    %13 = tpu.iota {dimensions = array<i32: 0>} : vector<3x4096xi32>
    %14 = vector.broadcast %11 : vector<1x4096xi32> to vector<3x4096xi32>
    %15 = arith.cmpi eq, %14, %13 : vector<3x4096xi32>
    %16 = vector.broadcast %10 : vector<1x4096xi1> to vector<3x4096xi1>
    %17 = arith.andi %15, %16 : vector<3x4096xi1>
    %18 = arith.extui %17 : vector<3x4096xi1> to vector<3x4096xi32>
    %19 = arith.sitofp %18 : vector<3x4096xi32> to vector<3x4096xf32>
    %cst = arith.constant 0.000000e+00 : f32
    %20 = vector.shape_cast %10 : vector<1x4096xi1> to vector<1x4096xi1>
    %21 = vector.broadcast %20 : vector<1x4096xi1> to vector<16x4096xi1>
    %22 = vector.broadcast %cst : f32 to vector<16x4096xf32>
    %23 = arith.select %21, %12, %22 : vector<16x4096xi1>, vector<16x4096xf32>
    %c0_4 = arith.constant 0 : index
    %c0_5 = arith.constant 0 : index
    %c0_6 = arith.constant 0 : index
    %24 = vector.load %arg4[%c0_4, %c0_5, %c0_6] : memref<1x16x3xf32, #tpu.memory_space<vmem>>, vector<1x16x3xf32>
    %25 = vector.shape_cast %24 : vector<1x16x3xf32> to vector<16x3xf32>
    %cst_7 = arith.constant dense<0.000000e+00> : vector<16x3xf32>
    %26 = tpu.matmul %23, %19, %cst_7 {dimension_numbers = #tpu.dot_dimension_numbers<[1], [1], [0], [0], [0, 0, 1, 0], [], []>} : vector<16x4096xf32>, vector<3x4096xf32>, vector<16x3xf32> -> vector<16x3xf32>
    %27 = arith.addf %25, %26 : vector<16x3xf32>
    %c0_8 = arith.constant 0 : index
    %c0_9 = arith.constant 0 : index
    %c0_10 = arith.constant 0 : index
    %28 = vector.load %arg4[%c0_8, %c0_9, %c0_10] : memref<1x16x3xf32, #tpu.memory_space<vmem>>, vector<1x16x3xf32>
    %29 = vector.shape_cast %28 : vector<1x16x3xf32> to vector<16x3xf32>
    %30 = vector.shape_cast %27 : vector<16x3xf32> to vector<1x16x3xf32>
    tpu.vector_store %arg4[%c0_8, %c0_9, %c0_10], %30 {strides = array<i32>} : memref<1x16x3xf32, #tpu.memory_space<vmem>>, vector<1x16x3xf32>,
    %c0_11 = arith.constant 0 : index
    %c0_12 = arith.constant 0 : index
    %c0_13 = arith.constant 0 : index
    %31 = vector.load %arg5[%c0_11, %c0_12, %c0_13] : memref<1x3x1xf32, #tpu.memory_space<vmem>>, vector<1x3x1xf32>
    %32 = vector.shape_cast %31 : vector<1x3x1xf32> to vector<3x1xf32>
    %cst_14 = arith.constant dense<0.000000e+00> : vector<3xf32>
    %33 = vector.multi_reduction <add>, %19, %cst_14 [1] : vector<3x4096xf32> to vector<3xf32>
    %34 = vector.shape_cast %33 : vector<3xf32> to vector<3x1xf32>
    %35 = arith.addf %32, %34 : vector<3x1xf32>
    %c0_15 = arith.constant 0 : index
    %c0_16 = arith.constant 0 : index
    %c0_17 = arith.constant 0 : index
    %36 = vector.load %arg5[%c0_15, %c0_16, %c0_17] : memref<1x3x1xf32, #tpu.memory_space<vmem>>, vector<1x3x1xf32>
    %37 = vector.shape_cast %36 : vector<1x3x1xf32> to vector<3x1xf32>
    %38 = vector.shape_cast %35 : vector<3x1xf32> to vector<1x3x1xf32>
    tpu.vector_store %arg5[%c0_15, %c0_16, %c0_17], %38 {strides = array<i32>} : memref<1x3x1xf32, #tpu.memory_space<vmem>>, vector<1x3x1xf32>,
    %39 = vector.extract_strided_slice %17 {offsets = [0, 0], sizes = [1, 4096], strides = [1, 1]} : vector<3x4096xi1> to vector<1x4096xi1>
    %cst_18 = arith.constant 0xFF800000 : f32
    %40 = vector.shape_cast %39 : vector<1x4096xi1> to vector<1x4096xi1>
    %41 = vector.broadcast %40 : vector<1x4096xi1> to vector<16x4096xi1>
    %42 = vector.broadcast %cst_18 : f32 to vector<16x4096xf32>
    %43 = arith.select %41, %12, %42 : vector<16x4096xi1>, vector<16x4096xf32>
    %cst_19 = arith.constant dense<0xFF800000> : vector<16xf32>
    %44 = vector.multi_reduction <maximumf>, %43, %cst_19 [1] : vector<16x4096xf32> to vector<16xf32>
    %45 = vector.shape_cast %44 : vector<16xf32> to vector<16x1xf32>
    %46 = vector.extract_strided_slice %17 {offsets = [1, 0], sizes = [1, 4096], strides = [1, 1]} : vector<3x4096xi1> to vector<1x4096xi1>
    %cst_20 = arith.constant 0xFF800000 : f32
    %47 = vector.shape_cast %46 : vector<1x4096xi1> to vector<1x4096xi1>
    %48 = vector.broadcast %47 : vector<1x4096xi1> to vector<16x4096xi1>
    %49 = vector.broadcast %cst_20 : f32 to vector<16x4096xf32>
    %50 = arith.select %48, %12, %49 : vector<16x4096xi1>, vector<16x4096xf32>
    %cst_21 = arith.constant dense<0xFF800000> : vector<16xf32>
    %51 = vector.multi_reduction <maximumf>, %50, %cst_21 [1] : vector<16x4096xf32> to vector<16xf32>
    %52 = vector.shape_cast %51 : vector<16xf32> to vector<16x1xf32>
    %53 = vector.extract_strided_slice %17 {offsets = [2, 0], sizes = [1, 4096], strides = [1, 1]} : vector<3x4096xi1> to vector<1x4096xi1>
    %cst_22 = arith.constant 0xFF800000 : f32
    %54 = vector.shape_cast %53 : vector<1x4096xi1> to vector<1x4096xi1>
    %55 = vector.broadcast %54 : vector<1x4096xi1> to vector<16x4096xi1>
    %56 = vector.broadcast %cst_22 : f32 to vector<16x4096xf32>
    %57 = arith.select %55, %12, %56 : vector<16x4096xi1>, vector<16x4096xf32>
    %cst_23 = arith.constant dense<0xFF800000> : vector<16xf32>
    %58 = vector.multi_reduction <maximumf>, %57, %cst_23 [1] : vector<16x4096xf32> to vector<16xf32>
    %59 = vector.shape_cast %58 : vector<16xf32> to vector<16x1xf32>
    %c0_24 = arith.constant 0 : index
    %c0_25 = arith.constant 0 : index
    %c0_26 = arith.constant 0 : index
    %60 = vector.load %arg6[%c0_24, %c0_25, %c0_26] : memref<1x16x3xf32, #tpu.memory_space<vmem>>, vector<1x16x3xf32>
    %61 = vector.shape_cast %60 : vector<1x16x3xf32> to vector<16x3xf32>
    %62 = tpu.concatenate %45, %52, %59 in 1 : vector<16x1xf32>, vector<16x1xf32>, vector<16x1xf32> -> vector<16x3xf32>
    %63 = arith.maximumf %61, %62 : vector<16x3xf32>
    %c0_27 = arith.constant 0 : index
    %c0_28 = arith.constant 0 : index
    %c0_29 = arith.constant 0 : index
    %64 = vector.load %arg6[%c0_27, %c0_28, %c0_29] : memref<1x16x3xf32, #tpu.memory_space<vmem>>, vector<1x16x3xf32>
    %65 = vector.shape_cast %64 : vector<1x16x3xf32> to vector<16x3xf32>
    %66 = vector.shape_cast %63 : vector<16x3xf32> to vector<1x16x3xf32>
    tpu.vector_store %arg6[%c0_27, %c0_28, %c0_29], %66 {strides = array<i32>} : memref<1x16x3xf32, #tpu.memory_space<vmem>>, vector<1x16x3xf32>,
    return
  }
  func.func @transform_0(%arg0: i32, %arg1: i32) -> (i32, i32) {
    %c3_i32 = arith.constant 3 : i32
    %0 = arith.muli %arg0, %c3_i32 : i32
    %1 = arith.addi %0, %arg1 : i32
    %c2_i32 = arith.constant 2 : i32
    %2 = arith.minsi %1, %c2_i32 : i32
    %c0_i32 = arith.constant 0 : i32
    %c0_i32_0 = arith.constant 0 : i32
    return %c0_i32, %2 : i32, i32
  }
  func.func @transform_1(%arg0: i32, %arg1: i32) -> (i32, i32) {
    %c3_i32 = arith.constant 3 : i32
    %0 = arith.muli %arg0, %c3_i32 : i32
    %1 = arith.addi %0, %arg1 : i32
    %c2_i32 = arith.constant 2 : i32
    %2 = arith.minsi %1, %c2_i32 : i32
    %c0_i32 = arith.constant 0 : i32
    %c0_i32_0 = arith.constant 0 : i32
    return %c0_i32, %2 : i32, i32
  }
  func.func @transform_2(%arg0: i32, %arg1: i32) -> (i32, i32, i32) {
    %c0_i32 = arith.constant 0 : i32
    %c0_i32_0 = arith.constant 0 : i32
    %c0_i32_1 = arith.constant 0 : i32
    return %arg0, %c0_i32, %c0_i32_0 : i32, i32, i32
  }
  func.func @transform_3(%arg0: i32, %arg1: i32) -> (i32, i32, i32) {
    %c0_i32 = arith.constant 0 : i32
    %c0_i32_0 = arith.constant 0 : i32
    %c0_i32_1 = arith.constant 0 : i32
    return %arg0, %c0_i32, %c0_i32_0 : i32, i32, i32
  }
  func.func @transform_4(%arg0: i32, %arg1: i32) -> (i32, i32, i32) {
    %c0_i32 = arith.constant 0 : i32
    %c0_i32_0 = arith.constant 0 : i32
    %c0_i32_1 = arith.constant 0 : i32
    return %arg0, %c0_i32, %c0_i32_0 : i32, i32, i32
  }
}

module attributes {stable_mosaic.version = 11 : i64} {
  func.func @_apply_kernel(%arg0: i32, %arg1: memref<1x4096xi32, #tpu.memory_space<vmem>>, %arg2: memref<16x4096xf32, #tpu.memory_space<vmem>>, %arg3: memref<16x3xf32, #tpu.memory_space<vmem>>, %arg4: memref<16x4096xf32, #tpu.memory_space<vmem>>) attributes {dimension_semantics = [#tpu.dimension_semantics<parallel>], iteration_bounds = array<i64: 3>, scalar_prefetch = 0 : i64, scratch_operands = 0 : i64, tpu.core_type = #tpu.core_type<tc>, window_params = [{transform_indices = @transform_0, window_bounds = array<i64: 1, 4096>}, {transform_indices = @transform_1, window_bounds = array<i64: 16, 4096>}, {pipeline_mode = #tpu.pipeline_mode<synchronous>, transform_indices = @transform_2, window_bounds = array<i64: 16, 3>}, {transform_indices = @transform_3, window_bounds = array<i64: 16, 4096>}]} {
    %c0 = arith.constant 0 : index
    %c0_0 = arith.constant 0 : index
    %0 = vector.load %arg1[%c0, %c0_0] : memref<1x4096xi32, #tpu.memory_space<vmem>>, vector<1x4096xi32>
    %c0_1 = arith.constant 0 : index
    %c0_2 = arith.constant 0 : index
    %1 = vector.load %arg3[%c0_1, %c0_2] : memref<16x3xf32, #tpu.memory_space<vmem>>, vector<16x3xf32>
    %2 = tpu.iota {dimensions = array<i32: 0>} : vector<3x4096xi32>
    %3 = vector.broadcast %0 : vector<1x4096xi32> to vector<3x4096xi32>
    %4 = arith.cmpi eq, %3, %2 : vector<3x4096xi32>
    %5 = arith.extui %4 : vector<3x4096xi1> to vector<3x4096xi32>
    %6 = arith.sitofp %5 : vector<3x4096xi32> to vector<3x4096xf32>
    %cst = arith.constant dense<0.000000e+00> : vector<16x4096xf32>
    %7 = tpu.matmul %1, %6, %cst {dimension_numbers = #tpu.dot_dimension_numbers<[1], [0], [0], [1], [0, 0, 1, 1], [], []>} : vector<16x3xf32>, vector<3x4096xf32>, vector<16x4096xf32> -> vector<16x4096xf32>
    %c0_3 = arith.constant 0 : index
    %c0_4 = arith.constant 0 : index
    %8 = vector.load %arg2[%c0_3, %c0_4] : memref<16x4096xf32, #tpu.memory_space<vmem>>, vector<16x4096xf32>
    %9 = arith.mulf %8, %7 : vector<16x4096xf32>
    %c0_5 = arith.constant 0 : index
    %c0_6 = arith.constant 0 : index
    %10 = vector.load %arg4[%c0_5, %c0_6] : memref<16x4096xf32, #tpu.memory_space<vmem>>, vector<16x4096xf32>
    tpu.vector_store %arg4[%c0_5, %c0_6], %9 {strides = array<i32>} : memref<16x4096xf32, #tpu.memory_space<vmem>>, vector<16x4096xf32>,
    return
  }
  func.func @transform_0(%arg0: i32) -> (i32, i32) {
    %c0_i32 = arith.constant 0 : i32
    %c0_i32_0 = arith.constant 0 : i32
    return %c0_i32, %arg0 : i32, i32
  }
  func.func @transform_1(%arg0: i32) -> (i32, i32) {
    %c0_i32 = arith.constant 0 : i32
    %c0_i32_0 = arith.constant 0 : i32
    return %c0_i32, %arg0 : i32, i32
  }
  func.func @transform_2(%arg0: i32) -> (i32, i32) {
    %c0_i32 = arith.constant 0 : i32
    %c0_i32_0 = arith.constant 0 : i32
    %c0_i32_1 = arith.constant 0 : i32
    return %c0_i32, %c0_i32_0 : i32, i32
  }
  func.func @transform_3(%arg0: i32) -> (i32, i32) {
    %c0_i32 = arith.constant 0 : i32
    %c0_i32_0 = arith.constant 0 : i32
    return %c0_i32, %arg0 : i32, i32
  }
}

</mosaic_0001>

<llo_original>
// kernel: channel_attention_3d.3
$region0: #{channel_attention_3d.3}
  #allocation0 [shape = 'u32[]', space=smem, size = 0x4, offset = 0x4, fixed_abs, tag = 'smem constant byte address 0x4 - core index']
  #allocation1 [shape = 'u32[144,128]{1,0:T(1,128)}', space=vmem, size = 0x12000, scoped, tag = 'internal scratch']
  %s0 = inlined_call_operand.vmem [shape: s32[1,9000], index: 0, kind: input, shape index: {}]
  %s1 = inlined_call_operand.vmem [shape: f32[16,9000], index: 1, kind: input, shape index: {}]
  %s2 = inlined_call_operand.vmem [shape: f32[16,3], index: 2, kind: input, shape index: {}]
  %s3 = inlined_call_operand.hbm [shape: f32[16,9000], index: 3, kind: output, shape index: {}]
  %s4 = sld [smem:[#allocation0]]
  $region111: #{channel_attention_3d.3} parent=0
    _
  %s6 = ssub.s32 1, %s4
  %s7 = scalar_select 0, %s6, %s4
  $region1: #{channel_attention_3d.3} parent=0
    #allocation2 [shape = 'u8[524288]{0}', space=vmem, size = 0x80000, scoped, tag = 'input window, operand 1']
    #allocation3 [shape = 'u8[524288]{0}', space=vmem, size = 0x80000, scoped, tag = 'output window, operand 0']
    #allocation4 [shape = 's32[2]{0}', space=sflag, size = 0x8, scoped, tag = 'scoped memory for channel_attention_3d.3']
    %8 = vsyncpa [#allocation4], 0
    %s9 = scalar_lea.sflag [#allocation4], 1
    %10 = vsyncpa %s9, 0
    loop: start=0, step=1, limit=5
    $region2: #{channel_attention_3d.3} parent=1 // loop_pre_header
      _
    $region3: #{channel_attention_3d.3} parent=1 // loop_header
      %s12 = sphi 0, %s16
      %p13 = scmp.ge.s32.totalorder %s12, 5
      %s22 = sphi 0, %s24
      %s25 = sphi 0, %s22
      %s26 = sphi 0, %s25
      %s42 = sphi 0, %s26
      %s48 = sphi 0, %s50
      %s51 = sphi 0, %s48
      %s52 = sphi 0, %s51
      %s68 = sphi 0, %s52
      %s72 = sphi 0, %s72
      %s74 = sphi 0, %s72
      %s75 = sphi 0, %s74
      %s89 = sphi 0, %s75
      %s95 = sphi 0, %s97
      %s98 = sphi 0, %s95
      %s99 = sphi 0, %s98
      %s115 = sphi 0, %s99
    $region4: #{channel_attention_3d.3} parent=1 // loop_header_branch
      %15 = sbr.rel (%p13) target = $region8
    $region5: #{channel_attention_3d.3} parent=1 // loop_body
      %s17 = ssub.s32 %s12, 1
      %s18 = ssub.s32 %s12, 2
      %s19 = sadd.s32 %s12, 1
      %s20 = ssub.s32 %s12, %s19
      %p21 = scmp.eq.s32.totalorder %s20, 0
      %s23 = sadd.s32 %s22, 1
      %s24 = scalar_select %p21, %s22, %s23
      %p27 = pneg %p21
      %p28 = scmp.eq.s32.totalorder %s12, 2
      %p29 = por %p27, %p28
      %p30 = scmp.ne.s32.totalorder %s22, %s25
      %p31 = scmp.eq.s32.totalorder %s12, 0
      %p32 = por %p30, %p31
      %p33 = scmp.ne.s32.totalorder %s22, %s25
      %p34 = scmp.eq.s32.totalorder %s17, 2
      %p35 = por %p33, %p34
      %p36 = scmp.ne.s32.totalorder %s25, %s26
      %p37 = scmp.eq.s32.totalorder %s17, 0
      %p38 = por %p36, %p37
      %p39 = scmp.ne.s32.totalorder %s25, %s26
      %p40 = scmp.eq.s32.totalorder %s18, 2
      %p41 = por %p39, %p40
      %p43 = scmp.ne.s32.totalorder %s26, %s42
      %p44 = scmp.eq.s32.totalorder %s18, 0
      %p45 = por %p43, %p44
      %s46 = ssub.s32 %s12, %s19
      %p47 = scmp.eq.s32.totalorder %s46, 0
      %s49 = sadd.s32 %s48, 1
      %s50 = scalar_select %p47, %s48, %s49
      %p53 = pneg %p47
      %p54 = scmp.eq.s32.totalorder %s12, 2
      %p55 = por %p53, %p54
      %p56 = scmp.ne.s32.totalorder %s48, %s51
      %p57 = scmp.eq.s32.totalorder %s12, 0
      %p58 = por %p56, %p57
      %p59 = scmp.ne.s32.totalorder %s48, %s51
      %p60 = scmp.eq.s32.totalorder %s17, 2
      %p61 = por %p59, %p60
      %p62 = scmp.ne.s32.totalorder %s51, %s52
      %p63 = scmp.eq.s32.totalorder %s17, 0
      %p64 = por %p62, %p63
      %p65 = scmp.ne.s32.totalorder %s51, %s52
      %p66 = scmp.eq.s32.totalorder %s18, 2
      %p67 = por %p65, %p66
      %p69 = scmp.ne.s32.totalorder %s52, %s68
      %p70 = scmp.eq.s32.totalorder %s18, 0
      %p71 = por %p69, %p70
      %s73 = sadd.s32 %s72, 1
      %p76 = scmp.eq.s32.totalorder %s12, 2
      %p77 = scmp.ne.s32.totalorder %s72, %s74
      %p78 = scmp.eq.s32.totalorder %s12, 0
      %p79 = por %p77, %p78
      %p80 = scmp.ne.s32.totalorder %s72, %s74
      %p81 = scmp.eq.s32.totalorder %s17, 2
      %p82 = por %p80, %p81
      %p83 = scmp.ne.s32.totalorder %s74, %s75
      %p84 = scmp.eq.s32.totalorder %s17, 0
      %p85 = por %p83, %p84
      %p86 = scmp.ne.s32.totalorder %s74, %s75
      %p87 = scmp.eq.s32.totalorder %s18, 2
      %p88 = por %p86, %p87
      %p90 = scmp.ne.s32.totalorder %s75, %s89
      %p91 = scmp.eq.s32.totalorder %s18, 0
      %p92 = por %p90, %p91
      %s93 = ssub.s32 %s12, %s19
      %p94 = scmp.eq.s32.totalorder %s93, 0
      %s96 = sadd.s32 %s95, 1
      %s97 = scalar_select %p94, %s95, %s96
      %p100 = pneg %p94
      %p101 = scmp.eq.s32.totalorder %s12, 2
      %p102 = por %p100, %p101
      %p103 = scmp.ne.s32.totalorder %s95, %s98
      %p104 = scmp.eq.s32.totalorder %s12, 0
      %p105 = por %p103, %p104
      %p106 = scmp.ne.s32.totalorder %s95, %s98
      %p107 = scmp.eq.s32.totalorder %s17, 2
      %p108 = por %p106, %p107
      %p109 = scmp.ne.s32.totalorder %s98, %s99
      %p110 = scmp.eq.s32.totalorder %s17, 0
      %p111 = por %p109, %p110
      %p112 = scmp.ne.s32.totalorder %s98, %s99
      %p113 = scmp.eq.s32.totalorder %s18, 2
      %p114 = por %p112, %p113
      %p116 = scmp.ne.s32.totalorder %s99, %s115
      %p117 = scmp.eq.s32.totalorder %s18, 0
      %p118 = por %p116, %p117
      %p119 = scmp.le.s32.totalorder 1, %s12
      %p120 = scmp.lt.s32.totalorder %s12, 4
      %p121 = pnand %p119, %p120
      %p122 = pneg %p121
      // Predicated region
      $region9: #{channel_attention_3d.3} parent=5 // pred_check
        _
      $region10: #{channel_attention_3d.3} parent=5 // pred_check_branch
        %124 = sbr.rel (%p121) target = $region12
      $region11: #{channel_attention_3d.3} parent=5 // pred_region
        %s125 = ssub.s32 %s12, 1
        // Predicated region
        $region13: #{channel_attention_3d.3} parent=11 // pred_check
          %p126 = pneg %p85
        $region14: #{channel_attention_3d.3} parent=11 // pred_check_branch
          %128 = sbr.rel (%p126) target = $region16
        $region15: #{channel_attention_3d.3} parent=11 // pred_region
          _
        $region16: #{channel_attention_3d.3} parent=11 // pred_fallthru
          _
      $region12: #{channel_attention_3d.3} parent=5 // pred_fallthru
        _
      %p129 = scmp.lt.s32.totalorder %s12, 3
      // Predicated region
      $region17: #{channel_attention_3d.3} parent=5 // pred_check
        %p130 = pneg %p129
      $region18: #{channel_attention_3d.3} parent=5 // pred_check_branch
        %132 = sbr.rel (%p130) target = $region20
      $region19: #{channel_attention_3d.3} parent=5 // pred_region
        // Predicated region
        $region21: #{channel_attention_3d.3} parent=19 // pred_check
          %p133 = pneg %p32
        $region22: #{channel_attention_3d.3} parent=19 // pred_check_branch
          %135 = sbr.rel (%p133) target = $region24
        $region23: #{channel_attention_3d.3} parent=19 // pred_region
          %s136 = smul.u32 32, %s12
          %s137 = ssub.s32 71, %s136
          %p138 = scmp.lt.s32.totalorder %s137, 32
          %s139 = scalar_select %p138, %s137, 32
          %s140 = smul.u32 16, %s139
          %p141 = scmp.lt.s32.totalorder %s136, 70
          %s142 = scalar_select %p141, %s136, 70
          %s143 = scalar_lea.vmem %s0, %s142
          %s144 = smul.u32 32, %s12
          %s145 = ssub.s32 71, %s144
          %p146 = scmp.lt.s32.totalorder %s145, 32
          %s147 = scalar_select %p146, %s145, 32
          %s148 = smul.u32 16, %s147
        $region24: #{channel_attention_3d.3} parent=19 // pred_fallthru
          _
        // Predicated region
        $region25: #{channel_attention_3d.3} parent=19 // pred_check
          %p149 = pneg %p58
        $region26: #{channel_attention_3d.3} parent=19 // pred_check_branch
          %151 = sbr.rel (%p149) target = $region28
        $region27: #{channel_attention_3d.3} parent=19 // pred_region
          %s152 = sand.u32 %s48, 1
          %s153 = sand.u32 %s48, 1
          %s154 = smul.addr %s153, 512
          %s155 = scalar_lea.vmem [#allocation2], %s154
          %s156 = smul.u32 32, %s12
          %s157 = ssub.s32 71, %s156
          %p158 = scmp.lt.s32.totalorder %s157, 32
          %s159 = scalar_select %p158, %s157, 32
          %s160 = smul.u32 256, %s159
          %p161 = scmp.ne.s32.totalorder 0, %s160
          %s162 = smul.addr %s156, 8
          %s163 = scalar_lea.vmem %s1, %s162
          %s164 = smul.u32 %s159, 8
          // Predicated region
          $region29: #{channel_attention_3d.3} parent=27 // pred_check
            %p165 = pneg %p161
          $region30: #{channel_attention_3d.3} parent=27 // pred_check_branch
            %167 = sbr.rel (%p165) target = $region32
          $region31: #{channel_attention_3d.3} parent=27 // pred_region
            %p168 = scmp.lt.u32.totalorder %s164, 8
            %p169 = pneg %p168
            // Predicated region
            $region33: #{channel_attention_3d.3} parent=31 // pred_check
              _
            $region34: #{channel_attention_3d.3} parent=31 // pred_check_branch
              %171 = sbr.rel (%p168) target = $region36
            $region35: #{channel_attention_3d.3} parent=31 // pred_region
              %s188 = sand.u32 %s164, 7
              %p189 = scmp.eq.s32.totalorder %s188, 0
              // Predicated region
              $region48: #{channel_attention_3d.3} parent=35 // pred_check
                %p190 = pneg %p189
              $region49: #{channel_attention_3d.3} parent=35 // pred_check_branch
                %192 = sbr.rel (%p190) target = $region51
              $region50: #{channel_attention_3d.3} parent=35 // pred_region
                %s193 = sshrl.u32 %s164, 3
                %s194 = sshrl.u32 %s193, 5
                // While loop
                $region52: #{channel_attention_3d.3} parent=50 // loop_pre_header
                  _
                $region53: #{channel_attention_3d.3} parent=50 // loop_header
                  %s198 = sphi 0, %s200
                  %p199 = scmp.ge.s32.totalorder %s198, %s194
                  %s203 = sphi 0, %s336
                  %s204 = sphi %s163, %s339
                  %s205 = sphi %s155, %s340
                $region54: #{channel_attention_3d.3} parent=50 // loop_header_branch
                  %202 = sbr.rel (%p199) target = $region58
                $region55: #{channel_attention_3d.3} parent=50 // loop_body
                  %v206 = vld [vmem:[%s204] sm:$0xff]
                  %207 = vst [vmem:[%s205] sm:$0xff] %v206
                  %v208 = vld [vmem:[%s204 + $0x8] sm:$0xff]
                  %209 = vst [vmem:[%s205 + $0x8] sm:$0xff] %v208
                  %v210 = vld [vmem:[%s204 + $0x10] sm:$0xff]
                  %211 = vst [vmem:[%s205 + $0x10] sm:$0xff] %v210
                  %v212 = vld [vmem:[%s204 + $0x18] sm:$0xff]
                  %213 = vst [vmem:[%s205 + $0x18] sm:$0xff] %v212
                  %v214 = vld [vmem:[%s204 + $0x20] sm:$0xff]
                  %215 = vst [vmem:[%s205 + $0x20] sm:$0xff] %v214
                  %v216 = vld [vmem:[%s204 + $0x28] sm:$0xff]
                  %217 = vst [vmem:[%s205 + $0x28] sm:$0xff] %v216
                  %v218 = vld [vmem:[%s204 + $0x30] sm:$0xff]
                  %219 = vst [vmem:[%s205 + $0x30] sm:$0xff] %v218
                  %v220 = vld [vmem:[%s204 + $0x38] sm:$0xff]
                  %221 = vst [vmem:[%s205 + $0x38] sm:$0xff] %v220
                  %v222 = vld [vmem:[%s204 + $0x40] sm:$0xff]
                  %223 = vst [vmem:[%s205 + $0x40] sm:$0xff] %v222
                  %v224 = vld [vmem:[%s204 + $0x48] sm:$0xff]
                  %225 = vst [vmem:[%s205 + $0x48] sm:$0xff] %v224
                  %v226 = vld [vmem:[%s204 + $0x50] sm:$0xff]
                  %227 = vst [vmem:[%s205 + $0x50] sm:$0xff] %v226
                  %v228 = vld [vmem:[%s204 + $0x58] sm:$0xff]
                  %229 = vst [vmem:[%s205 + $0x58] sm:$0xff] %v228
                  %v230 = vld [vmem:[%s204 + $0x60] sm:$0xff]
                  %231 = vst [vmem:[%s205 + $0x60] sm:$0xff] %v230
                  %v232 = vld [vmem:[%s204 + $0x68] sm:$0xff]
                  %233 = vst [vmem:[%s205 + $0x68] sm:$0xff] %v232
                  %v234 = vld [vmem:[%s204 + $0x70] sm:$0xff]
                  %235 = vst [vmem:[%s205 + $0x70] sm:$0xff] %v234
                  %v236 = vld [vmem:[%s204 + $0x78] sm:$0xff]
                  %237 = vst [vmem:[%s205 + $0x78] sm:$0xff] %v236
                  %v238 = vld [vmem:[%s204 + $0x80] sm:$0xff]
                  %239 = vst [vmem:[%s205 + $0x80] sm:$0xff] %v238
                  %v240 = vld [vmem:[%s204 + $0x88] sm:$0xff]
                  %241 = vst [vmem:[%s205 + $0x88] sm:$0xff] %v240
                  %v242 = vld [vmem:[%s204 + $0x90] sm:$0xff]
                  %243 = vst [vmem:[%s205 + $0x90] sm:$0xff] %v242
                  %v244 = vld [vmem:[%s204 + $0x98] sm:$0xff]
                  %245 = vst [vmem:[%s205 + $0x98] sm:$0xff] %v244
                  %v246 = vld [vmem:[%s204 + $0xa0] sm:$0xff]
                  %247 = vst [vmem:[%s205 + $0xa0] sm:$0xff] %v246
                  %v248 = vld [vmem:[%s204 + $0xa8] sm:$0xff]
                  %249 = vst [vmem:[%s205 + $0xa8] sm:$0xff] %v248
                  %v250 = vld [vmem:[%s204 + $0xb0] sm:$0xff]
                  %251 = vst [vmem:[%s205 + $0xb0] sm:$0xff] %v250
                  %v252 = vld [vmem:[%s204 + $0xb8] sm:$0xff]
                  %253 = vst [vmem:[%s205 + $0xb8] sm:$0xff] %v252
                  %v254 = vld [vmem:[%s204 + $0xc0] sm:$0xff]
                  %255 = vst [vmem:[%s205 + $0xc0] sm:$0xff] %v254
                  %v256 = vld [vmem:[%s204 + $0xc8] sm:$0xff]
                  %257 = vst [vmem:[%s205 + $0xc8] sm:$0xff] %v256
                  %v258 = vld [vmem:[%s204 + $0xd0] sm:$0xff]
                  %259 = vst [vmem:[%s205 + $0xd0] sm:$0xff] %v258
                  %v260 = vld [vmem:[%s204 + $0xd8] sm:$0xff]
                  %261 = vst [vmem:[%s205 + $0xd8] sm:$0xff] %v260
                  %v262 = vld [vmem:[%s204 + $0xe0] sm:$0xff]
                  %263 = vst [vmem:[%s205 + $0xe0] sm:$0xff] %v262
                  %v264 = vld [vmem:[%s204 + $0xe8] sm:$0xff]
                  %265 = vst [vmem:[%s205 + $0xe8] sm:$0xff] %v264
                  %v266 = vld [vmem:[%s204 + $0xf0] sm:$0xff]
                  %267 = vst [vmem:[%s205 + $0xf0] sm:$0xff] %v266
                  %v268 = vld [vmem:[%s204 + $0xf8] sm:$0xff]
                  %269 = vst [vmem:[%s205 + $0xf8] sm:$0xff] %v268
                  %v270 = vld [vmem:[%s204 + $0x238] sm:$0xff]
                  %271 = vst [vmem:[%s205 + $0x100] sm:$0xff] %v270
                  %v272 = vld [vmem:[%s204 + $0x240] sm:$0xff]
                  %273 = vst [vmem:[%s205 + $0x108] sm:$0xff] %v272
                  %v274 = vld [vmem:[%s204 + $0x248] sm:$0xff]
                  %275 = vst [vmem:[%s205 + $0x110] sm:$0xff] %v274
                  %v276 = vld [vmem:[%s204 + $0x250] sm:$0xff]
                  %277 = vst [vmem:[%s205 + $0x118] sm:$0xff] %v276
                  %v278 = vld [vmem:[%s204 + $0x258] sm:$0xff]
                  %279 = vst [vmem:[%s205 + $0x120] sm:$0xff] %v278
                  %v280 = vld [vmem:[%s204 + $0x260] sm:$0xff]
                  %281 = vst [vmem:[%s205 + $0x128] sm:$0xff] %v280
                  %v282 = vld [vmem:[%s204 + $0x268] sm:$0xff]
                  %283 = vst [vmem:[%s205 + $0x130] sm:$0xff] %v282
                  %v284 = vld [vmem:[%s204 + $0x270] sm:$0xff]
                  %285 = vst [vmem:[%s205 + $0x138] sm:$0xff] %v284
                  %v286 = vld [vmem:[%s204 + $0x278] sm:$0xff]
                  %287 = vst [vmem:[%s205 + $0x140] sm:$0xff] %v286
                  %v288 = vld [vmem:[%s204 + $0x280] sm:$0xff]
                  %289 = vst [vmem:[%s205 + $0x148] sm:$0xff] %v288
                  %v290 = vld [vmem:[%s204 + $0x288] sm:$0xff]
                  %291 = vst [vmem:[%s205 + $0x150] sm:$0xff] %v290
                  %v292 = vld [vmem:[%s204 + $0x290] sm:$0xff]
                  %293 = vst [vmem:[%s205 + $0x158] sm:$0xff] %v292
                  %v294 = vld [vmem:[%s204 + $0x298] sm:$0xff]
                  %295 = vst [vmem:[%s205 + $0x160] sm:$0xff] %v294
                  %v296 = vld [vmem:[%s204 + $0x2a0] sm:$0xff]
                  %297 = vst [vmem:[%s205 + $0x168] sm:$0xff] %v296
                  %v298 = vld [vmem:[%s204 + $0x2a8] sm:$0xff]
                  %299 = vst [vmem:[%s205 + $0x170] sm:$0xff] %v298
                  %v300 = vld [vmem:[%s204 + $0x2b0] sm:$0xff]
                  %301 = vst [vmem:[%s205 + $0x178] sm:$0xff] %v300
                  %v302 = vld [vmem:[%s204 + $0x2b8] sm:$0xff]
                  %303 = vst [vmem:[%s205 + $0x180] sm:$0xff] %v302
                  %v304 = vld [vmem:[%s204 + $0x2c0] sm:$0xff]
                  %305 = vst [vmem:[%s205 + $0x188] sm:$0xff] %v304
                  %v306 = vld [vmem:[%s204 + $0x2c8] sm:$0xff]
                  %307 = vst [vmem:[%s205 + $0x190] sm:$0xff] %v306
                  %v308 = vld [vmem:[%s204 + $0x2d0] sm:$0xff]
                  %309 = vst [vmem:[%s205 + $0x198] sm:$0xff] %v308
                  %v310 = vld [vmem:[%s204 + $0x2d8] sm:$0xff]
                  %311 = vst [vmem:[%s205 + $0x1a0] sm:$0xff] %v310
                  %v312 = vld [vmem:[%s204 + $0x2e0] sm:$0xff]
                  %313 = vst [vmem:[%s205 + $0x1a8] sm:$0xff] %v312
                  %v314 = vld [vmem:[%s204 + $0x2e8] sm:$0xff]
                  %315 = vst [vmem:[%s205 + $0x1b0] sm:$0xff] %v314
                  %v316 = vld [vmem:[%s204 + $0x2f0] sm:$0xff]
                  %317 = vst [vmem:[%s205 + $0x1b8] sm:$0xff] %v316
                  %v318 = vld [vmem:[%s204 + $0x2f8] sm:$0xff]
                  %319 = vst [vmem:[%s205 + $0x1c0] sm:$0xff] %v318
                  %v320 = vld [vmem:[%s204 + $0x300] sm:$0xff]
                  %321 = vst [vmem:[%s205 + $0x1c8] sm:$0xff] %v320
                  %v322 = vld [vmem:[%s204 + $0x308] sm:$0xff]
                  %323 = vst [vmem:[%s205 + $0x1d0] sm:$0xff] %v322
                  %v324 = vld [vmem:[%s204 + $0x310] sm:$0xff]
                  %325 = vst [vmem:[%s205 + $0x1d8] sm:$0xff] %v324
                  %v326 = vld [vmem:[%s204 + $0x318] sm:$0xff]
                  %327 = vst [vmem:[%s205 + $0x1e0] sm:$0xff] %v326
                  %v328 = vld [vmem:[%s204 + $0x320] sm:$0xff]
                  %329 = vst [vmem:[%s205 + $0x1e8] sm:$0xff] %v328
                  %v330 = vld [vmem:[%s204 + $0x328] sm:$0xff]
                  %331 = vst [vmem:[%s205 + $0x1f0] sm:$0xff] %v330
                  %v332 = vld [vmem:[%s204 + $0x330] sm:$0xff]
                  %333 = vst [vmem:[%s205 + $0x1f8] sm:$0xff] %v332
                  %s334 = sadd.s32 1, %s203
                  %p335 = scmp.ge.s32.totalorder %s334, %s194
                  %s336 = scalar_select %p335, 0, %s334
                  %s337 = smul.u32 %s336, 256
                  %s338 = smul.u32 %s336, 256
                  %s339 = scalar_lea.vmem %s163, %s337
                  %s340 = scalar_lea.vmem %s155, %s338 [#allocation2]
                $region56: #{channel_attention_3d.3} parent=50 // loop_footer
                  %s200 = sadd.s32 %s198, 1
                $region57: #{channel_attention_3d.3} parent=50 // loop_footer_branch
                  %197 = sbr.rel target = $region53
                $region58: #{channel_attention_3d.3} parent=50 // loop_exit
                  _
                %s341 = sshrl.u32 %s193, 5
                %s342 = sand.u32 %s193, 31
                %s343 = smul.u32 %s341, 32
                %s344 = smul.u32 128, %s343
                %s345 = sshra.s32 %s344, 4
                %s346 = scalar_lea.vmem %s163, %s345
                %s347 = smul.u32 128, %s343
                %s348 = sshra.s32 %s347, 4
                %s349 = scalar_lea.vmem %s155, %s348 [#allocation2]
                // While loop
                $region59: #{channel_attention_3d.3} parent=50 // loop_pre_header
                  _
                $region60: #{channel_attention_3d.3} parent=50 // loop_header
                  %s353 = sphi 0, %s355
                  %p354 = scmp.ge.s32.totalorder %s353, %s342
                  %s358 = sphi 0, %s367
                  %s359 = sphi %s346, %s370
                  %s360 = sphi %s349, %s371
                $region61: #{channel_attention_3d.3} parent=50 // loop_header_branch
                  %357 = sbr.rel (%p354) target = $region65
                $region62: #{channel_attention_3d.3} parent=50 // loop_body
                  %v361 = vld [vmem:[%s359] sm:$0xff]
                  %362 = vst [vmem:[%s360] sm:$0xff] %v361
                  %v363 = vld [vmem:[%s359 + $0x238] sm:$0xff]
                  %364 = vst [vmem:[%s360 + $0x100] sm:$0xff] %v363
                  %s365 = sadd.s32 1, %s358
                  %p366 = scmp.ge.s32.totalorder %s365, %s342
                  %s367 = scalar_select %p366, 0, %s365
                  %s368 = smul.u32 %s367, 8
                  %s369 = smul.u32 %s367, 8
                  %s370 = scalar_lea.vmem %s346, %s368
                  %s371 = scalar_lea.vmem %s349, %s369 [#allocation2]
                $region63: #{channel_attention_3d.3} parent=50 // loop_footer
                  %s355 = sadd.s32 %s353, 1
                $region64: #{channel_attention_3d.3} parent=50 // loop_footer_branch
                  %352 = sbr.rel target = $region60
                $region65: #{channel_attention_3d.3} parent=50 // loop_exit
                  _
              $region51: #{channel_attention_3d.3} parent=35 // pred_fallthru
                _
              %p372 = pneg %p189
              // Predicated region
              $region66: #{channel_attention_3d.3} parent=35 // pred_check
                _
              $region67: #{channel_attention_3d.3} parent=35 // pred_check_branch
                %374 = sbr.rel (%p189) target = $region69
              $region68: #{channel_attention_3d.3} parent=35 // pred_region
                %s375 = sand.u32 %s164, 7
                %s376 = ssub.s32 %s164, %s375
                %s377 = scalar_lea.vmem %s163, %s376
                %s378 = ssub.s32 %s164, %s375
                %s379 = scalar_lea.vmem %s155, %s378 [#allocation2]
                %s380 = sshrl.u32 %s164, 3
                %s381 = sshrl.u32 %s380, 5
                // While loop
                $region70: #{channel_attention_3d.3} parent=68 // loop_pre_header
                  _
                $region71: #{channel_attention_3d.3} parent=68 // loop_header
                  %s385 = sphi 0, %s387
                  %p386 = scmp.ge.s32.totalorder %s385, %s381
                  %s390 = sphi 0, %s523
                  %s391 = sphi %s163, %s526
                  %s392 = sphi %s155, %s527
                $region72: #{channel_attention_3d.3} parent=68 // loop_header_branch
                  %389 = sbr.rel (%p386) target = $region76
                $region73: #{channel_attention_3d.3} parent=68 // loop_body
                  %v393 = vld [vmem:[%s391] sm:$0xff]
                  %394 = vst [vmem:[%s392] sm:$0xff] %v393
                  %v395 = vld [vmem:[%s391 + $0x8] sm:$0xff]
                  %396 = vst [vmem:[%s392 + $0x8] sm:$0xff] %v395
                  %v397 = vld [vmem:[%s391 + $0x10] sm:$0xff]
                  %398 = vst [vmem:[%s392 + $0x10] sm:$0xff] %v397
                  %v399 = vld [vmem:[%s391 + $0x18] sm:$0xff]
                  %400 = vst [vmem:[%s392 + $0x18] sm:$0xff] %v399
                  %v401 = vld [vmem:[%s391 + $0x20] sm:$0xff]
                  %402 = vst [vmem:[%s392 + $0x20] sm:$0xff] %v401
                  %v403 = vld [vmem:[%s391 + $0x28] sm:$0xff]
                  %404 = vst [vmem:[%s392 + $0x28] sm:$0xff] %v403
                  %v405 = vld [vmem:[%s391 + $0x30] sm:$0xff]
                  %406 = vst [vmem:[%s392 + $0x30] sm:$0xff] %v405
                  %v407 = vld [vmem:[%s391 + $0x38] sm:$0xff]
                  %408 = vst [vmem:[%s392 + $0x38] sm:$0xff] %v407
                  %v409 = vld [vmem:[%s391 + $0x40] sm:$0xff]
                  %410 = vst [vmem:[%s392 + $0x40] sm:$0xff] %v409
                  %v411 = vld [vmem:[%s391 + $0x48] sm:$0xff]
                  %412 = vst [vmem:[%s392 + $0x48] sm:$0xff] %v411
                  %v413 = vld [vmem:[%s391 + $0x50] sm:$0xff]
                  %414 = vst [vmem:[%s392 + $0x50] sm:$0xff] %v413
                  %v415 = vld [vmem:[%s391 + $0x58] sm:$0xff]
                  %416 = vst [vmem:[%s392 + $0x58] sm:$0xff] %v415
                  %v417 = vld [vmem:[%s391 + $0x60] sm:$0xff]
                  %418 = vst [vmem:[%s392 + $0x60] sm:$0xff] %v417
                  %v419 = vld [vmem:[%s391 + $0x68] sm:$0xff]
                  %420 = vst [vmem:[%s392 + $0x68] sm:$0xff] %v419
                  %v421 = vld [vmem:[%s391 + $0x70] sm:$0xff]
                  %422 = vst [vmem:[%s392 + $0x70] sm:$0xff] %v421
                  %v423 = vld [vmem:[%s391 + $0x78] sm:$0xff]
                  %424 = vst [vmem:[%s392 + $0x78] sm:$0xff] %v423
                  %v425 = vld [vmem:[%s391 + $0x80] sm:$0xff]
                  %426 = vst [vmem:[%s392 + $0x80] sm:$0xff] %v425
                  %v427 = vld [vmem:[%s391 + $0x88] sm:$0xff]
                  %428 = vst [vmem:[%s392 + $0x88] sm:$0xff] %v427
                  %v429 = vld [vmem:[%s391 + $0x90] sm:$0xff]
                  %430 = vst [vmem:[%s392 + $0x90] sm:$0xff] %v429
                  %v431 = vld [vmem:[%s391 + $0x98] sm:$0xff]
                  %432 = vst [vmem:[%s392 + $0x98] sm:$0xff] %v431
                  %v433 = vld [vmem:[%s391 + $0xa0] sm:$0xff]
                  %434 = vst [vmem:[%s392 + $0xa0] sm:$0xff] %v433
                  %v435 = vld [vmem:[%s391 + $0xa8] sm:$0xff]
                  %436 = vst [vmem:[%s392 + $0xa8] sm:$0xff] %v435
                  %v437 = vld [vmem:[%s391 + $0xb0] sm:$0xff]
                  %438 = vst [vmem:[%s392 + $0xb0] sm:$0xff] %v437
                  %v439 = vld [vmem:[%s391 + $0xb8] sm:$0xff]
                  %440 = vst [vmem:[%s392 + $0xb8] sm:$0xff] %v439
                  %v441 = vld [vmem:[%s391 + $0xc0] sm:$0xff]
                  %442 = vst [vmem:[%s392 + $0xc0] sm:$0xff] %v441
                  %v443 = vld [vmem:[%s391 + $0xc8] sm:$0xff]
                  %444 = vst [vmem:[%s392 + $0xc8] sm:$0xff] %v443
                  %v445 = vld [vmem:[%s391 + $0xd0] sm:$0xff]
                  %446 = vst [vmem:[%s392 + $0xd0] sm:$0xff] %v445
                  %v447 = vld [vmem:[%s391 + $0xd8] sm:$0xff]
                  %448 = vst [vmem:[%s392 + $0xd8] sm:$0xff] %v447
                  %v449 = vld [vmem:[%s391 + $0xe0] sm:$0xff]
                  %450 = vst [vmem:[%s392 + $0xe0] sm:$0xff] %v449
                  %v451 = vld [vmem:[%s391 + $0xe8] sm:$0xff]
                  %452 = vst [vmem:[%s392 + $0xe8] sm:$0xff] %v451
                  %v453 = vld [vmem:[%s391 + $0xf0] sm:$0xff]
                  %454 = vst [vmem:[%s392 + $0xf0] sm:$0xff] %v453
                  %v455 = vld [vmem:[%s391 + $0xf8] sm:$0xff]
                  %456 = vst [vmem:[%s392 + $0xf8] sm:$0xff] %v455
                  %v457 = vld [vmem:[%s391 + $0x238] sm:$0xff]
                  %458 = vst [vmem:[%s392 + $0x100] sm:$0xff] %v457
                  %v459 = vld [vmem:[%s391 + $0x240] sm:$0xff]
                  %460 = vst [vmem:[%s392 + $0x108] sm:$0xff] %v459
                  %v461 = vld [vmem:[%s391 + $0x248] sm:$0xff]
                  %462 = vst [vmem:[%s392 + $0x110] sm:$0xff] %v461
                  %v463 = vld [vmem:[%s391 + $0x250] sm:$0xff]
                  %464 = vst [vmem:[%s392 + $0x118] sm:$0xff] %v463
                  %v465 = vld [vmem:[%s391 + $0x258] sm:$0xff]
                  %466 = vst [vmem:[%s392 + $0x120] sm:$0xff] %v465
                  %v467 = vld [vmem:[%s391 + $0x260] sm:$0xff]
                  %468 = vst [vmem:[%s392 + $0x128] sm:$0xff] %v467
                  %v469 = vld [vmem:[%s391 + $0x268] sm:$0xff]
                  %470 = vst [vmem:[%s392 + $0x130] sm:$0xff] %v469
                  %v471 = vld [vmem:[%s391 + $0x270] sm:$0xff]
                  %472 = vst [vmem:[%s392 + $0x138] sm:$0xff] %v471
                  %v473 = vld [vmem:[%s391 + $0x278] sm:$0xff]
                  %474 = vst [vmem:[%s392 + $0x140] sm:$0xff] %v473
                  %v475 = vld [vmem:[%s391 + $0x280] sm:$0xff]
                  %476 = vst [vmem:[%s392 + $0x148] sm:$0xff] %v475
                  %v477 = vld [vmem:[%s391 + $0x288] sm:$0xff]
                  %478 = vst [vmem:[%s392 + $0x150] sm:$0xff] %v477
                  %v479 = vld [vmem:[%s391 + $0x290] sm:$0xff]
                  %480 = vst [vmem:[%s392 + $0x158] sm:$0xff] %v479
                  %v481 = vld [vmem:[%s391 + $0x298] sm:$0xff]
                  %482 = vst [vmem:[%s392 + $0x160] sm:$0xff] %v481
                  %v483 = vld [vmem:[%s391 + $0x2a0] sm:$0xff]
                  %484 = vst [vmem:[%s392 + $0x168] sm:$0xff] %v483
                  %v485 = vld [vmem:[%s391 + $0x2a8] sm:$0xff]
                  %486 = vst [vmem:[%s392 + $0x170] sm:$0xff] %v485
                  %v487 = vld [vmem:[%s391 + $0x2b0] sm:$0xff]
                  %488 = vst [vmem:[%s392 + $0x178] sm:$0xff] %v487
                  %v489 = vld [vmem:[%s391 + $0x2b8] sm:$0xff]
                  %490 = vst [vmem:[%s392 + $0x180] sm:$0xff] %v489
                  %v491 = vld [vmem:[%s391 + $0x2c0] sm:$0xff]
                  %492 = vst [vmem:[%s392 + $0x188] sm:$0xff] %v491
                  %v493 = vld [vmem:[%s391 + $0x2c8] sm:$0xff]
                  %494 = vst [vmem:[%s392 + $0x190] sm:$0xff] %v493
                  %v495 = vld [vmem:[%s391 + $0x2d0] sm:$0xff]
                  %496 = vst [vmem:[%s392 + $0x198] sm:$0xff] %v495
                  %v497 = vld [vmem:[%s391 + $0x2d8] sm:$0xff]
                  %498 = vst [vmem:[%s392 + $0x1a0] sm:$0xff] %v497
                  %v499 = vld [vmem:[%s391 + $0x2e0] sm:$0xff]
                  %500 = vst [vmem:[%s392 + $0x1a8] sm:$0xff] %v499
                  %v501 = vld [vmem:[%s391 + $0x2e8] sm:$0xff]
                  %502 = vst [vmem:[%s392 + $0x1b0] sm:$0xff] %v501
                  %v503 = vld [vmem:[%s391 + $0x2f0] sm:$0xff]
                  %504 = vst [vmem:[%s392 + $0x1b8] sm:$0xff] %v503
                  %v505 = vld [vmem:[%s391 + $0x2f8] sm:$0xff]
                  %506 = vst [vmem:[%s392 + $0x1c0] sm:$0xff] %v505
                  %v507 = vld [vmem:[%s391 + $0x300] sm:$0xff]
                  %508 = vst [vmem:[%s392 + $0x1c8] sm:$0xff] %v507
                  %v509 = vld [vmem:[%s391 + $0x308] sm:$0xff]
                  %510 = vst [vmem:[%s392 + $0x1d0] sm:$0xff] %v509
                  %v511 = vld [vmem:[%s391 + $0x310] sm:$0xff]
                  %512 = vst [vmem:[%s392 + $0x1d8] sm:$0xff] %v511
                  %v513 = vld [vmem:[%s391 + $0x318] sm:$0xff]
                  %514 = vst [vmem:[%s392 + $0x1e0] sm:$0xff] %v513
                  %v515 = vld [vmem:[%s391 + $0x320] sm:$0xff]
                  %516 = vst [vmem:[%s392 + $0x1e8] sm:$0xff] %v515
                  %v517 = vld [vmem:[%s391 + $0x328] sm:$0xff]
                  %518 = vst [vmem:[%s392 + $0x1f0] sm:$0xff] %v517
                  %v519 = vld [vmem:[%s391 + $0x330] sm:$0xff]
                  %520 = vst [vmem:[%s392 + $0x1f8] sm:$0xff] %v519
                  %s521 = sadd.s32 1, %s390
                  %p522 = scmp.ge.s32.totalorder %s521, %s381
                  %s523 = scalar_select %p522, 0, %s521
                  %s524 = smul.u32 %s523, 256
                  %s525 = smul.u32 %s523, 256
                  %s526 = scalar_lea.vmem %s163, %s524
                  %s527 = scalar_lea.vmem %s155, %s525 [#allocation2]
                $region74: #{channel_attention_3d.3} parent=68 // loop_footer
                  %s387 = sadd.s32 %s385, 1
                $region75: #{channel_attention_3d.3} parent=68 // loop_footer_branch
                  %384 = sbr.rel target = $region71
                $region76: #{channel_attention_3d.3} parent=68 // loop_exit
                  _
                %s528 = sshrl.u32 %s380, 5
                %s529 = sand.u32 %s380, 31
                %s530 = smul.u32 %s528, 32
                %s531 = smul.u32 128, %s530
                %s532 = sshra.s32 %s531, 4
                %s533 = scalar_lea.vmem %s163, %s532
                %s534 = smul.u32 128, %s530
                %s535 = sshra.s32 %s534, 4
                %s536 = scalar_lea.vmem %s155, %s535 [#allocation2]
                // While loop
                $region77: #{channel_attention_3d.3} parent=68 // loop_pre_header
                  _
                $region78: #{channel_attention_3d.3} parent=68 // loop_header
                  %s540 = sphi 0, %s542
                  %p541 = scmp.ge.s32.totalorder %s540, %s529
                  %s545 = sphi 0, %s554
                  %s546 = sphi %s533, %s557
                  %s547 = sphi %s536, %s558
                $region79: #{channel_attention_3d.3} parent=68 // loop_header_branch
                  %544 = sbr.rel (%p541) target = $region83
                $region80: #{channel_attention_3d.3} parent=68 // loop_body
                  %v548 = vld [vmem:[%s546] sm:$0xff]
                  %549 = vst [vmem:[%s547] sm:$0xff] %v548
                  %v550 = vld [vmem:[%s546 + $0x238] sm:$0xff]
                  %551 = vst [vmem:[%s547 + $0x100] sm:$0xff] %v550
                  %s552 = sadd.s32 1, %s545
                  %p553 = scmp.ge.s32.totalorder %s552, %s529
                  %s554 = scalar_select %p553, 0, %s552
                  %s555 = smul.u32 %s554, 8
                  %s556 = smul.u32 %s554, 8
                  %s557 = scalar_lea.vmem %s533, %s555
                  %s558 = scalar_lea.vmem %s536, %s556 [#allocation2]
                $region81: #{channel_attention_3d.3} parent=68 // loop_footer
                  %s542 = sadd.s32 %s540, 1
                $region82: #{channel_attention_3d.3} parent=68 // loop_footer_branch
                  %539 = sbr.rel target = $region78
                $region83: #{channel_attention_3d.3} parent=68 // loop_exit
                  _
                %s559 = sshllo.u32 0, %s375
                loop: start=0, step=1, limit=1
                $region84: #{channel_attention_3d.3} parent=68 // loop_pre_header
                  _
                $region85: #{channel_attention_3d.3} parent=68 // loop_header
                  %s561 = sphi 0, %s565
                  %p562 = scmp.ge.s32.totalorder %s561, 1
                  %s566 = sphi %s377, %s377
                  %s567 = sphi %s379, %s379
                $region86: #{channel_attention_3d.3} parent=68 // loop_header_branch
                  %564 = sbr.rel (%p562) target = $region90
                $region87: #{channel_attention_3d.3} parent=68 // loop_body
                  %v568 = vld [vmem:[%s566] sm:%s559]
                  %569 = vst [vmem:[%s567] sm:%s559] %v568
                  %v570 = vld [vmem:[%s566 + $0x238] sm:%s559]
                  %571 = vst [vmem:[%s567 + $0x100] sm:%s559] %v570
                $region88: #{channel_attention_3d.3} parent=68 // loop_footer
                  %s565 = sadd.s32 1, %s561
                $region89: #{channel_attention_3d.3} parent=68 // loop_footer_branch
                  %560 = sbr.rel target = $region85
                $region90: #{channel_attention_3d.3} parent=68 // loop_exit
                  _
              $region69: #{channel_attention_3d.3} parent=35 // pred_fallthru
                _
            $region36: #{channel_attention_3d.3} parent=31 // pred_fallthru
              _
            // Predicated region
            $region37: #{channel_attention_3d.3} parent=31 // pred_check
              %p172 = pneg %p168
            $region38: #{channel_attention_3d.3} parent=31 // pred_check_branch
              %174 = sbr.rel (%p172) target = $region40
            $region39: #{channel_attention_3d.3} parent=31 // pred_region
              %s175 = sshllo.u32 0, %s164
              loop: start=0, step=1, limit=1
              $region41: #{channel_attention_3d.3} parent=39 // loop_pre_header
                _
              $region42: #{channel_attention_3d.3} parent=39 // loop_header
                %s177 = sphi 0, %s181
                %p178 = scmp.ge.s32.totalorder %s177, 1
                %s182 = sphi %s163, %s163
                %s183 = sphi %s155, %s155
              $region43: #{channel_attention_3d.3} parent=39 // loop_header_branch
                %180 = sbr.rel (%p178) target = $region47
              $region44: #{channel_attention_3d.3} parent=39 // loop_body
                %v184 = vld [vmem:[%s182] sm:%s175]
                %185 = vst [vmem:[%s183] sm:%s175] %v184
                %v186 = vld [vmem:[%s182 + $0x238] sm:%s175]
                %187 = vst [vmem:[%s183 + $0x100] sm:%s175] %v186
              $region45: #{channel_attention_3d.3} parent=39 // loop_footer
                %s181 = sadd.s32 1, %s177
              $region46: #{channel_attention_3d.3} parent=39 // loop_footer_branch
                %176 = sbr.rel target = $region42
              $region47: #{channel_attention_3d.3} parent=39 // loop_exit
                _
            $region40: #{channel_attention_3d.3} parent=31 // pred_fallthru
              _
          $region32: #{channel_attention_3d.3} parent=27 // pred_fallthru
            _
          %572 = vnop
        $region28: #{channel_attention_3d.3} parent=19 // pred_fallthru
          _
      $region20: #{channel_attention_3d.3} parent=5 // pred_fallthru
        _
      %p573 = scmp.le.s32.totalorder 1, %s12
      %p574 = scmp.lt.s32.totalorder %s12, 4
      %p575 = pnand %p573, %p574
      %p576 = pneg %p575
      // Predicated region
      $region91: #{channel_attention_3d.3} parent=5 // pred_check
        _
      $region92: #{channel_attention_3d.3} parent=5 // pred_check_branch
        %578 = sbr.rel (%p575) target = $region94
      $region93: #{channel_attention_3d.3} parent=5 // pred_region
        %s579 = ssub.s32 %s12, 1
        %s580 = sand.u32 %s51, 1
        %s581 = sand.u32 %s51, 1
        %s582 = smul.addr %s581, 512
        %s583 = scalar_lea.vmem [#allocation2], %s582
        // Predicated region
        $region95: #{channel_attention_3d.3} parent=93 // pred_check
          %p584 = pneg %p64
        $region96: #{channel_attention_3d.3} parent=93 // pred_check_branch
          %586 = sbr.rel (%p584) target = $region98
        $region97: #{channel_attention_3d.3} parent=93 // pred_region
          _
        $region98: #{channel_attention_3d.3} parent=93 // pred_fallthru
          _
        %s587 = smul.u32 32, %s17
        %s588 = ssub.s32 71, %s587
        %p589 = scmp.lt.s32.totalorder %s588, 32
        %s590 = scalar_select %p589, %s588, 32
        %s591 = smul.u32 16, %s590
        %p592 = scmp.lt.s32.totalorder %s587, 70
        %s593 = scalar_select %p592, %s587, 70
        %s594 = scalar_lea.vmem %s0, %s593
        %p595 = pneg %p38
        %p596 = pneg %p35
        %s597 = sand.u32 %s51, 1
        %s598 = sand.u32 %s51, 1
        %s599 = smul.addr %s598, 512
        %s600 = scalar_lea.vmem [#allocation2], %s599
        %p601 = pneg %p64
        %p602 = pneg %p61
        %p603 = pneg %p85
        %p604 = pneg %p82
        %p605 = pneg %p111
        %p606 = pneg %p108
        %s607 = sand.u32 %s98, 1
        %s608 = scalar_lea.sflag [#allocation4], %s607
        %s609 = sand.u32 %s98, 1
        %s610 = smul.addr %s609, 512
        %s611 = scalar_lea.vmem [#allocation3], %s610
        %s612 = smul.u32 32, %s17
        %s613 = ssub.s32 71, %s612
        %p614 = scmp.lt.s32.totalorder %s613, 32
        %s615 = scalar_select %p614, %s613, 32
        %s616 = smul.u32 16, %s615
        %p617 = scmp.lt.s32.totalorder %s612, 70
        %s618 = scalar_select %p617, %s612, 70
        %s619 = scalar_lea.vmem %s0, %s618
        %s620 = smul.u32 32, %s17
        %s621 = ssub.s32 71, %s620
        %p622 = scmp.lt.s32.totalorder %s621, 32
        %s623 = scalar_select %p622, %s621, 32
        %s624 = smul.u32 16, %s623
        %s625 = smul.u32 32, %s17
        %s626 = ssub.s32 71, %s625
        %p627 = scmp.lt.s32.totalorder %s626, 32
        %s628 = scalar_select %p627, %s626, 32
        %s629 = smul.u32 256, %s628
        %s630 = smul.u32 32, %s17
        %s631 = ssub.s32 71, %s630
        %p632 = scmp.lt.s32.totalorder %s631, 32
        %s633 = scalar_select %p632, %s631, 32
        %s634 = smul.u32 256, %s633
        %v635 = vld [vmem:[%s619] sm:$0xff]
        %v636 = vld [vmem:[%s619 + $0x8] sm:$0xff]
        %v637 = vld [vmem:[%s619 + $0x10] sm:$0xff]
        %v638 = vld [vmem:[%s619 + $0x18] sm:$0xff]
        %v639 = vld [vmem:[%s2] sm:$0xff]
        %v640 = vld [vmem:[%s2 + $0x8] sm:$0xff]
        %v641 = vlaneseq
        %v642 = vshrl.u32 %v641, 7
        %v643 = vlaneseq
        %v644 = vshrl.u32 %v643, 7
        %v645 = vsub.s32 0, %v644
        %v646 = vrot.slane %v635, %v645
        %v647 = vlaneseq
        %v648 = vshrl.u32 %v647, 7
        %v649 = vsub.s32 1, %v648
        %v650 = vrot.slane %v635, %v649
        %v651 = vlaneseq
        %v652 = vshrl.u32 %v651, 7
        %v653 = vsub.s32 2, %v652
        %v654 = vrot.slane %v635, %v653
        %v655 = vlaneseq
        %v656 = vshrl.u32 %v655, 7
        %v657 = vsub.s32 3, %v656
        %v658 = vrot.slane %v635, %v657
        %v659 = vlaneseq
        %v660 = vshrl.u32 %v659, 7
        %v661 = vsub.s32 4, %v660
        %v662 = vrot.slane %v635, %v661
        %v663 = vlaneseq
        %v664 = vshrl.u32 %v663, 7
        %v665 = vsub.s32 5, %v664
        %v666 = vrot.slane %v635, %v665
        %v667 = vlaneseq
        %v668 = vshrl.u32 %v667, 7
        %v669 = vsub.s32 6, %v668
        %v670 = vrot.slane %v635, %v669
        %v671 = vlaneseq
        %v672 = vshrl.u32 %v671, 7
        %v673 = vsub.s32 7, %v672
        %v674 = vrot.slane %v635, %v673
        %v675 = vlaneseq
        %v676 = vshrl.u32 %v675, 7
        %v677 = vsub.s32 0, %v676
        %v678 = vrot.slane %v636, %v677
        %v679 = vlaneseq
        %v680 = vshrl.u32 %v679, 7
        %v681 = vsub.s32 1, %v680
        %v682 = vrot.slane %v636, %v681
        %v683 = vlaneseq
        %v684 = vshrl.u32 %v683, 7
        %v685 = vsub.s32 2, %v684
        %v686 = vrot.slane %v636, %v685
        %v687 = vlaneseq
        %v688 = vshrl.u32 %v687, 7
        %v689 = vsub.s32 3, %v688
        %v690 = vrot.slane %v636, %v689
        %v691 = vlaneseq
        %v692 = vshrl.u32 %v691, 7
        %v693 = vsub.s32 4, %v692
        %v694 = vrot.slane %v636, %v693
        %v695 = vlaneseq
        %v696 = vshrl.u32 %v695, 7
        %v697 = vsub.s32 5, %v696
        %v698 = vrot.slane %v636, %v697
        %v699 = vlaneseq
        %v700 = vshrl.u32 %v699, 7
        %v701 = vsub.s32 6, %v700
        %v702 = vrot.slane %v636, %v701
        %v703 = vlaneseq
        %v704 = vshrl.u32 %v703, 7
        %v705 = vsub.s32 7, %v704
        %v706 = vrot.slane %v636, %v705
        %v707 = vlaneseq
        %v708 = vshrl.u32 %v707, 7
        %v709 = vsub.s32 0, %v708
        %v710 = vrot.slane %v637, %v709
        %v711 = vlaneseq
        %v712 = vshrl.u32 %v711, 7
        %v713 = vsub.s32 1, %v712
        %v714 = vrot.slane %v637, %v713
        %v715 = vlaneseq
        %v716 = vshrl.u32 %v715, 7
        %v717 = vsub.s32 2, %v716
        %v718 = vrot.slane %v637, %v717
        %v719 = vlaneseq
        %v720 = vshrl.u32 %v719, 7
        %v721 = vsub.s32 3, %v720
        %v722 = vrot.slane %v637, %v721
        %v723 = vlaneseq
        %v724 = vshrl.u32 %v723, 7
        %v725 = vsub.s32 4, %v724
        %v726 = vrot.slane %v637, %v725
        %v727 = vlaneseq
        %v728 = vshrl.u32 %v727, 7
        %v729 = vsub.s32 5, %v728
        %v730 = vrot.slane %v637, %v729
        %v731 = vlaneseq
        %v732 = vshrl.u32 %v731, 7
        %v733 = vsub.s32 6, %v732
        %v734 = vrot.slane %v637, %v733
        %v735 = vlaneseq
        %v736 = vshrl.u32 %v735, 7
        %v737 = vsub.s32 7, %v736
        %v738 = vrot.slane %v637, %v737
        %v739 = vlaneseq
        %v740 = vshrl.u32 %v739, 7
        %v741 = vsub.s32 0, %v740
        %v742 = vrot.slane %v638, %v741
        %v743 = vlaneseq
        %v744 = vshrl.u32 %v743, 7
        %v745 = vsub.s32 1, %v744
        %v746 = vrot.slane %v638, %v745
        %v747 = vlaneseq
        %v748 = vshrl.u32 %v747, 7
        %v749 = vsub.s32 2, %v748
        %v750 = vrot.slane %v638, %v749
        %v751 = vlaneseq
        %v752 = vshrl.u32 %v751, 7
        %v753 = vsub.s32 3, %v752
        %v754 = vrot.slane %v638, %v753
        %v755 = vlaneseq
        %v756 = vshrl.u32 %v755, 7
        %v757 = vsub.s32 4, %v756
        %v758 = vrot.slane %v638, %v757
        %v759 = vlaneseq
        %v760 = vshrl.u32 %v759, 7
        %v761 = vsub.s32 5, %v760
        %v762 = vrot.slane %v638, %v761
        %v763 = vlaneseq
        %v764 = vshrl.u32 %v763, 7
        %v765 = vsub.s32 6, %v764
        %v766 = vrot.slane %v638, %v765
        %v767 = vlaneseq
        %v768 = vshrl.u32 %v767, 7
        %v769 = vsub.s32 7, %v768
        %v770 = vrot.slane %v638, %v769
        %vm771 = vcmp.eq.s32.totalorder %v646, %v642
        %vm772 = vcmp.eq.s32.totalorder %v650, %v642
        %vm773 = vcmp.eq.s32.totalorder %v654, %v642
        %vm774 = vcmp.eq.s32.totalorder %v658, %v642
        %vm775 = vcmp.eq.s32.totalorder %v662, %v642
        %vm776 = vcmp.eq.s32.totalorder %v666, %v642
        %vm777 = vcmp.eq.s32.totalorder %v670, %v642
        %vm778 = vcmp.eq.s32.totalorder %v674, %v642
        %vm779 = vcmp.eq.s32.totalorder %v678, %v642
        %vm780 = vcmp.eq.s32.totalorder %v682, %v642
        %vm781 = vcmp.eq.s32.totalorder %v686, %v642
        %vm782 = vcmp.eq.s32.totalorder %v690, %v642
        %vm783 = vcmp.eq.s32.totalorder %v694, %v642
        %vm784 = vcmp.eq.s32.totalorder %v698, %v642
        %vm785 = vcmp.eq.s32.totalorder %v702, %v642
        %vm786 = vcmp.eq.s32.totalorder %v706, %v642
        %vm787 = vcmp.eq.s32.totalorder %v710, %v642
        %vm788 = vcmp.eq.s32.totalorder %v714, %v642
        %vm789 = vcmp.eq.s32.totalorder %v718, %v642
        %vm790 = vcmp.eq.s32.totalorder %v722, %v642
        %vm791 = vcmp.eq.s32.totalorder %v726, %v642
        %vm792 = vcmp.eq.s32.totalorder %v730, %v642
        %vm793 = vcmp.eq.s32.totalorder %v734, %v642
        %vm794 = vcmp.eq.s32.totalorder %v738, %v642
        %vm795 = vcmp.eq.s32.totalorder %v742, %v642
        %vm796 = vcmp.eq.s32.totalorder %v746, %v642
        %vm797 = vcmp.eq.s32.totalorder %v750, %v642
        %vm798 = vcmp.eq.s32.totalorder %v754, %v642
        %vm799 = vcmp.eq.s32.totalorder %v758, %v642
        %vm800 = vcmp.eq.s32.totalorder %v762, %v642
        %vm801 = vcmp.eq.s32.totalorder %v766, %v642
        %vm802 = vcmp.eq.s32.totalorder %v770, %v642
        %v803 = vsel %vm771, 1, 0
        %v804 = vsel %vm772, 1, 0
        %v805 = vsel %vm773, 1, 0
        %v806 = vsel %vm774, 1, 0
        %v807 = vsel %vm775, 1, 0
        %v808 = vsel %vm776, 1, 0
        %v809 = vsel %vm777, 1, 0
        %v810 = vsel %vm778, 1, 0
        %v811 = vsel %vm779, 1, 0
        %v812 = vsel %vm780, 1, 0
        %v813 = vsel %vm781, 1, 0
        %v814 = vsel %vm782, 1, 0
        %v815 = vsel %vm783, 1, 0
        %v816 = vsel %vm784, 1, 0
        %v817 = vsel %vm785, 1, 0
        %v818 = vsel %vm786, 1, 0
        %v819 = vsel %vm787, 1, 0
        %v820 = vsel %vm788, 1, 0
        %v821 = vsel %vm789, 1, 0
        %v822 = vsel %vm790, 1, 0
        %v823 = vsel %vm791, 1, 0
        %v824 = vsel %vm792, 1, 0
        %v825 = vsel %vm793, 1, 0
        %v826 = vsel %vm794, 1, 0
        %v827 = vsel %vm795, 1, 0
        %v828 = vsel %vm796, 1, 0
        %v829 = vsel %vm797, 1, 0
        %v830 = vsel %vm798, 1, 0
        %v831 = vsel %vm799, 1, 0
        %v832 = vsel %vm800, 1, 0
        %v833 = vsel %vm801, 1, 0
        %v834 = vsel %vm802, 1, 0
        %v835 = vcvt.s32.f32 %v803
        %v836 = vcvt.s32.f32 %v804
        %v837 = vcvt.s32.f32 %v805
        %v838 = vcvt.s32.f32 %v806
        %v839 = vcvt.s32.f32 %v807
        %v840 = vcvt.s32.f32 %v808
        %v841 = vcvt.s32.f32 %v809
        %v842 = vcvt.s32.f32 %v810
        %v843 = vcvt.s32.f32 %v811
        %v844 = vcvt.s32.f32 %v812
        %v845 = vcvt.s32.f32 %v813
        %v846 = vcvt.s32.f32 %v814
        %v847 = vcvt.s32.f32 %v815
        %v848 = vcvt.s32.f32 %v816
        %v849 = vcvt.s32.f32 %v817
        %v850 = vcvt.s32.f32 %v818
        %v851 = vcvt.s32.f32 %v819
        %v852 = vcvt.s32.f32 %v820
        %v853 = vcvt.s32.f32 %v821
        %v854 = vcvt.s32.f32 %v822
        %v855 = vcvt.s32.f32 %v823
        %v856 = vcvt.s32.f32 %v824
        %v857 = vcvt.s32.f32 %v825
        %v858 = vcvt.s32.f32 %v826
        %v859 = vcvt.s32.f32 %v827
        %v860 = vcvt.s32.f32 %v828
        %v861 = vcvt.s32.f32 %v829
        %v862 = vcvt.s32.f32 %v830
        %v863 = vcvt.s32.f32 %v831
        %v864 = vcvt.s32.f32 %v832
        %v865 = vcvt.s32.f32 %v833
        %v866 = vcvt.s32.f32 %v834
        %vm867 = vcmask 23552
        %v869 = vsel %vm867, %v639, 0
        %v872 = vsel %vm867, %v640, 0
        %vm874 = vcmask 1042432
        %v876 = vsel %vm874, %v835, 0
        %v879 = vsel %vm874, %v836, 0
        %v882 = vsel %vm874, %v837, 0
        %v885 = vsel %vm874, %v838, 0
        %v888 = vsel %vm874, %v839, 0
        %v891 = vsel %vm874, %v840, 0
        %v894 = vsel %vm874, %v841, 0
        %v897 = vsel %vm874, %v842, 0
        %v900 = vsel %vm874, %v843, 0
        %v903 = vsel %vm874, %v844, 0
        %v906 = vsel %vm874, %v845, 0
        %v909 = vsel %vm874, %v846, 0
        %v912 = vsel %vm874, %v847, 0
        %v915 = vsel %vm874, %v848, 0
        %v918 = vsel %vm874, %v849, 0
        %v921 = vsel %vm874, %v850, 0
        %v924 = vsel %vm874, %v851, 0
        %v927 = vsel %vm874, %v852, 0
        %v930 = vsel %vm874, %v853, 0
        %v933 = vsel %vm874, %v854, 0
        %v936 = vsel %vm874, %v855, 0
        %v939 = vsel %vm874, %v856, 0
        %v942 = vsel %vm874, %v857, 0
        %v945 = vsel %vm874, %v858, 0
        %v948 = vsel %vm874, %v859, 0
        %v951 = vsel %vm874, %v860, 0
        %v954 = vsel %vm874, %v861, 0
        %v957 = vsel %vm874, %v862, 0
        %v960 = vsel %vm874, %v863, 0
        %v963 = vsel %vm874, %v864, 0
        %v966 = vsel %vm874, %v865, 0
        %v969 = vsel %vm874, %v866, 0
        %971 = vmatprep.subr.mxu0 %v879
        %972 = vmatpush1.msra.mxu0 %v876
        %973 = vmatprep.subr.mxu0 0.0
        %974 = vmatpush1.msra.mxu0 0.0
        %975 = vmatprep.subr.mxu0 0.0
        %976 = vmatpush1.msra.mxu0 0.0
        %977 = vmatprep.subr.mxu0 0.0
        %978 = vmatpush1.msra.mxu0 0.0
        %979 = vmatprep.subr.mxu0 0.0
        %980 = vmatpush1.msra.mxu0 0.0
        %981 = vmatprep.subr.mxu0 0.0
        %982 = vmatpush1.msra.mxu0 0.0
        %983 = vmatprep.subr.mxu0 0.0
        %984 = vmatpush1.msra.mxu0 0.0
        %985 = vmatprep.subr.mxu0 0.0
        %986 = vmatpush1.msra.mxu0 0.0
        %987 = vmatprep.subr.mxu0 0.0
        %988 = vmatpush1.msra.mxu0 0.0
        %989 = vmatprep.subr.mxu0 0.0
        %990 = vmatpush1.msra.mxu0 0.0
        %991 = vmatprep.subr.mxu0 0.0
        %992 = vmatpush1.msra.mxu0 0.0
        %993 = vmatprep.subr.mxu0 0.0
        %994 = vmatpush1.msra.mxu0 0.0
        %995 = vmatprep.subr.mxu0 0.0
        %996 = vmatpush1.msra.mxu0 0.0
        %997 = vmatprep.subr.mxu0 0.0
        %998 = vmatpush1.msra.mxu0 0.0
        %999 = vmatprep.subr.mxu0 0.0
        %1000 = vmatpush1.msra.mxu0 0.0
        %1001 = vmatprep.subr.mxu0 0.0
        %1002 = vmatpush1.msra.mxu0 0.0
        %1003 = vmatprep.subr.mxu0 0.0
        %1004 = vmatpush1.msra.mxu0 0.0
        %1005 = vmatprep.subr.mxu0 0.0
        %1006 = vmatpush1.msra.mxu0 0.0
        %1007 = vmatprep.subr.mxu0 0.0
        %1008 = vmatpush1.msra.mxu0 0.0
        %1009 = vmatprep.subr.mxu0 0.0
        %1010 = vmatpush1.msra.mxu0 0.0
        %1011 = vmatprep.subr.mxu0 0.0
        %1012 = vmatpush1.msra.mxu0 0.0
        %1013 = vmatprep.subr.mxu0 0.0
        %1014 = vmatpush1.msra.mxu0 0.0
        %1015 = vmatprep.subr.mxu0 0.0
        %1016 = vmatpush1.msra.mxu0 0.0
        %1017 = vmatprep.subr.mxu0 0.0
        %1018 = vmatpush1.msra.mxu0 0.0
        %1019 = vmatprep.subr.mxu0 0.0
        %1020 = vmatpush1.msra.mxu0 0.0
        %1021 = vmatprep.subr.mxu0 0.0
        %1022 = vmatpush1.msra.mxu0 0.0
        %1023 = vmatprep.subr.mxu0 0.0
        %1024 = vmatpush1.msra.mxu0 0.0
        %1025 = vmatprep.subr.mxu0 0.0
        %1026 = vmatpush1.msra.mxu0 0.0
        %1027 = vmatprep.subr.mxu0 0.0
        %1028 = vmatpush1.msra.mxu0 0.0
        %1029 = vmatprep.subr.mxu0 0.0
        %1030 = vmatpush1.msra.mxu0 0.0
        %1031 = vmatprep.subr.mxu0 0.0
        %1032 = vmatpush1.msra.mxu0 0.0
        %1033 = vmatprep.subr.mxu0 0.0
        %1034 = vmatpush1.msra.mxu0 0.0
        %1035 = vmatprep.mubr.f32.mxu0 0.0
        %1036 = vmatmul.mubr.f32.gmra.mrb[0].mxu0 %v869
        %v1037 = vpop.f32.mrb[0].mxu0
        %v1038 = vadd.f32 0.0, %v1037
        %v1039 = vpop.f32.mrb[0].mxu0
        %v1040 = vadd.f32 0.0, %v1039
        %1041 = vmatprep.mubr.f32.mxu0 0.0
        %1042 = vmatmul.mubr.f32.gmra.mrb[0].mxu0 %v872
        %v1043 = vpop.f32.mrb[0].mxu0
        %v1044 = vadd.f32 0.0, %v1043
        %v1045 = vpop.f32.mrb[0].mxu0
        %v1046 = vadd.f32 0.0, %v1045
        %1047 = vdwg.mxu0
        %1048 = vmatprep.subr.mxu0 %v885
        %1049 = vmatpush1.msra.mxu0 %v882
        %1050 = vmatprep.subr.mxu0 0.0
        %1051 = vmatpush1.msra.mxu0 0.0
        %1052 = vmatprep.subr.mxu0 0.0
        %1053 = vmatpush1.msra.mxu0 0.0
        %1054 = vmatprep.subr.mxu0 0.0
        %1055 = vmatpush1.msra.mxu0 0.0
        %1056 = vmatprep.subr.mxu0 0.0
        %1057 = vmatpush1.msra.mxu0 0.0
        %1058 = vmatprep.subr.mxu0 0.0
        %1059 = vmatpush1.msra.mxu0 0.0
        %1060 = vmatprep.subr.mxu0 0.0
        %1061 = vmatpush1.msra.mxu0 0.0
        %1062 = vmatprep.subr.mxu0 0.0
        %1063 = vmatpush1.msra.mxu0 0.0
        %1064 = vmatprep.subr.mxu0 0.0
        %1065 = vmatpush1.msra.mxu0 0.0
        %1066 = vmatprep.subr.mxu0 0.0
        %1067 = vmatpush1.msra.mxu0 0.0
        %1068 = vmatprep.subr.mxu0 0.0
        %1069 = vmatpush1.msra.mxu0 0.0
        %1070 = vmatprep.subr.mxu0 0.0
        %1071 = vmatpush1.msra.mxu0 0.0
        %1072 = vmatprep.subr.mxu0 0.0
        %1073 = vmatpush1.msra.mxu0 0.0
        %1074 = vmatprep.subr.mxu0 0.0
        %1075 = vmatpush1.msra.mxu0 0.0
        %1076 = vmatprep.subr.mxu0 0.0
        %1077 = vmatpush1.msra.mxu0 0.0
        %1078 = vmatprep.subr.mxu0 0.0
        %1079 = vmatpush1.msra.mxu0 0.0
        %1080 = vmatprep.subr.mxu0 0.0
        %1081 = vmatpush1.msra.mxu0 0.0
        %1082 = vmatprep.subr.mxu0 0.0
        %1083 = vmatpush1.msra.mxu0 0.0
        %1084 = vmatprep.subr.mxu0 0.0
        %1085 = vmatpush1.msra.mxu0 0.0
        %1086 = vmatprep.subr.mxu0 0.0
        %1087 = vmatpush1.msra.mxu0 0.0
        %1088 = vmatprep.subr.mxu0 0.0
        %1089 = vmatpush1.msra.mxu0 0.0
        %1090 = vmatprep.subr.mxu0 0.0
        %1091 = vmatpush1.msra.mxu0 0.0
        %1092 = vmatprep.subr.mxu0 0.0
        %1093 = vmatpush1.msra.mxu0 0.0
        %1094 = vmatprep.subr.mxu0 0.0
        %1095 = vmatpush1.msra.mxu0 0.0
        %1096 = vmatprep.subr.mxu0 0.0
        %1097 = vmatpush1.msra.mxu0 0.0
        %1098 = vmatprep.subr.mxu0 0.0
        %1099 = vmatpush1.msra.mxu0 0.0
        %1100 = vmatprep.subr.mxu0 0.0
        %1101 = vmatpush1.msra.mxu0 0.0
        %1102 = vmatprep.subr.mxu0 0.0
        %1103 = vmatpush1.msra.mxu0 0.0
        %1104 = vmatprep.subr.mxu0 0.0
        %1105 = vmatpush1.msra.mxu0 0.0
        %1106 = vmatprep.subr.mxu0 0.0
        %1107 = vmatpush1.msra.mxu0 0.0
        %1108 = vmatprep.subr.mxu0 0.0
        %1109 = vmatpush1.msra.mxu0 0.0
        %1110 = vmatprep.subr.mxu0 0.0
        %1111 = vmatpush1.msra.mxu0 0.0
        %1112 = vmatprep.mubr.f32.mxu0 0.0
        %1113 = vmatmul.mubr.f32.gmra.mrb[0].mxu0 %v869
        %v1114 = vpop.f32.mrb[0].mxu0
        %v1115 = vadd.f32 0.0, %v1114
        %v1116 = vpop.f32.mrb[0].mxu0
        %v1117 = vadd.f32 0.0, %v1116
        %1118 = vmatprep.mubr.f32.mxu0 0.0
        %1119 = vmatmul.mubr.f32.gmra.mrb[0].mxu0 %v872
        %v1120 = vpop.f32.mrb[0].mxu0
        %v1121 = vadd.f32 0.0, %v1120
        %v1122 = vpop.f32.mrb[0].mxu0
        %v1123 = vadd.f32 0.0, %v1122
        %1124 = vdwg.mxu0
        %1125 = vmatprep.subr.mxu0 %v891
        %1126 = vmatpush1.msra.mxu0 %v888
        %1127 = vmatprep.subr.mxu0 0.0
        %1128 = vmatpush1.msra.mxu0 0.0
        %1129 = vmatprep.subr.mxu0 0.0
        %1130 = vmatpush1.msra.mxu0 0.0
        %1131 = vmatprep.subr.mxu0 0.0
        %1132 = vmatpush1.msra.mxu0 0.0
        %1133 = vmatprep.subr.mxu0 0.0
        %1134 = vmatpush1.msra.mxu0 0.0
        %1135 = vmatprep.subr.mxu0 0.0
        %1136 = vmatpush1.msra.mxu0 0.0
        %1137 = vmatprep.subr.mxu0 0.0
        %1138 = vmatpush1.msra.mxu0 0.0
        %1139 = vmatprep.subr.mxu0 0.0
        %1140 = vmatpush1.msra.mxu0 0.0
        %1141 = vmatprep.subr.mxu0 0.0
        %1142 = vmatpush1.msra.mxu0 0.0
        %1143 = vmatprep.subr.mxu0 0.0
        %1144 = vmatpush1.msra.mxu0 0.0
        %1145 = vmatprep.subr.mxu0 0.0
        %1146 = vmatpush1.msra.mxu0 0.0
        %1147 = vmatprep.subr.mxu0 0.0
        %1148 = vmatpush1.msra.mxu0 0.0
        %1149 = vmatprep.subr.mxu0 0.0
        %1150 = vmatpush1.msra.mxu0 0.0
        %1151 = vmatprep.subr.mxu0 0.0
        %1152 = vmatpush1.msra.mxu0 0.0
        %1153 = vmatprep.subr.mxu0 0.0
        %1154 = vmatpush1.msra.mxu0 0.0
        %1155 = vmatprep.subr.mxu0 0.0
        %1156 = vmatpush1.msra.mxu0 0.0
        %1157 = vmatprep.subr.mxu0 0.0
        %1158 = vmatpush1.msra.mxu0 0.0
        %1159 = vmatprep.subr.mxu0 0.0
        %1160 = vmatpush1.msra.mxu0 0.0
        %1161 = vmatprep.subr.mxu0 0.0
        %1162 = vmatpush1.msra.mxu0 0.0
        %1163 = vmatprep.subr.mxu0 0.0
        %1164 = vmatpush1.msra.mxu0 0.0
        %1165 = vmatprep.subr.mxu0 0.0
        %1166 = vmatpush1.msra.mxu0 0.0
        %1167 = vmatprep.subr.mxu0 0.0
        %1168 = vmatpush1.msra.mxu0 0.0
        %1169 = vmatprep.subr.mxu0 0.0
        %1170 = vmatpush1.msra.mxu0 0.0
        %1171 = vmatprep.subr.mxu0 0.0
        %1172 = vmatpush1.msra.mxu0 0.0
        %1173 = vmatprep.subr.mxu0 0.0
        %1174 = vmatpush1.msra.mxu0 0.0
        %1175 = vmatprep.subr.mxu0 0.0
        %1176 = vmatpush1.msra.mxu0 0.0
        %1177 = vmatprep.subr.mxu0 0.0
        %1178 = vmatpush1.msra.mxu0 0.0
        %1179 = vmatprep.subr.mxu0 0.0
        %1180 = vmatpush1.msra.mxu0 0.0
        %1181 = vmatprep.subr.mxu0 0.0
        %1182 = vmatpush1.msra.mxu0 0.0
        %1183 = vmatprep.subr.mxu0 0.0
        %1184 = vmatpush1.msra.mxu0 0.0
        %1185 = vmatprep.subr.mxu0 0.0
        %1186 = vmatpush1.msra.mxu0 0.0
        %1187 = vmatprep.subr.mxu0 0.0
        %1188 = vmatpush1.msra.mxu0 0.0
        %1189 = vmatprep.mubr.f32.mxu0 0.0
        %1190 = vmatmul.mubr.f32.gmra.mrb[0].mxu0 %v869
        %v1191 = vpop.f32.mrb[0].mxu0
        %v1192 = vadd.f32 0.0, %v1191
        %v1193 = vpop.f32.mrb[0].mxu0
        %v1194 = vadd.f32 0.0, %v1193
        %1195 = vmatprep.mubr.f32.mxu0 0.0
        %1196 = vmatmul.mubr.f32.gmra.mrb[0].mxu0 %v872
        %v1197 = vpop.f32.mrb[0].mxu0
        %v1198 = vadd.f32 0.0, %v1197
        %v1199 = vpop.f32.mrb[0].mxu0
        %v1200 = vadd.f32 0.0, %v1199
        %1201 = vdwg.mxu0
        %1202 = vmatprep.subr.mxu0 %v897
        %1203 = vmatpush1.msra.mxu0 %v894
        %1204 = vmatprep.subr.mxu0 0.0
        %1205 = vmatpush1.msra.mxu0 0.0
        %1206 = vmatprep.subr.mxu0 0.0
        %1207 = vmatpush1.msra.mxu0 0.0
        %1208 = vmatprep.subr.mxu0 0.0
        %1209 = vmatpush1.msra.mxu0 0.0
        %1210 = vmatprep.subr.mxu0 0.0
        %1211 = vmatpush1.msra.mxu0 0.0
        %1212 = vmatprep.subr.mxu0 0.0
        %1213 = vmatpush1.msra.mxu0 0.0
        %1214 = vmatprep.subr.mxu0 0.0
        %1215 = vmatpush1.msra.mxu0 0.0
        %1216 = vmatprep.subr.mxu0 0.0
        %1217 = vmatpush1.msra.mxu0 0.0
        %1218 = vmatprep.subr.mxu0 0.0
        %1219 = vmatpush1.msra.mxu0 0.0
        %1220 = vmatprep.subr.mxu0 0.0
        %1221 = vmatpush1.msra.mxu0 0.0
        %1222 = vmatprep.subr.mxu0 0.0
        %1223 = vmatpush1.msra.mxu0 0.0
        %1224 = vmatprep.subr.mxu0 0.0
        %1225 = vmatpush1.msra.mxu0 0.0
        %1226 = vmatprep.subr.mxu0 0.0
        %1227 = vmatpush1.msra.mxu0 0.0
        %1228 = vmatprep.subr.mxu0 0.0
        %1229 = vmatpush1.msra.mxu0 0.0
        %1230 = vmatprep.subr.mxu0 0.0
        %1231 = vmatpush1.msra.mxu0 0.0
        %1232 = vmatprep.subr.mxu0 0.0
        %1233 = vmatpush1.msra.mxu0 0.0
        %1234 = vmatprep.subr.mxu0 0.0
        %1235 = vmatpush1.msra.mxu0 0.0
        %1236 = vmatprep.subr.mxu0 0.0
        %1237 = vmatpush1.msra.mxu0 0.0
        %1238 = vmatprep.subr.mxu0 0.0
        %1239 = vmatpush1.msra.mxu0 0.0
        %1240 = vmatprep.subr.mxu0 0.0
        %1241 = vmatpush1.msra.mxu0 0.0
        %1242 = vmatprep.subr.mxu0 0.0
        %1243 = vmatpush1.msra.mxu0 0.0
        %1244 = vmatprep.subr.mxu0 0.0
        %1245 = vmatpush1.msra.mxu0 0.0
        %1246 = vmatprep.subr.mxu0 0.0
        %1247 = vmatpush1.msra.mxu0 0.0
        %1248 = vmatprep.subr.mxu0 0.0
        %1249 = vmatpush1.msra.mxu0 0.0
        %1250 = vmatprep.subr.mxu0 0.0
        %1251 = vmatpush1.msra.mxu0 0.0
        %1252 = vmatprep.subr.mxu0 0.0
        %1253 = vmatpush1.msra.mxu0 0.0
        %1254 = vmatprep.subr.mxu0 0.0
        %1255 = vmatpush1.msra.mxu0 0.0
        %1256 = vmatprep.subr.mxu0 0.0
        %1257 = vmatpush1.msra.mxu0 0.0
        %1258 = vmatprep.subr.mxu0 0.0
        %1259 = vmatpush1.msra.mxu0 0.0
        %1260 = vmatprep.subr.mxu0 0.0
        %1261 = vmatpush1.msra.mxu0 0.0
        %1262 = vmatprep.subr.mxu0 0.0
        %1263 = vmatpush1.msra.mxu0 0.0
        %1264 = vmatprep.subr.mxu0 0.0
        %1265 = vmatpush1.msra.mxu0 0.0
        %1266 = vmatprep.mubr.f32.mxu0 0.0
        %1267 = vmatmul.mubr.f32.gmra.mrb[0].mxu0 %v869
        %v1268 = vpop.f32.mrb[0].mxu0
        %v1269 = vadd.f32 0.0, %v1268
        %v1270 = vpop.f32.mrb[0].mxu0
        %v1271 = vadd.f32 0.0, %v1270
        %1272 = vmatprep.mubr.f32.mxu0 0.0
        %1273 = vmatmul.mubr.f32.gmra.mrb[0].mxu0 %v872
        %v1274 = vpop.f32.mrb[0].mxu0
        %v1275 = vadd.f32 0.0, %v1274
        %v1276 = vpop.f32.mrb[0].mxu0
        %v1277 = vadd.f32 0.0, %v1276
        %1278 = vdwg.mxu0
        %1279 = vmatprep.subr.mxu0 %v903
        %1280 = vmatpush1.msra.mxu0 %v900
        %1281 = vmatprep.subr.mxu0 0.0
        %1282 = vmatpush1.msra.mxu0 0.0
        %1283 = vmatprep.subr.mxu0 0.0
        %1284 = vmatpush1.msra.mxu0 0.0
        %1285 = vmatprep.subr.mxu0 0.0
        %1286 = vmatpush1.msra.mxu0 0.0
        %1287 = vmatprep.subr.mxu0 0.0
        %1288 = vmatpush1.msra.mxu0 0.0
        %1289 = vmatprep.subr.mxu0 0.0
        %1290 = vmatpush1.msra.mxu0 0.0
        %1291 = vmatprep.subr.mxu0 0.0
        %1292 = vmatpush1.msra.mxu0 0.0
        %1293 = vmatprep.subr.mxu0 0.0
        %1294 = vmatpush1.msra.mxu0 0.0
        %1295 = vmatprep.subr.mxu0 0.0
        %1296 = vmatpush1.msra.mxu0 0.0
        %1297 = vmatprep.subr.mxu0 0.0
        %1298 = vmatpush1.msra.mxu0 0.0
        %1299 = vmatprep.subr.mxu0 0.0
        %1300 = vmatpush1.msra.mxu0 0.0
        %1301 = vmatprep.subr.mxu0 0.0
        %1302 = vmatpush1.msra.mxu0 0.0
        %1303 = vmatprep.subr.mxu0 0.0
        %1304 = vmatpush1.msra.mxu0 0.0
        %1305 = vmatprep.subr.mxu0 0.0
        %1306 = vmatpush1.msra.mxu0 0.0
        %1307 = vmatprep.subr.mxu0 0.0
        %1308 = vmatpush1.msra.mxu0 0.0
        %1309 = vmatprep.subr.mxu0 0.0
        %1310 = vmatpush1.msra.mxu0 0.0
        %1311 = vmatprep.subr.mxu0 0.0
        %1312 = vmatpush1.msra.mxu0 0.0
        %1313 = vmatprep.subr.mxu0 0.0
        %1314 = vmatpush1.msra.mxu0 0.0
        %1315 = vmatprep.subr.mxu0 0.0
        %1316 = vmatpush1.msra.mxu0 0.0
        %1317 = vmatprep.subr.mxu0 0.0
        %1318 = vmatpush1.msra.mxu0 0.0
        %1319 = vmatprep.subr.mxu0 0.0
        %1320 = vmatpush1.msra.mxu0 0.0
        %1321 = vmatprep.subr.mxu0 0.0
        %1322 = vmatpush1.msra.mxu0 0.0
        %1323 = vmatprep.subr.mxu0 0.0
        %1324 = vmatpush1.msra.mxu0 0.0
        %1325 = vmatprep.subr.mxu0 0.0
        %1326 = vmatpush1.msra.mxu0 0.0
        %1327 = vmatprep.subr.mxu0 0.0
        %1328 = vmatpush1.msra.mxu0 0.0
        %1329 = vmatprep.subr.mxu0 0.0
        %1330 = vmatpush1.msra.mxu0 0.0
        %1331 = vmatprep.subr.mxu0 0.0
        %1332 = vmatpush1.msra.mxu0 0.0
        %1333 = vmatprep.subr.mxu0 0.0
        %1334 = vmatpush1.msra.mxu0 0.0
        %1335 = vmatprep.subr.mxu0 0.0
        %1336 = vmatpush1.msra.mxu0 0.0
        %1337 = vmatprep.subr.mxu0 0.0
        %1338 = vmatpush1.msra.mxu0 0.0
        %1339 = vmatprep.subr.mxu0 0.0
        %1340 = vmatpush1.msra.mxu0 0.0
        %1341 = vmatprep.subr.mxu0 0.0
        %1342 = vmatpush1.msra.mxu0 0.0
        %1343 = vmatprep.mubr.f32.mxu0 0.0
        %1344 = vmatmul.mubr.f32.gmra.mrb[0].mxu0 %v869
        %v1345 = vpop.f32.mrb[0].mxu0
        %v1346 = vadd.f32 0.0, %v1345
        %v1347 = vpop.f32.mrb[0].mxu0
        %v1348 = vadd.f32 0.0, %v1347
        %1349 = vmatprep.mubr.f32.mxu0 0.0
        %1350 = vmatmul.mubr.f32.gmra.mrb[0].mxu0 %v872
        %v1351 = vpop.f32.mrb[0].mxu0
        %v1352 = vadd.f32 0.0, %v1351
        %v1353 = vpop.f32.mrb[0].mxu0
        %v1354 = vadd.f32 0.0, %v1353
        %1355 = vdwg.mxu0
        %1356 = vmatprep.subr.mxu0 %v909
        %1357 = vmatpush1.msra.mxu0 %v906
        %1358 = vmatprep.subr.mxu0 0.0
        %1359 = vmatpush1.msra.mxu0 0.0
        %1360 = vmatprep.subr.mxu0 0.0
        %1361 = vmatpush1.msra.mxu0 0.0
        %1362 = vmatprep.subr.mxu0 0.0
        %1363 = vmatpush1.msra.mxu0 0.0
        %1364 = vmatprep.subr.mxu0 0.0
        %1365 = vmatpush1.msra.mxu0 0.0
        %1366 = vmatprep.subr.mxu0 0.0
        %1367 = vmatpush1.msra.mxu0 0.0
        %1368 = vmatprep.subr.mxu0 0.0
        %1369 = vmatpush1.msra.mxu0 0.0
        %1370 = vmatprep.subr.mxu0 0.0
        %1371 = vmatpush1.msra.mxu0 0.0
        %1372 = vmatprep.subr.mxu0 0.0
        %1373 = vmatpush1.msra.mxu0 0.0
        %1374 = vmatprep.subr.mxu0 0.0
        %1375 = vmatpush1.msra.mxu0 0.0
        %1376 = vmatprep.subr.mxu0 0.0
        %1377 = vmatpush1.msra.mxu0 0.0
        %1378 = vmatprep.subr.mxu0 0.0
        %1379 = vmatpush1.msra.mxu0 0.0
        %1380 = vmatprep.subr.mxu0 0.0
        %1381 = vmatpush1.msra.mxu0 0.0
        %1382 = vmatprep.subr.mxu0 0.0
        %1383 = vmatpush1.msra.mxu0 0.0
        %1384 = vmatprep.subr.mxu0 0.0
        %1385 = vmatpush1.msra.mxu0 0.0
        %1386 = vmatprep.subr.mxu0 0.0
        %1387 = vmatpush1.msra.mxu0 0.0
        %1388 = vmatprep.subr.mxu0 0.0
        %1389 = vmatpush1.msra.mxu0 0.0
        %1390 = vmatprep.subr.mxu0 0.0
        %1391 = vmatpush1.msra.mxu0 0.0
        %1392 = vmatprep.subr.mxu0 0.0
        %1393 = vmatpush1.msra.mxu0 0.0
        %1394 = vmatprep.subr.mxu0 0.0
        %1395 = vmatpush1.msra.mxu0 0.0
        %1396 = vmatprep.subr.mxu0 0.0
        %1397 = vmatpush1.msra.mxu0 0.0
        %1398 = vmatprep.subr.mxu0 0.0
        %1399 = vmatpush1.msra.mxu0 0.0
        %1400 = vmatprep.subr.mxu0 0.0
        %1401 = vmatpush1.msra.mxu0 0.0
        %1402 = vmatprep.subr.mxu0 0.0
        %1403 = vmatpush1.msra.mxu0 0.0
        %1404 = vmatprep.subr.mxu0 0.0
        %1405 = vmatpush1.msra.mxu0 0.0
        %1406 = vmatprep.subr.mxu0 0.0
        %1407 = vmatpush1.msra.mxu0 0.0
        %1408 = vmatprep.subr.mxu0 0.0
        %1409 = vmatpush1.msra.mxu0 0.0
        %1410 = vmatprep.subr.mxu0 0.0
        %1411 = vmatpush1.msra.mxu0 0.0
        %1412 = vmatprep.subr.mxu0 0.0
        %1413 = vmatpush1.msra.mxu0 0.0
        %1414 = vmatprep.subr.mxu0 0.0
        %1415 = vmatpush1.msra.mxu0 0.0
        %1416 = vmatprep.subr.mxu0 0.0
        %1417 = vmatpush1.msra.mxu0 0.0
        %1418 = vmatprep.subr.mxu0 0.0
        %1419 = vmatpush1.msra.mxu0 0.0
        %1420 = vmatprep.mubr.f32.mxu0 0.0
        %1421 = vmatmul.mubr.f32.gmra.mrb[0].mxu0 %v869
        %v1422 = vpop.f32.mrb[0].mxu0
        %v1423 = vadd.f32 0.0, %v1422
        %v1424 = vpop.f32.mrb[0].mxu0
        %v1425 = vadd.f32 0.0, %v1424
        %1426 = vmatprep.mubr.f32.mxu0 0.0
        %1427 = vmatmul.mubr.f32.gmra.mrb[0].mxu0 %v872
        %v1428 = vpop.f32.mrb[0].mxu0
        %v1429 = vadd.f32 0.0, %v1428
        %v1430 = vpop.f32.mrb[0].mxu0
        %v1431 = vadd.f32 0.0, %v1430
        %1432 = vdwg.mxu0
        %1433 = vmatprep.subr.mxu0 %v915
        %1434 = vmatpush1.msra.mxu0 %v912
        %1435 = vmatprep.subr.mxu0 0.0
        %1436 = vmatpush1.msra.mxu0 0.0
        %1437 = vmatprep.subr.mxu0 0.0
        %1438 = vmatpush1.msra.mxu0 0.0
        %1439 = vmatprep.subr.mxu0 0.0
        %1440 = vmatpush1.msra.mxu0 0.0
        %1441 = vmatprep.subr.mxu0 0.0
        %1442 = vmatpush1.msra.mxu0 0.0
        %1443 = vmatprep.subr.mxu0 0.0
        %1444 = vmatpush1.msra.mxu0 0.0
        %1445 = vmatprep.subr.mxu0 0.0
        %1446 = vmatpush1.msra.mxu0 0.0
        %1447 = vmatprep.subr.mxu0 0.0
        %1448 = vmatpush1.msra.mxu0 0.0
        %1449 = vmatprep.subr.mxu0 0.0
        %1450 = vmatpush1.msra.mxu0 0.0
        %1451 = vmatprep.subr.mxu0 0.0
        %1452 = vmatpush1.msra.mxu0 0.0
        %1453 = vmatprep.subr.mxu0 0.0
        %1454 = vmatpush1.msra.mxu0 0.0
        %1455 = vmatprep.subr.mxu0 0.0
        %1456 = vmatpush1.msra.mxu0 0.0
        %1457 = vmatprep.subr.mxu0 0.0
        %1458 = vmatpush1.msra.mxu0 0.0
        %1459 = vmatprep.subr.mxu0 0.0
        %1460 = vmatpush1.msra.mxu0 0.0
        %1461 = vmatprep.subr.mxu0 0.0
        %1462 = vmatpush1.msra.mxu0 0.0
        %1463 = vmatprep.subr.mxu0 0.0
        %1464 = vmatpush1.msra.mxu0 0.0
        %1465 = vmatprep.subr.mxu0 0.0
        %1466 = vmatpush1.msra.mxu0 0.0
        %1467 = vmatprep.subr.mxu0 0.0
        %1468 = vmatpush1.msra.mxu0 0.0
        %1469 = vmatprep.subr.mxu0 0.0
        %1470 = vmatpush1.msra.mxu0 0.0
        %1471 = vmatprep.subr.mxu0 0.0
        %1472 = vmatpush1.msra.mxu0 0.0
        %1473 = vmatprep.subr.mxu0 0.0
        %1474 = vmatpush1.msra.mxu0 0.0
        %1475 = vmatprep.subr.mxu0 0.0
        %1476 = vmatpush1.msra.mxu0 0.0
        %1477 = vmatprep.subr.mxu0 0.0
        %1478 = vmatpush1.msra.mxu0 0.0
        %1479 = vmatprep.subr.mxu0 0.0
        %1480 = vmatpush1.msra.mxu0 0.0
        %1481 = vmatprep.subr.mxu0 0.0
        %1482 = vmatpush1.msra.mxu0 0.0
        %1483 = vmatprep.subr.mxu0 0.0
        %1484 = vmatpush1.msra.mxu0 0.0
        %1485 = vmatprep.subr.mxu0 0.0
        %1486 = vmatpush1.msra.mxu0 0.0
        %1487 = vmatprep.subr.mxu0 0.0
        %1488 = vmatpush1.msra.mxu0 0.0
        %1489 = vmatprep.subr.mxu0 0.0
        %1490 = vmatpush1.msra.mxu0 0.0
        %1491 = vmatprep.subr.mxu0 0.0
        %1492 = vmatpush1.msra.mxu0 0.0
        %1493 = vmatprep.subr.mxu0 0.0
        %1494 = vmatpush1.msra.mxu0 0.0
        %1495 = vmatprep.subr.mxu0 0.0
        %1496 = vmatpush1.msra.mxu0 0.0
        %1497 = vmatprep.mubr.f32.mxu0 0.0
        %1498 = vmatmul.mubr.f32.gmra.mrb[0].mxu0 %v869
        %v1499 = vpop.f32.mrb[0].mxu0
        %v1500 = vadd.f32 0.0, %v1499
        %v1501 = vpop.f32.mrb[0].mxu0
        %v1502 = vadd.f32 0.0, %v1501
        %1503 = vmatprep.mubr.f32.mxu0 0.0
        %1504 = vmatmul.mubr.f32.gmra.mrb[0].mxu0 %v872
        %v1505 = vpop.f32.mrb[0].mxu0
        %v1506 = vadd.f32 0.0, %v1505
        %v1507 = vpop.f32.mrb[0].mxu0
        %v1508 = vadd.f32 0.0, %v1507
        %1509 = vdwg.mxu0
        %1510 = vmatprep.subr.mxu0 %v921
        %1511 = vmatpush1.msra.mxu0 %v918
        %1512 = vmatprep.subr.mxu0 0.0
        %1513 = vmatpush1.msra.mxu0 0.0
        %1514 = vmatprep.subr.mxu0 0.0
        %1515 = vmatpush1.msra.mxu0 0.0
        %1516 = vmatprep.subr.mxu0 0.0
        %1517 = vmatpush1.msra.mxu0 0.0
        %1518 = vmatprep.subr.mxu0 0.0
        %1519 = vmatpush1.msra.mxu0 0.0
        %1520 = vmatprep.subr.mxu0 0.0
        %1521 = vmatpush1.msra.mxu0 0.0
        %1522 = vmatprep.subr.mxu0 0.0
        %1523 = vmatpush1.msra.mxu0 0.0
        %1524 = vmatprep.subr.mxu0 0.0
        %1525 = vmatpush1.msra.mxu0 0.0
        %1526 = vmatprep.subr.mxu0 0.0
        %1527 = vmatpush1.msra.mxu0 0.0
        %1528 = vmatprep.subr.mxu0 0.0
        %1529 = vmatpush1.msra.mxu0 0.0
        %1530 = vmatprep.subr.mxu0 0.0
        %1531 = vmatpush1.msra.mxu0 0.0
        %1532 = vmatprep.subr.mxu0 0.0
        %1533 = vmatpush1.msra.mxu0 0.0
        %1534 = vmatprep.subr.mxu0 0.0
        %1535 = vmatpush1.msra.mxu0 0.0
        %1536 = vmatprep.subr.mxu0 0.0
        %1537 = vmatpush1.msra.mxu0 0.0
        %1538 = vmatprep.subr.mxu0 0.0
        %1539 = vmatpush1.msra.mxu0 0.0
        %1540 = vmatprep.subr.mxu0 0.0
        %1541 = vmatpush1.msra.mxu0 0.0
        %1542 = vmatprep.subr.mxu0 0.0
        %1543 = vmatpush1.msra.mxu0 0.0
        %1544 = vmatprep.subr.mxu0 0.0
        %1545 = vmatpush1.msra.mxu0 0.0
        %1546 = vmatprep.subr.mxu0 0.0
        %1547 = vmatpush1.msra.mxu0 0.0
        %1548 = vmatprep.subr.mxu0 0.0
        %1549 = vmatpush1.msra.mxu0 0.0
        %1550 = vmatprep.subr.mxu0 0.0
        %1551 = vmatpush1.msra.mxu0 0.0
        %1552 = vmatprep.subr.mxu0 0.0
        %1553 = vmatpush1.msra.mxu0 0.0
        %1554 = vmatprep.subr.mxu0 0.0
        %1555 = vmatpush1.msra.mxu0 0.0
        %1556 = vmatprep.subr.mxu0 0.0
        %1557 = vmatpush1.msra.mxu0 0.0
        %1558 = vmatprep.subr.mxu0 0.0
        %1559 = vmatpush1.msra.mxu0 0.0
        %1560 = vmatprep.subr.mxu0 0.0
        %1561 = vmatpush1.msra.mxu0 0.0
        %1562 = vmatprep.subr.mxu0 0.0
        %1563 = vmatpush1.msra.mxu0 0.0
        %1564 = vmatprep.subr.mxu0 0.0
        %1565 = vmatpush1.msra.mxu0 0.0
        %1566 = vmatprep.subr.mxu0 0.0
        %1567 = vmatpush1.msra.mxu0 0.0
        %1568 = vmatprep.subr.mxu0 0.0
        %1569 = vmatpush1.msra.mxu0 0.0
        %1570 = vmatprep.subr.mxu0 0.0
        %1571 = vmatpush1.msra.mxu0 0.0
        %1572 = vmatprep.subr.mxu0 0.0
        %1573 = vmatpush1.msra.mxu0 0.0
        %1574 = vmatprep.mubr.f32.mxu0 0.0
        %1575 = vmatmul.mubr.f32.gmra.mrb[0].mxu0 %v869
        %v1576 = vpop.f32.mrb[0].mxu0
        %v1577 = vadd.f32 0.0, %v1576
        %v1578 = vpop.f32.mrb[0].mxu0
        %v1579 = vadd.f32 0.0, %v1578
        %1580 = vmatprep.mubr.f32.mxu0 0.0
        %1581 = vmatmul.mubr.f32.gmra.mrb[0].mxu0 %v872
        %v1582 = vpop.f32.mrb[0].mxu0
        %v1583 = vadd.f32 0.0, %v1582
        %v1584 = vpop.f32.mrb[0].mxu0
        %v1585 = vadd.f32 0.0, %v1584
        %1586 = vdwg.mxu0
        %1587 = vmatprep.subr.mxu0 %v927
        %1588 = vmatpush1.msra.mxu0 %v924
        %1589 = vmatprep.subr.mxu0 0.0
        %1590 = vmatpush1.msra.mxu0 0.0
        %1591 = vmatprep.subr.mxu0 0.0
        %1592 = vmatpush1.msra.mxu0 0.0
        %1593 = vmatprep.subr.mxu0 0.0
        %1594 = vmatpush1.msra.mxu0 0.0
        %1595 = vmatprep.subr.mxu0 0.0
        %1596 = vmatpush1.msra.mxu0 0.0
        %1597 = vmatprep.subr.mxu0 0.0
        %1598 = vmatpush1.msra.mxu0 0.0
        %1599 = vmatprep.subr.mxu0 0.0
        %1600 = vmatpush1.msra.mxu0 0.0
        %1601 = vmatprep.subr.mxu0 0.0
        %1602 = vmatpush1.msra.mxu0 0.0
        %1603 = vmatprep.subr.mxu0 0.0
        %1604 = vmatpush1.msra.mxu0 0.0
        %1605 = vmatprep.subr.mxu0 0.0
        %1606 = vmatpush1.msra.mxu0 0.0
        %1607 = vmatprep.subr.mxu0 0.0
        %1608 = vmatpush1.msra.mxu0 0.0
        %1609 = vmatprep.subr.mxu0 0.0
        %1610 = vmatpush1.msra.mxu0 0.0
        %1611 = vmatprep.subr.mxu0 0.0
        %1612 = vmatpush1.msra.mxu0 0.0
        %1613 = vmatprep.subr.mxu0 0.0
        %1614 = vmatpush1.msra.mxu0 0.0
        %1615 = vmatprep.subr.mxu0 0.0
        %1616 = vmatpush1.msra.mxu0 0.0
        %1617 = vmatprep.subr.mxu0 0.0
        %1618 = vmatpush1.msra.mxu0 0.0
        %1619 = vmatprep.subr.mxu0 0.0
        %1620 = vmatpush1.msra.mxu0 0.0
        %1621 = vmatprep.subr.mxu0 0.0
        %1622 = vmatpush1.msra.mxu0 0.0
        %1623 = vmatprep.subr.mxu0 0.0
        %1624 = vmatpush1.msra.mxu0 0.0
        %1625 = vmatprep.subr.mxu0 0.0
        %1626 = vmatpush1.msra.mxu0 0.0
        %1627 = vmatprep.subr.mxu0 0.0
        %1628 = vmatpush1.msra.mxu0 0.0
        %1629 = vmatprep.subr.mxu0 0.0
        %1630 = vmatpush1.msra.mxu0 0.0
        %1631 = vmatprep.subr.mxu0 0.0
        %1632 = vmatpush1.msra.mxu0 0.0
        %1633 = vmatprep.subr.mxu0 0.0
        %1634 = vmatpush1.msra.mxu0 0.0
        %1635 = vmatprep.subr.mxu0 0.0
        %1636 = vmatpush1.msra.mxu0 0.0
        %1637 = vmatprep.subr.mxu0 0.0
        %1638 = vmatpush1.msra.mxu0 0.0
        %1639 = vmatprep.subr.mxu0 0.0
        %1640 = vmatpush1.msra.mxu0 0.0
        %1641 = vmatprep.subr.mxu0 0.0
        %1642 = vmatpush1.msra.mxu0 0.0
        %1643 = vmatprep.subr.mxu0 0.0
        %1644 = vmatpush1.msra.mxu0 0.0
        %1645 = vmatprep.subr.mxu0 0.0
        %1646 = vmatpush1.msra.mxu0 0.0
        %1647 = vmatprep.subr.mxu0 0.0
        %1648 = vmatpush1.msra.mxu0 0.0
        %1649 = vmatprep.subr.mxu0 0.0
        %1650 = vmatpush1.msra.mxu0 0.0
        %1651 = vmatprep.mubr.f32.mxu0 0.0
        %1652 = vmatmul.mubr.f32.gmra.mrb[0].mxu0 %v869
        %v1653 = vpop.f32.mrb[0].mxu0
        %v1654 = vadd.f32 0.0, %v1653
        %v1655 = vpop.f32.mrb[0].mxu0
        %v1656 = vadd.f32 0.0, %v1655
        %1657 = vmatprep.mubr.f32.mxu0 0.0
        %1658 = vmatmul.mubr.f32.gmra.mrb[0].mxu0 %v872
        %v1659 = vpop.f32.mrb[0].mxu0
        %v1660 = vadd.f32 0.0, %v1659
        %v1661 = vpop.f32.mrb[0].mxu0
        %v1662 = vadd.f32 0.0, %v1661
        %1663 = vdwg.mxu0
        %1664 = vmatprep.subr.mxu0 %v933
        %1665 = vmatpush1.msra.mxu0 %v930
        %1666 = vmatprep.subr.mxu0 0.0
        %1667 = vmatpush1.msra.mxu0 0.0
        %1668 = vmatprep.subr.mxu0 0.0
        %1669 = vmatpush1.msra.mxu0 0.0
        %1670 = vmatprep.subr.mxu0 0.0
        %1671 = vmatpush1.msra.mxu0 0.0
        %1672 = vmatprep.subr.mxu0 0.0
        %1673 = vmatpush1.msra.mxu0 0.0
        %1674 = vmatprep.subr.mxu0 0.0
        %1675 = vmatpush1.msra.mxu0 0.0
        %1676 = vmatprep.subr.mxu0 0.0
        %1677 = vmatpush1.msra.mxu0 0.0
        %1678 = vmatprep.subr.mxu0 0.0
        %1679 = vmatpush1.msra.mxu0 0.0
        %1680 = vmatprep.subr.mxu0 0.0
        %1681 = vmatpush1.msra.mxu0 0.0
        %1682 = vmatprep.subr.mxu0 0.0
        %1683 = vmatpush1.msra.mxu0 0.0
        %1684 = vmatprep.subr.mxu0 0.0
        %1685 = vmatpush1.msra.mxu0 0.0
        %1686 = vmatprep.subr.mxu0 0.0
        %1687 = vmatpush1.msra.mxu0 0.0
        %1688 = vmatprep.subr.mxu0 0.0
        %1689 = vmatpush1.msra.mxu0 0.0
        %1690 = vmatprep.subr.mxu0 0.0
        %1691 = vmatpush1.msra.mxu0 0.0
        %1692 = vmatprep.subr.mxu0 0.0
        %1693 = vmatpush1.msra.mxu0 0.0
        %1694 = vmatprep.subr.mxu0 0.0
        %1695 = vmatpush1.msra.mxu0 0.0
        %1696 = vmatprep.subr.mxu0 0.0
        %1697 = vmatpush1.msra.mxu0 0.0
        %1698 = vmatprep.subr.mxu0 0.0
        %1699 = vmatpush1.msra.mxu0 0.0
        %1700 = vmatprep.subr.mxu0 0.0
        %1701 = vmatpush1.msra.mxu0 0.0
        %1702 = vmatprep.subr.mxu0 0.0
        %1703 = vmatpush1.msra.mxu0 0.0
        %1704 = vmatprep.subr.mxu0 0.0
        %1705 = vmatpush1.msra.mxu0 0.0
        %1706 = vmatprep.subr.mxu0 0.0
        %1707 = vmatpush1.msra.mxu0 0.0
        %1708 = vmatprep.subr.mxu0 0.0
        %1709 = vmatpush1.msra.mxu0 0.0
        %1710 = vmatprep.subr.mxu0 0.0
        %1711 = vmatpush1.msra.mxu0 0.0
        %1712 = vmatprep.subr.mxu0 0.0
        %1713 = vmatpush1.msra.mxu0 0.0
        %1714 = vmatprep.subr.mxu0 0.0
        %1715 = vmatpush1.msra.mxu0 0.0
        %1716 = vmatprep.subr.mxu0 0.0
        %1717 = vmatpush1.msra.mxu0 0.0
        %1718 = vmatprep.subr.mxu0 0.0
        %1719 = vmatpush1.msra.mxu0 0.0
        %1720 = vmatprep.subr.mxu0 0.0
        %1721 = vmatpush1.msra.mxu0 0.0
        %1722 = vmatprep.subr.mxu0 0.0
        %1723 = vmatpush1.msra.mxu0 0.0
        %1724 = vmatprep.subr.mxu0 0.0
        %1725 = vmatpush1.msra.mxu0 0.0
        %1726 = vmatprep.subr.mxu0 0.0
        %1727 = vmatpush1.msra.mxu0 0.0
        %1728 = vmatprep.mubr.f32.mxu0 0.0
        %1729 = vmatmul.mubr.f32.gmra.mrb[0].mxu0 %v869
        %v1730 = vpop.f32.mrb[0].mxu0
        %v1731 = vadd.f32 0.0, %v1730
        %v1732 = vpop.f32.mrb[0].mxu0
        %v1733 = vadd.f32 0.0, %v1732
        %1734 = vmatprep.mubr.f32.mxu0 0.0
        %1735 = vmatmul.mubr.f32.gmra.mrb[0].mxu0 %v872
        %v1736 = vpop.f32.mrb[0].mxu0
        %v1737 = vadd.f32 0.0, %v1736
        %v1738 = vpop.f32.mrb[0].mxu0
        %v1739 = vadd.f32 0.0, %v1738
        %1740 = vdwg.mxu0
        %1741 = vmatprep.subr.mxu0 %v939
        %1742 = vmatpush1.msra.mxu0 %v936
        %1743 = vmatprep.subr.mxu0 0.0
        %1744 = vmatpush1.msra.mxu0 0.0
        %1745 = vmatprep.subr.mxu0 0.0
        %1746 = vmatpush1.msra.mxu0 0.0
        %1747 = vmatprep.subr.mxu0 0.0
        %1748 = vmatpush1.msra.mxu0 0.0
        %1749 = vmatprep.subr.mxu0 0.0
        %1750 = vmatpush1.msra.mxu0 0.0
        %1751 = vmatprep.subr.mxu0 0.0
        %1752 = vmatpush1.msra.mxu0 0.0
        %1753 = vmatprep.subr.mxu0 0.0
        %1754 = vmatpush1.msra.mxu0 0.0
        %1755 = vmatprep.subr.mxu0 0.0
        %1756 = vmatpush1.msra.mxu0 0.0
        %1757 = vmatprep.subr.mxu0 0.0
        %1758 = vmatpush1.msra.mxu0 0.0
        %1759 = vmatprep.subr.mxu0 0.0
        %1760 = vmatpush1.msra.mxu0 0.0
        %1761 = vmatprep.subr.mxu0 0.0
        %1762 = vmatpush1.msra.mxu0 0.0
        %1763 = vmatprep.subr.mxu0 0.0
        %1764 = vmatpush1.msra.mxu0 0.0
        %1765 = vmatprep.subr.mxu0 0.0
        %1766 = vmatpush1.msra.mxu0 0.0
        %1767 = vmatprep.subr.mxu0 0.0
        %1768 = vmatpush1.msra.mxu0 0.0
        %1769 = vmatprep.subr.mxu0 0.0
        %1770 = vmatpush1.msra.mxu0 0.0
        %1771 = vmatprep.subr.mxu0 0.0
        %1772 = vmatpush1.msra.mxu0 0.0
        %1773 = vmatprep.subr.mxu0 0.0
        %1774 = vmatpush1.msra.mxu0 0.0
        %1775 = vmatprep.subr.mxu0 0.0
        %1776 = vmatpush1.msra.mxu0 0.0
        %1777 = vmatprep.subr.mxu0 0.0
        %1778 = vmatpush1.msra.mxu0 0.0
        %1779 = vmatprep.subr.mxu0 0.0
        %1780 = vmatpush1.msra.mxu0 0.0
        %1781 = vmatprep.subr.mxu0 0.0
        %1782 = vmatpush1.msra.mxu0 0.0
        %1783 = vmatprep.subr.mxu0 0.0
        %1784 = vmatpush1.msra.mxu0 0.0
        %1785 = vmatprep.subr.mxu0 0.0
        %1786 = vmatpush1.msra.mxu0 0.0
        %1787 = vmatprep.subr.mxu0 0.0
        %1788 = vmatpush1.msra.mxu0 0.0
        %1789 = vmatprep.subr.mxu0 0.0
        %1790 = vmatpush1.msra.mxu0 0.0
        %1791 = vmatprep.subr.mxu0 0.0
        %1792 = vmatpush1.msra.mxu0 0.0
        %1793 = vmatprep.subr.mxu0 0.0
        %1794 = vmatpush1.msra.mxu0 0.0
        %1795 = vmatprep.subr.mxu0 0.0
        %1796 = vmatpush1.msra.mxu0 0.0
        %1797 = vmatprep.subr.mxu0 0.0
        %1798 = vmatpush1.msra.mxu0 0.0
        %1799 = vmatprep.subr.mxu0 0.0
        %1800 = vmatpush1.msra.mxu0 0.0
        %1801 = vmatprep.subr.mxu0 0.0
        %1802 = vmatpush1.msra.mxu0 0.0
        %1803 = vmatprep.subr.mxu0 0.0
        %1804 = vmatpush1.msra.mxu0 0.0
        %1805 = vmatprep.mubr.f32.mxu0 0.0
        %1806 = vmatmul.mubr.f32.gmra.mrb[0].mxu0 %v869
        %v1807 = vpop.f32.mrb[0].mxu0
        %v1808 = vadd.f32 0.0, %v1807
        %v1809 = vpop.f32.mrb[0].mxu0
        %v1810 = vadd.f32 0.0, %v1809
        %1811 = vmatprep.mubr.f32.mxu0 0.0
        %1812 = vmatmul.mubr.f32.gmra.mrb[0].mxu0 %v872
        %v1813 = vpop.f32.mrb[0].mxu0
        %v1814 = vadd.f32 0.0, %v1813
        %v1815 = vpop.f32.mrb[0].mxu0
        %v1816 = vadd.f32 0.0, %v1815
        %1817 = vdwg.mxu0
        %1818 = vmatprep.subr.mxu0 %v945
        %1819 = vmatpush1.msra.mxu0 %v942
        %1820 = vmatprep.subr.mxu0 0.0
        %1821 = vmatpush1.msra.mxu0 0.0
        %1822 = vmatprep.subr.mxu0 0.0
        %1823 = vmatpush1.msra.mxu0 0.0
        %1824 = vmatprep.subr.mxu0 0.0
        %1825 = vmatpush1.msra.mxu0 0.0
        %1826 = vmatprep.subr.mxu0 0.0
        %1827 = vmatpush1.msra.mxu0 0.0
        %1828 = vmatprep.subr.mxu0 0.0
        %1829 = vmatpush1.msra.mxu0 0.0
        %1830 = vmatprep.subr.mxu0 0.0
        %1831 = vmatpush1.msra.mxu0 0.0
        %1832 = vmatprep.subr.mxu0 0.0
        %1833 = vmatpush1.msra.mxu0 0.0
        %1834 = vmatprep.subr.mxu0 0.0
        %1835 = vmatpush1.msra.mxu0 0.0
        %1836 = vmatprep.subr.mxu0 0.0
        %1837 = vmatpush1.msra.mxu0 0.0
        %1838 = vmatprep.subr.mxu0 0.0
        %1839 = vmatpush1.msra.mxu0 0.0
        %1840 = vmatprep.subr.mxu0 0.0
        %1841 = vmatpush1.msra.mxu0 0.0
        %1842 = vmatprep.subr.mxu0 0.0
        %1843 = vmatpush1.msra.mxu0 0.0
        %1844 = vmatprep.subr.mxu0 0.0
        %1845 = vmatpush1.msra.mxu0 0.0
        %1846 = vmatprep.subr.mxu0 0.0
        %1847 = vmatpush1.msra.mxu0 0.0
        %1848 = vmatprep.subr.mxu0 0.0
        %1849 = vmatpush1.msra.mxu0 0.0
        %1850 = vmatprep.subr.mxu0 0.0
        %1851 = vmatpush1.msra.mxu0 0.0
        %1852 = vmatprep.subr.mxu0 0.0
        %1853 = vmatpush1.msra.mxu0 0.0
        %1854 = vmatprep.subr.mxu0 0.0
        %1855 = vmatpush1.msra.mxu0 0.0
        %1856 = vmatprep.subr.mxu0 0.0
        %1857 = vmatpush1.msra.mxu0 0.0
        %1858 = vmatprep.subr.mxu0 0.0
        %1859 = vmatpush1.msra.mxu0 0.0
        %1860 = vmatprep.subr.mxu0 0.0
        %1861 = vmatpush1.msra.mxu0 0.0
        %1862 = vmatprep.subr.mxu0 0.0
        %1863 = vmatpush1.msra.mxu0 0.0
        %1864 = vmatprep.subr.mxu0 0.0
        %1865 = vmatpush1.msra.mxu0 0.0
        %1866 = vmatprep.subr.mxu0 0.0
        %1867 = vmatpush1.msra.mxu0 0.0
        %1868 = vmatprep.subr.mxu0 0.0
        %1869 = vmatpush1.msra.mxu0 0.0
        %1870 = vmatprep.subr.mxu0 0.0
        %1871 = vmatpush1.msra.mxu0 0.0
        %1872 = vmatprep.subr.mxu0 0.0
        %1873 = vmatpush1.msra.mxu0 0.0
        %1874 = vmatprep.subr.mxu0 0.0
        %1875 = vmatpush1.msra.mxu0 0.0
        %1876 = vmatprep.subr.mxu0 0.0
        %1877 = vmatpush1.msra.mxu0 0.0
        %1878 = vmatprep.subr.mxu0 0.0
        %1879 = vmatpush1.msra.mxu0 0.0
        %1880 = vmatprep.subr.mxu0 0.0
        %1881 = vmatpush1.msra.mxu0 0.0
        %1882 = vmatprep.mubr.f32.mxu0 0.0
        %1883 = vmatmul.mubr.f32.gmra.mrb[0].mxu0 %v869
        %v1884 = vpop.f32.mrb[0].mxu0
        %v1885 = vadd.f32 0.0, %v1884
        %v1886 = vpop.f32.mrb[0].mxu0
        %v1887 = vadd.f32 0.0, %v1886
        %1888 = vmatprep.mubr.f32.mxu0 0.0
        %1889 = vmatmul.mubr.f32.gmra.mrb[0].mxu0 %v872
        %v1890 = vpop.f32.mrb[0].mxu0
        %v1891 = vadd.f32 0.0, %v1890
        %v1892 = vpop.f32.mrb[0].mxu0
        %v1893 = vadd.f32 0.0, %v1892
        %1894 = vdwg.mxu0
        %1895 = vmatprep.subr.mxu0 %v951
        %1896 = vmatpush1.msra.mxu0 %v948
        %1897 = vmatprep.subr.mxu0 0.0
        %1898 = vmatpush1.msra.mxu0 0.0
        %1899 = vmatprep.subr.mxu0 0.0
        %1900 = vmatpush1.msra.mxu0 0.0
        %1901 = vmatprep.subr.mxu0 0.0
        %1902 = vmatpush1.msra.mxu0 0.0
        %1903 = vmatprep.subr.mxu0 0.0
        %1904 = vmatpush1.msra.mxu0 0.0
        %1905 = vmatprep.subr.mxu0 0.0
        %1906 = vmatpush1.msra.mxu0 0.0
        %1907 = vmatprep.subr.mxu0 0.0
        %1908 = vmatpush1.msra.mxu0 0.0
        %1909 = vmatprep.subr.mxu0 0.0
        %1910 = vmatpush1.msra.mxu0 0.0
        %1911 = vmatprep.subr.mxu0 0.0
        %1912 = vmatpush1.msra.mxu0 0.0
        %1913 = vmatprep.subr.mxu0 0.0
        %1914 = vmatpush1.msra.mxu0 0.0
        %1915 = vmatprep.subr.mxu0 0.0
        %1916 = vmatpush1.msra.mxu0 0.0
        %1917 = vmatprep.subr.mxu0 0.0
        %1918 = vmatpush1.msra.mxu0 0.0
        %1919 = vmatprep.subr.mxu0 0.0
        %1920 = vmatpush1.msra.mxu0 0.0
        %1921 = vmatprep.subr.mxu0 0.0
        %1922 = vmatpush1.msra.mxu0 0.0
        %1923 = vmatprep.subr.mxu0 0.0
        %1924 = vmatpush1.msra.mxu0 0.0
        %1925 = vmatprep.subr.mxu0 0.0
        %1926 = vmatpush1.msra.mxu0 0.0
        %1927 = vmatprep.subr.mxu0 0.0
        %1928 = vmatpush1.msra.mxu0 0.0
        %1929 = vmatprep.subr.mxu0 0.0
        %1930 = vmatpush1.msra.mxu0 0.0
        %1931 = vmatprep.subr.mxu0 0.0
        %1932 = vmatpush1.msra.mxu0 0.0
        %1933 = vmatprep.subr.mxu0 0.0
        %1934 = vmatpush1.msra.mxu0 0.0
        %1935 = vmatprep.subr.mxu0 0.0
        %1936 = vmatpush1.msra.mxu0 0.0
        %1937 = vmatprep.subr.mxu0 0.0
        %1938 = vmatpush1.msra.mxu0 0.0
        %1939 = vmatprep.subr.mxu0 0.0
        %1940 = vmatpush1.msra.mxu0 0.0
        %1941 = vmatprep.subr.mxu0 0.0
        %1942 = vmatpush1.msra.mxu0 0.0
        %1943 = vmatprep.subr.mxu0 0.0
        %1944 = vmatpush1.msra.mxu0 0.0
        %1945 = vmatprep.subr.mxu0 0.0
        %1946 = vmatpush1.msra.mxu0 0.0
        %1947 = vmatprep.subr.mxu0 0.0
        %1948 = vmatpush1.msra.mxu0 0.0
        %1949 = vmatprep.subr.mxu0 0.0
        %1950 = vmatpush1.msra.mxu0 0.0
        %1951 = vmatprep.subr.mxu0 0.0
        %1952 = vmatpush1.msra.mxu0 0.0
        %1953 = vmatprep.subr.mxu0 0.0
        %1954 = vmatpush1.msra.mxu0 0.0
        %1955 = vmatprep.subr.mxu0 0.0
        %1956 = vmatpush1.msra.mxu0 0.0
        %1957 = vmatprep.subr.mxu0 0.0
        %1958 = vmatpush1.msra.mxu0 0.0
        %1959 = vmatprep.mubr.f32.mxu0 0.0
        %1960 = vmatmul.mubr.f32.gmra.mrb[0].mxu0 %v869
        %v1961 = vpop.f32.mrb[0].mxu0
        %v1962 = vadd.f32 0.0, %v1961
        %v1963 = vpop.f32.mrb[0].mxu0
        %v1964 = vadd.f32 0.0, %v1963
        %1965 = vmatprep.mubr.f32.mxu0 0.0
        %1966 = vmatmul.mubr.f32.gmra.mrb[0].mxu0 %v872
        %v1967 = vpop.f32.mrb[0].mxu0
        %v1968 = vadd.f32 0.0, %v1967
        %v1969 = vpop.f32.mrb[0].mxu0
        %v1970 = vadd.f32 0.0, %v1969
        %1971 = vdwg.mxu0
        %1972 = vmatprep.subr.mxu0 %v957
        %1973 = vmatpush1.msra.mxu0 %v954
        %1974 = vmatprep.subr.mxu0 0.0
        %1975 = vmatpush1.msra.mxu0 0.0
        %1976 = vmatprep.subr.mxu0 0.0
        %1977 = vmatpush1.msra.mxu0 0.0
        %1978 = vmatprep.subr.mxu0 0.0
        %1979 = vmatpush1.msra.mxu0 0.0
        %1980 = vmatprep.subr.mxu0 0.0
        %1981 = vmatpush1.msra.mxu0 0.0
        %1982 = vmatprep.subr.mxu0 0.0
        %1983 = vmatpush1.msra.mxu0 0.0
        %1984 = vmatprep.subr.mxu0 0.0
        %1985 = vmatpush1.msra.mxu0 0.0
        %1986 = vmatprep.subr.mxu0 0.0
        %1987 = vmatpush1.msra.mxu0 0.0
        %1988 = vmatprep.subr.mxu0 0.0
        %1989 = vmatpush1.msra.mxu0 0.0
        %1990 = vmatprep.subr.mxu0 0.0
        %1991 = vmatpush1.msra.mxu0 0.0
        %1992 = vmatprep.subr.mxu0 0.0
        %1993 = vmatpush1.msra.mxu0 0.0
        %1994 = vmatprep.subr.mxu0 0.0
        %1995 = vmatpush1.msra.mxu0 0.0
        %1996 = vmatprep.subr.mxu0 0.0
        %1997 = vmatpush1.msra.mxu0 0.0
        %1998 = vmatprep.subr.mxu0 0.0
        %1999 = vmatpush1.msra.mxu0 0.0
        %2000 = vmatprep.subr.mxu0 0.0
        %2001 = vmatpush1.msra.mxu0 0.0
        %2002 = vmatprep.subr.mxu0 0.0
        %2003 = vmatpush1.msra.mxu0 0.0
        %2004 = vmatprep.subr.mxu0 0.0
        %2005 = vmatpush1.msra.mxu0 0.0
        %2006 = vmatprep.subr.mxu0 0.0
        %2007 = vmatpush1.msra.mxu0 0.0
        %2008 = vmatprep.subr.mxu0 0.0
        %2009 = vmatpush1.msra.mxu0 0.0
        %2010 = vmatprep.subr.mxu0 0.0
        %2011 = vmatpush1.msra.mxu0 0.0
        %2012 = vmatprep.subr.mxu0 0.0
        %2013 = vmatpush1.msra.mxu0 0.0
        %2014 = vmatprep.subr.mxu0 0.0
        %2015 = vmatpush1.msra.mxu0 0.0
        %2016 = vmatprep.subr.mxu0 0.0
        %2017 = vmatpush1.msra.mxu0 0.0
        %2018 = vmatprep.subr.mxu0 0.0
        %2019 = vmatpush1.msra.mxu0 0.0
        %2020 = vmatprep.subr.mxu0 0.0
        %2021 = vmatpush1.msra.mxu0 0.0
        %2022 = vmatprep.subr.mxu0 0.0
        %2023 = vmatpush1.msra.mxu0 0.0
        %2024 = vmatprep.subr.mxu0 0.0
        %2025 = vmatpush1.msra.mxu0 0.0
        %2026 = vmatprep.subr.mxu0 0.0
        %2027 = vmatpush1.msra.mxu0 0.0
        %2028 = vmatprep.subr.mxu0 0.0
        %2029 = vmatpush1.msra.mxu0 0.0
        %2030 = vmatprep.subr.mxu0 0.0
        %2031 = vmatpush1.msra.mxu0 0.0
        %2032 = vmatprep.subr.mxu0 0.0
        %2033 = vmatpush1.msra.mxu0 0.0
        %2034 = vmatprep.subr.mxu0 0.0
        %2035 = vmatpush1.msra.mxu0 0.0
        %2036 = vmatprep.mubr.f32.mxu0 0.0
        %2037 = vmatmul.mubr.f32.gmra.mrb[0].mxu0 %v869
        %v2038 = vpop.f32.mrb[0].mxu0
        %v2039 = vadd.f32 0.0, %v2038
        %v2040 = vpop.f32.mrb[0].mxu0
        %v2041 = vadd.f32 0.0, %v2040
        %2042 = vmatprep.mubr.f32.mxu0 0.0
        %2043 = vmatmul.mubr.f32.gmra.mrb[0].mxu0 %v872
        %v2044 = vpop.f32.mrb[0].mxu0
        %v2045 = vadd.f32 0.0, %v2044
        %v2046 = vpop.f32.mrb[0].mxu0
        %v2047 = vadd.f32 0.0, %v2046
        %2048 = vdwg.mxu0
        %2049 = vmatprep.subr.mxu0 %v963
        %2050 = vmatpush1.msra.mxu0 %v960
        %2051 = vmatprep.subr.mxu0 0.0
        %2052 = vmatpush1.msra.mxu0 0.0
        %2053 = vmatprep.subr.mxu0 0.0
        %2054 = vmatpush1.msra.mxu0 0.0
        %2055 = vmatprep.subr.mxu0 0.0
        %2056 = vmatpush1.msra.mxu0 0.0
        %2057 = vmatprep.subr.mxu0 0.0
        %2058 = vmatpush1.msra.mxu0 0.0
        %2059 = vmatprep.subr.mxu0 0.0
        %2060 = vmatpush1.msra.mxu0 0.0
        %2061 = vmatprep.subr.mxu0 0.0
        %2062 = vmatpush1.msra.mxu0 0.0
        %2063 = vmatprep.subr.mxu0 0.0
        %2064 = vmatpush1.msra.mxu0 0.0
        %2065 = vmatprep.subr.mxu0 0.0
        %2066 = vmatpush1.msra.mxu0 0.0
        %2067 = vmatprep.subr.mxu0 0.0
        %2068 = vmatpush1.msra.mxu0 0.0
        %2069 = vmatprep.subr.mxu0 0.0
        %2070 = vmatpush1.msra.mxu0 0.0
        %2071 = vmatprep.subr.mxu0 0.0
        %2072 = vmatpush1.msra.mxu0 0.0
        %2073 = vmatprep.subr.mxu0 0.0
        %2074 = vmatpush1.msra.mxu0 0.0
        %2075 = vmatprep.subr.mxu0 0.0
        %2076 = vmatpush1.msra.mxu0 0.0
        %2077 = vmatprep.subr.mxu0 0.0
        %2078 = vmatpush1.msra.mxu0 0.0
        %2079 = vmatprep.subr.mxu0 0.0
        %2080 = vmatpush1.msra.mxu0 0.0
        %2081 = vmatprep.subr.mxu0 0.0
        %2082 = vmatpush1.msra.mxu0 0.0
        %2083 = vmatprep.subr.mxu0 0.0
        %2084 = vmatpush1.msra.mxu0 0.0
        %2085 = vmatprep.subr.mxu0 0.0
        %2086 = vmatpush1.msra.mxu0 0.0
        %2087 = vmatprep.subr.mxu0 0.0
        %2088 = vmatpush1.msra.mxu0 0.0
        %2089 = vmatprep.subr.mxu0 0.0
        %2090 = vmatpush1.msra.mxu0 0.0
        %2091 = vmatprep.subr.mxu0 0.0
        %2092 = vmatpush1.msra.mxu0 0.0
        %2093 = vmatprep.subr.mxu0 0.0
        %2094 = vmatpush1.msra.mxu0 0.0
        %2095 = vmatprep.subr.mxu0 0.0
        %2096 = vmatpush1.msra.mxu0 0.0
        %2097 = vmatprep.subr.mxu0 0.0
        %2098 = vmatpush1.msra.mxu0 0.0
        %2099 = vmatprep.subr.mxu0 0.0
        %2100 = vmatpush1.msra.mxu0 0.0
        %2101 = vmatprep.subr.mxu0 0.0
        %2102 = vmatpush1.msra.mxu0 0.0
        %2103 = vmatprep.subr.mxu0 0.0
        %2104 = vmatpush1.msra.mxu0 0.0
        %2105 = vmatprep.subr.mxu0 0.0
        %2106 = vmatpush1.msra.mxu0 0.0
        %2107 = vmatprep.subr.mxu0 0.0
        %2108 = vmatpush1.msra.mxu0 0.0
        %2109 = vmatprep.subr.mxu0 0.0
        %2110 = vmatpush1.msra.mxu0 0.0
        %2111 = vmatprep.subr.mxu0 0.0
        %2112 = vmatpush1.msra.mxu0 0.0
        %2113 = vmatprep.mubr.f32.mxu0 0.0
        %2114 = vmatmul.mubr.f32.gmra.mrb[0].mxu0 %v869
        %v2115 = vpop.f32.mrb[0].mxu0
        %v2116 = vadd.f32 0.0, %v2115
        %v2117 = vpop.f32.mrb[0].mxu0
        %v2118 = vadd.f32 0.0, %v2117
        %2119 = vmatprep.mubr.f32.mxu0 0.0
        %2120 = vmatmul.mubr.f32.gmra.mrb[0].mxu0 %v872
        %v2121 = vpop.f32.mrb[0].mxu0
        %v2122 = vadd.f32 0.0, %v2121
        %v2123 = vpop.f32.mrb[0].mxu0
        %v2124 = vadd.f32 0.0, %v2123
        %2125 = vdwg.mxu0
        %2126 = vmatprep.subr.mxu0 %v969
        %2127 = vmatpush1.msra.mxu0 %v966
        %2128 = vmatprep.subr.mxu0 0.0
        %2129 = vmatpush1.msra.mxu0 0.0
        %2130 = vmatprep.subr.mxu0 0.0
        %2131 = vmatpush1.msra.mxu0 0.0
        %2132 = vmatprep.subr.mxu0 0.0
        %2133 = vmatpush1.msra.mxu0 0.0
        %2134 = vmatprep.subr.mxu0 0.0
        %2135 = vmatpush1.msra.mxu0 0.0
        %2136 = vmatprep.subr.mxu0 0.0
        %2137 = vmatpush1.msra.mxu0 0.0
        %2138 = vmatprep.subr.mxu0 0.0
        %2139 = vmatpush1.msra.mxu0 0.0
        %2140 = vmatprep.subr.mxu0 0.0
        %2141 = vmatpush1.msra.mxu0 0.0
        %2142 = vmatprep.subr.mxu0 0.0
        %2143 = vmatpush1.msra.mxu0 0.0
        %2144 = vmatprep.subr.mxu0 0.0
        %2145 = vmatpush1.msra.mxu0 0.0
        %2146 = vmatprep.subr.mxu0 0.0
        %2147 = vmatpush1.msra.mxu0 0.0
        %2148 = vmatprep.subr.mxu0 0.0
        %2149 = vmatpush1.msra.mxu0 0.0
        %2150 = vmatprep.subr.mxu0 0.0
        %2151 = vmatpush1.msra.mxu0 0.0
        %2152 = vmatprep.subr.mxu0 0.0
        %2153 = vmatpush1.msra.mxu0 0.0
        %2154 = vmatprep.subr.mxu0 0.0
        %2155 = vmatpush1.msra.mxu0 0.0
        %2156 = vmatprep.subr.mxu0 0.0
        %2157 = vmatpush1.msra.mxu0 0.0
        %2158 = vmatprep.subr.mxu0 0.0
        %2159 = vmatpush1.msra.mxu0 0.0
        %2160 = vmatprep.subr.mxu0 0.0
        %2161 = vmatpush1.msra.mxu0 0.0
        %2162 = vmatprep.subr.mxu0 0.0
        %2163 = vmatpush1.msra.mxu0 0.0
        %2164 = vmatprep.subr.mxu0 0.0
        %2165 = vmatpush1.msra.mxu0 0.0
        %2166 = vmatprep.subr.mxu0 0.0
        %2167 = vmatpush1.msra.mxu0 0.0
        %2168 = vmatprep.subr.mxu0 0.0
        %2169 = vmatpush1.msra.mxu0 0.0
        %2170 = vmatprep.subr.mxu0 0.0
        %2171 = vmatpush1.msra.mxu0 0.0
        %2172 = vmatprep.subr.mxu0 0.0
        %2173 = vmatpush1.msra.mxu0 0.0
        %2174 = vmatprep.subr.mxu0 0.0
        %2175 = vmatpush1.msra.mxu0 0.0
        %2176 = vmatprep.subr.mxu0 0.0
        %2177 = vmatpush1.msra.mxu0 0.0
        %2178 = vmatprep.subr.mxu0 0.0
        %2179 = vmatpush1.msra.mxu0 0.0
        %2180 = vmatprep.subr.mxu0 0.0
        %2181 = vmatpush1.msra.mxu0 0.0
        %2182 = vmatprep.subr.mxu0 0.0
        %2183 = vmatpush1.msra.mxu0 0.0
        %2184 = vmatprep.subr.mxu0 0.0
        %2185 = vmatpush1.msra.mxu0 0.0
        %2186 = vmatprep.subr.mxu0 0.0
        %2187 = vmatpush1.msra.mxu0 0.0
        %2188 = vmatprep.subr.mxu0 0.0
        %2189 = vmatpush1.msra.mxu0 0.0
        %2190 = vmatprep.mubr.f32.mxu0 0.0
        %2191 = vmatmul.mubr.f32.gmra.mrb[0].mxu0 %v869
        %v2192 = vpop.f32.mrb[0].mxu0
        %v2193 = vadd.f32 0.0, %v2192
        %v2194 = vpop.f32.mrb[0].mxu0
        %v2195 = vadd.f32 0.0, %v2194
        %2196 = vmatprep.mubr.f32.mxu0 0.0
        %2197 = vmatmul.mubr.f32.gmra.mrb[0].mxu0 %v872
        %v2198 = vpop.f32.mrb[0].mxu0
        %v2199 = vadd.f32 0.0, %v2198
        %v2200 = vpop.f32.mrb[0].mxu0
        %v2201 = vadd.f32 0.0, %v2200
        %2202 = vdwg.mxu0
        %v2203 = vld [vmem:[%s583] sm:$0xff]
        %v2204 = vld [vmem:[%s583 + $0x8] sm:$0xff]
        %v2205 = vld [vmem:[%s583 + $0x10] sm:$0xff]
        %v2206 = vld [vmem:[%s583 + $0x18] sm:$0xff]
        %v2207 = vld [vmem:[%s583 + $0x20] sm:$0xff]
        %v2208 = vld [vmem:[%s583 + $0x28] sm:$0xff]
        %v2209 = vld [vmem:[%s583 + $0x30] sm:$0xff]
        %v2210 = vld [vmem:[%s583 + $0x38] sm:$0xff]
        %v2211 = vld [vmem:[%s583 + $0x40] sm:$0xff]
        %v2212 = vld [vmem:[%s583 + $0x48] sm:$0xff]
        %v2213 = vld [vmem:[%s583 + $0x50] sm:$0xff]
        %v2214 = vld [vmem:[%s583 + $0x58] sm:$0xff]
        %v2215 = vld [vmem:[%s583 + $0x60] sm:$0xff]
        %v2216 = vld [vmem:[%s583 + $0x68] sm:$0xff]
        %v2217 = vld [vmem:[%s583 + $0x70] sm:$0xff]
        %v2218 = vld [vmem:[%s583 + $0x78] sm:$0xff]
        %v2219 = vld [vmem:[%s583 + $0x80] sm:$0xff]
        %v2220 = vld [vmem:[%s583 + $0x88] sm:$0xff]
        %v2221 = vld [vmem:[%s583 + $0x90] sm:$0xff]
        %v2222 = vld [vmem:[%s583 + $0x98] sm:$0xff]
        %v2223 = vld [vmem:[%s583 + $0xa0] sm:$0xff]
        %v2224 = vld [vmem:[%s583 + $0xa8] sm:$0xff]
        %v2225 = vld [vmem:[%s583 + $0xb0] sm:$0xff]
        %v2226 = vld [vmem:[%s583 + $0xb8] sm:$0xff]
        %v2227 = vld [vmem:[%s583 + $0xc0] sm:$0xff]
        %v2228 = vld [vmem:[%s583 + $0xc8] sm:$0xff]
        %v2229 = vld [vmem:[%s583 + $0xd0] sm:$0xff]
        %v2230 = vld [vmem:[%s583 + $0xd8] sm:$0xff]
        %v2231 = vld [vmem:[%s583 + $0xe0] sm:$0xff]
        %v2232 = vld [vmem:[%s583 + $0xe8] sm:$0xff]
        %v2233 = vld [vmem:[%s583 + $0xf0] sm:$0xff]
        %v2234 = vld [vmem:[%s583 + $0xf8] sm:$0xff]
        %v2235 = vld [vmem:[%s583 + $0x100] sm:$0xff]
        %v2236 = vld [vmem:[%s583 + $0x108] sm:$0xff]
        %v2237 = vld [vmem:[%s583 + $0x110] sm:$0xff]
        %v2238 = vld [vmem:[%s583 + $0x118] sm:$0xff]
        %v2239 = vld [vmem:[%s583 + $0x120] sm:$0xff]
        %v2240 = vld [vmem:[%s583 + $0x128] sm:$0xff]
        %v2241 = vld [vmem:[%s583 + $0x130] sm:$0xff]
        %v2242 = vld [vmem:[%s583 + $0x138] sm:$0xff]
        %v2243 = vld [vmem:[%s583 + $0x140] sm:$0xff]
        %v2244 = vld [vmem:[%s583 + $0x148] sm:$0xff]
        %v2245 = vld [vmem:[%s583 + $0x150] sm:$0xff]
        %v2246 = vld [vmem:[%s583 + $0x158] sm:$0xff]
        %v2247 = vld [vmem:[%s583 + $0x160] sm:$0xff]
        %v2248 = vld [vmem:[%s583 + $0x168] sm:$0xff]
        %v2249 = vld [vmem:[%s583 + $0x170] sm:$0xff]
        %v2250 = vld [vmem:[%s583 + $0x178] sm:$0xff]
        %v2251 = vld [vmem:[%s583 + $0x180] sm:$0xff]
        %v2252 = vld [vmem:[%s583 + $0x188] sm:$0xff]
        %v2253 = vld [vmem:[%s583 + $0x190] sm:$0xff]
        %v2254 = vld [vmem:[%s583 + $0x198] sm:$0xff]
        %v2255 = vld [vmem:[%s583 + $0x1a0] sm:$0xff]
        %v2256 = vld [vmem:[%s583 + $0x1a8] sm:$0xff]
        %v2257 = vld [vmem:[%s583 + $0x1b0] sm:$0xff]
        %v2258 = vld [vmem:[%s583 + $0x1b8] sm:$0xff]
        %v2259 = vld [vmem:[%s583 + $0x1c0] sm:$0xff]
        %v2260 = vld [vmem:[%s583 + $0x1c8] sm:$0xff]
        %v2261 = vld [vmem:[%s583 + $0x1d0] sm:$0xff]
        %v2262 = vld [vmem:[%s583 + $0x1d8] sm:$0xff]
        %v2263 = vld [vmem:[%s583 + $0x1e0] sm:$0xff]
        %v2264 = vld [vmem:[%s583 + $0x1e8] sm:$0xff]
        %v2265 = vld [vmem:[%s583 + $0x1f0] sm:$0xff]
        %v2266 = vld [vmem:[%s583 + $0x1f8] sm:$0xff]
        %v2267 = vmul.f32 %v2203, %v1038
        %v2268 = vmul.f32 %v2204, %v1040
        %v2269 = vmul.f32 %v2205, %v1115
        %v2270 = vmul.f32 %v2206, %v1117
        %v2271 = vmul.f32 %v2207, %v1192
        %v2272 = vmul.f32 %v2208, %v1194
        %v2273 = vmul.f32 %v2209, %v1269
        %v2274 = vmul.f32 %v2210, %v1271
        %v2275 = vmul.f32 %v2211, %v1346
        %v2276 = vmul.f32 %v2212, %v1348
        %v2277 = vmul.f32 %v2213, %v1423
        %v2278 = vmul.f32 %v2214, %v1425
        %v2279 = vmul.f32 %v2215, %v1500
        %v2280 = vmul.f32 %v2216, %v1502
        %v2281 = vmul.f32 %v2217, %v1577
        %v2282 = vmul.f32 %v2218, %v1579
        %v2283 = vmul.f32 %v2219, %v1654
        %v2284 = vmul.f32 %v2220, %v1656
        %v2285 = vmul.f32 %v2221, %v1731
        %v2286 = vmul.f32 %v2222, %v1733
        %v2287 = vmul.f32 %v2223, %v1808
        %v2288 = vmul.f32 %v2224, %v1810
        %v2289 = vmul.f32 %v2225, %v1885
        %v2290 = vmul.f32 %v2226, %v1887
        %v2291 = vmul.f32 %v2227, %v1962
        %v2292 = vmul.f32 %v2228, %v1964
        %v2293 = vmul.f32 %v2229, %v2039
        %v2294 = vmul.f32 %v2230, %v2041
        %v2295 = vmul.f32 %v2231, %v2116
        %v2296 = vmul.f32 %v2232, %v2118
        %v2297 = vmul.f32 %v2233, %v2193
        %v2298 = vmul.f32 %v2234, %v2195
        %v2299 = vmul.f32 %v2235, %v1044
        %v2300 = vmul.f32 %v2236, %v1046
        %v2301 = vmul.f32 %v2237, %v1121
        %v2302 = vmul.f32 %v2238, %v1123
        %v2303 = vmul.f32 %v2239, %v1198
        %v2304 = vmul.f32 %v2240, %v1200
        %v2305 = vmul.f32 %v2241, %v1275
        %v2306 = vmul.f32 %v2242, %v1277
        %v2307 = vmul.f32 %v2243, %v1352
        %v2308 = vmul.f32 %v2244, %v1354
        %v2309 = vmul.f32 %v2245, %v1429
        %v2310 = vmul.f32 %v2246, %v1431
        %v2311 = vmul.f32 %v2247, %v1506
        %v2312 = vmul.f32 %v2248, %v1508
        %v2313 = vmul.f32 %v2249, %v1583
        %v2314 = vmul.f32 %v2250, %v1585
        %v2315 = vmul.f32 %v2251, %v1660
        %v2316 = vmul.f32 %v2252, %v1662
        %v2317 = vmul.f32 %v2253, %v1737
        %v2318 = vmul.f32 %v2254, %v1739
        %v2319 = vmul.f32 %v2255, %v1814
        %v2320 = vmul.f32 %v2256, %v1816
        %v2321 = vmul.f32 %v2257, %v1891
        %v2322 = vmul.f32 %v2258, %v1893
        %v2323 = vmul.f32 %v2259, %v1968
        %v2324 = vmul.f32 %v2260, %v1970
        %v2325 = vmul.f32 %v2261, %v2045
        %v2326 = vmul.f32 %v2262, %v2047
        %v2327 = vmul.f32 %v2263, %v2122
        %v2328 = vmul.f32 %v2264, %v2124
        %v2329 = vmul.f32 %v2265, %v2199
        %v2330 = vmul.f32 %v2266, %v2201
        %2331 = vst [vmem:[%s611] sm:$0xff] %v2267
        %2332 = vst [vmem:[%s611 + $0x8] sm:$0xff] %v2268
        %2333 = vst [vmem:[%s611 + $0x10] sm:$0xff] %v2269
        %2334 = vst [vmem:[%s611 + $0x18] sm:$0xff] %v2270
        %2335 = vst [vmem:[%s611 + $0x20] sm:$0xff] %v2271
        %2336 = vst [vmem:[%s611 + $0x28] sm:$0xff] %v2272
        %2337 = vst [vmem:[%s611 + $0x30] sm:$0xff] %v2273
        %2338 = vst [vmem:[%s611 + $0x38] sm:$0xff] %v2274
        %2339 = vst [vmem:[%s611 + $0x40] sm:$0xff] %v2275
        %2340 = vst [vmem:[%s611 + $0x48] sm:$0xff] %v2276
        %2341 = vst [vmem:[%s611 + $0x50] sm:$0xff] %v2277
        %2342 = vst [vmem:[%s611 + $0x58] sm:$0xff] %v2278
        %2343 = vst [vmem:[%s611 + $0x60] sm:$0xff] %v2279
        %2344 = vst [vmem:[%s611 + $0x68] sm:$0xff] %v2280
        %2345 = vst [vmem:[%s611 + $0x70] sm:$0xff] %v2281
        %2346 = vst [vmem:[%s611 + $0x78] sm:$0xff] %v2282
        %2347 = vst [vmem:[%s611 + $0x80] sm:$0xff] %v2283
        %2348 = vst [vmem:[%s611 + $0x88] sm:$0xff] %v2284
        %2349 = vst [vmem:[%s611 + $0x90] sm:$0xff] %v2285
        %2350 = vst [vmem:[%s611 + $0x98] sm:$0xff] %v2286
        %2351 = vst [vmem:[%s611 + $0xa0] sm:$0xff] %v2287
        %2352 = vst [vmem:[%s611 + $0xa8] sm:$0xff] %v2288
        %2353 = vst [vmem:[%s611 + $0xb0] sm:$0xff] %v2289
        %2354 = vst [vmem:[%s611 + $0xb8] sm:$0xff] %v2290
        %2355 = vst [vmem:[%s611 + $0xc0] sm:$0xff] %v2291
        %2356 = vst [vmem:[%s611 + $0xc8] sm:$0xff] %v2292
        %2357 = vst [vmem:[%s611 + $0xd0] sm:$0xff] %v2293
        %2358 = vst [vmem:[%s611 + $0xd8] sm:$0xff] %v2294
        %2359 = vst [vmem:[%s611 + $0xe0] sm:$0xff] %v2295
        %2360 = vst [vmem:[%s611 + $0xe8] sm:$0xff] %v2296
        %2361 = vst [vmem:[%s611 + $0xf0] sm:$0xff] %v2297
        %2362 = vst [vmem:[%s611 + $0xf8] sm:$0xff] %v2298
        %2363 = vst [vmem:[%s611 + $0x100] sm:$0xff] %v2299
        %2364 = vst [vmem:[%s611 + $0x108] sm:$0xff] %v2300
        %2365 = vst [vmem:[%s611 + $0x110] sm:$0xff] %v2301
        %2366 = vst [vmem:[%s611 + $0x118] sm:$0xff] %v2302
        %2367 = vst [vmem:[%s611 + $0x120] sm:$0xff] %v2303
        %2368 = vst [vmem:[%s611 + $0x128] sm:$0xff] %v2304
        %2369 = vst [vmem:[%s611 + $0x130] sm:$0xff] %v2305
        %2370 = vst [vmem:[%s611 + $0x138] sm:$0xff] %v2306
        %2371 = vst [vmem:[%s611 + $0x140] sm:$0xff] %v2307
        %2372 = vst [vmem:[%s611 + $0x148] sm:$0xff] %v2308
        %2373 = vst [vmem:[%s611 + $0x150] sm:$0xff] %v2309
        %2374 = vst [vmem:[%s611 + $0x158] sm:$0xff] %v2310
        %2375 = vst [vmem:[%s611 + $0x160] sm:$0xff] %v2311
        %2376 = vst [vmem:[%s611 + $0x168] sm:$0xff] %v2312
        %2377 = vst [vmem:[%s611 + $0x170] sm:$0xff] %v2313
        %2378 = vst [vmem:[%s611 + $0x178] sm:$0xff] %v2314
        %2379 = vst [vmem:[%s611 + $0x180] sm:$0xff] %v2315
        %2380 = vst [vmem:[%s611 + $0x188] sm:$0xff] %v2316
        %2381 = vst [vmem:[%s611 + $0x190] sm:$0xff] %v2317
        %2382 = vst [vmem:[%s611 + $0x198] sm:$0xff] %v2318
        %2383 = vst [vmem:[%s611 + $0x1a0] sm:$0xff] %v2319
        %2384 = vst [vmem:[%s611 + $0x1a8] sm:$0xff] %v2320
        %2385 = vst [vmem:[%s611 + $0x1b0] sm:$0xff] %v2321
        %2386 = vst [vmem:[%s611 + $0x1b8] sm:$0xff] %v2322
        %2387 = vst [vmem:[%s611 + $0x1c0] sm:$0xff] %v2323
        %2388 = vst [vmem:[%s611 + $0x1c8] sm:$0xff] %v2324
        %2389 = vst [vmem:[%s611 + $0x1d0] sm:$0xff] %v2325
        %2390 = vst [vmem:[%s611 + $0x1d8] sm:$0xff] %v2326
        %2391 = vst [vmem:[%s611 + $0x1e0] sm:$0xff] %v2327
        %2392 = vst [vmem:[%s611 + $0x1e8] sm:$0xff] %v2328
        %2393 = vst [vmem:[%s611 + $0x1f0] sm:$0xff] %v2329
        %2394 = vst [vmem:[%s611 + $0x1f8] sm:$0xff] %v2330
        %s2395 = sand.u32 %s98, 1
        %s2396 = scalar_lea.sflag [#allocation4], %s2395
        %s2397 = sand.u32 %s98, 1
        %s2398 = smul.addr %s2397, 512
        %s2399 = scalar_lea.vmem [#allocation3], %s2398
        // Predicated region
        $region99: #{channel_attention_3d.3} parent=93 // pred_check
          %p2400 = pneg %p108
        $region100: #{channel_attention_3d.3} parent=93 // pred_check_branch
          %2402 = sbr.rel (%p2400) target = $region102
        $region101: #{channel_attention_3d.3} parent=93 // pred_region
          %s2403 = smul.u32 32, %s17
          %s2404 = ssub.s32 71, %s2403
          %p2405 = scmp.lt.s32.totalorder %s2404, 32
          %s2406 = scalar_select %p2405, %s2404, 32
          %s2407 = smul.u32 256, %s2406
          %s2409 = ssub.s32 8192, %s2407
          %2410 = vsyncadd %s2396, %s2409
          %p2411 = scmp.ne.s32.totalorder 0, %s2407
          %s2412 = smul.addr %s2403, 128
          %s2413 = scalar_lea.hbm %s3, %s2412
          %s2414 = smul.u32 %s2406, 8
          %s2415 = smul.u32 %s2414, 2
          %s2416 = sshll.u32 %s2399, 4
          %s2417 = int_to_ptr.vmem [resolvable:$true] %s2416
          %s2418 = sshll.u32 %s2415, 4
          %2422 = dma.vmem_to_hbm [thread:$0]  (%p2411), %s2417, %s2418, %s2413, %s2396, 4096, 9088, %s2414
        $region102: #{channel_attention_3d.3} parent=93 // pred_fallthru
          _
      $region94: #{channel_attention_3d.3} parent=5 // pred_fallthru
        _
      %p2423 = scmp.le.s32.totalorder 2, %s12
      // Predicated region
      $region103: #{channel_attention_3d.3} parent=5 // pred_check
        %p2424 = pneg %p2423
      $region104: #{channel_attention_3d.3} parent=5 // pred_check_branch
        %2426 = sbr.rel (%p2424) target = $region106
      $region105: #{channel_attention_3d.3} parent=5 // pred_region
        %s2427 = ssub.s32 %s12, 2
        // Predicated region
        $region107: #{channel_attention_3d.3} parent=105 // pred_check
          %p2428 = pneg %p114
        $region108: #{channel_attention_3d.3} parent=105 // pred_check_branch
          %2430 = sbr.rel (%p2428) target = $region110
        $region109: #{channel_attention_3d.3} parent=105 // pred_region
          %s2431 = sand.u32 %s99, 1
          %s2432 = scalar_lea.sflag [#allocation4], %s2431
          %s2433 = sand.u32 %s99, 1
          %s2434 = smul.addr %s2433, 512
          %s2435 = scalar_lea.vmem [#allocation3], %s2434
          %2436 = dma.done %s2432, 8192
        $region110: #{channel_attention_3d.3} parent=105 // pred_fallthru
          _
      $region106: #{channel_attention_3d.3} parent=5 // pred_fallthru
        _
    $region6: #{channel_attention_3d.3} parent=1 // loop_footer
      %s16 = sadd.s32 1, %s12
    $region7: #{channel_attention_3d.3} parent=1 // loop_footer_branch
      %11 = sbr.rel target = $region3
    $region8: #{channel_attention_3d.3} parent=1 // loop_exit
      _
    %2437 = vsyncpa [#allocation4], 1
    %s2438 = scalar_lea.sflag [#allocation4], 1
    %2439 = vsyncpa %s2438, 1

// kernel: channel_attention_3d.2
$region0: #{channel_attention_3d.2}
  #allocation0 [shape = 'u32[]', space=smem, size = 0x4, offset = 0x4, fixed_abs, tag = 'smem constant byte address 0x4 - core index']
  #allocation1 [shape = 'u32[144,128]{1,0:T(1,128)}', space=vmem, size = 0x12000, scoped, tag = 'internal scratch']
  %s0 = inlined_call_operand.vmem [shape: s32[1,9000], index: 0, kind: input, shape index: {}]
  %s1 = inlined_call_operand.hbm [shape: f32[16,9000], index: 1, kind: input, shape index: {}]
  %s2 = inlined_call_operand.vmem [shape: f32[1,16,3], index: 2, kind: output, shape index: {0}]
  %s3 = inlined_call_operand.vmem [shape: f32[1,3,1], index: 3, kind: output, shape index: {1}]
  %s4 = inlined_call_operand.vmem [shape: f32[1,16,3], index: 4, kind: output, shape index: {2}]
  %5 = xla_tuple %s2, %s3, %s4
  %s6 = sld [smem:[#allocation0]]
  $region65: #{channel_attention_3d.2} parent=0
    _
  %s8 = ssub.s32 1, %s6
  %s9 = scalar_select 0, %s8, %s6
  $region1: #{channel_attention_3d.2} parent=0
    #allocation2 [shape = 'u8[524288]{0}', space=vmem, size = 0x80000, scoped, tag = 'input window, operand 1']
    #allocation3 [shape = 's32[2]{0}', space=sflag, size = 0x8, scoped, tag = 'scoped memory for channel_attention_3d.2']
    %10 = vsyncpa [#allocation3], 0
    %s11 = scalar_lea.sflag [#allocation3], 1
    %12 = vsyncpa %s11, 0
    loop: start=0, step=1, limit=5
    $region2: #{channel_attention_3d.2} parent=1 // loop_pre_header
      _
    $region3: #{channel_attention_3d.2} parent=1 // loop_header
      %s14 = sphi 0, %s18
      %p15 = scmp.ge.s32.totalorder %s14, 5
      %s21 = sphi 0, %s33
      %s22 = sphi 0, %s29
      %s23 = sphi 0, %s21
      %s24 = sphi 0, %s22
      %s25 = sphi 0, %s23
      %s26 = sphi 0, %s24
      %s44 = sphi 0, %s46
      %s47 = sphi 0, %s44
      %s48 = sphi 0, %s47
      %s64 = sphi 0, %s48
      %s78 = sphi 0, %s80
      %s81 = sphi 0, %s78
      %s82 = sphi 0, %s81
      %s98 = sphi 0, %s82
      %s104 = sphi 0, %s106
      %s107 = sphi 0, %s104
      %s108 = sphi 0, %s107
      %s124 = sphi 0, %s108
      %s130 = sphi 0, %s132
      %s133 = sphi 0, %s130
      %s134 = sphi 0, %s133
      %s150 = sphi 0, %s134
      %s156 = sphi 0, %s158
      %s159 = sphi 0, %s156
      %s160 = sphi 0, %s159
      %s176 = sphi 0, %s160
    $region4: #{channel_attention_3d.2} parent=1 // loop_header_branch
      %17 = sbr.rel (%p15) target = $region8
    $region5: #{channel_attention_3d.2} parent=1 // loop_body
      %s19 = ssub.s32 %s14, 1
      %s20 = ssub.s32 %s14, 2
      %s27 = sadd.s32 1, %s22
      %p28 = scmp.ge.s32.totalorder %s27, 3
      %s29 = scalar_select %p28, 0, %s27
      %s30 = sadd.s32 1, %s21
      %s31 = scalar_select %p28, %s30, %s21
      %p32 = scmp.ge.s32.totalorder %s31, 1
      %s33 = scalar_select %p32, 0, %s31
      %s34 = smul.u32 %s21, 3
      %s35 = sadd.s32 %s34, %s22
      %p36 = scmp.lt.s32.totalorder %s35, 2
      %s37 = scalar_select %p36, %s35, 2
      %s38 = smul.u32 %s33, 3
      %s39 = sadd.s32 %s38, %s29
      %p40 = scmp.lt.s32.totalorder %s39, 2
      %s41 = scalar_select %p40, %s39, 2
      %s42 = ssub.s32 %s37, %s41
      %p43 = scmp.eq.s32.totalorder %s42, 0
      %s45 = sadd.s32 %s44, 1
      %s46 = scalar_select %p43, %s44, %s45
      %p49 = pneg %p43
      %p50 = scmp.eq.s32.totalorder %s14, 2
      %p51 = por %p49, %p50
      %p52 = scmp.ne.s32.totalorder %s44, %s47
      %p53 = scmp.eq.s32.totalorder %s14, 0
      %p54 = por %p52, %p53
      %p55 = scmp.ne.s32.totalorder %s44, %s47
      %p56 = scmp.eq.s32.totalorder %s19, 2
      %p57 = por %p55, %p56
      %p58 = scmp.ne.s32.totalorder %s47, %s48
      %p59 = scmp.eq.s32.totalorder %s19, 0
      %p60 = por %p58, %p59
      %p61 = scmp.ne.s32.totalorder %s47, %s48
      %p62 = scmp.eq.s32.totalorder %s20, 2
      %p63 = por %p61, %p62
      %p65 = scmp.ne.s32.totalorder %s48, %s64
      %p66 = scmp.eq.s32.totalorder %s20, 0
      %p67 = por %p65, %p66
      %s68 = smul.u32 %s21, 3
      %s69 = sadd.s32 %s68, %s22
      %p70 = scmp.lt.s32.totalorder %s69, 2
      %s71 = scalar_select %p70, %s69, 2
      %s72 = smul.u32 %s33, 3
      %s73 = sadd.s32 %s72, %s29
      %p74 = scmp.lt.s32.totalorder %s73, 2
      %s75 = scalar_select %p74, %s73, 2
      %s76 = ssub.s32 %s71, %s75
      %p77 = scmp.eq.s32.totalorder %s76, 0
      %s79 = sadd.s32 %s78, 1
      %s80 = scalar_select %p77, %s78, %s79
      %p83 = pneg %p77
      %p84 = scmp.eq.s32.totalorder %s14, 2
      %p85 = por %p83, %p84
      %p86 = scmp.ne.s32.totalorder %s78, %s81
      %p87 = scmp.eq.s32.totalorder %s14, 0
      %p88 = por %p86, %p87
      %p89 = scmp.ne.s32.totalorder %s78, %s81
      %p90 = scmp.eq.s32.totalorder %s19, 2
      %p91 = por %p89, %p90
      %p92 = scmp.ne.s32.totalorder %s81, %s82
      %p93 = scmp.eq.s32.totalorder %s19, 0
      %p94 = por %p92, %p93
      %p95 = scmp.ne.s32.totalorder %s81, %s82
      %p96 = scmp.eq.s32.totalorder %s20, 2
      %p97 = por %p95, %p96
      %p99 = scmp.ne.s32.totalorder %s82, %s98
      %p100 = scmp.eq.s32.totalorder %s20, 0
      %p101 = por %p99, %p100
      %s102 = ssub.s32 %s21, %s33
      %p103 = scmp.eq.s32.totalorder %s102, 0
      %s105 = sadd.s32 %s104, 1
      %s106 = scalar_select %p103, %s104, %s105
      %p109 = pneg %p103
      %p110 = scmp.eq.s32.totalorder %s14, 2
      %p111 = por %p109, %p110
      %p112 = scmp.ne.s32.totalorder %s104, %s107
      %p113 = scmp.eq.s32.totalorder %s14, 0
      %p114 = por %p112, %p113
      %p115 = scmp.ne.s32.totalorder %s104, %s107
      %p116 = scmp.eq.s32.totalorder %s19, 2
      %p117 = por %p115, %p116
      %p118 = scmp.ne.s32.totalorder %s107, %s108
      %p119 = scmp.eq.s32.totalorder %s19, 0
      %p120 = por %p118, %p119
      %p121 = scmp.ne.s32.totalorder %s107, %s108
      %p122 = scmp.eq.s32.totalorder %s20, 2
      %p123 = por %p121, %p122
      %p125 = scmp.ne.s32.totalorder %s108, %s124
      %p126 = scmp.eq.s32.totalorder %s20, 0
      %p127 = por %p125, %p126
      %s128 = ssub.s32 %s21, %s33
      %p129 = scmp.eq.s32.totalorder %s128, 0
      %s131 = sadd.s32 %s130, 1
      %s132 = scalar_select %p129, %s130, %s131
      %p135 = pneg %p129
      %p136 = scmp.eq.s32.totalorder %s14, 2
      %p137 = por %p135, %p136
      %p138 = scmp.ne.s32.totalorder %s130, %s133
      %p139 = scmp.eq.s32.totalorder %s14, 0
      %p140 = por %p138, %p139
      %p141 = scmp.ne.s32.totalorder %s130, %s133
      %p142 = scmp.eq.s32.totalorder %s19, 2
      %p143 = por %p141, %p142
      %p144 = scmp.ne.s32.totalorder %s133, %s134
      %p145 = scmp.eq.s32.totalorder %s19, 0
      %p146 = por %p144, %p145
      %p147 = scmp.ne.s32.totalorder %s133, %s134
      %p148 = scmp.eq.s32.totalorder %s20, 2
      %p149 = por %p147, %p148
      %p151 = scmp.ne.s32.totalorder %s134, %s150
      %p152 = scmp.eq.s32.totalorder %s20, 0
      %p153 = por %p151, %p152
      %s154 = ssub.s32 %s21, %s33
      %p155 = scmp.eq.s32.totalorder %s154, 0
      %s157 = sadd.s32 %s156, 1
      %s158 = scalar_select %p155, %s156, %s157
      %p161 = pneg %p155
      %p162 = scmp.eq.s32.totalorder %s14, 2
      %p163 = por %p161, %p162
      %p164 = scmp.ne.s32.totalorder %s156, %s159
      %p165 = scmp.eq.s32.totalorder %s14, 0
      %p166 = por %p164, %p165
      %p167 = scmp.ne.s32.totalorder %s156, %s159
      %p168 = scmp.eq.s32.totalorder %s19, 2
      %p169 = por %p167, %p168
      %p170 = scmp.ne.s32.totalorder %s159, %s160
      %p171 = scmp.eq.s32.totalorder %s19, 0
      %p172 = por %p170, %p171
      %p173 = scmp.ne.s32.totalorder %s159, %s160
      %p174 = scmp.eq.s32.totalorder %s20, 2
      %p175 = por %p173, %p174
      %p177 = scmp.ne.s32.totalorder %s160, %s176
      %p178 = scmp.eq.s32.totalorder %s20, 0
      %p179 = por %p177, %p178
      %p180 = scmp.le.s32.totalorder 1, %s14
      %p181 = scmp.lt.s32.totalorder %s14, 4
      %p182 = pnand %p180, %p181
      %p183 = pneg %p182
      // Predicated region
      $region9: #{channel_attention_3d.2} parent=5 // pred_check
        _
      $region10: #{channel_attention_3d.2} parent=5 // pred_check_branch
        %185 = sbr.rel (%p182) target = $region12
      $region11: #{channel_attention_3d.2} parent=5 // pred_region
        %s186 = ssub.s32 %s14, 1
      $region12: #{channel_attention_3d.2} parent=5 // pred_fallthru
        _
      %p187 = scmp.lt.s32.totalorder %s14, 3
      // Predicated region
      $region13: #{channel_attention_3d.2} parent=5 // pred_check
        %p188 = pneg %p187
      $region14: #{channel_attention_3d.2} parent=5 // pred_check_branch
        %190 = sbr.rel (%p188) target = $region16
      $region15: #{channel_attention_3d.2} parent=5 // pred_region
        // Predicated region
        $region17: #{channel_attention_3d.2} parent=15 // pred_check
          %p191 = pneg %p54
        $region18: #{channel_attention_3d.2} parent=15 // pred_check_branch
          %193 = sbr.rel (%p191) target = $region20
        $region19: #{channel_attention_3d.2} parent=15 // pred_region
          %s194 = smul.u32 %s21, 3
          %s195 = sadd.s32 %s194, %s22
          %p196 = scmp.lt.s32.totalorder %s195, 2
          %s197 = scalar_select %p196, %s195, 2
          %s198 = smul.u32 32, %s197
          %s199 = ssub.s32 71, %s198
          %p200 = scmp.lt.s32.totalorder %s199, 32
          %s201 = scalar_select %p200, %s199, 32
          %s202 = smul.u32 16, %s201
          %p203 = scmp.lt.s32.totalorder %s198, 70
          %s204 = scalar_select %p203, %s198, 70
          %s205 = scalar_lea.vmem %s0, %s204
          %s206 = smul.u32 %s21, 3
          %s207 = sadd.s32 %s206, %s22
          %p208 = scmp.lt.s32.totalorder %s207, 2
          %s209 = scalar_select %p208, %s207, 2
          %s210 = smul.u32 32, %s209
          %s211 = ssub.s32 71, %s210
          %p212 = scmp.lt.s32.totalorder %s211, 32
          %s213 = scalar_select %p212, %s211, 32
          %s214 = smul.u32 16, %s213
        $region20: #{channel_attention_3d.2} parent=15 // pred_fallthru
          _
        // Predicated region
        $region21: #{channel_attention_3d.2} parent=15 // pred_check
          %p215 = pneg %p88
        $region22: #{channel_attention_3d.2} parent=15 // pred_check_branch
          %217 = sbr.rel (%p215) target = $region24
        $region23: #{channel_attention_3d.2} parent=15 // pred_region
          %s218 = sand.u32 %s78, 1
          %s219 = scalar_lea.sflag [#allocation3], %s218
          %s220 = sand.u32 %s78, 1
          %s221 = smul.addr %s220, 512
          %s222 = scalar_lea.vmem [#allocation2], %s221
          %s223 = smul.u32 %s21, 3
          %s224 = sadd.s32 %s223, %s22
          %p225 = scmp.lt.s32.totalorder %s224, 2
          %s226 = scalar_select %p225, %s224, 2
          %s227 = smul.u32 32, %s226
          %s228 = ssub.s32 71, %s227
          %p229 = scmp.lt.s32.totalorder %s228, 32
          %s230 = scalar_select %p229, %s228, 32
          %s231 = smul.u32 256, %s230
          %s233 = ssub.s32 8192, %s231
          %234 = vsyncadd %s219, %s233
          %p235 = scmp.ne.s32.totalorder 0, %s231
          %s236 = smul.addr %s227, 128
          %s237 = scalar_lea.hbm %s1, %s236
          %s238 = smul.u32 %s230, 8
          %s239 = smul.u32 %s238, 2
          %s240 = sshll.u32 %s222, 4
          %s241 = int_to_ptr.vmem [resolvable:$true] %s240
          %s242 = sshll.u32 %s239, 4
          %246 = dma.hbm_to_vmem [thread:$0]  (%p235), %s237, %s242, %s241, %s219, 9088, 4096, %s238
        $region24: #{channel_attention_3d.2} parent=15 // pred_fallthru
          _
      $region16: #{channel_attention_3d.2} parent=5 // pred_fallthru
        _
      %p247 = scmp.le.s32.totalorder 1, %s14
      %p248 = scmp.lt.s32.totalorder %s14, 4
      %p249 = pnand %p247, %p248
      %p250 = pneg %p249
      // Predicated region
      $region25: #{channel_attention_3d.2} parent=5 // pred_check
        _
      $region26: #{channel_attention_3d.2} parent=5 // pred_check_branch
        %252 = sbr.rel (%p249) target = $region28
      $region27: #{channel_attention_3d.2} parent=5 // pred_region
        %s253 = ssub.s32 %s14, 1
        %s254 = sand.u32 %s81, 1
        %s255 = scalar_lea.sflag [#allocation3], %s254
        %s256 = sand.u32 %s81, 1
        %s257 = smul.addr %s256, 512
        %s258 = scalar_lea.vmem [#allocation2], %s257
        // Predicated region
        $region29: #{channel_attention_3d.2} parent=27 // pred_check
          %p259 = pneg %p94
        $region30: #{channel_attention_3d.2} parent=27 // pred_check_branch
          %261 = sbr.rel (%p259) target = $region32
        $region31: #{channel_attention_3d.2} parent=27 // pred_region
          %262 = dma.done %s255, 8192
        $region32: #{channel_attention_3d.2} parent=27 // pred_fallthru
          _
        %s263 = smul.u32 %s23, 3
        %s264 = sadd.s32 %s263, %s24
        %p265 = scmp.lt.s32.totalorder %s264, 2
        %s266 = scalar_select %p265, %s264, 2
        %s267 = smul.u32 32, %s266
        %s268 = ssub.s32 71, %s267
        %p269 = scmp.lt.s32.totalorder %s268, 32
        %s270 = scalar_select %p269, %s268, 32
        %s271 = smul.u32 16, %s270
        %p272 = scmp.lt.s32.totalorder %s267, 70
        %s273 = scalar_select %p272, %s267, 70
        %s274 = scalar_lea.vmem %s0, %s273
        %p275 = pneg %p60
        %p276 = pneg %p57
        %s277 = sand.u32 %s81, 1
        %s278 = scalar_lea.sflag [#allocation3], %s277
        %s279 = sand.u32 %s81, 1
        %s280 = smul.addr %s279, 512
        %s281 = scalar_lea.vmem [#allocation2], %s280
        %p282 = pneg %p94
        %p283 = pneg %p91
        %p284 = pneg %p120
        %p285 = pneg %p117
        %p286 = scmp.lt.s32.totalorder %s23, 0
        %s287 = scalar_select %p286, %s23, 0
        %s288 = smul.addr %s287, 2
        %s289 = smul.addr %s288, 8
        %s290 = scalar_lea.vmem %s2, %s289
        %p291 = pneg %p146
        %p292 = pneg %p143
        %p293 = scmp.lt.s32.totalorder %s23, 0
        %s294 = scalar_select %p293, %s23, 0
        %s295 = smul.addr %s294, 4
        %s296 = scalar_lea.vmem %s3, %s295
        %p297 = pneg %p172
        %p298 = pneg %p169
        %p299 = scmp.lt.s32.totalorder %s23, 0
        %s300 = scalar_select %p299, %s23, 0
        %s301 = smul.addr %s300, 2
        %s302 = smul.addr %s301, 8
        %s303 = scalar_lea.vmem %s4, %s302
        %s304 = smul.u32 %s23, 3
        %s305 = sadd.s32 %s304, %s24
        %p306 = scmp.lt.s32.totalorder %s305, 2
        %s307 = scalar_select %p306, %s305, 2
        %s308 = smul.u32 32, %s307
        %s309 = ssub.s32 71, %s308
        %p310 = scmp.lt.s32.totalorder %s309, 32
        %s311 = scalar_select %p310, %s309, 32
        %s312 = smul.u32 16, %s311
        %p313 = scmp.lt.s32.totalorder %s308, 70
        %s314 = scalar_select %p313, %s308, 70
        %s315 = scalar_lea.vmem %s0, %s314
        %s316 = smul.u32 %s23, 3
        %s317 = sadd.s32 %s316, %s24
        %p318 = scmp.lt.s32.totalorder %s317, 2
        %s319 = scalar_select %p318, %s317, 2
        %s320 = smul.u32 32, %s319
        %s321 = ssub.s32 71, %s320
        %p322 = scmp.lt.s32.totalorder %s321, 32
        %s323 = scalar_select %p322, %s321, 32
        %s324 = smul.u32 16, %s323
        %s325 = smul.u32 %s23, 3
        %s326 = sadd.s32 %s325, %s24
        %p327 = scmp.lt.s32.totalorder %s326, 2
        %s328 = scalar_select %p327, %s326, 2
        %s329 = smul.u32 32, %s328
        %s330 = ssub.s32 71, %s329
        %p331 = scmp.lt.s32.totalorder %s330, 32
        %s332 = scalar_select %p331, %s330, 32
        %s333 = smul.u32 256, %s332
        %p334 = scmp.lt.s32.totalorder %s23, 0
        %s335 = scalar_select %p334, %s23, 0
        %s336 = smul.addr %s335, 2
        %s337 = smul.addr %s336, 8
        %s338 = scalar_lea.vmem %s2, %s337
        %p339 = scmp.lt.s32.totalorder %s23, 0
        %s340 = scalar_select %p339, %s23, 0
        %s341 = smul.addr %s340, 4
        %s342 = scalar_lea.vmem %s3, %s341
        %p343 = scmp.lt.s32.totalorder %s23, 0
        %s344 = scalar_select %p343, %s23, 0
        %s345 = smul.addr %s344, 2
        %s346 = smul.addr %s345, 8
        %s347 = scalar_lea.vmem %s4, %s346
        %p348 = scmp.eq.s32.totalorder %s24, 0
        // Predicated region
        $region33: #{channel_attention_3d.2} parent=27 // pred_check
          %p349 = pneg %p348
        $region34: #{channel_attention_3d.2} parent=27 // pred_check_branch
          %351 = sbr.rel (%p349) target = $region36
        $region35: #{channel_attention_3d.2} parent=27 // pred_region
          %vm352 = vcmask 23552
          %353 = vst.msk [vmem:[%s338] sm:$0xff] %vm352, 0.0
          %354 = vst.msk [vmem:[%s338 + $0x8] sm:$0xff] %vm352, 0.0
          %vm355 = vcmask 2048
          %356 = vst.msk [vmem:[%s342] sm:$0x7] %vm355, 0.0
          %357 = vst.msk [vmem:[%s347] sm:$0xff] %vm352, -inf
          %358 = vst.msk [vmem:[%s347 + $0x8] sm:$0xff] %vm352, -inf
        $region36: #{channel_attention_3d.2} parent=27 // pred_fallthru
          _
        %s359 = smul.u32 %s23, 3
        %s360 = sadd.s32 %s359, %s24
        %s361 = smul.u32 %s360, 4096
        %v362 = vlaneseq
        %v363 = vand.u32 %v362, 127
        %v364 = vadd.s32 %v363, 128
        %v365 = vadd.s32 %v363, 256
        %v366 = vadd.s32 %v363, 384
        %v367 = vadd.s32 %v363, 512
        %v368 = vadd.s32 %v363, 640
        %v369 = vadd.s32 %v363, 768
        %v370 = vadd.s32 %v363, 896
        %v371 = vadd.s32 %v363, 1024
        %v372 = vadd.s32 %v363, 1152
        %v373 = vadd.s32 %v363, 1280
        %v374 = vadd.s32 %v363, 1408
        %v375 = vadd.s32 %v363, 1536
        %v376 = vadd.s32 %v363, 1664
        %v377 = vadd.s32 %v363, 1792
        %v378 = vadd.s32 %v363, 1920
        %v379 = vadd.s32 %v363, 2048
        %v380 = vadd.s32 %v363, 2176
        %v381 = vadd.s32 %v363, 2304
        %v382 = vadd.s32 %v363, 2432
        %v383 = vadd.s32 %v363, 2560
        %v384 = vadd.s32 %v363, 2688
        %v385 = vadd.s32 %v363, 2816
        %v386 = vadd.s32 %v363, 2944
        %v387 = vadd.s32 %v363, 3072
        %v388 = vadd.s32 %v363, 3200
        %v389 = vadd.s32 %v363, 3328
        %v390 = vadd.s32 %v363, 3456
        %v391 = vadd.s32 %v363, 3584
        %v392 = vadd.s32 %v363, 3712
        %v393 = vadd.s32 %v363, 3840
        %v394 = vadd.s32 %v363, 3968
        %v395 = vstv %s361
        %v396 = vadd.s32 %v395, %v363
        %v397 = vadd.s32 %v395, %v364
        %v398 = vadd.s32 %v395, %v365
        %v399 = vadd.s32 %v395, %v366
        %v400 = vadd.s32 %v395, %v367
        %v401 = vadd.s32 %v395, %v368
        %v402 = vadd.s32 %v395, %v369
        %v403 = vadd.s32 %v395, %v370
        %v404 = vadd.s32 %v395, %v371
        %v405 = vadd.s32 %v395, %v372
        %v406 = vadd.s32 %v395, %v373
        %v407 = vadd.s32 %v395, %v374
        %v408 = vadd.s32 %v395, %v375
        %v409 = vadd.s32 %v395, %v376
        %v410 = vadd.s32 %v395, %v377
        %v411 = vadd.s32 %v395, %v378
        %v412 = vadd.s32 %v395, %v379
        %v413 = vadd.s32 %v395, %v380
        %v414 = vadd.s32 %v395, %v381
        %v415 = vadd.s32 %v395, %v382
        %v416 = vadd.s32 %v395, %v383
        %v417 = vadd.s32 %v395, %v384
        %v418 = vadd.s32 %v395, %v385
        %v419 = vadd.s32 %v395, %v386
        %v420 = vadd.s32 %v395, %v387
        %v421 = vadd.s32 %v395, %v388
        %v422 = vadd.s32 %v395, %v389
        %v423 = vadd.s32 %v395, %v390
        %v424 = vadd.s32 %v395, %v391
        %v425 = vadd.s32 %v395, %v392
        %v426 = vadd.s32 %v395, %v393
        %v427 = vadd.s32 %v395, %v394
        %vm428 = vcmp.lt.s32.totalorder %v396, 9000
        %vm429 = vcmp.lt.s32.totalorder %v397, 9000
        %vm430 = vcmp.lt.s32.totalorder %v398, 9000
        %vm431 = vcmp.lt.s32.totalorder %v399, 9000
        %vm432 = vcmp.lt.s32.totalorder %v400, 9000
        %vm433 = vcmp.lt.s32.totalorder %v401, 9000
        %vm434 = vcmp.lt.s32.totalorder %v402, 9000
        %vm435 = vcmp.lt.s32.totalorder %v403, 9000
        %vm436 = vcmp.lt.s32.totalorder %v404, 9000
        %vm437 = vcmp.lt.s32.totalorder %v405, 9000
        %vm438 = vcmp.lt.s32.totalorder %v406, 9000
        %vm439 = vcmp.lt.s32.totalorder %v407, 9000
        %vm440 = vcmp.lt.s32.totalorder %v408, 9000
        %vm441 = vcmp.lt.s32.totalorder %v409, 9000
        %vm442 = vcmp.lt.s32.totalorder %v410, 9000
        %vm443 = vcmp.lt.s32.totalorder %v411, 9000
        %vm444 = vcmp.lt.s32.totalorder %v412, 9000
        %vm445 = vcmp.lt.s32.totalorder %v413, 9000
        %vm446 = vcmp.lt.s32.totalorder %v414, 9000
        %vm447 = vcmp.lt.s32.totalorder %v415, 9000
        %vm448 = vcmp.lt.s32.totalorder %v416, 9000
        %vm449 = vcmp.lt.s32.totalorder %v417, 9000
        %vm450 = vcmp.lt.s32.totalorder %v418, 9000
        %vm451 = vcmp.lt.s32.totalorder %v419, 9000
        %vm452 = vcmp.lt.s32.totalorder %v420, 9000
        %vm453 = vcmp.lt.s32.totalorder %v421, 9000
        %vm454 = vcmp.lt.s32.totalorder %v422, 9000
        %vm455 = vcmp.lt.s32.totalorder %v423, 9000
        %vm456 = vcmp.lt.s32.totalorder %v424, 9000
        %vm457 = vcmp.lt.s32.totalorder %v425, 9000
        %vm458 = vcmp.lt.s32.totalorder %v426, 9000
        %vm459 = vcmp.lt.s32.totalorder %v427, 9000
        %v460 = vld [vmem:[%s315] sm:$0xff]
        %v461 = vld [vmem:[%s315 + $0x8] sm:$0xff]
        %v462 = vld [vmem:[%s315 + $0x10] sm:$0xff]
        %v463 = vld [vmem:[%s315 + $0x18] sm:$0xff]
        %v464 = vld [vmem:[%s258] sm:$0xff]
        %v465 = vld [vmem:[%s258 + $0x8] sm:$0xff]
        %v466 = vld [vmem:[%s258 + $0x10] sm:$0xff]
        %v467 = vld [vmem:[%s258 + $0x18] sm:$0xff]
        %v468 = vld [vmem:[%s258 + $0x20] sm:$0xff]
        %v469 = vld [vmem:[%s258 + $0x28] sm:$0xff]
        %v470 = vld [vmem:[%s258 + $0x30] sm:$0xff]
        %v471 = vld [vmem:[%s258 + $0x38] sm:$0xff]
        %v472 = vld [vmem:[%s258 + $0x40] sm:$0xff]
        %v473 = vld [vmem:[%s258 + $0x48] sm:$0xff]
        %v474 = vld [vmem:[%s258 + $0x50] sm:$0xff]
        %v475 = vld [vmem:[%s258 + $0x58] sm:$0xff]
        %v476 = vld [vmem:[%s258 + $0x60] sm:$0xff]
        %v477 = vld [vmem:[%s258 + $0x68] sm:$0xff]
        %v478 = vld [vmem:[%s258 + $0x70] sm:$0xff]
        %v479 = vld [vmem:[%s258 + $0x78] sm:$0xff]
        %v480 = vld [vmem:[%s258 + $0x80] sm:$0xff]
        %v481 = vld [vmem:[%s258 + $0x88] sm:$0xff]
        %v482 = vld [vmem:[%s258 + $0x90] sm:$0xff]
        %v483 = vld [vmem:[%s258 + $0x98] sm:$0xff]
        %v484 = vld [vmem:[%s258 + $0xa0] sm:$0xff]
        %v485 = vld [vmem:[%s258 + $0xa8] sm:$0xff]
        %v486 = vld [vmem:[%s258 + $0xb0] sm:$0xff]
        %v487 = vld [vmem:[%s258 + $0xb8] sm:$0xff]
        %v488 = vld [vmem:[%s258 + $0xc0] sm:$0xff]
        %v489 = vld [vmem:[%s258 + $0xc8] sm:$0xff]
        %v490 = vld [vmem:[%s258 + $0xd0] sm:$0xff]
        %v491 = vld [vmem:[%s258 + $0xd8] sm:$0xff]
        %v492 = vld [vmem:[%s258 + $0xe0] sm:$0xff]
        %v493 = vld [vmem:[%s258 + $0xe8] sm:$0xff]
        %v494 = vld [vmem:[%s258 + $0xf0] sm:$0xff]
        %v495 = vld [vmem:[%s258 + $0xf8] sm:$0xff]
        %v496 = vld [vmem:[%s258 + $0x100] sm:$0xff]
        %v497 = vld [vmem:[%s258 + $0x108] sm:$0xff]
        %v498 = vld [vmem:[%s258 + $0x110] sm:$0xff]
        %v499 = vld [vmem:[%s258 + $0x118] sm:$0xff]
        %v500 = vld [vmem:[%s258 + $0x120] sm:$0xff]
        %v501 = vld [vmem:[%s258 + $0x128] sm:$0xff]
        %v502 = vld [vmem:[%s258 + $0x130] sm:$0xff]
        %v503 = vld [vmem:[%s258 + $0x138] sm:$0xff]
        %v504 = vld [vmem:[%s258 + $0x140] sm:$0xff]
        %v505 = vld [vmem:[%s258 + $0x148] sm:$0xff]
        %v506 = vld [vmem:[%s258 + $0x150] sm:$0xff]
        %v507 = vld [vmem:[%s258 + $0x158] sm:$0xff]
        %v508 = vld [vmem:[%s258 + $0x160] sm:$0xff]
        %v509 = vld [vmem:[%s258 + $0x168] sm:$0xff]
        %v510 = vld [vmem:[%s258 + $0x170] sm:$0xff]
        %v511 = vld [vmem:[%s258 + $0x178] sm:$0xff]
        %v512 = vld [vmem:[%s258 + $0x180] sm:$0xff]
        %v513 = vld [vmem:[%s258 + $0x188] sm:$0xff]
        %v514 = vld [vmem:[%s258 + $0x190] sm:$0xff]
        %v515 = vld [vmem:[%s258 + $0x198] sm:$0xff]
        %v516 = vld [vmem:[%s258 + $0x1a0] sm:$0xff]
        %v517 = vld [vmem:[%s258 + $0x1a8] sm:$0xff]
        %v518 = vld [vmem:[%s258 + $0x1b0] sm:$0xff]
        %v519 = vld [vmem:[%s258 + $0x1b8] sm:$0xff]
        %v520 = vld [vmem:[%s258 + $0x1c0] sm:$0xff]
        %v521 = vld [vmem:[%s258 + $0x1c8] sm:$0xff]
        %v522 = vld [vmem:[%s258 + $0x1d0] sm:$0xff]
        %v523 = vld [vmem:[%s258 + $0x1d8] sm:$0xff]
        %v524 = vld [vmem:[%s258 + $0x1e0] sm:$0xff]
        %v525 = vld [vmem:[%s258 + $0x1e8] sm:$0xff]
        %v526 = vld [vmem:[%s258 + $0x1f0] sm:$0xff]
        %v527 = vld [vmem:[%s258 + $0x1f8] sm:$0xff]
        %v528 = vlaneseq
        %v529 = vshrl.u32 %v528, 7
        %v530 = vlaneseq
        %v531 = vshrl.u32 %v530, 7
        %v532 = vsub.s32 0, %v531
        %v533 = vrot.slane %v460, %v532
        %v534 = vlaneseq
        %v535 = vshrl.u32 %v534, 7
        %v536 = vsub.s32 1, %v535
        %v537 = vrot.slane %v460, %v536
        %v538 = vlaneseq
        %v539 = vshrl.u32 %v538, 7
        %v540 = vsub.s32 2, %v539
        %v541 = vrot.slane %v460, %v540
        %v542 = vlaneseq
        %v543 = vshrl.u32 %v542, 7
        %v544 = vsub.s32 3, %v543
        %v545 = vrot.slane %v460, %v544
        %v546 = vlaneseq
        %v547 = vshrl.u32 %v546, 7
        %v548 = vsub.s32 4, %v547
        %v549 = vrot.slane %v460, %v548
        %v550 = vlaneseq
        %v551 = vshrl.u32 %v550, 7
        %v552 = vsub.s32 5, %v551
        %v553 = vrot.slane %v460, %v552
        %v554 = vlaneseq
        %v555 = vshrl.u32 %v554, 7
        %v556 = vsub.s32 6, %v555
        %v557 = vrot.slane %v460, %v556
        %v558 = vlaneseq
        %v559 = vshrl.u32 %v558, 7
        %v560 = vsub.s32 7, %v559
        %v561 = vrot.slane %v460, %v560
        %v562 = vlaneseq
        %v563 = vshrl.u32 %v562, 7
        %v564 = vsub.s32 0, %v563
        %v565 = vrot.slane %v461, %v564
        %v566 = vlaneseq
        %v567 = vshrl.u32 %v566, 7
        %v568 = vsub.s32 1, %v567
        %v569 = vrot.slane %v461, %v568
        %v570 = vlaneseq
        %v571 = vshrl.u32 %v570, 7
        %v572 = vsub.s32 2, %v571
        %v573 = vrot.slane %v461, %v572
        %v574 = vlaneseq
        %v575 = vshrl.u32 %v574, 7
        %v576 = vsub.s32 3, %v575
        %v577 = vrot.slane %v461, %v576
        %v578 = vlaneseq
        %v579 = vshrl.u32 %v578, 7
        %v580 = vsub.s32 4, %v579
        %v581 = vrot.slane %v461, %v580
        %v582 = vlaneseq
        %v583 = vshrl.u32 %v582, 7
        %v584 = vsub.s32 5, %v583
        %v585 = vrot.slane %v461, %v584
        %v586 = vlaneseq
        %v587 = vshrl.u32 %v586, 7
        %v588 = vsub.s32 6, %v587
        %v589 = vrot.slane %v461, %v588
        %v590 = vlaneseq
        %v591 = vshrl.u32 %v590, 7
        %v592 = vsub.s32 7, %v591
        %v593 = vrot.slane %v461, %v592
        %v594 = vlaneseq
        %v595 = vshrl.u32 %v594, 7
        %v596 = vsub.s32 0, %v595
        %v597 = vrot.slane %v462, %v596
        %v598 = vlaneseq
        %v599 = vshrl.u32 %v598, 7
        %v600 = vsub.s32 1, %v599
        %v601 = vrot.slane %v462, %v600
        %v602 = vlaneseq
        %v603 = vshrl.u32 %v602, 7
        %v604 = vsub.s32 2, %v603
        %v605 = vrot.slane %v462, %v604
        %v606 = vlaneseq
        %v607 = vshrl.u32 %v606, 7
        %v608 = vsub.s32 3, %v607
        %v609 = vrot.slane %v462, %v608
        %v610 = vlaneseq
        %v611 = vshrl.u32 %v610, 7
        %v612 = vsub.s32 4, %v611
        %v613 = vrot.slane %v462, %v612
        %v614 = vlaneseq
        %v615 = vshrl.u32 %v614, 7
        %v616 = vsub.s32 5, %v615
        %v617 = vrot.slane %v462, %v616
        %v618 = vlaneseq
        %v619 = vshrl.u32 %v618, 7
        %v620 = vsub.s32 6, %v619
        %v621 = vrot.slane %v462, %v620
        %v622 = vlaneseq
        %v623 = vshrl.u32 %v622, 7
        %v624 = vsub.s32 7, %v623
        %v625 = vrot.slane %v462, %v624
        %v626 = vlaneseq
        %v627 = vshrl.u32 %v626, 7
        %v628 = vsub.s32 0, %v627
        %v629 = vrot.slane %v463, %v628
        %v630 = vlaneseq
        %v631 = vshrl.u32 %v630, 7
        %v632 = vsub.s32 1, %v631
        %v633 = vrot.slane %v463, %v632
        %v634 = vlaneseq
        %v635 = vshrl.u32 %v634, 7
        %v636 = vsub.s32 2, %v635
        %v637 = vrot.slane %v463, %v636
        %v638 = vlaneseq
        %v639 = vshrl.u32 %v638, 7
        %v640 = vsub.s32 3, %v639
        %v641 = vrot.slane %v463, %v640
        %v642 = vlaneseq
        %v643 = vshrl.u32 %v642, 7
        %v644 = vsub.s32 4, %v643
        %v645 = vrot.slane %v463, %v644
        %v646 = vlaneseq
        %v647 = vshrl.u32 %v646, 7
        %v648 = vsub.s32 5, %v647
        %v649 = vrot.slane %v463, %v648
        %v650 = vlaneseq
        %v651 = vshrl.u32 %v650, 7
        %v652 = vsub.s32 6, %v651
        %v653 = vrot.slane %v463, %v652
        %v654 = vlaneseq
        %v655 = vshrl.u32 %v654, 7
        %v656 = vsub.s32 7, %v655
        %v657 = vrot.slane %v463, %v656
        %vm658 = vcmp.eq.s32.totalorder %v533, %v529
        %vm659 = vcmp.eq.s32.totalorder %v537, %v529
        %vm660 = vcmp.eq.s32.totalorder %v541, %v529
        %vm661 = vcmp.eq.s32.totalorder %v545, %v529
        %vm662 = vcmp.eq.s32.totalorder %v549, %v529
        %vm663 = vcmp.eq.s32.totalorder %v553, %v529
        %vm664 = vcmp.eq.s32.totalorder %v557, %v529
        %vm665 = vcmp.eq.s32.totalorder %v561, %v529
        %vm666 = vcmp.eq.s32.totalorder %v565, %v529
        %vm667 = vcmp.eq.s32.totalorder %v569, %v529
        %vm668 = vcmp.eq.s32.totalorder %v573, %v529
        %vm669 = vcmp.eq.s32.totalorder %v577, %v529
        %vm670 = vcmp.eq.s32.totalorder %v581, %v529
        %vm671 = vcmp.eq.s32.totalorder %v585, %v529
        %vm672 = vcmp.eq.s32.totalorder %v589, %v529
        %vm673 = vcmp.eq.s32.totalorder %v593, %v529
        %vm674 = vcmp.eq.s32.totalorder %v597, %v529
        %vm675 = vcmp.eq.s32.totalorder %v601, %v529
        %vm676 = vcmp.eq.s32.totalorder %v605, %v529
        %vm677 = vcmp.eq.s32.totalorder %v609, %v529
        %vm678 = vcmp.eq.s32.totalorder %v613, %v529
        %vm679 = vcmp.eq.s32.totalorder %v617, %v529
        %vm680 = vcmp.eq.s32.totalorder %v621, %v529
        %vm681 = vcmp.eq.s32.totalorder %v625, %v529
        %vm682 = vcmp.eq.s32.totalorder %v629, %v529
        %vm683 = vcmp.eq.s32.totalorder %v633, %v529
        %vm684 = vcmp.eq.s32.totalorder %v637, %v529
        %vm685 = vcmp.eq.s32.totalorder %v641, %v529
        %vm686 = vcmp.eq.s32.totalorder %v645, %v529
        %vm687 = vcmp.eq.s32.totalorder %v649, %v529
        %vm688 = vcmp.eq.s32.totalorder %v653, %v529
        %vm689 = vcmp.eq.s32.totalorder %v657, %v529
        %v690 = vsel %vm428, 1, 0
        %v691 = vsel %vm429, 1, 0
        %v692 = vsel %vm430, 1, 0
        %v693 = vsel %vm431, 1, 0
        %v694 = vsel %vm432, 1, 0
        %v695 = vsel %vm433, 1, 0
        %v696 = vsel %vm434, 1, 0
        %v697 = vsel %vm435, 1, 0
        %v698 = vsel %vm436, 1, 0
        %v699 = vsel %vm437, 1, 0
        %v700 = vsel %vm438, 1, 0
        %v701 = vsel %vm439, 1, 0
        %v702 = vsel %vm440, 1, 0
        %v703 = vsel %vm441, 1, 0
        %v704 = vsel %vm442, 1, 0
        %v705 = vsel %vm443, 1, 0
        %v706 = vsel %vm444, 1, 0
        %v707 = vsel %vm445, 1, 0
        %v708 = vsel %vm446, 1, 0
        %v709 = vsel %vm447, 1, 0
        %v710 = vsel %vm448, 1, 0
        %v711 = vsel %vm449, 1, 0
        %v712 = vsel %vm450, 1, 0
        %v713 = vsel %vm451, 1, 0
        %v714 = vsel %vm452, 1, 0
        %v715 = vsel %vm453, 1, 0
        %v716 = vsel %vm454, 1, 0
        %v717 = vsel %vm455, 1, 0
        %v718 = vsel %vm456, 1, 0
        %v719 = vsel %vm457, 1, 0
        %v720 = vsel %vm458, 1, 0
        %v721 = vsel %vm459, 1, 0
        %vm722 = vcmp.eq.s32.totalorder %v690, 1
        %vm723 = vcmp.eq.s32.totalorder %v691, 1
        %vm724 = vcmp.eq.s32.totalorder %v692, 1
        %vm725 = vcmp.eq.s32.totalorder %v693, 1
        %vm726 = vcmp.eq.s32.totalorder %v694, 1
        %vm727 = vcmp.eq.s32.totalorder %v695, 1
        %vm728 = vcmp.eq.s32.totalorder %v696, 1
        %vm729 = vcmp.eq.s32.totalorder %v697, 1
        %vm730 = vcmp.eq.s32.totalorder %v698, 1
        %vm731 = vcmp.eq.s32.totalorder %v699, 1
        %vm732 = vcmp.eq.s32.totalorder %v700, 1
        %vm733 = vcmp.eq.s32.totalorder %v701, 1
        %vm734 = vcmp.eq.s32.totalorder %v702, 1
        %vm735 = vcmp.eq.s32.totalorder %v703, 1
        %vm736 = vcmp.eq.s32.totalorder %v704, 1
        %vm737 = vcmp.eq.s32.totalorder %v705, 1
        %vm738 = vcmp.eq.s32.totalorder %v706, 1
        %vm739 = vcmp.eq.s32.totalorder %v707, 1
        %vm740 = vcmp.eq.s32.totalorder %v708, 1
        %vm741 = vcmp.eq.s32.totalorder %v709, 1
        %vm742 = vcmp.eq.s32.totalorder %v710, 1
        %vm743 = vcmp.eq.s32.totalorder %v711, 1
        %vm744 = vcmp.eq.s32.totalorder %v712, 1
        %vm745 = vcmp.eq.s32.totalorder %v713, 1
        %vm746 = vcmp.eq.s32.totalorder %v714, 1
        %vm747 = vcmp.eq.s32.totalorder %v715, 1
        %vm748 = vcmp.eq.s32.totalorder %v716, 1
        %vm749 = vcmp.eq.s32.totalorder %v717, 1
        %vm750 = vcmp.eq.s32.totalorder %v718, 1
        %vm751 = vcmp.eq.s32.totalorder %v719, 1
        %vm752 = vcmp.eq.s32.totalorder %v720, 1
        %vm753 = vcmp.eq.s32.totalorder %v721, 1
        %vm754 = vmand %vm658, %vm722
        %vm755 = vmand %vm659, %vm723
        %vm756 = vmand %vm660, %vm724
        %vm757 = vmand %vm661, %vm725
        %vm758 = vmand %vm662, %vm726
        %vm759 = vmand %vm663, %vm727
        %vm760 = vmand %vm664, %vm728
        %vm761 = vmand %vm665, %vm729
        %vm762 = vmand %vm666, %vm730
        %vm763 = vmand %vm667, %vm731
        %vm764 = vmand %vm668, %vm732
        %vm765 = vmand %vm669, %vm733
        %vm766 = vmand %vm670, %vm734
        %vm767 = vmand %vm671, %vm735
        %vm768 = vmand %vm672, %vm736
        %vm769 = vmand %vm673, %vm737
        %vm770 = vmand %vm674, %vm738
        %vm771 = vmand %vm675, %vm739
        %vm772 = vmand %vm676, %vm740
        %vm773 = vmand %vm677, %vm741
        %vm774 = vmand %vm678, %vm742
        %vm775 = vmand %vm679, %vm743
        %vm776 = vmand %vm680, %vm744
        %vm777 = vmand %vm681, %vm745
        %vm778 = vmand %vm682, %vm746
        %vm779 = vmand %vm683, %vm747
        %vm780 = vmand %vm684, %vm748
        %vm781 = vmand %vm685, %vm749
        %vm782 = vmand %vm686, %vm750
        %vm783 = vmand %vm687, %vm751
        %vm784 = vmand %vm688, %vm752
        %vm785 = vmand %vm689, %vm753
        %v786 = vsel %vm754, 1, 0
        %v787 = vsel %vm755, 1, 0
        %v788 = vsel %vm756, 1, 0
        %v789 = vsel %vm757, 1, 0
        %v790 = vsel %vm758, 1, 0
        %v791 = vsel %vm759, 1, 0
        %v792 = vsel %vm760, 1, 0
        %v793 = vsel %vm761, 1, 0
        %v794 = vsel %vm762, 1, 0
        %v795 = vsel %vm763, 1, 0
        %v796 = vsel %vm764, 1, 0
        %v797 = vsel %vm765, 1, 0
        %v798 = vsel %vm766, 1, 0
        %v799 = vsel %vm767, 1, 0
        %v800 = vsel %vm768, 1, 0
        %v801 = vsel %vm769, 1, 0
        %v802 = vsel %vm770, 1, 0
        %v803 = vsel %vm771, 1, 0
        %v804 = vsel %vm772, 1, 0
        %v805 = vsel %vm773, 1, 0
        %v806 = vsel %vm774, 1, 0
        %v807 = vsel %vm775, 1, 0
        %v808 = vsel %vm776, 1, 0
        %v809 = vsel %vm777, 1, 0
        %v810 = vsel %vm778, 1, 0
        %v811 = vsel %vm779, 1, 0
        %v812 = vsel %vm780, 1, 0
        %v813 = vsel %vm781, 1, 0
        %v814 = vsel %vm782, 1, 0
        %v815 = vsel %vm783, 1, 0
        %v816 = vsel %vm784, 1, 0
        %v817 = vsel %vm785, 1, 0
        %v818 = vcvt.s32.f32 %v786
        %v819 = vcvt.s32.f32 %v787
        %v820 = vcvt.s32.f32 %v788
        %v821 = vcvt.s32.f32 %v789
        %v822 = vcvt.s32.f32 %v790
        %v823 = vcvt.s32.f32 %v791
        %v824 = vcvt.s32.f32 %v792
        %v825 = vcvt.s32.f32 %v793
        %v826 = vcvt.s32.f32 %v794
        %v827 = vcvt.s32.f32 %v795
        %v828 = vcvt.s32.f32 %v796
        %v829 = vcvt.s32.f32 %v797
        %v830 = vcvt.s32.f32 %v798
        %v831 = vcvt.s32.f32 %v799
        %v832 = vcvt.s32.f32 %v800
        %v833 = vcvt.s32.f32 %v801
        %v834 = vcvt.s32.f32 %v802
        %v835 = vcvt.s32.f32 %v803
        %v836 = vcvt.s32.f32 %v804
        %v837 = vcvt.s32.f32 %v805
        %v838 = vcvt.s32.f32 %v806
        %v839 = vcvt.s32.f32 %v807
        %v840 = vcvt.s32.f32 %v808
        %v841 = vcvt.s32.f32 %v809
        %v842 = vcvt.s32.f32 %v810
        %v843 = vcvt.s32.f32 %v811
        %v844 = vcvt.s32.f32 %v812
        %v845 = vcvt.s32.f32 %v813
        %v846 = vcvt.s32.f32 %v814
        %v847 = vcvt.s32.f32 %v815
        %v848 = vcvt.s32.f32 %v816
        %v849 = vcvt.s32.f32 %v817
        %v850 = vsel %vm722, %v464, 0.0
        %v851 = vsel %vm723, %v465, 0.0
        %v852 = vsel %vm724, %v466, 0.0
        %v853 = vsel %vm725, %v467, 0.0
        %v854 = vsel %vm726, %v468, 0.0
        %v855 = vsel %vm727, %v469, 0.0
        %v856 = vsel %vm728, %v470, 0.0
        %v857 = vsel %vm729, %v471, 0.0
        %v858 = vsel %vm730, %v472, 0.0
        %v859 = vsel %vm731, %v473, 0.0
        %v860 = vsel %vm732, %v474, 0.0
        %v861 = vsel %vm733, %v475, 0.0
        %v862 = vsel %vm734, %v476, 0.0
        %v863 = vsel %vm735, %v477, 0.0
        %v864 = vsel %vm736, %v478, 0.0
        %v865 = vsel %vm737, %v479, 0.0
        %v866 = vsel %vm738, %v480, 0.0
        %v867 = vsel %vm739, %v481, 0.0
        %v868 = vsel %vm740, %v482, 0.0
        %v869 = vsel %vm741, %v483, 0.0
        %v870 = vsel %vm742, %v484, 0.0
        %v871 = vsel %vm743, %v485, 0.0
        %v872 = vsel %vm744, %v486, 0.0
        %v873 = vsel %vm745, %v487, 0.0
        %v874 = vsel %vm746, %v488, 0.0
        %v875 = vsel %vm747, %v489, 0.0
        %v876 = vsel %vm748, %v490, 0.0
        %v877 = vsel %vm749, %v491, 0.0
        %v878 = vsel %vm750, %v492, 0.0
        %v879 = vsel %vm751, %v493, 0.0
        %v880 = vsel %vm752, %v494, 0.0
        %v881 = vsel %vm753, %v495, 0.0
        %v882 = vsel %vm722, %v496, 0.0
        %v883 = vsel %vm723, %v497, 0.0
        %v884 = vsel %vm724, %v498, 0.0
        %v885 = vsel %vm725, %v499, 0.0
        %v886 = vsel %vm726, %v500, 0.0
        %v887 = vsel %vm727, %v501, 0.0
        %v888 = vsel %vm728, %v502, 0.0
        %v889 = vsel %vm729, %v503, 0.0
        %v890 = vsel %vm730, %v504, 0.0
        %v891 = vsel %vm731, %v505, 0.0
        %v892 = vsel %vm732, %v506, 0.0
        %v893 = vsel %vm733, %v507, 0.0
        %v894 = vsel %vm734, %v508, 0.0
        %v895 = vsel %vm735, %v509, 0.0
        %v896 = vsel %vm736, %v510, 0.0
        %v897 = vsel %vm737, %v511, 0.0
        %v898 = vsel %vm738, %v512, 0.0
        %v899 = vsel %vm739, %v513, 0.0
        %v900 = vsel %vm740, %v514, 0.0
        %v901 = vsel %vm741, %v515, 0.0
        %v902 = vsel %vm742, %v516, 0.0
        %v903 = vsel %vm743, %v517, 0.0
        %v904 = vsel %vm744, %v518, 0.0
        %v905 = vsel %vm745, %v519, 0.0
        %v906 = vsel %vm746, %v520, 0.0
        %v907 = vsel %vm747, %v521, 0.0
        %v908 = vsel %vm748, %v522, 0.0
        %v909 = vsel %vm749, %v523, 0.0
        %v910 = vsel %vm750, %v524, 0.0
        %v911 = vsel %vm751, %v525, 0.0
        %v912 = vsel %vm752, %v526, 0.0
        %v913 = vsel %vm753, %v527, 0.0
        %v914 = vld [vmem:[%s338] sm:$0xff]
        %v915 = vld [vmem:[%s338 + $0x8] sm:$0xff]
        %916 = vmatprep.subr.mxu0 %v819
        %917 = vmatpush1.xpose.msra.mxu0 %v818
        %918 = vmatprep.subr.mxu0 0.0
        %919 = vmatpush1.xpose.msra.mxu0 0.0
        %920 = vmatprep.subr.mxu0 0.0
        %921 = vmatpush1.xpose.msra.mxu0 0.0
        %922 = vmatprep.subr.mxu0 0.0
        %923 = vmatpush1.xpose.msra.mxu0 0.0
        %924 = vmatprep.subr.mxu0 0.0
        %925 = vmatpush1.xpose.msra.mxu0 0.0
        %926 = vmatprep.subr.mxu0 0.0
        %927 = vmatpush1.xpose.msra.mxu0 0.0
        %928 = vmatprep.subr.mxu0 0.0
        %929 = vmatpush1.xpose.msra.mxu0 0.0
        %930 = vmatprep.subr.mxu0 0.0
        %931 = vmatpush1.xpose.msra.mxu0 0.0
        %932 = vmatprep.subr.mxu0 0.0
        %933 = vmatpush1.xpose.msra.mxu0 0.0
        %934 = vmatprep.subr.mxu0 0.0
        %935 = vmatpush1.xpose.msra.mxu0 0.0
        %936 = vmatprep.subr.mxu0 0.0
        %937 = vmatpush1.xpose.msra.mxu0 0.0
        %938 = vmatprep.subr.mxu0 0.0
        %939 = vmatpush1.xpose.msra.mxu0 0.0
        %940 = vmatprep.subr.mxu0 0.0
        %941 = vmatpush1.xpose.msra.mxu0 0.0
        %942 = vmatprep.subr.mxu0 0.0
        %943 = vmatpush1.xpose.msra.mxu0 0.0
        %944 = vmatprep.subr.mxu0 0.0
        %945 = vmatpush1.xpose.msra.mxu0 0.0
        %946 = vmatprep.subr.mxu0 0.0
        %947 = vmatpush1.xpose.msra.mxu0 0.0
        %948 = vmatprep.subr.mxu0 0.0
        %949 = vmatpush1.xpose.msra.mxu0 0.0
        %950 = vmatprep.subr.mxu0 0.0
        %951 = vmatpush1.xpose.msra.mxu0 0.0
        %952 = vmatprep.subr.mxu0 0.0
        %953 = vmatpush1.xpose.msra.mxu0 0.0
        %954 = vmatprep.subr.mxu0 0.0
        %955 = vmatpush1.xpose.msra.mxu0 0.0
        %956 = vmatprep.subr.mxu0 0.0
        %957 = vmatpush1.xpose.msra.mxu0 0.0
        %958 = vmatprep.subr.mxu0 0.0
        %959 = vmatpush1.xpose.msra.mxu0 0.0
        %960 = vmatprep.subr.mxu0 0.0
        %961 = vmatpush1.xpose.msra.mxu0 0.0
        %962 = vmatprep.subr.mxu0 0.0
        %963 = vmatpush1.xpose.msra.mxu0 0.0
        %964 = vmatprep.subr.mxu0 0.0
        %965 = vmatpush1.xpose.msra.mxu0 0.0
        %966 = vmatprep.subr.mxu0 0.0
        %967 = vmatpush1.xpose.msra.mxu0 0.0
        %968 = vmatprep.subr.mxu0 0.0
        %969 = vmatpush1.xpose.msra.mxu0 0.0
        %970 = vmatprep.subr.mxu0 0.0
        %971 = vmatpush1.xpose.msra.mxu0 0.0
        %972 = vmatprep.subr.mxu0 0.0
        %973 = vmatpush1.xpose.msra.mxu0 0.0
        %974 = vmatprep.subr.mxu0 0.0
        %975 = vmatpush1.xpose.msra.mxu0 0.0
        %976 = vmatprep.subr.mxu0 0.0
        %977 = vmatpush1.xpose.msra.mxu0 0.0
        %978 = vmatprep.subr.mxu0 0.0
        %979 = vmatpush1.xpose.msra.mxu0 0.0
        %980 = vmatprep.mubr.f32.mxu0 %v851
        %981 = vmatmul.mubr.f32.gmra.mrb[0].mxu0 %v850
        %v982 = vpop.f32.mrb[0].mxu0
        %v983 = vadd.f32 0.0, %v982
        %v984 = vpop.f32.mrb[0].mxu0
        %985 = vmatprep.mubr.f32.mxu0 %v883
        %986 = vmatmul.mubr.f32.gmra.mrb[0].mxu0 %v882
        %v987 = vpop.f32.mrb[0].mxu0
        %v988 = vadd.f32 0.0, %v987
        %v989 = vpop.f32.mrb[0].mxu0
        %990 = vdwg.mxu0
        %991 = vmatprep.subr.mxu0 %v821
        %992 = vmatpush1.xpose.msra.mxu0 %v820
        %993 = vmatprep.subr.mxu0 0.0
        %994 = vmatpush1.xpose.msra.mxu0 0.0
        %995 = vmatprep.subr.mxu0 0.0
        %996 = vmatpush1.xpose.msra.mxu0 0.0
        %997 = vmatprep.subr.mxu0 0.0
        %998 = vmatpush1.xpose.msra.mxu0 0.0
        %999 = vmatprep.subr.mxu0 0.0
        %1000 = vmatpush1.xpose.msra.mxu0 0.0
        %1001 = vmatprep.subr.mxu0 0.0
        %1002 = vmatpush1.xpose.msra.mxu0 0.0
        %1003 = vmatprep.subr.mxu0 0.0
        %1004 = vmatpush1.xpose.msra.mxu0 0.0
        %1005 = vmatprep.subr.mxu0 0.0
        %1006 = vmatpush1.xpose.msra.mxu0 0.0
        %1007 = vmatprep.subr.mxu0 0.0
        %1008 = vmatpush1.xpose.msra.mxu0 0.0
        %1009 = vmatprep.subr.mxu0 0.0
        %1010 = vmatpush1.xpose.msra.mxu0 0.0
        %1011 = vmatprep.subr.mxu0 0.0
        %1012 = vmatpush1.xpose.msra.mxu0 0.0
        %1013 = vmatprep.subr.mxu0 0.0
        %1014 = vmatpush1.xpose.msra.mxu0 0.0
        %1015 = vmatprep.subr.mxu0 0.0
        %1016 = vmatpush1.xpose.msra.mxu0 0.0
        %1017 = vmatprep.subr.mxu0 0.0
        %1018 = vmatpush1.xpose.msra.mxu0 0.0
        %1019 = vmatprep.subr.mxu0 0.0
        %1020 = vmatpush1.xpose.msra.mxu0 0.0
        %1021 = vmatprep.subr.mxu0 0.0
        %1022 = vmatpush1.xpose.msra.mxu0 0.0
        %1023 = vmatprep.subr.mxu0 0.0
        %1024 = vmatpush1.xpose.msra.mxu0 0.0
        %1025 = vmatprep.subr.mxu0 0.0
        %1026 = vmatpush1.xpose.msra.mxu0 0.0
        %1027 = vmatprep.subr.mxu0 0.0
        %1028 = vmatpush1.xpose.msra.mxu0 0.0
        %1029 = vmatprep.subr.mxu0 0.0
        %1030 = vmatpush1.xpose.msra.mxu0 0.0
        %1031 = vmatprep.subr.mxu0 0.0
        %1032 = vmatpush1.xpose.msra.mxu0 0.0
        %1033 = vmatprep.subr.mxu0 0.0
        %1034 = vmatpush1.xpose.msra.mxu0 0.0
        %1035 = vmatprep.subr.mxu0 0.0
        %1036 = vmatpush1.xpose.msra.mxu0 0.0
        %1037 = vmatprep.subr.mxu0 0.0
        %1038 = vmatpush1.xpose.msra.mxu0 0.0
        %1039 = vmatprep.subr.mxu0 0.0
        %1040 = vmatpush1.xpose.msra.mxu0 0.0
        %1041 = vmatprep.subr.mxu0 0.0
        %1042 = vmatpush1.xpose.msra.mxu0 0.0
        %1043 = vmatprep.subr.mxu0 0.0
        %1044 = vmatpush1.xpose.msra.mxu0 0.0
        %1045 = vmatprep.subr.mxu0 0.0
        %1046 = vmatpush1.xpose.msra.mxu0 0.0
        %1047 = vmatprep.subr.mxu0 0.0
        %1048 = vmatpush1.xpose.msra.mxu0 0.0
        %1049 = vmatprep.subr.mxu0 0.0
        %1050 = vmatpush1.xpose.msra.mxu0 0.0
        %1051 = vmatprep.subr.mxu0 0.0
        %1052 = vmatpush1.xpose.msra.mxu0 0.0
        %1053 = vmatprep.subr.mxu0 0.0
        %1054 = vmatpush1.xpose.msra.mxu0 0.0
        %1055 = vmatprep.mubr.f32.mxu0 %v853
        %1056 = vmatmul.mubr.f32.gmra.mrb[0].mxu0 %v852
        %v1057 = vpop.f32.mrb[0].mxu0
        %v1058 = vadd.f32 %v983, %v1057
        %v1059 = vpop.f32.mrb[0].mxu0
        %1060 = vmatprep.mubr.f32.mxu0 %v885
        %1061 = vmatmul.mubr.f32.gmra.mrb[0].mxu0 %v884
        %v1062 = vpop.f32.mrb[0].mxu0
        %v1063 = vadd.f32 %v988, %v1062
        %v1064 = vpop.f32.mrb[0].mxu0
        %1065 = vdwg.mxu0
        %1066 = vmatprep.subr.mxu0 %v823
        %1067 = vmatpush1.xpose.msra.mxu0 %v822
        %1068 = vmatprep.subr.mxu0 0.0
        %1069 = vmatpush1.xpose.msra.mxu0 0.0
        %1070 = vmatprep.subr.mxu0 0.0
        %1071 = vmatpush1.xpose.msra.mxu0 0.0
        %1072 = vmatprep.subr.mxu0 0.0
        %1073 = vmatpush1.xpose.msra.mxu0 0.0
        %1074 = vmatprep.subr.mxu0 0.0
        %1075 = vmatpush1.xpose.msra.mxu0 0.0
        %1076 = vmatprep.subr.mxu0 0.0
        %1077 = vmatpush1.xpose.msra.mxu0 0.0
        %1078 = vmatprep.subr.mxu0 0.0
        %1079 = vmatpush1.xpose.msra.mxu0 0.0
        %1080 = vmatprep.subr.mxu0 0.0
        %1081 = vmatpush1.xpose.msra.mxu0 0.0
        %1082 = vmatprep.subr.mxu0 0.0
        %1083 = vmatpush1.xpose.msra.mxu0 0.0
        %1084 = vmatprep.subr.mxu0 0.0
        %1085 = vmatpush1.xpose.msra.mxu0 0.0
        %1086 = vmatprep.subr.mxu0 0.0
        %1087 = vmatpush1.xpose.msra.mxu0 0.0
        %1088 = vmatprep.subr.mxu0 0.0
        %1089 = vmatpush1.xpose.msra.mxu0 0.0
        %1090 = vmatprep.subr.mxu0 0.0
        %1091 = vmatpush1.xpose.msra.mxu0 0.0
        %1092 = vmatprep.subr.mxu0 0.0
        %1093 = vmatpush1.xpose.msra.mxu0 0.0
        %1094 = vmatprep.subr.mxu0 0.0
        %1095 = vmatpush1.xpose.msra.mxu0 0.0
        %1096 = vmatprep.subr.mxu0 0.0
        %1097 = vmatpush1.xpose.msra.mxu0 0.0
        %1098 = vmatprep.subr.mxu0 0.0
        %1099 = vmatpush1.xpose.msra.mxu0 0.0
        %1100 = vmatprep.subr.mxu0 0.0
        %1101 = vmatpush1.xpose.msra.mxu0 0.0
        %1102 = vmatprep.subr.mxu0 0.0
        %1103 = vmatpush1.xpose.msra.mxu0 0.0
        %1104 = vmatprep.subr.mxu0 0.0
        %1105 = vmatpush1.xpose.msra.mxu0 0.0
        %1106 = vmatprep.subr.mxu0 0.0
        %1107 = vmatpush1.xpose.msra.mxu0 0.0
        %1108 = vmatprep.subr.mxu0 0.0
        %1109 = vmatpush1.xpose.msra.mxu0 0.0
        %1110 = vmatprep.subr.mxu0 0.0
        %1111 = vmatpush1.xpose.msra.mxu0 0.0
        %1112 = vmatprep.subr.mxu0 0.0
        %1113 = vmatpush1.xpose.msra.mxu0 0.0
        %1114 = vmatprep.subr.mxu0 0.0
        %1115 = vmatpush1.xpose.msra.mxu0 0.0
        %1116 = vmatprep.subr.mxu0 0.0
        %1117 = vmatpush1.xpose.msra.mxu0 0.0
        %1118 = vmatprep.subr.mxu0 0.0
        %1119 = vmatpush1.xpose.msra.mxu0 0.0
        %1120 = vmatprep.subr.mxu0 0.0
        %1121 = vmatpush1.xpose.msra.mxu0 0.0
        %1122 = vmatprep.subr.mxu0 0.0
        %1123 = vmatpush1.xpose.msra.mxu0 0.0
        %1124 = vmatprep.subr.mxu0 0.0
        %1125 = vmatpush1.xpose.msra.mxu0 0.0
        %1126 = vmatprep.subr.mxu0 0.0
        %1127 = vmatpush1.xpose.msra.mxu0 0.0
        %1128 = vmatprep.subr.mxu0 0.0
        %1129 = vmatpush1.xpose.msra.mxu0 0.0
        %1130 = vmatprep.mubr.f32.mxu0 %v855
        %1131 = vmatmul.mubr.f32.gmra.mrb[0].mxu0 %v854
        %v1132 = vpop.f32.mrb[0].mxu0
        %v1133 = vadd.f32 %v1058, %v1132
        %v1134 = vpop.f32.mrb[0].mxu0
        %1135 = vmatprep.mubr.f32.mxu0 %v887
        %1136 = vmatmul.mubr.f32.gmra.mrb[0].mxu0 %v886
        %v1137 = vpop.f32.mrb[0].mxu0
        %v1138 = vadd.f32 %v1063, %v1137
        %v1139 = vpop.f32.mrb[0].mxu0
        %1140 = vdwg.mxu0
        %1141 = vmatprep.subr.mxu0 %v825
        %1142 = vmatpush1.xpose.msra.mxu0 %v824
        %1143 = vmatprep.subr.mxu0 0.0
        %1144 = vmatpush1.xpose.msra.mxu0 0.0
        %1145 = vmatprep.subr.mxu0 0.0
        %1146 = vmatpush1.xpose.msra.mxu0 0.0
        %1147 = vmatprep.subr.mxu0 0.0
        %1148 = vmatpush1.xpose.msra.mxu0 0.0
        %1149 = vmatprep.subr.mxu0 0.0
        %1150 = vmatpush1.xpose.msra.mxu0 0.0
        %1151 = vmatprep.subr.mxu0 0.0
        %1152 = vmatpush1.xpose.msra.mxu0 0.0
        %1153 = vmatprep.subr.mxu0 0.0
        %1154 = vmatpush1.xpose.msra.mxu0 0.0
        %1155 = vmatprep.subr.mxu0 0.0
        %1156 = vmatpush1.xpose.msra.mxu0 0.0
        %1157 = vmatprep.subr.mxu0 0.0
        %1158 = vmatpush1.xpose.msra.mxu0 0.0
        %1159 = vmatprep.subr.mxu0 0.0
        %1160 = vmatpush1.xpose.msra.mxu0 0.0
        %1161 = vmatprep.subr.mxu0 0.0
        %1162 = vmatpush1.xpose.msra.mxu0 0.0
        %1163 = vmatprep.subr.mxu0 0.0
        %1164 = vmatpush1.xpose.msra.mxu0 0.0
        %1165 = vmatprep.subr.mxu0 0.0
        %1166 = vmatpush1.xpose.msra.mxu0 0.0
        %1167 = vmatprep.subr.mxu0 0.0
        %1168 = vmatpush1.xpose.msra.mxu0 0.0
        %1169 = vmatprep.subr.mxu0 0.0
        %1170 = vmatpush1.xpose.msra.mxu0 0.0
        %1171 = vmatprep.subr.mxu0 0.0
        %1172 = vmatpush1.xpose.msra.mxu0 0.0
        %1173 = vmatprep.subr.mxu0 0.0
        %1174 = vmatpush1.xpose.msra.mxu0 0.0
        %1175 = vmatprep.subr.mxu0 0.0
        %1176 = vmatpush1.xpose.msra.mxu0 0.0
        %1177 = vmatprep.subr.mxu0 0.0
        %1178 = vmatpush1.xpose.msra.mxu0 0.0
        %1179 = vmatprep.subr.mxu0 0.0
        %1180 = vmatpush1.xpose.msra.mxu0 0.0
        %1181 = vmatprep.subr.mxu0 0.0
        %1182 = vmatpush1.xpose.msra.mxu0 0.0
        %1183 = vmatprep.subr.mxu0 0.0
        %1184 = vmatpush1.xpose.msra.mxu0 0.0
        %1185 = vmatprep.subr.mxu0 0.0
        %1186 = vmatpush1.xpose.msra.mxu0 0.0
        %1187 = vmatprep.subr.mxu0 0.0
        %1188 = vmatpush1.xpose.msra.mxu0 0.0
        %1189 = vmatprep.subr.mxu0 0.0
        %1190 = vmatpush1.xpose.msra.mxu0 0.0
        %1191 = vmatprep.subr.mxu0 0.0
        %1192 = vmatpush1.xpose.msra.mxu0 0.0
        %1193 = vmatprep.subr.mxu0 0.0
        %1194 = vmatpush1.xpose.msra.mxu0 0.0
        %1195 = vmatprep.subr.mxu0 0.0
        %1196 = vmatpush1.xpose.msra.mxu0 0.0
        %1197 = vmatprep.subr.mxu0 0.0
        %1198 = vmatpush1.xpose.msra.mxu0 0.0
        %1199 = vmatprep.subr.mxu0 0.0
        %1200 = vmatpush1.xpose.msra.mxu0 0.0
        %1201 = vmatprep.subr.mxu0 0.0
        %1202 = vmatpush1.xpose.msra.mxu0 0.0
        %1203 = vmatprep.subr.mxu0 0.0
        %1204 = vmatpush1.xpose.msra.mxu0 0.0
        %1205 = vmatprep.mubr.f32.mxu0 %v857
        %1206 = vmatmul.mubr.f32.gmra.mrb[0].mxu0 %v856
        %v1207 = vpop.f32.mrb[0].mxu0
        %v1208 = vadd.f32 %v1133, %v1207
        %v1209 = vpop.f32.mrb[0].mxu0
        %1210 = vmatprep.mubr.f32.mxu0 %v889
        %1211 = vmatmul.mubr.f32.gmra.mrb[0].mxu0 %v888
        %v1212 = vpop.f32.mrb[0].mxu0
        %v1213 = vadd.f32 %v1138, %v1212
        %v1214 = vpop.f32.mrb[0].mxu0
        %1215 = vdwg.mxu0
        %1216 = vmatprep.subr.mxu0 %v827
        %1217 = vmatpush1.xpose.msra.mxu0 %v826
        %1218 = vmatprep.subr.mxu0 0.0
        %1219 = vmatpush1.xpose.msra.mxu0 0.0
        %1220 = vmatprep.subr.mxu0 0.0
        %1221 = vmatpush1.xpose.msra.mxu0 0.0
        %1222 = vmatprep.subr.mxu0 0.0
        %1223 = vmatpush1.xpose.msra.mxu0 0.0
        %1224 = vmatprep.subr.mxu0 0.0
        %1225 = vmatpush1.xpose.msra.mxu0 0.0
        %1226 = vmatprep.subr.mxu0 0.0
        %1227 = vmatpush1.xpose.msra.mxu0 0.0
        %1228 = vmatprep.subr.mxu0 0.0
        %1229 = vmatpush1.xpose.msra.mxu0 0.0
        %1230 = vmatprep.subr.mxu0 0.0
        %1231 = vmatpush1.xpose.msra.mxu0 0.0
        %1232 = vmatprep.subr.mxu0 0.0
        %1233 = vmatpush1.xpose.msra.mxu0 0.0
        %1234 = vmatprep.subr.mxu0 0.0
        %1235 = vmatpush1.xpose.msra.mxu0 0.0
        %1236 = vmatprep.subr.mxu0 0.0
        %1237 = vmatpush1.xpose.msra.mxu0 0.0
        %1238 = vmatprep.subr.mxu0 0.0
        %1239 = vmatpush1.xpose.msra.mxu0 0.0
        %1240 = vmatprep.subr.mxu0 0.0
        %1241 = vmatpush1.xpose.msra.mxu0 0.0
        %1242 = vmatprep.subr.mxu0 0.0
        %1243 = vmatpush1.xpose.msra.mxu0 0.0
        %1244 = vmatprep.subr.mxu0 0.0
        %1245 = vmatpush1.xpose.msra.mxu0 0.0
        %1246 = vmatprep.subr.mxu0 0.0
        %1247 = vmatpush1.xpose.msra.mxu0 0.0
        %1248 = vmatprep.subr.mxu0 0.0
        %1249 = vmatpush1.xpose.msra.mxu0 0.0
        %1250 = vmatprep.subr.mxu0 0.0
        %1251 = vmatpush1.xpose.msra.mxu0 0.0
        %1252 = vmatprep.subr.mxu0 0.0
        %1253 = vmatpush1.xpose.msra.mxu0 0.0
        %1254 = vmatprep.subr.mxu0 0.0
        %1255 = vmatpush1.xpose.msra.mxu0 0.0
        %1256 = vmatprep.subr.mxu0 0.0
        %1257 = vmatpush1.xpose.msra.mxu0 0.0
        %1258 = vmatprep.subr.mxu0 0.0
        %1259 = vmatpush1.xpose.msra.mxu0 0.0
        %1260 = vmatprep.subr.mxu0 0.0
        %1261 = vmatpush1.xpose.msra.mxu0 0.0
        %1262 = vmatprep.subr.mxu0 0.0
        %1263 = vmatpush1.xpose.msra.mxu0 0.0
        %1264 = vmatprep.subr.mxu0 0.0
        %1265 = vmatpush1.xpose.msra.mxu0 0.0
        %1266 = vmatprep.subr.mxu0 0.0
        %1267 = vmatpush1.xpose.msra.mxu0 0.0
        %1268 = vmatprep.subr.mxu0 0.0
        %1269 = vmatpush1.xpose.msra.mxu0 0.0
        %1270 = vmatprep.subr.mxu0 0.0
        %1271 = vmatpush1.xpose.msra.mxu0 0.0
        %1272 = vmatprep.subr.mxu0 0.0
        %1273 = vmatpush1.xpose.msra.mxu0 0.0
        %1274 = vmatprep.subr.mxu0 0.0
        %1275 = vmatpush1.xpose.msra.mxu0 0.0
        %1276 = vmatprep.subr.mxu0 0.0
        %1277 = vmatpush1.xpose.msra.mxu0 0.0
        %1278 = vmatprep.subr.mxu0 0.0
        %1279 = vmatpush1.xpose.msra.mxu0 0.0
        %1280 = vmatprep.mubr.f32.mxu0 %v859
        %1281 = vmatmul.mubr.f32.gmra.mrb[0].mxu0 %v858
        %v1282 = vpop.f32.mrb[0].mxu0
        %v1283 = vadd.f32 %v1208, %v1282
        %v1284 = vpop.f32.mrb[0].mxu0
        %1285 = vmatprep.mubr.f32.mxu0 %v891
        %1286 = vmatmul.mubr.f32.gmra.mrb[0].mxu0 %v890
        %v1287 = vpop.f32.mrb[0].mxu0
        %v1288 = vadd.f32 %v1213, %v1287
        %v1289 = vpop.f32.mrb[0].mxu0
        %1290 = vdwg.mxu0
        %1291 = vmatprep.subr.mxu0 %v829
        %1292 = vmatpush1.xpose.msra.mxu0 %v828
        %1293 = vmatprep.subr.mxu0 0.0
        %1294 = vmatpush1.xpose.msra.mxu0 0.0
        %1295 = vmatprep.subr.mxu0 0.0
        %1296 = vmatpush1.xpose.msra.mxu0 0.0
        %1297 = vmatprep.subr.mxu0 0.0
        %1298 = vmatpush1.xpose.msra.mxu0 0.0
        %1299 = vmatprep.subr.mxu0 0.0
        %1300 = vmatpush1.xpose.msra.mxu0 0.0
        %1301 = vmatprep.subr.mxu0 0.0
        %1302 = vmatpush1.xpose.msra.mxu0 0.0
        %1303 = vmatprep.subr.mxu0 0.0
        %1304 = vmatpush1.xpose.msra.mxu0 0.0
        %1305 = vmatprep.subr.mxu0 0.0
        %1306 = vmatpush1.xpose.msra.mxu0 0.0
        %1307 = vmatprep.subr.mxu0 0.0
        %1308 = vmatpush1.xpose.msra.mxu0 0.0
        %1309 = vmatprep.subr.mxu0 0.0
        %1310 = vmatpush1.xpose.msra.mxu0 0.0
        %1311 = vmatprep.subr.mxu0 0.0
        %1312 = vmatpush1.xpose.msra.mxu0 0.0
        %1313 = vmatprep.subr.mxu0 0.0
        %1314 = vmatpush1.xpose.msra.mxu0 0.0
        %1315 = vmatprep.subr.mxu0 0.0
        %1316 = vmatpush1.xpose.msra.mxu0 0.0
        %1317 = vmatprep.subr.mxu0 0.0
        %1318 = vmatpush1.xpose.msra.mxu0 0.0
        %1319 = vmatprep.subr.mxu0 0.0
        %1320 = vmatpush1.xpose.msra.mxu0 0.0
        %1321 = vmatprep.subr.mxu0 0.0
        %1322 = vmatpush1.xpose.msra.mxu0 0.0
        %1323 = vmatprep.subr.mxu0 0.0
        %1324 = vmatpush1.xpose.msra.mxu0 0.0
        %1325 = vmatprep.subr.mxu0 0.0
        %1326 = vmatpush1.xpose.msra.mxu0 0.0
        %1327 = vmatprep.subr.mxu0 0.0
        %1328 = vmatpush1.xpose.msra.mxu0 0.0
        %1329 = vmatprep.subr.mxu0 0.0
        %1330 = vmatpush1.xpose.msra.mxu0 0.0
        %1331 = vmatprep.subr.mxu0 0.0
        %1332 = vmatpush1.xpose.msra.mxu0 0.0
        %1333 = vmatprep.subr.mxu0 0.0
        %1334 = vmatpush1.xpose.msra.mxu0 0.0
        %1335 = vmatprep.subr.mxu0 0.0
        %1336 = vmatpush1.xpose.msra.mxu0 0.0
        %1337 = vmatprep.subr.mxu0 0.0
        %1338 = vmatpush1.xpose.msra.mxu0 0.0
        %1339 = vmatprep.subr.mxu0 0.0
        %1340 = vmatpush1.xpose.msra.mxu0 0.0
        %1341 = vmatprep.subr.mxu0 0.0
        %1342 = vmatpush1.xpose.msra.mxu0 0.0
        %1343 = vmatprep.subr.mxu0 0.0
        %1344 = vmatpush1.xpose.msra.mxu0 0.0
        %1345 = vmatprep.subr.mxu0 0.0
        %1346 = vmatpush1.xpose.msra.mxu0 0.0
        %1347 = vmatprep.subr.mxu0 0.0
        %1348 = vmatpush1.xpose.msra.mxu0 0.0
        %1349 = vmatprep.subr.mxu0 0.0
        %1350 = vmatpush1.xpose.msra.mxu0 0.0
        %1351 = vmatprep.subr.mxu0 0.0
        %1352 = vmatpush1.xpose.msra.mxu0 0.0
        %1353 = vmatprep.subr.mxu0 0.0
        %1354 = vmatpush1.xpose.msra.mxu0 0.0
        %1355 = vmatprep.mubr.f32.mxu0 %v861
        %1356 = vmatmul.mubr.f32.gmra.mrb[0].mxu0 %v860
        %v1357 = vpop.f32.mrb[0].mxu0
        %v1358 = vadd.f32 %v1283, %v1357
        %v1359 = vpop.f32.mrb[0].mxu0
        %1360 = vmatprep.mubr.f32.mxu0 %v893
        %1361 = vmatmul.mubr.f32.gmra.mrb[0].mxu0 %v892
        %v1362 = vpop.f32.mrb[0].mxu0
        %v1363 = vadd.f32 %v1288, %v1362
        %v1364 = vpop.f32.mrb[0].mxu0
        %1365 = vdwg.mxu0
        %1366 = vmatprep.subr.mxu0 %v831
        %1367 = vmatpush1.xpose.msra.mxu0 %v830
        %1368 = vmatprep.subr.mxu0 0.0
        %1369 = vmatpush1.xpose.msra.mxu0 0.0
        %1370 = vmatprep.subr.mxu0 0.0
        %1371 = vmatpush1.xpose.msra.mxu0 0.0
        %1372 = vmatprep.subr.mxu0 0.0
        %1373 = vmatpush1.xpose.msra.mxu0 0.0
        %1374 = vmatprep.subr.mxu0 0.0
        %1375 = vmatpush1.xpose.msra.mxu0 0.0
        %1376 = vmatprep.subr.mxu0 0.0
        %1377 = vmatpush1.xpose.msra.mxu0 0.0
        %1378 = vmatprep.subr.mxu0 0.0
        %1379 = vmatpush1.xpose.msra.mxu0 0.0
        %1380 = vmatprep.subr.mxu0 0.0
        %1381 = vmatpush1.xpose.msra.mxu0 0.0
        %1382 = vmatprep.subr.mxu0 0.0
        %1383 = vmatpush1.xpose.msra.mxu0 0.0
        %1384 = vmatprep.subr.mxu0 0.0
        %1385 = vmatpush1.xpose.msra.mxu0 0.0
        %1386 = vmatprep.subr.mxu0 0.0
        %1387 = vmatpush1.xpose.msra.mxu0 0.0
        %1388 = vmatprep.subr.mxu0 0.0
        %1389 = vmatpush1.xpose.msra.mxu0 0.0
        %1390 = vmatprep.subr.mxu0 0.0
        %1391 = vmatpush1.xpose.msra.mxu0 0.0
        %1392 = vmatprep.subr.mxu0 0.0
        %1393 = vmatpush1.xpose.msra.mxu0 0.0
        %1394 = vmatprep.subr.mxu0 0.0
        %1395 = vmatpush1.xpose.msra.mxu0 0.0
        %1396 = vmatprep.subr.mxu0 0.0
        %1397 = vmatpush1.xpose.msra.mxu0 0.0
        %1398 = vmatprep.subr.mxu0 0.0
        %1399 = vmatpush1.xpose.msra.mxu0 0.0
        %1400 = vmatprep.subr.mxu0 0.0
        %1401 = vmatpush1.xpose.msra.mxu0 0.0
        %1402 = vmatprep.subr.mxu0 0.0
        %1403 = vmatpush1.xpose.msra.mxu0 0.0
        %1404 = vmatprep.subr.mxu0 0.0
        %1405 = vmatpush1.xpose.msra.mxu0 0.0
        %1406 = vmatprep.subr.mxu0 0.0
        %1407 = vmatpush1.xpose.msra.mxu0 0.0
        %1408 = vmatprep.subr.mxu0 0.0
        %1409 = vmatpush1.xpose.msra.mxu0 0.0
        %1410 = vmatprep.subr.mxu0 0.0
        %1411 = vmatpush1.xpose.msra.mxu0 0.0
        %1412 = vmatprep.subr.mxu0 0.0
        %1413 = vmatpush1.xpose.msra.mxu0 0.0
        %1414 = vmatprep.subr.mxu0 0.0
        %1415 = vmatpush1.xpose.msra.mxu0 0.0
        %1416 = vmatprep.subr.mxu0 0.0
        %1417 = vmatpush1.xpose.msra.mxu0 0.0
        %1418 = vmatprep.subr.mxu0 0.0
        %1419 = vmatpush1.xpose.msra.mxu0 0.0
        %1420 = vmatprep.subr.mxu0 0.0
        %1421 = vmatpush1.xpose.msra.mxu0 0.0
        %1422 = vmatprep.subr.mxu0 0.0
        %1423 = vmatpush1.xpose.msra.mxu0 0.0
        %1424 = vmatprep.subr.mxu0 0.0
        %1425 = vmatpush1.xpose.msra.mxu0 0.0
        %1426 = vmatprep.subr.mxu0 0.0
        %1427 = vmatpush1.xpose.msra.mxu0 0.0
        %1428 = vmatprep.subr.mxu0 0.0
        %1429 = vmatpush1.xpose.msra.mxu0 0.0
        %1430 = vmatprep.mubr.f32.mxu0 %v863
        %1431 = vmatmul.mubr.f32.gmra.mrb[0].mxu0 %v862
        %v1432 = vpop.f32.mrb[0].mxu0
        %v1433 = vadd.f32 %v1358, %v1432
        %v1434 = vpop.f32.mrb[0].mxu0
        %1435 = vmatprep.mubr.f32.mxu0 %v895
        %1436 = vmatmul.mubr.f32.gmra.mrb[0].mxu0 %v894
        %v1437 = vpop.f32.mrb[0].mxu0
        %v1438 = vadd.f32 %v1363, %v1437
        %v1439 = vpop.f32.mrb[0].mxu0
        %1440 = vdwg.mxu0
        %1441 = vmatprep.subr.mxu0 %v833
        %1442 = vmatpush1.xpose.msra.mxu0 %v832
        %1443 = vmatprep.subr.mxu0 0.0
        %1444 = vmatpush1.xpose.msra.mxu0 0.0
        %1445 = vmatprep.subr.mxu0 0.0
        %1446 = vmatpush1.xpose.msra.mxu0 0.0
        %1447 = vmatprep.subr.mxu0 0.0
        %1448 = vmatpush1.xpose.msra.mxu0 0.0
        %1449 = vmatprep.subr.mxu0 0.0
        %1450 = vmatpush1.xpose.msra.mxu0 0.0
        %1451 = vmatprep.subr.mxu0 0.0
        %1452 = vmatpush1.xpose.msra.mxu0 0.0
        %1453 = vmatprep.subr.mxu0 0.0
        %1454 = vmatpush1.xpose.msra.mxu0 0.0
        %1455 = vmatprep.subr.mxu0 0.0
        %1456 = vmatpush1.xpose.msra.mxu0 0.0
        %1457 = vmatprep.subr.mxu0 0.0
        %1458 = vmatpush1.xpose.msra.mxu0 0.0
        %1459 = vmatprep.subr.mxu0 0.0
        %1460 = vmatpush1.xpose.msra.mxu0 0.0
        %1461 = vmatprep.subr.mxu0 0.0
        %1462 = vmatpush1.xpose.msra.mxu0 0.0
        %1463 = vmatprep.subr.mxu0 0.0
        %1464 = vmatpush1.xpose.msra.mxu0 0.0
        %1465 = vmatprep.subr.mxu0 0.0
        %1466 = vmatpush1.xpose.msra.mxu0 0.0
        %1467 = vmatprep.subr.mxu0 0.0
        %1468 = vmatpush1.xpose.msra.mxu0 0.0
        %1469 = vmatprep.subr.mxu0 0.0
        %1470 = vmatpush1.xpose.msra.mxu0 0.0
        %1471 = vmatprep.subr.mxu0 0.0
        %1472 = vmatpush1.xpose.msra.mxu0 0.0
        %1473 = vmatprep.subr.mxu0 0.0
        %1474 = vmatpush1.xpose.msra.mxu0 0.0
        %1475 = vmatprep.subr.mxu0 0.0
        %1476 = vmatpush1.xpose.msra.mxu0 0.0
        %1477 = vmatprep.subr.mxu0 0.0
        %1478 = vmatpush1.xpose.msra.mxu0 0.0
        %1479 = vmatprep.subr.mxu0 0.0
        %1480 = vmatpush1.xpose.msra.mxu0 0.0
        %1481 = vmatprep.subr.mxu0 0.0
        %1482 = vmatpush1.xpose.msra.mxu0 0.0
        %1483 = vmatprep.subr.mxu0 0.0
        %1484 = vmatpush1.xpose.msra.mxu0 0.0
        %1485 = vmatprep.subr.mxu0 0.0
        %1486 = vmatpush1.xpose.msra.mxu0 0.0
        %1487 = vmatprep.subr.mxu0 0.0
        %1488 = vmatpush1.xpose.msra.mxu0 0.0
        %1489 = vmatprep.subr.mxu0 0.0
        %1490 = vmatpush1.xpose.msra.mxu0 0.0
        %1491 = vmatprep.subr.mxu0 0.0
        %1492 = vmatpush1.xpose.msra.mxu0 0.0
        %1493 = vmatprep.subr.mxu0 0.0
        %1494 = vmatpush1.xpose.msra.mxu0 0.0
        %1495 = vmatprep.subr.mxu0 0.0
        %1496 = vmatpush1.xpose.msra.mxu0 0.0
        %1497 = vmatprep.subr.mxu0 0.0
        %1498 = vmatpush1.xpose.msra.mxu0 0.0
        %1499 = vmatprep.subr.mxu0 0.0
        %1500 = vmatpush1.xpose.msra.mxu0 0.0
        %1501 = vmatprep.subr.mxu0 0.0
        %1502 = vmatpush1.xpose.msra.mxu0 0.0
        %1503 = vmatprep.subr.mxu0 0.0
        %1504 = vmatpush1.xpose.msra.mxu0 0.0
        %1505 = vmatprep.mubr.f32.mxu0 %v865
        %1506 = vmatmul.mubr.f32.gmra.mrb[0].mxu0 %v864
        %v1507 = vpop.f32.mrb[0].mxu0
        %v1508 = vadd.f32 %v1433, %v1507
        %v1509 = vpop.f32.mrb[0].mxu0
        %1510 = vmatprep.mubr.f32.mxu0 %v897
        %1511 = vmatmul.mubr.f32.gmra.mrb[0].mxu0 %v896
        %v1512 = vpop.f32.mrb[0].mxu0
        %v1513 = vadd.f32 %v1438, %v1512
        %v1514 = vpop.f32.mrb[0].mxu0
        %1515 = vdwg.mxu0
        %1516 = vmatprep.subr.mxu0 %v835
        %1517 = vmatpush1.xpose.msra.mxu0 %v834
        %1518 = vmatprep.subr.mxu0 0.0
        %1519 = vmatpush1.xpose.msra.mxu0 0.0
        %1520 = vmatprep.subr.mxu0 0.0
        %1521 = vmatpush1.xpose.msra.mxu0 0.0
        %1522 = vmatprep.subr.mxu0 0.0
        %1523 = vmatpush1.xpose.msra.mxu0 0.0
        %1524 = vmatprep.subr.mxu0 0.0
        %1525 = vmatpush1.xpose.msra.mxu0 0.0
        %1526 = vmatprep.subr.mxu0 0.0
        %1527 = vmatpush1.xpose.msra.mxu0 0.0
        %1528 = vmatprep.subr.mxu0 0.0
        %1529 = vmatpush1.xpose.msra.mxu0 0.0
        %1530 = vmatprep.subr.mxu0 0.0
        %1531 = vmatpush1.xpose.msra.mxu0 0.0
        %1532 = vmatprep.subr.mxu0 0.0
        %1533 = vmatpush1.xpose.msra.mxu0 0.0
        %1534 = vmatprep.subr.mxu0 0.0
        %1535 = vmatpush1.xpose.msra.mxu0 0.0
        %1536 = vmatprep.subr.mxu0 0.0
        %1537 = vmatpush1.xpose.msra.mxu0 0.0
        %1538 = vmatprep.subr.mxu0 0.0
        %1539 = vmatpush1.xpose.msra.mxu0 0.0
        %1540 = vmatprep.subr.mxu0 0.0
        %1541 = vmatpush1.xpose.msra.mxu0 0.0
        %1542 = vmatprep.subr.mxu0 0.0
        %1543 = vmatpush1.xpose.msra.mxu0 0.0
        %1544 = vmatprep.subr.mxu0 0.0
        %1545 = vmatpush1.xpose.msra.mxu0 0.0
        %1546 = vmatprep.subr.mxu0 0.0
        %1547 = vmatpush1.xpose.msra.mxu0 0.0
        %1548 = vmatprep.subr.mxu0 0.0
        %1549 = vmatpush1.xpose.msra.mxu0 0.0
        %1550 = vmatprep.subr.mxu0 0.0
        %1551 = vmatpush1.xpose.msra.mxu0 0.0
        %1552 = vmatprep.subr.mxu0 0.0
        %1553 = vmatpush1.xpose.msra.mxu0 0.0
        %1554 = vmatprep.subr.mxu0 0.0
        %1555 = vmatpush1.xpose.msra.mxu0 0.0
        %1556 = vmatprep.subr.mxu0 0.0
        %1557 = vmatpush1.xpose.msra.mxu0 0.0
        %1558 = vmatprep.subr.mxu0 0.0
        %1559 = vmatpush1.xpose.msra.mxu0 0.0
        %1560 = vmatprep.subr.mxu0 0.0
        %1561 = vmatpush1.xpose.msra.mxu0 0.0
        %1562 = vmatprep.subr.mxu0 0.0
        %1563 = vmatpush1.xpose.msra.mxu0 0.0
        %1564 = vmatprep.subr.mxu0 0.0
        %1565 = vmatpush1.xpose.msra.mxu0 0.0
        %1566 = vmatprep.subr.mxu0 0.0
        %1567 = vmatpush1.xpose.msra.mxu0 0.0
        %1568 = vmatprep.subr.mxu0 0.0
        %1569 = vmatpush1.xpose.msra.mxu0 0.0
        %1570 = vmatprep.subr.mxu0 0.0
        %1571 = vmatpush1.xpose.msra.mxu0 0.0
        %1572 = vmatprep.subr.mxu0 0.0
        %1573 = vmatpush1.xpose.msra.mxu0 0.0
        %1574 = vmatprep.subr.mxu0 0.0
        %1575 = vmatpush1.xpose.msra.mxu0 0.0
        %1576 = vmatprep.subr.mxu0 0.0
        %1577 = vmatpush1.xpose.msra.mxu0 0.0
        %1578 = vmatprep.subr.mxu0 0.0
        %1579 = vmatpush1.xpose.msra.mxu0 0.0
        %1580 = vmatprep.mubr.f32.mxu0 %v867
        %1581 = vmatmul.mubr.f32.gmra.mrb[0].mxu0 %v866
        %v1582 = vpop.f32.mrb[0].mxu0
        %v1583 = vadd.f32 %v1508, %v1582
        %v1584 = vpop.f32.mrb[0].mxu0
        %1585 = vmatprep.mubr.f32.mxu0 %v899
        %1586 = vmatmul.mubr.f32.gmra.mrb[0].mxu0 %v898
        %v1587 = vpop.f32.mrb[0].mxu0
        %v1588 = vadd.f32 %v1513, %v1587
        %v1589 = vpop.f32.mrb[0].mxu0
        %1590 = vdwg.mxu0
        %1591 = vmatprep.subr.mxu0 %v837
        %1592 = vmatpush1.xpose.msra.mxu0 %v836
        %1593 = vmatprep.subr.mxu0 0.0
        %1594 = vmatpush1.xpose.msra.mxu0 0.0
        %1595 = vmatprep.subr.mxu0 0.0
        %1596 = vmatpush1.xpose.msra.mxu0 0.0
        %1597 = vmatprep.subr.mxu0 0.0
        %1598 = vmatpush1.xpose.msra.mxu0 0.0
        %1599 = vmatprep.subr.mxu0 0.0
        %1600 = vmatpush1.xpose.msra.mxu0 0.0
        %1601 = vmatprep.subr.mxu0 0.0
        %1602 = vmatpush1.xpose.msra.mxu0 0.0
        %1603 = vmatprep.subr.mxu0 0.0
        %1604 = vmatpush1.xpose.msra.mxu0 0.0
        %1605 = vmatprep.subr.mxu0 0.0
        %1606 = vmatpush1.xpose.msra.mxu0 0.0
        %1607 = vmatprep.subr.mxu0 0.0
        %1608 = vmatpush1.xpose.msra.mxu0 0.0
        %1609 = vmatprep.subr.mxu0 0.0
        %1610 = vmatpush1.xpose.msra.mxu0 0.0
        %1611 = vmatprep.subr.mxu0 0.0
        %1612 = vmatpush1.xpose.msra.mxu0 0.0
        %1613 = vmatprep.subr.mxu0 0.0
        %1614 = vmatpush1.xpose.msra.mxu0 0.0
        %1615 = vmatprep.subr.mxu0 0.0
        %1616 = vmatpush1.xpose.msra.mxu0 0.0
        %1617 = vmatprep.subr.mxu0 0.0
        %1618 = vmatpush1.xpose.msra.mxu0 0.0
        %1619 = vmatprep.subr.mxu0 0.0
        %1620 = vmatpush1.xpose.msra.mxu0 0.0
        %1621 = vmatprep.subr.mxu0 0.0
        %1622 = vmatpush1.xpose.msra.mxu0 0.0
        %1623 = vmatprep.subr.mxu0 0.0
        %1624 = vmatpush1.xpose.msra.mxu0 0.0
        %1625 = vmatprep.subr.mxu0 0.0
        %1626 = vmatpush1.xpose.msra.mxu0 0.0
        %1627 = vmatprep.subr.mxu0 0.0
        %1628 = vmatpush1.xpose.msra.mxu0 0.0
        %1629 = vmatprep.subr.mxu0 0.0
        %1630 = vmatpush1.xpose.msra.mxu0 0.0
        %1631 = vmatprep.subr.mxu0 0.0
        %1632 = vmatpush1.xpose.msra.mxu0 0.0
        %1633 = vmatprep.subr.mxu0 0.0
        %1634 = vmatpush1.xpose.msra.mxu0 0.0
        %1635 = vmatprep.subr.mxu0 0.0
        %1636 = vmatpush1.xpose.msra.mxu0 0.0
        %1637 = vmatprep.subr.mxu0 0.0
        %1638 = vmatpush1.xpose.msra.mxu0 0.0
        %1639 = vmatprep.subr.mxu0 0.0
        %1640 = vmatpush1.xpose.msra.mxu0 0.0
        %1641 = vmatprep.subr.mxu0 0.0
        %1642 = vmatpush1.xpose.msra.mxu0 0.0
        %1643 = vmatprep.subr.mxu0 0.0
        %1644 = vmatpush1.xpose.msra.mxu0 0.0
        %1645 = vmatprep.subr.mxu0 0.0
        %1646 = vmatpush1.xpose.msra.mxu0 0.0
        %1647 = vmatprep.subr.mxu0 0.0
        %1648 = vmatpush1.xpose.msra.mxu0 0.0
        %1649 = vmatprep.subr.mxu0 0.0
        %1650 = vmatpush1.xpose.msra.mxu0 0.0
        %1651 = vmatprep.subr.mxu0 0.0
        %1652 = vmatpush1.xpose.msra.mxu0 0.0
        %1653 = vmatprep.subr.mxu0 0.0
        %1654 = vmatpush1.xpose.msra.mxu0 0.0
        %1655 = vmatprep.mubr.f32.mxu0 %v869
        %1656 = vmatmul.mubr.f32.gmra.mrb[0].mxu0 %v868
        %v1657 = vpop.f32.mrb[0].mxu0
        %v1658 = vadd.f32 %v1583, %v1657
        %v1659 = vpop.f32.mrb[0].mxu0
        %1660 = vmatprep.mubr.f32.mxu0 %v901
        %1661 = vmatmul.mubr.f32.gmra.mrb[0].mxu0 %v900
        %v1662 = vpop.f32.mrb[0].mxu0
        %v1663 = vadd.f32 %v1588, %v1662
        %v1664 = vpop.f32.mrb[0].mxu0
        %1665 = vdwg.mxu0
        %1666 = vmatprep.subr.mxu0 %v839
        %1667 = vmatpush1.xpose.msra.mxu0 %v838
        %1668 = vmatprep.subr.mxu0 0.0
        %1669 = vmatpush1.xpose.msra.mxu0 0.0
        %1670 = vmatprep.subr.mxu0 0.0
        %1671 = vmatpush1.xpose.msra.mxu0 0.0
        %1672 = vmatprep.subr.mxu0 0.0
        %1673 = vmatpush1.xpose.msra.mxu0 0.0
        %1674 = vmatprep.subr.mxu0 0.0
        %1675 = vmatpush1.xpose.msra.mxu0 0.0
        %1676 = vmatprep.subr.mxu0 0.0
        %1677 = vmatpush1.xpose.msra.mxu0 0.0
        %1678 = vmatprep.subr.mxu0 0.0
        %1679 = vmatpush1.xpose.msra.mxu0 0.0
        %1680 = vmatprep.subr.mxu0 0.0
        %1681 = vmatpush1.xpose.msra.mxu0 0.0
        %1682 = vmatprep.subr.mxu0 0.0
        %1683 = vmatpush1.xpose.msra.mxu0 0.0
        %1684 = vmatprep.subr.mxu0 0.0
        %1685 = vmatpush1.xpose.msra.mxu0 0.0
        %1686 = vmatprep.subr.mxu0 0.0
        %1687 = vmatpush1.xpose.msra.mxu0 0.0
        %1688 = vmatprep.subr.mxu0 0.0
        %1689 = vmatpush1.xpose.msra.mxu0 0.0
        %1690 = vmatprep.subr.mxu0 0.0
        %1691 = vmatpush1.xpose.msra.mxu0 0.0
        %1692 = vmatprep.subr.mxu0 0.0
        %1693 = vmatpush1.xpose.msra.mxu0 0.0
        %1694 = vmatprep.subr.mxu0 0.0
        %1695 = vmatpush1.xpose.msra.mxu0 0.0
        %1696 = vmatprep.subr.mxu0 0.0
        %1697 = vmatpush1.xpose.msra.mxu0 0.0
        %1698 = vmatprep.subr.mxu0 0.0
        %1699 = vmatpush1.xpose.msra.mxu0 0.0
        %1700 = vmatprep.subr.mxu0 0.0
        %1701 = vmatpush1.xpose.msra.mxu0 0.0
        %1702 = vmatprep.subr.mxu0 0.0
        %1703 = vmatpush1.xpose.msra.mxu0 0.0
        %1704 = vmatprep.subr.mxu0 0.0
        %1705 = vmatpush1.xpose.msra.mxu0 0.0
        %1706 = vmatprep.subr.mxu0 0.0
        %1707 = vmatpush1.xpose.msra.mxu0 0.0
        %1708 = vmatprep.subr.mxu0 0.0
        %1709 = vmatpush1.xpose.msra.mxu0 0.0
        %1710 = vmatprep.subr.mxu0 0.0
        %1711 = vmatpush1.xpose.msra.mxu0 0.0
        %1712 = vmatprep.subr.mxu0 0.0
        %1713 = vmatpush1.xpose.msra.mxu0 0.0
        %1714 = vmatprep.subr.mxu0 0.0
        %1715 = vmatpush1.xpose.msra.mxu0 0.0
        %1716 = vmatprep.subr.mxu0 0.0
        %1717 = vmatpush1.xpose.msra.mxu0 0.0
        %1718 = vmatprep.subr.mxu0 0.0
        %1719 = vmatpush1.xpose.msra.mxu0 0.0
        %1720 = vmatprep.subr.mxu0 0.0
        %1721 = vmatpush1.xpose.msra.mxu0 0.0
        %1722 = vmatprep.subr.mxu0 0.0
        %1723 = vmatpush1.xpose.msra.mxu0 0.0
        %1724 = vmatprep.subr.mxu0 0.0
        %1725 = vmatpush1.xpose.msra.mxu0 0.0
        %1726 = vmatprep.subr.mxu0 0.0
        %1727 = vmatpush1.xpose.msra.mxu0 0.0
        %1728 = vmatprep.subr.mxu0 0.0
        %1729 = vmatpush1.xpose.msra.mxu0 0.0
        %1730 = vmatprep.mubr.f32.mxu0 %v871
        %1731 = vmatmul.mubr.f32.gmra.mrb[0].mxu0 %v870
        %v1732 = vpop.f32.mrb[0].mxu0
        %v1733 = vadd.f32 %v1658, %v1732
        %v1734 = vpop.f32.mrb[0].mxu0
        %1735 = vmatprep.mubr.f32.mxu0 %v903
        %1736 = vmatmul.mubr.f32.gmra.mrb[0].mxu0 %v902
        %v1737 = vpop.f32.mrb[0].mxu0
        %v1738 = vadd.f32 %v1663, %v1737
        %v1739 = vpop.f32.mrb[0].mxu0
        %1740 = vdwg.mxu0
        %1741 = vmatprep.subr.mxu0 %v841
        %1742 = vmatpush1.xpose.msra.mxu0 %v840
        %1743 = vmatprep.subr.mxu0 0.0
        %1744 = vmatpush1.xpose.msra.mxu0 0.0
        %1745 = vmatprep.subr.mxu0 0.0
        %1746 = vmatpush1.xpose.msra.mxu0 0.0
        %1747 = vmatprep.subr.mxu0 0.0
        %1748 = vmatpush1.xpose.msra.mxu0 0.0
        %1749 = vmatprep.subr.mxu0 0.0
        %1750 = vmatpush1.xpose.msra.mxu0 0.0
        %1751 = vmatprep.subr.mxu0 0.0
        %1752 = vmatpush1.xpose.msra.mxu0 0.0
        %1753 = vmatprep.subr.mxu0 0.0
        %1754 = vmatpush1.xpose.msra.mxu0 0.0
        %1755 = vmatprep.subr.mxu0 0.0
        %1756 = vmatpush1.xpose.msra.mxu0 0.0
        %1757 = vmatprep.subr.mxu0 0.0
        %1758 = vmatpush1.xpose.msra.mxu0 0.0
        %1759 = vmatprep.subr.mxu0 0.0
        %1760 = vmatpush1.xpose.msra.mxu0 0.0
        %1761 = vmatprep.subr.mxu0 0.0
        %1762 = vmatpush1.xpose.msra.mxu0 0.0
        %1763 = vmatprep.subr.mxu0 0.0
        %1764 = vmatpush1.xpose.msra.mxu0 0.0
        %1765 = vmatprep.subr.mxu0 0.0
        %1766 = vmatpush1.xpose.msra.mxu0 0.0
        %1767 = vmatprep.subr.mxu0 0.0
        %1768 = vmatpush1.xpose.msra.mxu0 0.0
        %1769 = vmatprep.subr.mxu0 0.0
        %1770 = vmatpush1.xpose.msra.mxu0 0.0
        %1771 = vmatprep.subr.mxu0 0.0
        %1772 = vmatpush1.xpose.msra.mxu0 0.0
        %1773 = vmatprep.subr.mxu0 0.0
        %1774 = vmatpush1.xpose.msra.mxu0 0.0
        %1775 = vmatprep.subr.mxu0 0.0
        %1776 = vmatpush1.xpose.msra.mxu0 0.0
        %1777 = vmatprep.subr.mxu0 0.0
        %1778 = vmatpush1.xpose.msra.mxu0 0.0
        %1779 = vmatprep.subr.mxu0 0.0
        %1780 = vmatpush1.xpose.msra.mxu0 0.0
        %1781 = vmatprep.subr.mxu0 0.0
        %1782 = vmatpush1.xpose.msra.mxu0 0.0
        %1783 = vmatprep.subr.mxu0 0.0
        %1784 = vmatpush1.xpose.msra.mxu0 0.0
        %1785 = vmatprep.subr.mxu0 0.0
        %1786 = vmatpush1.xpose.msra.mxu0 0.0
        %1787 = vmatprep.subr.mxu0 0.0
        %1788 = vmatpush1.xpose.msra.mxu0 0.0
        %1789 = vmatprep.subr.mxu0 0.0
        %1790 = vmatpush1.xpose.msra.mxu0 0.0
        %1791 = vmatprep.subr.mxu0 0.0
        %1792 = vmatpush1.xpose.msra.mxu0 0.0
        %1793 = vmatprep.subr.mxu0 0.0
        %1794 = vmatpush1.xpose.msra.mxu0 0.0
        %1795 = vmatprep.subr.mxu0 0.0
        %1796 = vmatpush1.xpose.msra.mxu0 0.0
        %1797 = vmatprep.subr.mxu0 0.0
        %1798 = vmatpush1.xpose.msra.mxu0 0.0
        %1799 = vmatprep.subr.mxu0 0.0
        %1800 = vmatpush1.xpose.msra.mxu0 0.0
        %1801 = vmatprep.subr.mxu0 0.0
        %1802 = vmatpush1.xpose.msra.mxu0 0.0
        %1803 = vmatprep.subr.mxu0 0.0
        %1804 = vmatpush1.xpose.msra.mxu0 0.0
        %1805 = vmatprep.mubr.f32.mxu0 %v873
        %1806 = vmatmul.mubr.f32.gmra.mrb[0].mxu0 %v872
        %v1807 = vpop.f32.mrb[0].mxu0
        %v1808 = vadd.f32 %v1733, %v1807
        %v1809 = vpop.f32.mrb[0].mxu0
        %1810 = vmatprep.mubr.f32.mxu0 %v905
        %1811 = vmatmul.mubr.f32.gmra.mrb[0].mxu0 %v904
        %v1812 = vpop.f32.mrb[0].mxu0
        %v1813 = vadd.f32 %v1738, %v1812
        %v1814 = vpop.f32.mrb[0].mxu0
        %1815 = vdwg.mxu0
        %1816 = vmatprep.subr.mxu0 %v843
        %1817 = vmatpush1.xpose.msra.mxu0 %v842
        %1818 = vmatprep.subr.mxu0 0.0
        %1819 = vmatpush1.xpose.msra.mxu0 0.0
        %1820 = vmatprep.subr.mxu0 0.0
        %1821 = vmatpush1.xpose.msra.mxu0 0.0
        %1822 = vmatprep.subr.mxu0 0.0
        %1823 = vmatpush1.xpose.msra.mxu0 0.0
        %1824 = vmatprep.subr.mxu0 0.0
        %1825 = vmatpush1.xpose.msra.mxu0 0.0
        %1826 = vmatprep.subr.mxu0 0.0
        %1827 = vmatpush1.xpose.msra.mxu0 0.0
        %1828 = vmatprep.subr.mxu0 0.0
        %1829 = vmatpush1.xpose.msra.mxu0 0.0
        %1830 = vmatprep.subr.mxu0 0.0
        %1831 = vmatpush1.xpose.msra.mxu0 0.0
        %1832 = vmatprep.subr.mxu0 0.0
        %1833 = vmatpush1.xpose.msra.mxu0 0.0
        %1834 = vmatprep.subr.mxu0 0.0
        %1835 = vmatpush1.xpose.msra.mxu0 0.0
        %1836 = vmatprep.subr.mxu0 0.0
        %1837 = vmatpush1.xpose.msra.mxu0 0.0
        %1838 = vmatprep.subr.mxu0 0.0
        %1839 = vmatpush1.xpose.msra.mxu0 0.0
        %1840 = vmatprep.subr.mxu0 0.0
        %1841 = vmatpush1.xpose.msra.mxu0 0.0
        %1842 = vmatprep.subr.mxu0 0.0
        %1843 = vmatpush1.xpose.msra.mxu0 0.0
        %1844 = vmatprep.subr.mxu0 0.0
        %1845 = vmatpush1.xpose.msra.mxu0 0.0
        %1846 = vmatprep.subr.mxu0 0.0
        %1847 = vmatpush1.xpose.msra.mxu0 0.0
        %1848 = vmatprep.subr.mxu0 0.0
        %1849 = vmatpush1.xpose.msra.mxu0 0.0
        %1850 = vmatprep.subr.mxu0 0.0
        %1851 = vmatpush1.xpose.msra.mxu0 0.0
        %1852 = vmatprep.subr.mxu0 0.0
        %1853 = vmatpush1.xpose.msra.mxu0 0.0
        %1854 = vmatprep.subr.mxu0 0.0
        %1855 = vmatpush1.xpose.msra.mxu0 0.0
        %1856 = vmatprep.subr.mxu0 0.0
        %1857 = vmatpush1.xpose.msra.mxu0 0.0
        %1858 = vmatprep.subr.mxu0 0.0
        %1859 = vmatpush1.xpose.msra.mxu0 0.0
        %1860 = vmatprep.subr.mxu0 0.0
        %1861 = vmatpush1.xpose.msra.mxu0 0.0
        %1862 = vmatprep.subr.mxu0 0.0
        %1863 = vmatpush1.xpose.msra.mxu0 0.0
        %1864 = vmatprep.subr.mxu0 0.0
        %1865 = vmatpush1.xpose.msra.mxu0 0.0
        %1866 = vmatprep.subr.mxu0 0.0
        %1867 = vmatpush1.xpose.msra.mxu0 0.0
        %1868 = vmatprep.subr.mxu0 0.0
        %1869 = vmatpush1.xpose.msra.mxu0 0.0
        %1870 = vmatprep.subr.mxu0 0.0
        %1871 = vmatpush1.xpose.msra.mxu0 0.0
        %1872 = vmatprep.subr.mxu0 0.0
        %1873 = vmatpush1.xpose.msra.mxu0 0.0
        %1874 = vmatprep.subr.mxu0 0.0
        %1875 = vmatpush1.xpose.msra.mxu0 0.0
        %1876 = vmatprep.subr.mxu0 0.0
        %1877 = vmatpush1.xpose.msra.mxu0 0.0
        %1878 = vmatprep.subr.mxu0 0.0
        %1879 = vmatpush1.xpose.msra.mxu0 0.0
        %1880 = vmatprep.mubr.f32.mxu0 %v875
        %1881 = vmatmul.mubr.f32.gmra.mrb[0].mxu0 %v874
        %v1882 = vpop.f32.mrb[0].mxu0
        %v1883 = vadd.f32 %v1808, %v1882
        %v1884 = vpop.f32.mrb[0].mxu0
        %1885 = vmatprep.mubr.f32.mxu0 %v907
        %1886 = vmatmul.mubr.f32.gmra.mrb[0].mxu0 %v906
        %v1887 = vpop.f32.mrb[0].mxu0
        %v1888 = vadd.f32 %v1813, %v1887
        %v1889 = vpop.f32.mrb[0].mxu0
        %1890 = vdwg.mxu0
        %1891 = vmatprep.subr.mxu0 %v845
        %1892 = vmatpush1.xpose.msra.mxu0 %v844
        %1893 = vmatprep.subr.mxu0 0.0
        %1894 = vmatpush1.xpose.msra.mxu0 0.0
        %1895 = vmatprep.subr.mxu0 0.0
        %1896 = vmatpush1.xpose.msra.mxu0 0.0
        %1897 = vmatprep.subr.mxu0 0.0
        %1898 = vmatpush1.xpose.msra.mxu0 0.0
        %1899 = vmatprep.subr.mxu0 0.0
        %1900 = vmatpush1.xpose.msra.mxu0 0.0
        %1901 = vmatprep.subr.mxu0 0.0
        %1902 = vmatpush1.xpose.msra.mxu0 0.0
        %1903 = vmatprep.subr.mxu0 0.0
        %1904 = vmatpush1.xpose.msra.mxu0 0.0
        %1905 = vmatprep.subr.mxu0 0.0
        %1906 = vmatpush1.xpose.msra.mxu0 0.0
        %1907 = vmatprep.subr.mxu0 0.0
        %1908 = vmatpush1.xpose.msra.mxu0 0.0
        %1909 = vmatprep.subr.mxu0 0.0
        %1910 = vmatpush1.xpose.msra.mxu0 0.0
        %1911 = vmatprep.subr.mxu0 0.0
        %1912 = vmatpush1.xpose.msra.mxu0 0.0
        %1913 = vmatprep.subr.mxu0 0.0
        %1914 = vmatpush1.xpose.msra.mxu0 0.0
        %1915 = vmatprep.subr.mxu0 0.0
        %1916 = vmatpush1.xpose.msra.mxu0 0.0
        %1917 = vmatprep.subr.mxu0 0.0
        %1918 = vmatpush1.xpose.msra.mxu0 0.0
        %1919 = vmatprep.subr.mxu0 0.0
        %1920 = vmatpush1.xpose.msra.mxu0 0.0
        %1921 = vmatprep.subr.mxu0 0.0
        %1922 = vmatpush1.xpose.msra.mxu0 0.0
        %1923 = vmatprep.subr.mxu0 0.0
        %1924 = vmatpush1.xpose.msra.mxu0 0.0
        %1925 = vmatprep.subr.mxu0 0.0
        %1926 = vmatpush1.xpose.msra.mxu0 0.0
        %1927 = vmatprep.subr.mxu0 0.0
        %1928 = vmatpush1.xpose.msra.mxu0 0.0
        %1929 = vmatprep.subr.mxu0 0.0
        %1930 = vmatpush1.xpose.msra.mxu0 0.0
        %1931 = vmatprep.subr.mxu0 0.0
        %1932 = vmatpush1.xpose.msra.mxu0 0.0
        %1933 = vmatprep.subr.mxu0 0.0
        %1934 = vmatpush1.xpose.msra.mxu0 0.0
        %1935 = vmatprep.subr.mxu0 0.0
        %1936 = vmatpush1.xpose.msra.mxu0 0.0
        %1937 = vmatprep.subr.mxu0 0.0
        %1938 = vmatpush1.xpose.msra.mxu0 0.0
        %1939 = vmatprep.subr.mxu0 0.0
        %1940 = vmatpush1.xpose.msra.mxu0 0.0
        %1941 = vmatprep.subr.mxu0 0.0
        %1942 = vmatpush1.xpose.msra.mxu0 0.0
        %1943 = vmatprep.subr.mxu0 0.0
        %1944 = vmatpush1.xpose.msra.mxu0 0.0
        %1945 = vmatprep.subr.mxu0 0.0
        %1946 = vmatpush1.xpose.msra.mxu0 0.0
        %1947 = vmatprep.subr.mxu0 0.0
        %1948 = vmatpush1.xpose.msra.mxu0 0.0
        %1949 = vmatprep.subr.mxu0 0.0
        %1950 = vmatpush1.xpose.msra.mxu0 0.0
        %1951 = vmatprep.subr.mxu0 0.0
        %1952 = vmatpush1.xpose.msra.mxu0 0.0
        %1953 = vmatprep.subr.mxu0 0.0
        %1954 = vmatpush1.xpose.msra.mxu0 0.0
        %1955 = vmatprep.mubr.f32.mxu0 %v877
        %1956 = vmatmul.mubr.f32.gmra.mrb[0].mxu0 %v876
        %v1957 = vpop.f32.mrb[0].mxu0
        %v1958 = vadd.f32 %v1883, %v1957
        %v1959 = vpop.f32.mrb[0].mxu0
        %1960 = vmatprep.mubr.f32.mxu0 %v909
        %1961 = vmatmul.mubr.f32.gmra.mrb[0].mxu0 %v908
        %v1962 = vpop.f32.mrb[0].mxu0
        %v1963 = vadd.f32 %v1888, %v1962
        %v1964 = vpop.f32.mrb[0].mxu0
        %1965 = vdwg.mxu0
        %1966 = vmatprep.subr.mxu0 %v847
        %1967 = vmatpush1.xpose.msra.mxu0 %v846
        %1968 = vmatprep.subr.mxu0 0.0
        %1969 = vmatpush1.xpose.msra.mxu0 0.0
        %1970 = vmatprep.subr.mxu0 0.0
        %1971 = vmatpush1.xpose.msra.mxu0 0.0
        %1972 = vmatprep.subr.mxu0 0.0
        %1973 = vmatpush1.xpose.msra.mxu0 0.0
        %1974 = vmatprep.subr.mxu0 0.0
        %1975 = vmatpush1.xpose.msra.mxu0 0.0
        %1976 = vmatprep.subr.mxu0 0.0
        %1977 = vmatpush1.xpose.msra.mxu0 0.0
        %1978 = vmatprep.subr.mxu0 0.0
        %1979 = vmatpush1.xpose.msra.mxu0 0.0
        %1980 = vmatprep.subr.mxu0 0.0
        %1981 = vmatpush1.xpose.msra.mxu0 0.0
        %1982 = vmatprep.subr.mxu0 0.0
        %1983 = vmatpush1.xpose.msra.mxu0 0.0
        %1984 = vmatprep.subr.mxu0 0.0
        %1985 = vmatpush1.xpose.msra.mxu0 0.0
        %1986 = vmatprep.subr.mxu0 0.0
        %1987 = vmatpush1.xpose.msra.mxu0 0.0
        %1988 = vmatprep.subr.mxu0 0.0
        %1989 = vmatpush1.xpose.msra.mxu0 0.0
        %1990 = vmatprep.subr.mxu0 0.0
        %1991 = vmatpush1.xpose.msra.mxu0 0.0
        %1992 = vmatprep.subr.mxu0 0.0
        %1993 = vmatpush1.xpose.msra.mxu0 0.0
        %1994 = vmatprep.subr.mxu0 0.0
        %1995 = vmatpush1.xpose.msra.mxu0 0.0
        %1996 = vmatprep.subr.mxu0 0.0
        %1997 = vmatpush1.xpose.msra.mxu0 0.0
        %1998 = vmatprep.subr.mxu0 0.0
        %1999 = vmatpush1.xpose.msra.mxu0 0.0
        %2000 = vmatprep.subr.mxu0 0.0
        %2001 = vmatpush1.xpose.msra.mxu0 0.0
        %2002 = vmatprep.subr.mxu0 0.0
        %2003 = vmatpush1.xpose.msra.mxu0 0.0
        %2004 = vmatprep.subr.mxu0 0.0
        %2005 = vmatpush1.xpose.msra.mxu0 0.0
        %2006 = vmatprep.subr.mxu0 0.0
        %2007 = vmatpush1.xpose.msra.mxu0 0.0
        %2008 = vmatprep.subr.mxu0 0.0
        %2009 = vmatpush1.xpose.msra.mxu0 0.0
        %2010 = vmatprep.subr.mxu0 0.0
        %2011 = vmatpush1.xpose.msra.mxu0 0.0
        %2012 = vmatprep.subr.mxu0 0.0
        %2013 = vmatpush1.xpose.msra.mxu0 0.0
        %2014 = vmatprep.subr.mxu0 0.0
        %2015 = vmatpush1.xpose.msra.mxu0 0.0
        %2016 = vmatprep.subr.mxu0 0.0
        %2017 = vmatpush1.xpose.msra.mxu0 0.0
        %2018 = vmatprep.subr.mxu0 0.0
        %2019 = vmatpush1.xpose.msra.mxu0 0.0
        %2020 = vmatprep.subr.mxu0 0.0
        %2021 = vmatpush1.xpose.msra.mxu0 0.0
        %2022 = vmatprep.subr.mxu0 0.0
        %2023 = vmatpush1.xpose.msra.mxu0 0.0
        %2024 = vmatprep.subr.mxu0 0.0
        %2025 = vmatpush1.xpose.msra.mxu0 0.0
        %2026 = vmatprep.subr.mxu0 0.0
        %2027 = vmatpush1.xpose.msra.mxu0 0.0
        %2028 = vmatprep.subr.mxu0 0.0
        %2029 = vmatpush1.xpose.msra.mxu0 0.0
        %2030 = vmatprep.mubr.f32.mxu0 %v879
        %2031 = vmatmul.mubr.f32.gmra.mrb[0].mxu0 %v878
        %v2032 = vpop.f32.mrb[0].mxu0
        %v2033 = vadd.f32 %v1958, %v2032
        %v2034 = vpop.f32.mrb[0].mxu0
        %2035 = vmatprep.mubr.f32.mxu0 %v911
        %2036 = vmatmul.mubr.f32.gmra.mrb[0].mxu0 %v910
        %v2037 = vpop.f32.mrb[0].mxu0
        %v2038 = vadd.f32 %v1963, %v2037
        %v2039 = vpop.f32.mrb[0].mxu0
        %2040 = vdwg.mxu0
        %2041 = vmatprep.subr.mxu0 %v849
        %2042 = vmatpush1.xpose.msra.mxu0 %v848
        %2043 = vmatprep.subr.mxu0 0.0
        %2044 = vmatpush1.xpose.msra.mxu0 0.0
        %2045 = vmatprep.subr.mxu0 0.0
        %2046 = vmatpush1.xpose.msra.mxu0 0.0
        %2047 = vmatprep.subr.mxu0 0.0
        %2048 = vmatpush1.xpose.msra.mxu0 0.0
        %2049 = vmatprep.subr.mxu0 0.0
        %2050 = vmatpush1.xpose.msra.mxu0 0.0
        %2051 = vmatprep.subr.mxu0 0.0
        %2052 = vmatpush1.xpose.msra.mxu0 0.0
        %2053 = vmatprep.subr.mxu0 0.0
        %2054 = vmatpush1.xpose.msra.mxu0 0.0
        %2055 = vmatprep.subr.mxu0 0.0
        %2056 = vmatpush1.xpose.msra.mxu0 0.0
        %2057 = vmatprep.subr.mxu0 0.0
        %2058 = vmatpush1.xpose.msra.mxu0 0.0
        %2059 = vmatprep.subr.mxu0 0.0
        %2060 = vmatpush1.xpose.msra.mxu0 0.0
        %2061 = vmatprep.subr.mxu0 0.0
        %2062 = vmatpush1.xpose.msra.mxu0 0.0
        %2063 = vmatprep.subr.mxu0 0.0
        %2064 = vmatpush1.xpose.msra.mxu0 0.0
        %2065 = vmatprep.subr.mxu0 0.0
        %2066 = vmatpush1.xpose.msra.mxu0 0.0
        %2067 = vmatprep.subr.mxu0 0.0
        %2068 = vmatpush1.xpose.msra.mxu0 0.0
        %2069 = vmatprep.subr.mxu0 0.0
        %2070 = vmatpush1.xpose.msra.mxu0 0.0
        %2071 = vmatprep.subr.mxu0 0.0
        %2072 = vmatpush1.xpose.msra.mxu0 0.0
        %2073 = vmatprep.subr.mxu0 0.0
        %2074 = vmatpush1.xpose.msra.mxu0 0.0
        %2075 = vmatprep.subr.mxu0 0.0
        %2076 = vmatpush1.xpose.msra.mxu0 0.0
        %2077 = vmatprep.subr.mxu0 0.0
        %2078 = vmatpush1.xpose.msra.mxu0 0.0
        %2079 = vmatprep.subr.mxu0 0.0
        %2080 = vmatpush1.xpose.msra.mxu0 0.0
        %2081 = vmatprep.subr.mxu0 0.0
        %2082 = vmatpush1.xpose.msra.mxu0 0.0
        %2083 = vmatprep.subr.mxu0 0.0
        %2084 = vmatpush1.xpose.msra.mxu0 0.0
        %2085 = vmatprep.subr.mxu0 0.0
        %2086 = vmatpush1.xpose.msra.mxu0 0.0
        %2087 = vmatprep.subr.mxu0 0.0
        %2088 = vmatpush1.xpose.msra.mxu0 0.0
        %2089 = vmatprep.subr.mxu0 0.0
        %2090 = vmatpush1.xpose.msra.mxu0 0.0
        %2091 = vmatprep.subr.mxu0 0.0
        %2092 = vmatpush1.xpose.msra.mxu0 0.0
        %2093 = vmatprep.subr.mxu0 0.0
        %2094 = vmatpush1.xpose.msra.mxu0 0.0
        %2095 = vmatprep.subr.mxu0 0.0
        %2096 = vmatpush1.xpose.msra.mxu0 0.0
        %2097 = vmatprep.subr.mxu0 0.0
        %2098 = vmatpush1.xpose.msra.mxu0 0.0
        %2099 = vmatprep.subr.mxu0 0.0
        %2100 = vmatpush1.xpose.msra.mxu0 0.0
        %2101 = vmatprep.subr.mxu0 0.0
        %2102 = vmatpush1.xpose.msra.mxu0 0.0
        %2103 = vmatprep.subr.mxu0 0.0
        %2104 = vmatpush1.xpose.msra.mxu0 0.0
        %2105 = vmatprep.mubr.f32.mxu0 %v881
        %2106 = vmatmul.mubr.f32.gmra.mrb[0].mxu0 %v880
        %v2107 = vpop.f32.mrb[0].mxu0
        %v2108 = vadd.f32 %v2033, %v2107
        %v2109 = vpop.f32.mrb[0].mxu0
        %2110 = vmatprep.mubr.f32.mxu0 %v913
        %2111 = vmatmul.mubr.f32.gmra.mrb[0].mxu0 %v912
        %v2112 = vpop.f32.mrb[0].mxu0
        %v2113 = vadd.f32 %v2038, %v2112
        %v2114 = vpop.f32.mrb[0].mxu0
        %2115 = vdwg.mxu0
        %v2116 = vadd.f32 %v914, %v2108
        %v2117 = vadd.f32 %v915, %v2113
        %vm2118 = vcmask 23552
        %2119 = vst.msk [vmem:[%s338] sm:$0xff] %vm2118, %v2116
        %2120 = vst.msk [vmem:[%s338 + $0x8] sm:$0xff] %vm2118, %v2117
        %v2121 = vld [vmem:[%s342] sm:$0x7]
        %vm2122 = vcmask 1042432
        %v2123 = vsel %vm2122, %v818, 0.0
        %v2124 = vsel %vm2122, %v819, 0.0
        %v2125 = vadd.f32 %v2123, %v2124
        %v2126 = vsel %vm2122, %v820, 0.0
        %v2127 = vadd.f32 %v2125, %v2126
        %v2128 = vsel %vm2122, %v821, 0.0
        %v2129 = vadd.f32 %v2127, %v2128
        %v2130 = vsel %vm2122, %v822, 0.0
        %v2131 = vadd.f32 %v2129, %v2130
        %v2132 = vsel %vm2122, %v823, 0.0
        %v2133 = vadd.f32 %v2131, %v2132
        %v2134 = vsel %vm2122, %v824, 0.0
        %v2135 = vadd.f32 %v2133, %v2134
        %v2136 = vsel %vm2122, %v825, 0.0
        %v2137 = vadd.f32 %v2135, %v2136
        %v2138 = vsel %vm2122, %v826, 0.0
        %v2139 = vadd.f32 %v2137, %v2138
        %v2140 = vsel %vm2122, %v827, 0.0
        %v2141 = vadd.f32 %v2139, %v2140
        %v2142 = vsel %vm2122, %v828, 0.0
        %v2143 = vadd.f32 %v2141, %v2142
        %v2144 = vsel %vm2122, %v829, 0.0
        %v2145 = vadd.f32 %v2143, %v2144
        %v2146 = vsel %vm2122, %v830, 0.0
        %v2147 = vadd.f32 %v2145, %v2146
        %v2148 = vsel %vm2122, %v831, 0.0
        %v2149 = vadd.f32 %v2147, %v2148
        %v2150 = vsel %vm2122, %v832, 0.0
        %v2151 = vadd.f32 %v2149, %v2150
        %v2152 = vsel %vm2122, %v833, 0.0
        %v2153 = vadd.f32 %v2151, %v2152
        %v2154 = vsel %vm2122, %v834, 0.0
        %v2155 = vadd.f32 %v2153, %v2154
        %v2156 = vsel %vm2122, %v835, 0.0
        %v2157 = vadd.f32 %v2155, %v2156
        %v2158 = vsel %vm2122, %v836, 0.0
        %v2159 = vadd.f32 %v2157, %v2158
        %v2160 = vsel %vm2122, %v837, 0.0
        %v2161 = vadd.f32 %v2159, %v2160
        %v2162 = vsel %vm2122, %v838, 0.0
        %v2163 = vadd.f32 %v2161, %v2162
        %v2164 = vsel %vm2122, %v839, 0.0
        %v2165 = vadd.f32 %v2163, %v2164
        %v2166 = vsel %vm2122, %v840, 0.0
        %v2167 = vadd.f32 %v2165, %v2166
        %v2168 = vsel %vm2122, %v841, 0.0
        %v2169 = vadd.f32 %v2167, %v2168
        %v2170 = vsel %vm2122, %v842, 0.0
        %v2171 = vadd.f32 %v2169, %v2170
        %v2172 = vsel %vm2122, %v843, 0.0
        %v2173 = vadd.f32 %v2171, %v2172
        %v2174 = vsel %vm2122, %v844, 0.0
        %v2175 = vadd.f32 %v2173, %v2174
        %v2176 = vsel %vm2122, %v845, 0.0
        %v2177 = vadd.f32 %v2175, %v2176
        %v2178 = vsel %vm2122, %v846, 0.0
        %v2179 = vadd.f32 %v2177, %v2178
        %v2180 = vsel %vm2122, %v847, 0.0
        %v2181 = vadd.f32 %v2179, %v2180
        %v2182 = vsel %vm2122, %v848, 0.0
        %v2183 = vadd.f32 %v2181, %v2182
        %v2184 = vsel %vm2122, %v849, 0.0
        %v2185 = vadd.f32 %v2183, %v2184
        %2186 = vadd.xlane.f32.xlu0 %v2185
        %v2187 = vpop.xlane.xlu0 %2186
        %v2188 = vadd.f32 %v2121, %v2187
        %vm2189 = vcmask 2048
        %2190 = vst.msk [vmem:[%s342] sm:$0x7] %vm2189, %v2188
        %vm2191 = vcmp.eq.s32.totalorder %v786, 1
        %vm2192 = vcmp.eq.s32.totalorder %v787, 1
        %vm2193 = vcmp.eq.s32.totalorder %v788, 1
        %vm2194 = vcmp.eq.s32.totalorder %v789, 1
        %vm2195 = vcmp.eq.s32.totalorder %v790, 1
        %vm2196 = vcmp.eq.s32.totalorder %v791, 1
        %vm2197 = vcmp.eq.s32.totalorder %v792, 1
        %vm2198 = vcmp.eq.s32.totalorder %v793, 1
        %vm2199 = vcmp.eq.s32.totalorder %v794, 1
        %vm2200 = vcmp.eq.s32.totalorder %v795, 1
        %vm2201 = vcmp.eq.s32.totalorder %v796, 1
        %vm2202 = vcmp.eq.s32.totalorder %v797, 1
        %vm2203 = vcmp.eq.s32.totalorder %v798, 1
        %vm2204 = vcmp.eq.s32.totalorder %v799, 1
        %vm2205 = vcmp.eq.s32.totalorder %v800, 1
        %vm2206 = vcmp.eq.s32.totalorder %v801, 1
        %vm2207 = vcmp.eq.s32.totalorder %v802, 1
        %vm2208 = vcmp.eq.s32.totalorder %v803, 1
        %vm2209 = vcmp.eq.s32.totalorder %v804, 1
        %vm2210 = vcmp.eq.s32.totalorder %v805, 1
        %vm2211 = vcmp.eq.s32.totalorder %v806, 1
        %vm2212 = vcmp.eq.s32.totalorder %v807, 1
        %vm2213 = vcmp.eq.s32.totalorder %v808, 1
        %vm2214 = vcmp.eq.s32.totalorder %v809, 1
        %vm2215 = vcmp.eq.s32.totalorder %v810, 1
        %vm2216 = vcmp.eq.s32.totalorder %v811, 1
        %vm2217 = vcmp.eq.s32.totalorder %v812, 1
        %vm2218 = vcmp.eq.s32.totalorder %v813, 1
        %vm2219 = vcmp.eq.s32.totalorder %v814, 1
        %vm2220 = vcmp.eq.s32.totalorder %v815, 1
        %vm2221 = vcmp.eq.s32.totalorder %v816, 1
        %vm2222 = vcmp.eq.s32.totalorder %v817, 1
        %v2287 = vrot.slane %v464, 1
        %v2288 = vrot.slane %v465, 1
        %v2289 = vrot.slane %v466, 1
        %v2290 = vrot.slane %v467, 1
        %v2291 = vrot.slane %v468, 1
        %v2292 = vrot.slane %v469, 1
        %v2293 = vrot.slane %v470, 1
        %v2294 = vrot.slane %v471, 1
        %v2295 = vrot.slane %v472, 1
        %v2296 = vrot.slane %v473, 1
        %v2297 = vrot.slane %v474, 1
        %v2298 = vrot.slane %v475, 1
        %v2299 = vrot.slane %v476, 1
        %v2300 = vrot.slane %v477, 1
        %v2301 = vrot.slane %v478, 1
        %v2302 = vrot.slane %v479, 1
        %v2303 = vrot.slane %v480, 1
        %v2304 = vrot.slane %v481, 1
        %v2305 = vrot.slane %v482, 1
        %v2306 = vrot.slane %v483, 1
        %v2307 = vrot.slane %v484, 1
        %v2308 = vrot.slane %v485, 1
        %v2309 = vrot.slane %v486, 1
        %v2310 = vrot.slane %v487, 1
        %v2311 = vrot.slane %v488, 1
        %v2312 = vrot.slane %v489, 1
        %v2313 = vrot.slane %v490, 1
        %v2314 = vrot.slane %v491, 1
        %v2315 = vrot.slane %v492, 1
        %v2316 = vrot.slane %v493, 1
        %v2317 = vrot.slane %v494, 1
        %v2318 = vrot.slane %v495, 1
        %v2319 = vrot.slane %v464, 2
        %v2320 = vrot.slane %v465, 2
        %v2321 = vrot.slane %v466, 2
        %v2322 = vrot.slane %v467, 2
        %v2323 = vrot.slane %v468, 2
        %v2324 = vrot.slane %v469, 2
        %v2325 = vrot.slane %v470, 2
        %v2326 = vrot.slane %v471, 2
        %v2327 = vrot.slane %v472, 2
        %v2328 = vrot.slane %v473, 2
        %v2329 = vrot.slane %v474, 2
        %v2330 = vrot.slane %v475, 2
        %v2331 = vrot.slane %v476, 2
        %v2332 = vrot.slane %v477, 2
        %v2333 = vrot.slane %v478, 2
        %v2334 = vrot.slane %v479, 2
        %v2335 = vrot.slane %v480, 2
        %v2336 = vrot.slane %v481, 2
        %v2337 = vrot.slane %v482, 2
        %v2338 = vrot.slane %v483, 2
        %v2339 = vrot.slane %v484, 2
        %v2340 = vrot.slane %v485, 2
        %v2341 = vrot.slane %v486, 2
        %v2342 = vrot.slane %v487, 2
        %v2343 = vrot.slane %v488, 2
        %v2344 = vrot.slane %v489, 2
        %v2345 = vrot.slane %v490, 2
        %v2346 = vrot.slane %v491, 2
        %v2347 = vrot.slane %v492, 2
        %v2348 = vrot.slane %v493, 2
        %v2349 = vrot.slane %v494, 2
        %v2350 = vrot.slane %v495, 2
        %v2351 = vrot.slane %v464, 3
        %v2352 = vrot.slane %v465, 3
        %v2353 = vrot.slane %v466, 3
        %v2354 = vrot.slane %v467, 3
        %v2355 = vrot.slane %v468, 3
        %v2356 = vrot.slane %v469, 3
        %v2357 = vrot.slane %v470, 3
        %v2358 = vrot.slane %v471, 3
        %v2359 = vrot.slane %v472, 3
        %v2360 = vrot.slane %v473, 3
        %v2361 = vrot.slane %v474, 3
        %v2362 = vrot.slane %v475, 3
        %v2363 = vrot.slane %v476, 3
        %v2364 = vrot.slane %v477, 3
        %v2365 = vrot.slane %v478, 3
        %v2366 = vrot.slane %v479, 3
        %v2367 = vrot.slane %v480, 3
        %v2368 = vrot.slane %v481, 3
        %v2369 = vrot.slane %v482, 3
        %v2370 = vrot.slane %v483, 3
        %v2371 = vrot.slane %v484, 3
        %v2372 = vrot.slane %v485, 3
        %v2373 = vrot.slane %v486, 3
        %v2374 = vrot.slane %v487, 3
        %v2375 = vrot.slane %v488, 3
        %v2376 = vrot.slane %v489, 3
        %v2377 = vrot.slane %v490, 3
        %v2378 = vrot.slane %v491, 3
        %v2379 = vrot.slane %v492, 3
        %v2380 = vrot.slane %v493, 3
        %v2381 = vrot.slane %v494, 3
        %v2382 = vrot.slane %v495, 3
        %v2383 = vrot.slane %v464, 4
        %v2384 = vrot.slane %v465, 4
        %v2385 = vrot.slane %v466, 4
        %v2386 = vrot.slane %v467, 4
        %v2387 = vrot.slane %v468, 4
        %v2388 = vrot.slane %v469, 4
        %v2389 = vrot.slane %v470, 4
        %v2390 = vrot.slane %v471, 4
        %v2391 = vrot.slane %v472, 4
        %v2392 = vrot.slane %v473, 4
        %v2393 = vrot.slane %v474, 4
        %v2394 = vrot.slane %v475, 4
        %v2395 = vrot.slane %v476, 4
        %v2396 = vrot.slane %v477, 4
        %v2397 = vrot.slane %v478, 4
        %v2398 = vrot.slane %v479, 4
        %v2399 = vrot.slane %v480, 4
        %v2400 = vrot.slane %v481, 4
        %v2401 = vrot.slane %v482, 4
        %v2402 = vrot.slane %v483, 4
        %v2403 = vrot.slane %v484, 4
        %v2404 = vrot.slane %v485, 4
        %v2405 = vrot.slane %v486, 4
        %v2406 = vrot.slane %v487, 4
        %v2407 = vrot.slane %v488, 4
        %v2408 = vrot.slane %v489, 4
        %v2409 = vrot.slane %v490, 4
        %v2410 = vrot.slane %v491, 4
        %v2411 = vrot.slane %v492, 4
        %v2412 = vrot.slane %v493, 4
        %v2413 = vrot.slane %v494, 4
        %v2414 = vrot.slane %v495, 4
        %v2415 = vrot.slane %v464, 5
        %v2416 = vrot.slane %v465, 5
        %v2417 = vrot.slane %v466, 5
        %v2418 = vrot.slane %v467, 5
        %v2419 = vrot.slane %v468, 5
        %v2420 = vrot.slane %v469, 5
        %v2421 = vrot.slane %v470, 5
        %v2422 = vrot.slane %v471, 5
        %v2423 = vrot.slane %v472, 5
        %v2424 = vrot.slane %v473, 5
        %v2425 = vrot.slane %v474, 5
        %v2426 = vrot.slane %v475, 5
        %v2427 = vrot.slane %v476, 5
        %v2428 = vrot.slane %v477, 5
        %v2429 = vrot.slane %v478, 5
        %v2430 = vrot.slane %v479, 5
        %v2431 = vrot.slane %v480, 5
        %v2432 = vrot.slane %v481, 5
        %v2433 = vrot.slane %v482, 5
        %v2434 = vrot.slane %v483, 5
        %v2435 = vrot.slane %v484, 5
        %v2436 = vrot.slane %v485, 5
        %v2437 = vrot.slane %v486, 5
        %v2438 = vrot.slane %v487, 5
        %v2439 = vrot.slane %v488, 5
        %v2440 = vrot.slane %v489, 5
        %v2441 = vrot.slane %v490, 5
        %v2442 = vrot.slane %v491, 5
        %v2443 = vrot.slane %v492, 5
        %v2444 = vrot.slane %v493, 5
        %v2445 = vrot.slane %v494, 5
        %v2446 = vrot.slane %v495, 5
        %v2447 = vrot.slane %v464, 6
        %v2448 = vrot.slane %v465, 6
        %v2449 = vrot.slane %v466, 6
        %v2450 = vrot.slane %v467, 6
        %v2451 = vrot.slane %v468, 6
        %v2452 = vrot.slane %v469, 6
        %v2453 = vrot.slane %v470, 6
        %v2454 = vrot.slane %v471, 6
        %v2455 = vrot.slane %v472, 6
        %v2456 = vrot.slane %v473, 6
        %v2457 = vrot.slane %v474, 6
        %v2458 = vrot.slane %v475, 6
        %v2459 = vrot.slane %v476, 6
        %v2460 = vrot.slane %v477, 6
        %v2461 = vrot.slane %v478, 6
        %v2462 = vrot.slane %v479, 6
        %v2463 = vrot.slane %v480, 6
        %v2464 = vrot.slane %v481, 6
        %v2465 = vrot.slane %v482, 6
        %v2466 = vrot.slane %v483, 6
        %v2467 = vrot.slane %v484, 6
        %v2468 = vrot.slane %v485, 6
        %v2469 = vrot.slane %v486, 6
        %v2470 = vrot.slane %v487, 6
        %v2471 = vrot.slane %v488, 6
        %v2472 = vrot.slane %v489, 6
        %v2473 = vrot.slane %v490, 6
        %v2474 = vrot.slane %v491, 6
        %v2475 = vrot.slane %v492, 6
        %v2476 = vrot.slane %v493, 6
        %v2477 = vrot.slane %v494, 6
        %v2478 = vrot.slane %v495, 6
        %v2479 = vrot.slane %v464, 7
        %v2480 = vrot.slane %v465, 7
        %v2481 = vrot.slane %v466, 7
        %v2482 = vrot.slane %v467, 7
        %v2483 = vrot.slane %v468, 7
        %v2484 = vrot.slane %v469, 7
        %v2485 = vrot.slane %v470, 7
        %v2486 = vrot.slane %v471, 7
        %v2487 = vrot.slane %v472, 7
        %v2488 = vrot.slane %v473, 7
        %v2489 = vrot.slane %v474, 7
        %v2490 = vrot.slane %v475, 7
        %v2491 = vrot.slane %v476, 7
        %v2492 = vrot.slane %v477, 7
        %v2493 = vrot.slane %v478, 7
        %v2494 = vrot.slane %v479, 7
        %v2495 = vrot.slane %v480, 7
        %v2496 = vrot.slane %v481, 7
        %v2497 = vrot.slane %v482, 7
        %v2498 = vrot.slane %v483, 7
        %v2499 = vrot.slane %v484, 7
        %v2500 = vrot.slane %v485, 7
        %v2501 = vrot.slane %v486, 7
        %v2502 = vrot.slane %v487, 7
        %v2503 = vrot.slane %v488, 7
        %v2504 = vrot.slane %v489, 7
        %v2505 = vrot.slane %v490, 7
        %v2506 = vrot.slane %v491, 7
        %v2507 = vrot.slane %v492, 7
        %v2508 = vrot.slane %v493, 7
        %v2509 = vrot.slane %v494, 7
        %v2510 = vrot.slane %v495, 7
        %v2511 = vrot.slane %v496, 1
        %v2512 = vrot.slane %v497, 1
        %v2513 = vrot.slane %v498, 1
        %v2514 = vrot.slane %v499, 1
        %v2515 = vrot.slane %v500, 1
        %v2516 = vrot.slane %v501, 1
        %v2517 = vrot.slane %v502, 1
        %v2518 = vrot.slane %v503, 1
        %v2519 = vrot.slane %v504, 1
        %v2520 = vrot.slane %v505, 1
        %v2521 = vrot.slane %v506, 1
        %v2522 = vrot.slane %v507, 1
        %v2523 = vrot.slane %v508, 1
        %v2524 = vrot.slane %v509, 1
        %v2525 = vrot.slane %v510, 1
        %v2526 = vrot.slane %v511, 1
        %v2527 = vrot.slane %v512, 1
        %v2528 = vrot.slane %v513, 1
        %v2529 = vrot.slane %v514, 1
        %v2530 = vrot.slane %v515, 1
        %v2531 = vrot.slane %v516, 1
        %v2532 = vrot.slane %v517, 1
        %v2533 = vrot.slane %v518, 1
        %v2534 = vrot.slane %v519, 1
        %v2535 = vrot.slane %v520, 1
        %v2536 = vrot.slane %v521, 1
        %v2537 = vrot.slane %v522, 1
        %v2538 = vrot.slane %v523, 1
        %v2539 = vrot.slane %v524, 1
        %v2540 = vrot.slane %v525, 1
        %v2541 = vrot.slane %v526, 1
        %v2542 = vrot.slane %v527, 1
        %v2543 = vrot.slane %v496, 2
        %v2544 = vrot.slane %v497, 2
        %v2545 = vrot.slane %v498, 2
        %v2546 = vrot.slane %v499, 2
        %v2547 = vrot.slane %v500, 2
        %v2548 = vrot.slane %v501, 2
        %v2549 = vrot.slane %v502, 2
        %v2550 = vrot.slane %v503, 2
        %v2551 = vrot.slane %v504, 2
        %v2552 = vrot.slane %v505, 2
        %v2553 = vrot.slane %v506, 2
        %v2554 = vrot.slane %v507, 2
        %v2555 = vrot.slane %v508, 2
        %v2556 = vrot.slane %v509, 2
        %v2557 = vrot.slane %v510, 2
        %v2558 = vrot.slane %v511, 2
        %v2559 = vrot.slane %v512, 2
        %v2560 = vrot.slane %v513, 2
        %v2561 = vrot.slane %v514, 2
        %v2562 = vrot.slane %v515, 2
        %v2563 = vrot.slane %v516, 2
        %v2564 = vrot.slane %v517, 2
        %v2565 = vrot.slane %v518, 2
        %v2566 = vrot.slane %v519, 2
        %v2567 = vrot.slane %v520, 2
        %v2568 = vrot.slane %v521, 2
        %v2569 = vrot.slane %v522, 2
        %v2570 = vrot.slane %v523, 2
        %v2571 = vrot.slane %v524, 2
        %v2572 = vrot.slane %v525, 2
        %v2573 = vrot.slane %v526, 2
        %v2574 = vrot.slane %v527, 2
        %v2575 = vrot.slane %v496, 3
        %v2576 = vrot.slane %v497, 3
        %v2577 = vrot.slane %v498, 3
        %v2578 = vrot.slane %v499, 3
        %v2579 = vrot.slane %v500, 3
        %v2580 = vrot.slane %v501, 3
        %v2581 = vrot.slane %v502, 3
        %v2582 = vrot.slane %v503, 3
        %v2583 = vrot.slane %v504, 3
        %v2584 = vrot.slane %v505, 3
        %v2585 = vrot.slane %v506, 3
        %v2586 = vrot.slane %v507, 3
        %v2587 = vrot.slane %v508, 3
        %v2588 = vrot.slane %v509, 3
        %v2589 = vrot.slane %v510, 3
        %v2590 = vrot.slane %v511, 3
        %v2591 = vrot.slane %v512, 3
        %v2592 = vrot.slane %v513, 3
        %v2593 = vrot.slane %v514, 3
        %v2594 = vrot.slane %v515, 3
        %v2595 = vrot.slane %v516, 3
        %v2596 = vrot.slane %v517, 3
        %v2597 = vrot.slane %v518, 3
        %v2598 = vrot.slane %v519, 3
        %v2599 = vrot.slane %v520, 3
        %v2600 = vrot.slane %v521, 3
        %v2601 = vrot.slane %v522, 3
        %v2602 = vrot.slane %v523, 3
        %v2603 = vrot.slane %v524, 3
        %v2604 = vrot.slane %v525, 3
        %v2605 = vrot.slane %v526, 3
        %v2606 = vrot.slane %v527, 3
        %v2607 = vrot.slane %v496, 4
        %v2608 = vrot.slane %v497, 4
        %v2609 = vrot.slane %v498, 4
        %v2610 = vrot.slane %v499, 4
        %v2611 = vrot.slane %v500, 4
        %v2612 = vrot.slane %v501, 4
        %v2613 = vrot.slane %v502, 4
        %v2614 = vrot.slane %v503, 4
        %v2615 = vrot.slane %v504, 4
        %v2616 = vrot.slane %v505, 4
        %v2617 = vrot.slane %v506, 4
        %v2618 = vrot.slane %v507, 4
        %v2619 = vrot.slane %v508, 4
        %v2620 = vrot.slane %v509, 4
        %v2621 = vrot.slane %v510, 4
        %v2622 = vrot.slane %v511, 4
        %v2623 = vrot.slane %v512, 4
        %v2624 = vrot.slane %v513, 4
        %v2625 = vrot.slane %v514, 4
        %v2626 = vrot.slane %v515, 4
        %v2627 = vrot.slane %v516, 4
        %v2628 = vrot.slane %v517, 4
        %v2629 = vrot.slane %v518, 4
        %v2630 = vrot.slane %v519, 4
        %v2631 = vrot.slane %v520, 4
        %v2632 = vrot.slane %v521, 4
        %v2633 = vrot.slane %v522, 4
        %v2634 = vrot.slane %v523, 4
        %v2635 = vrot.slane %v524, 4
        %v2636 = vrot.slane %v525, 4
        %v2637 = vrot.slane %v526, 4
        %v2638 = vrot.slane %v527, 4
        %v2639 = vrot.slane %v496, 5
        %v2640 = vrot.slane %v497, 5
        %v2641 = vrot.slane %v498, 5
        %v2642 = vrot.slane %v499, 5
        %v2643 = vrot.slane %v500, 5
        %v2644 = vrot.slane %v501, 5
        %v2645 = vrot.slane %v502, 5
        %v2646 = vrot.slane %v503, 5
        %v2647 = vrot.slane %v504, 5
        %v2648 = vrot.slane %v505, 5
        %v2649 = vrot.slane %v506, 5
        %v2650 = vrot.slane %v507, 5
        %v2651 = vrot.slane %v508, 5
        %v2652 = vrot.slane %v509, 5
        %v2653 = vrot.slane %v510, 5
        %v2654 = vrot.slane %v511, 5
        %v2655 = vrot.slane %v512, 5
        %v2656 = vrot.slane %v513, 5
        %v2657 = vrot.slane %v514, 5
        %v2658 = vrot.slane %v515, 5
        %v2659 = vrot.slane %v516, 5
        %v2660 = vrot.slane %v517, 5
        %v2661 = vrot.slane %v518, 5
        %v2662 = vrot.slane %v519, 5
        %v2663 = vrot.slane %v520, 5
        %v2664 = vrot.slane %v521, 5
        %v2665 = vrot.slane %v522, 5
        %v2666 = vrot.slane %v523, 5
        %v2667 = vrot.slane %v524, 5
        %v2668 = vrot.slane %v525, 5
        %v2669 = vrot.slane %v526, 5
        %v2670 = vrot.slane %v527, 5
        %v2671 = vrot.slane %v496, 6
        %v2672 = vrot.slane %v497, 6
        %v2673 = vrot.slane %v498, 6
        %v2674 = vrot.slane %v499, 6
        %v2675 = vrot.slane %v500, 6
        %v2676 = vrot.slane %v501, 6
        %v2677 = vrot.slane %v502, 6
        %v2678 = vrot.slane %v503, 6
        %v2679 = vrot.slane %v504, 6
        %v2680 = vrot.slane %v505, 6
        %v2681 = vrot.slane %v506, 6
        %v2682 = vrot.slane %v507, 6
        %v2683 = vrot.slane %v508, 6
        %v2684 = vrot.slane %v509, 6
        %v2685 = vrot.slane %v510, 6
        %v2686 = vrot.slane %v511, 6
        %v2687 = vrot.slane %v512, 6
        %v2688 = vrot.slane %v513, 6
        %v2689 = vrot.slane %v514, 6
        %v2690 = vrot.slane %v515, 6
        %v2691 = vrot.slane %v516, 6
        %v2692 = vrot.slane %v517, 6
        %v2693 = vrot.slane %v518, 6
        %v2694 = vrot.slane %v519, 6
        %v2695 = vrot.slane %v520, 6
        %v2696 = vrot.slane %v521, 6
        %v2697 = vrot.slane %v522, 6
        %v2698 = vrot.slane %v523, 6
        %v2699 = vrot.slane %v524, 6
        %v2700 = vrot.slane %v525, 6
        %v2701 = vrot.slane %v526, 6
        %v2702 = vrot.slane %v527, 6
        %v2703 = vrot.slane %v496, 7
        %v2704 = vrot.slane %v497, 7
        %v2705 = vrot.slane %v498, 7
        %v2706 = vrot.slane %v499, 7
        %v2707 = vrot.slane %v500, 7
        %v2708 = vrot.slane %v501, 7
        %v2709 = vrot.slane %v502, 7
        %v2710 = vrot.slane %v503, 7
        %v2711 = vrot.slane %v504, 7
        %v2712 = vrot.slane %v505, 7
        %v2713 = vrot.slane %v506, 7
        %v2714 = vrot.slane %v507, 7
        %v2715 = vrot.slane %v508, 7
        %v2716 = vrot.slane %v509, 7
        %v2717 = vrot.slane %v510, 7
        %v2718 = vrot.slane %v511, 7
        %v2719 = vrot.slane %v512, 7
        %v2720 = vrot.slane %v513, 7
        %v2721 = vrot.slane %v514, 7
        %v2722 = vrot.slane %v515, 7
        %v2723 = vrot.slane %v516, 7
        %v2724 = vrot.slane %v517, 7
        %v2725 = vrot.slane %v518, 7
        %v2726 = vrot.slane %v519, 7
        %v2727 = vrot.slane %v520, 7
        %v2728 = vrot.slane %v521, 7
        %v2729 = vrot.slane %v522, 7
        %v2730 = vrot.slane %v523, 7
        %v2731 = vrot.slane %v524, 7
        %v2732 = vrot.slane %v525, 7
        %v2733 = vrot.slane %v526, 7
        %v2734 = vrot.slane %v527, 7
        %v3247 = vsel %vm2191, %v464, -inf
        %v3248 = vsel %vm2192, %v465, -inf
        %v3249 = vsel %vm2193, %v466, -inf
        %v3250 = vsel %vm2194, %v467, -inf
        %v3251 = vsel %vm2195, %v468, -inf
        %v3252 = vsel %vm2196, %v469, -inf
        %v3253 = vsel %vm2197, %v470, -inf
        %v3254 = vsel %vm2198, %v471, -inf
        %v3255 = vsel %vm2199, %v472, -inf
        %v3256 = vsel %vm2200, %v473, -inf
        %v3257 = vsel %vm2201, %v474, -inf
        %v3258 = vsel %vm2202, %v475, -inf
        %v3259 = vsel %vm2203, %v476, -inf
        %v3260 = vsel %vm2204, %v477, -inf
        %v3261 = vsel %vm2205, %v478, -inf
        %v3262 = vsel %vm2206, %v479, -inf
        %v3263 = vsel %vm2207, %v480, -inf
        %v3264 = vsel %vm2208, %v481, -inf
        %v3265 = vsel %vm2209, %v482, -inf
        %v3266 = vsel %vm2210, %v483, -inf
        %v3267 = vsel %vm2211, %v484, -inf
        %v3268 = vsel %vm2212, %v485, -inf
        %v3269 = vsel %vm2213, %v486, -inf
        %v3270 = vsel %vm2214, %v487, -inf
        %v3271 = vsel %vm2215, %v488, -inf
        %v3272 = vsel %vm2216, %v489, -inf
        %v3273 = vsel %vm2217, %v490, -inf
        %v3274 = vsel %vm2218, %v491, -inf
        %v3275 = vsel %vm2219, %v492, -inf
        %v3276 = vsel %vm2220, %v493, -inf
        %v3277 = vsel %vm2221, %v494, -inf
        %v3278 = vsel %vm2222, %v495, -inf
        %v3279 = vsel %vm2191, %v2287, -inf
        %v3280 = vsel %vm2192, %v2288, -inf
        %v3281 = vsel %vm2193, %v2289, -inf
        %v3282 = vsel %vm2194, %v2290, -inf
        %v3283 = vsel %vm2195, %v2291, -inf
        %v3284 = vsel %vm2196, %v2292, -inf
        %v3285 = vsel %vm2197, %v2293, -inf
        %v3286 = vsel %vm2198, %v2294, -inf
        %v3287 = vsel %vm2199, %v2295, -inf
        %v3288 = vsel %vm2200, %v2296, -inf
        %v3289 = vsel %vm2201, %v2297, -inf
        %v3290 = vsel %vm2202, %v2298, -inf
        %v3291 = vsel %vm2203, %v2299, -inf
        %v3292 = vsel %vm2204, %v2300, -inf
        %v3293 = vsel %vm2205, %v2301, -inf
        %v3294 = vsel %vm2206, %v2302, -inf
        %v3295 = vsel %vm2207, %v2303, -inf
        %v3296 = vsel %vm2208, %v2304, -inf
        %v3297 = vsel %vm2209, %v2305, -inf
        %v3298 = vsel %vm2210, %v2306, -inf
        %v3299 = vsel %vm2211, %v2307, -inf
        %v3300 = vsel %vm2212, %v2308, -inf
        %v3301 = vsel %vm2213, %v2309, -inf
        %v3302 = vsel %vm2214, %v2310, -inf
        %v3303 = vsel %vm2215, %v2311, -inf
        %v3304 = vsel %vm2216, %v2312, -inf
        %v3305 = vsel %vm2217, %v2313, -inf
        %v3306 = vsel %vm2218, %v2314, -inf
        %v3307 = vsel %vm2219, %v2315, -inf
        %v3308 = vsel %vm2220, %v2316, -inf
        %v3309 = vsel %vm2221, %v2317, -inf
        %v3310 = vsel %vm2222, %v2318, -inf
        %v3311 = vsel %vm2191, %v2319, -inf
        %v3312 = vsel %vm2192, %v2320, -inf
        %v3313 = vsel %vm2193, %v2321, -inf
        %v3314 = vsel %vm2194, %v2322, -inf
        %v3315 = vsel %vm2195, %v2323, -inf
        %v3316 = vsel %vm2196, %v2324, -inf
        %v3317 = vsel %vm2197, %v2325, -inf
        %v3318 = vsel %vm2198, %v2326, -inf
        %v3319 = vsel %vm2199, %v2327, -inf
        %v3320 = vsel %vm2200, %v2328, -inf
        %v3321 = vsel %vm2201, %v2329, -inf
        %v3322 = vsel %vm2202, %v2330, -inf
        %v3323 = vsel %vm2203, %v2331, -inf
        %v3324 = vsel %vm2204, %v2332, -inf
        %v3325 = vsel %vm2205, %v2333, -inf
        %v3326 = vsel %vm2206, %v2334, -inf
        %v3327 = vsel %vm2207, %v2335, -inf
        %v3328 = vsel %vm2208, %v2336, -inf
        %v3329 = vsel %vm2209, %v2337, -inf
        %v3330 = vsel %vm2210, %v2338, -inf
        %v3331 = vsel %vm2211, %v2339, -inf
        %v3332 = vsel %vm2212, %v2340, -inf
        %v3333 = vsel %vm2213, %v2341, -inf
        %v3334 = vsel %vm2214, %v2342, -inf
        %v3335 = vsel %vm2215, %v2343, -inf
        %v3336 = vsel %vm2216, %v2344, -inf
        %v3337 = vsel %vm2217, %v2345, -inf
        %v3338 = vsel %vm2218, %v2346, -inf
        %v3339 = vsel %vm2219, %v2347, -inf
        %v3340 = vsel %vm2220, %v2348, -inf
        %v3341 = vsel %vm2221, %v2349, -inf
        %v3342 = vsel %vm2222, %v2350, -inf
        %v3343 = vsel %vm2191, %v2351, -inf
        %v3344 = vsel %vm2192, %v2352, -inf
        %v3345 = vsel %vm2193, %v2353, -inf
        %v3346 = vsel %vm2194, %v2354, -inf
        %v3347 = vsel %vm2195, %v2355, -inf
        %v3348 = vsel %vm2196, %v2356, -inf
        %v3349 = vsel %vm2197, %v2357, -inf
        %v3350 = vsel %vm2198, %v2358, -inf
        %v3351 = vsel %vm2199, %v2359, -inf
        %v3352 = vsel %vm2200, %v2360, -inf
        %v3353 = vsel %vm2201, %v2361, -inf
        %v3354 = vsel %vm2202, %v2362, -inf
        %v3355 = vsel %vm2203, %v2363, -inf
        %v3356 = vsel %vm2204, %v2364, -inf
        %v3357 = vsel %vm2205, %v2365, -inf
        %v3358 = vsel %vm2206, %v2366, -inf
        %v3359 = vsel %vm2207, %v2367, -inf
        %v3360 = vsel %vm2208, %v2368, -inf
        %v3361 = vsel %vm2209, %v2369, -inf
        %v3362 = vsel %vm2210, %v2370, -inf
        %v3363 = vsel %vm2211, %v2371, -inf
        %v3364 = vsel %vm2212, %v2372, -inf
        %v3365 = vsel %vm2213, %v2373, -inf
        %v3366 = vsel %vm2214, %v2374, -inf
        %v3367 = vsel %vm2215, %v2375, -inf
        %v3368 = vsel %vm2216, %v2376, -inf
        %v3369 = vsel %vm2217, %v2377, -inf
        %v3370 = vsel %vm2218, %v2378, -inf
        %v3371 = vsel %vm2219, %v2379, -inf
        %v3372 = vsel %vm2220, %v2380, -inf
        %v3373 = vsel %vm2221, %v2381, -inf
        %v3374 = vsel %vm2222, %v2382, -inf
        %v3375 = vsel %vm2191, %v2383, -inf
        %v3376 = vsel %vm2192, %v2384, -inf
        %v3377 = vsel %vm2193, %v2385, -inf
        %v3378 = vsel %vm2194, %v2386, -inf
        %v3379 = vsel %vm2195, %v2387, -inf
        %v3380 = vsel %vm2196, %v2388, -inf
        %v3381 = vsel %vm2197, %v2389, -inf
        %v3382 = vsel %vm2198, %v2390, -inf
        %v3383 = vsel %vm2199, %v2391, -inf
        %v3384 = vsel %vm2200, %v2392, -inf
        %v3385 = vsel %vm2201, %v2393, -inf
        %v3386 = vsel %vm2202, %v2394, -inf
        %v3387 = vsel %vm2203, %v2395, -inf
        %v3388 = vsel %vm2204, %v2396, -inf
        %v3389 = vsel %vm2205, %v2397, -inf
        %v3390 = vsel %vm2206, %v2398, -inf
        %v3391 = vsel %vm2207, %v2399, -inf
        %v3392 = vsel %vm2208, %v2400, -inf
        %v3393 = vsel %vm2209, %v2401, -inf
        %v3394 = vsel %vm2210, %v2402, -inf
        %v3395 = vsel %vm2211, %v2403, -inf
        %v3396 = vsel %vm2212, %v2404, -inf
        %v3397 = vsel %vm2213, %v2405, -inf
        %v3398 = vsel %vm2214, %v2406, -inf
        %v3399 = vsel %vm2215, %v2407, -inf
        %v3400 = vsel %vm2216, %v2408, -inf
        %v3401 = vsel %vm2217, %v2409, -inf
        %v3402 = vsel %vm2218, %v2410, -inf
        %v3403 = vsel %vm2219, %v2411, -inf
        %v3404 = vsel %vm2220, %v2412, -inf
        %v3405 = vsel %vm2221, %v2413, -inf
        %v3406 = vsel %vm2222, %v2414, -inf
        %v3407 = vsel %vm2191, %v2415, -inf
        %v3408 = vsel %vm2192, %v2416, -inf
        %v3409 = vsel %vm2193, %v2417, -inf
        %v3410 = vsel %vm2194, %v2418, -inf
        %v3411 = vsel %vm2195, %v2419, -inf
        %v3412 = vsel %vm2196, %v2420, -inf
        %v3413 = vsel %vm2197, %v2421, -inf
        %v3414 = vsel %vm2198, %v2422, -inf
        %v3415 = vsel %vm2199, %v2423, -inf
        %v3416 = vsel %vm2200, %v2424, -inf
        %v3417 = vsel %vm2201, %v2425, -inf
        %v3418 = vsel %vm2202, %v2426, -inf
        %v3419 = vsel %vm2203, %v2427, -inf
        %v3420 = vsel %vm2204, %v2428, -inf
        %v3421 = vsel %vm2205, %v2429, -inf
        %v3422 = vsel %vm2206, %v2430, -inf
        %v3423 = vsel %vm2207, %v2431, -inf
        %v3424 = vsel %vm2208, %v2432, -inf
        %v3425 = vsel %vm2209, %v2433, -inf
        %v3426 = vsel %vm2210, %v2434, -inf
        %v3427 = vsel %vm2211, %v2435, -inf
        %v3428 = vsel %vm2212, %v2436, -inf
        %v3429 = vsel %vm2213, %v2437, -inf
        %v3430 = vsel %vm2214, %v2438, -inf
        %v3431 = vsel %vm2215, %v2439, -inf
        %v3432 = vsel %vm2216, %v2440, -inf
        %v3433 = vsel %vm2217, %v2441, -inf
        %v3434 = vsel %vm2218, %v2442, -inf
        %v3435 = vsel %vm2219, %v2443, -inf
        %v3436 = vsel %vm2220, %v2444, -inf
        %v3437 = vsel %vm2221, %v2445, -inf
        %v3438 = vsel %vm2222, %v2446, -inf
        %v3439 = vsel %vm2191, %v2447, -inf
        %v3440 = vsel %vm2192, %v2448, -inf
        %v3441 = vsel %vm2193, %v2449, -inf
        %v3442 = vsel %vm2194, %v2450, -inf
        %v3443 = vsel %vm2195, %v2451, -inf
        %v3444 = vsel %vm2196, %v2452, -inf
        %v3445 = vsel %vm2197, %v2453, -inf
        %v3446 = vsel %vm2198, %v2454, -inf
        %v3447 = vsel %vm2199, %v2455, -inf
        %v3448 = vsel %vm2200, %v2456, -inf
        %v3449 = vsel %vm2201, %v2457, -inf
        %v3450 = vsel %vm2202, %v2458, -inf
        %v3451 = vsel %vm2203, %v2459, -inf
        %v3452 = vsel %vm2204, %v2460, -inf
        %v3453 = vsel %vm2205, %v2461, -inf
        %v3454 = vsel %vm2206, %v2462, -inf
        %v3455 = vsel %vm2207, %v2463, -inf
        %v3456 = vsel %vm2208, %v2464, -inf
        %v3457 = vsel %vm2209, %v2465, -inf
        %v3458 = vsel %vm2210, %v2466, -inf
        %v3459 = vsel %vm2211, %v2467, -inf
        %v3460 = vsel %vm2212, %v2468, -inf
        %v3461 = vsel %vm2213, %v2469, -inf
        %v3462 = vsel %vm2214, %v2470, -inf
        %v3463 = vsel %vm2215, %v2471, -inf
        %v3464 = vsel %vm2216, %v2472, -inf
        %v3465 = vsel %vm2217, %v2473, -inf
        %v3466 = vsel %vm2218, %v2474, -inf
        %v3467 = vsel %vm2219, %v2475, -inf
        %v3468 = vsel %vm2220, %v2476, -inf
        %v3469 = vsel %vm2221, %v2477, -inf
        %v3470 = vsel %vm2222, %v2478, -inf
        %v3471 = vsel %vm2191, %v2479, -inf
        %v3472 = vsel %vm2192, %v2480, -inf
        %v3473 = vsel %vm2193, %v2481, -inf
        %v3474 = vsel %vm2194, %v2482, -inf
        %v3475 = vsel %vm2195, %v2483, -inf
        %v3476 = vsel %vm2196, %v2484, -inf
        %v3477 = vsel %vm2197, %v2485, -inf
        %v3478 = vsel %vm2198, %v2486, -inf
        %v3479 = vsel %vm2199, %v2487, -inf
        %v3480 = vsel %vm2200, %v2488, -inf
        %v3481 = vsel %vm2201, %v2489, -inf
        %v3482 = vsel %vm2202, %v2490, -inf
        %v3483 = vsel %vm2203, %v2491, -inf
        %v3484 = vsel %vm2204, %v2492, -inf
        %v3485 = vsel %vm2205, %v2493, -inf
        %v3486 = vsel %vm2206, %v2494, -inf
        %v3487 = vsel %vm2207, %v2495, -inf
        %v3488 = vsel %vm2208, %v2496, -inf
        %v3489 = vsel %vm2209, %v2497, -inf
        %v3490 = vsel %vm2210, %v2498, -inf
        %v3491 = vsel %vm2211, %v2499, -inf
        %v3492 = vsel %vm2212, %v2500, -inf
        %v3493 = vsel %vm2213, %v2501, -inf
        %v3494 = vsel %vm2214, %v2502, -inf
        %v3495 = vsel %vm2215, %v2503, -inf
        %v3496 = vsel %vm2216, %v2504, -inf
        %v3497 = vsel %vm2217, %v2505, -inf
        %v3498 = vsel %vm2218, %v2506, -inf
        %v3499 = vsel %vm2219, %v2507, -inf
        %v3500 = vsel %vm2220, %v2508, -inf
        %v3501 = vsel %vm2221, %v2509, -inf
        %v3502 = vsel %vm2222, %v2510, -inf
        %v3503 = vsel %vm2191, %v496, -inf
        %v3504 = vsel %vm2192, %v497, -inf
        %v3505 = vsel %vm2193, %v498, -inf
        %v3506 = vsel %vm2194, %v499, -inf
        %v3507 = vsel %vm2195, %v500, -inf
        %v3508 = vsel %vm2196, %v501, -inf
        %v3509 = vsel %vm2197, %v502, -inf
        %v3510 = vsel %vm2198, %v503, -inf
        %v3511 = vsel %vm2199, %v504, -inf
        %v3512 = vsel %vm2200, %v505, -inf
        %v3513 = vsel %vm2201, %v506, -inf
        %v3514 = vsel %vm2202, %v507, -inf
        %v3515 = vsel %vm2203, %v508, -inf
        %v3516 = vsel %vm2204, %v509, -inf
        %v3517 = vsel %vm2205, %v510, -inf
        %v3518 = vsel %vm2206, %v511, -inf
        %v3519 = vsel %vm2207, %v512, -inf
        %v3520 = vsel %vm2208, %v513, -inf
        %v3521 = vsel %vm2209, %v514, -inf
        %v3522 = vsel %vm2210, %v515, -inf
        %v3523 = vsel %vm2211, %v516, -inf
        %v3524 = vsel %vm2212, %v517, -inf
        %v3525 = vsel %vm2213, %v518, -inf
        %v3526 = vsel %vm2214, %v519, -inf
        %v3527 = vsel %vm2215, %v520, -inf
        %v3528 = vsel %vm2216, %v521, -inf
        %v3529 = vsel %vm2217, %v522, -inf
        %v3530 = vsel %vm2218, %v523, -inf
        %v3531 = vsel %vm2219, %v524, -inf
        %v3532 = vsel %vm2220, %v525, -inf
        %v3533 = vsel %vm2221, %v526, -inf
        %v3534 = vsel %vm2222, %v527, -inf
        %v3535 = vsel %vm2191, %v2511, -inf
        %v3536 = vsel %vm2192, %v2512, -inf
        %v3537 = vsel %vm2193, %v2513, -inf
        %v3538 = vsel %vm2194, %v2514, -inf
        %v3539 = vsel %vm2195, %v2515, -inf
        %v3540 = vsel %vm2196, %v2516, -inf
        %v3541 = vsel %vm2197, %v2517, -inf
        %v3542 = vsel %vm2198, %v2518, -inf
        %v3543 = vsel %vm2199, %v2519, -inf
        %v3544 = vsel %vm2200, %v2520, -inf
        %v3545 = vsel %vm2201, %v2521, -inf
        %v3546 = vsel %vm2202, %v2522, -inf
        %v3547 = vsel %vm2203, %v2523, -inf
        %v3548 = vsel %vm2204, %v2524, -inf
        %v3549 = vsel %vm2205, %v2525, -inf
        %v3550 = vsel %vm2206, %v2526, -inf
        %v3551 = vsel %vm2207, %v2527, -inf
        %v3552 = vsel %vm2208, %v2528, -inf
        %v3553 = vsel %vm2209, %v2529, -inf
        %v3554 = vsel %vm2210, %v2530, -inf
        %v3555 = vsel %vm2211, %v2531, -inf
        %v3556 = vsel %vm2212, %v2532, -inf
        %v3557 = vsel %vm2213, %v2533, -inf
        %v3558 = vsel %vm2214, %v2534, -inf
        %v3559 = vsel %vm2215, %v2535, -inf
        %v3560 = vsel %vm2216, %v2536, -inf
        %v3561 = vsel %vm2217, %v2537, -inf
        %v3562 = vsel %vm2218, %v2538, -inf
        %v3563 = vsel %vm2219, %v2539, -inf
        %v3564 = vsel %vm2220, %v2540, -inf
        %v3565 = vsel %vm2221, %v2541, -inf
        %v3566 = vsel %vm2222, %v2542, -inf
        %v3567 = vsel %vm2191, %v2543, -inf
        %v3568 = vsel %vm2192, %v2544, -inf
        %v3569 = vsel %vm2193, %v2545, -inf
        %v3570 = vsel %vm2194, %v2546, -inf
        %v3571 = vsel %vm2195, %v2547, -inf
        %v3572 = vsel %vm2196, %v2548, -inf
        %v3573 = vsel %vm2197, %v2549, -inf
        %v3574 = vsel %vm2198, %v2550, -inf
        %v3575 = vsel %vm2199, %v2551, -inf
        %v3576 = vsel %vm2200, %v2552, -inf
        %v3577 = vsel %vm2201, %v2553, -inf
        %v3578 = vsel %vm2202, %v2554, -inf
        %v3579 = vsel %vm2203, %v2555, -inf
        %v3580 = vsel %vm2204, %v2556, -inf
        %v3581 = vsel %vm2205, %v2557, -inf
        %v3582 = vsel %vm2206, %v2558, -inf
        %v3583 = vsel %vm2207, %v2559, -inf
        %v3584 = vsel %vm2208, %v2560, -inf
        %v3585 = vsel %vm2209, %v2561, -inf
        %v3586 = vsel %vm2210, %v2562, -inf
        %v3587 = vsel %vm2211, %v2563, -inf
        %v3588 = vsel %vm2212, %v2564, -inf
        %v3589 = vsel %vm2213, %v2565, -inf
        %v3590 = vsel %vm2214, %v2566, -inf
        %v3591 = vsel %vm2215, %v2567, -inf
        %v3592 = vsel %vm2216, %v2568, -inf
        %v3593 = vsel %vm2217, %v2569, -inf
        %v3594 = vsel %vm2218, %v2570, -inf
        %v3595 = vsel %vm2219, %v2571, -inf
        %v3596 = vsel %vm2220, %v2572, -inf
        %v3597 = vsel %vm2221, %v2573, -inf
        %v3598 = vsel %vm2222, %v2574, -inf
        %v3599 = vsel %vm2191, %v2575, -inf
        %v3600 = vsel %vm2192, %v2576, -inf
        %v3601 = vsel %vm2193, %v2577, -inf
        %v3602 = vsel %vm2194, %v2578, -inf
        %v3603 = vsel %vm2195, %v2579, -inf
        %v3604 = vsel %vm2196, %v2580, -inf
        %v3605 = vsel %vm2197, %v2581, -inf
        %v3606 = vsel %vm2198, %v2582, -inf
        %v3607 = vsel %vm2199, %v2583, -inf
        %v3608 = vsel %vm2200, %v2584, -inf
        %v3609 = vsel %vm2201, %v2585, -inf
        %v3610 = vsel %vm2202, %v2586, -inf
        %v3611 = vsel %vm2203, %v2587, -inf
        %v3612 = vsel %vm2204, %v2588, -inf
        %v3613 = vsel %vm2205, %v2589, -inf
        %v3614 = vsel %vm2206, %v2590, -inf
        %v3615 = vsel %vm2207, %v2591, -inf
        %v3616 = vsel %vm2208, %v2592, -inf
        %v3617 = vsel %vm2209, %v2593, -inf
        %v3618 = vsel %vm2210, %v2594, -inf
        %v3619 = vsel %vm2211, %v2595, -inf
        %v3620 = vsel %vm2212, %v2596, -inf
        %v3621 = vsel %vm2213, %v2597, -inf
        %v3622 = vsel %vm2214, %v2598, -inf
        %v3623 = vsel %vm2215, %v2599, -inf
        %v3624 = vsel %vm2216, %v2600, -inf
        %v3625 = vsel %vm2217, %v2601, -inf
        %v3626 = vsel %vm2218, %v2602, -inf
        %v3627 = vsel %vm2219, %v2603, -inf
        %v3628 = vsel %vm2220, %v2604, -inf
        %v3629 = vsel %vm2221, %v2605, -inf
        %v3630 = vsel %vm2222, %v2606, -inf
        %v3631 = vsel %vm2191, %v2607, -inf
        %v3632 = vsel %vm2192, %v2608, -inf
        %v3633 = vsel %vm2193, %v2609, -inf
        %v3634 = vsel %vm2194, %v2610, -inf
        %v3635 = vsel %vm2195, %v2611, -inf
        %v3636 = vsel %vm2196, %v2612, -inf
        %v3637 = vsel %vm2197, %v2613, -inf
        %v3638 = vsel %vm2198, %v2614, -inf
        %v3639 = vsel %vm2199, %v2615, -inf
        %v3640 = vsel %vm2200, %v2616, -inf
        %v3641 = vsel %vm2201, %v2617, -inf
        %v3642 = vsel %vm2202, %v2618, -inf
        %v3643 = vsel %vm2203, %v2619, -inf
        %v3644 = vsel %vm2204, %v2620, -inf
        %v3645 = vsel %vm2205, %v2621, -inf
        %v3646 = vsel %vm2206, %v2622, -inf
        %v3647 = vsel %vm2207, %v2623, -inf
        %v3648 = vsel %vm2208, %v2624, -inf
        %v3649 = vsel %vm2209, %v2625, -inf
        %v3650 = vsel %vm2210, %v2626, -inf
        %v3651 = vsel %vm2211, %v2627, -inf
        %v3652 = vsel %vm2212, %v2628, -inf
        %v3653 = vsel %vm2213, %v2629, -inf
        %v3654 = vsel %vm2214, %v2630, -inf
        %v3655 = vsel %vm2215, %v2631, -inf
        %v3656 = vsel %vm2216, %v2632, -inf
        %v3657 = vsel %vm2217, %v2633, -inf
        %v3658 = vsel %vm2218, %v2634, -inf
        %v3659 = vsel %vm2219, %v2635, -inf
        %v3660 = vsel %vm2220, %v2636, -inf
        %v3661 = vsel %vm2221, %v2637, -inf
        %v3662 = vsel %vm2222, %v2638, -inf
        %v3663 = vsel %vm2191, %v2639, -inf
        %v3664 = vsel %vm2192, %v2640, -inf
        %v3665 = vsel %vm2193, %v2641, -inf
        %v3666 = vsel %vm2194, %v2642, -inf
        %v3667 = vsel %vm2195, %v2643, -inf
        %v3668 = vsel %vm2196, %v2644, -inf
        %v3669 = vsel %vm2197, %v2645, -inf
        %v3670 = vsel %vm2198, %v2646, -inf
        %v3671 = vsel %vm2199, %v2647, -inf
        %v3672 = vsel %vm2200, %v2648, -inf
        %v3673 = vsel %vm2201, %v2649, -inf
        %v3674 = vsel %vm2202, %v2650, -inf
        %v3675 = vsel %vm2203, %v2651, -inf
        %v3676 = vsel %vm2204, %v2652, -inf
        %v3677 = vsel %vm2205, %v2653, -inf
        %v3678 = vsel %vm2206, %v2654, -inf
        %v3679 = vsel %vm2207, %v2655, -inf
        %v3680 = vsel %vm2208, %v2656, -inf
        %v3681 = vsel %vm2209, %v2657, -inf
        %v3682 = vsel %vm2210, %v2658, -inf
        %v3683 = vsel %vm2211, %v2659, -inf
        %v3684 = vsel %vm2212, %v2660, -inf
        %v3685 = vsel %vm2213, %v2661, -inf
        %v3686 = vsel %vm2214, %v2662, -inf
        %v3687 = vsel %vm2215, %v2663, -inf
        %v3688 = vsel %vm2216, %v2664, -inf
        %v3689 = vsel %vm2217, %v2665, -inf
        %v3690 = vsel %vm2218, %v2666, -inf
        %v3691 = vsel %vm2219, %v2667, -inf
        %v3692 = vsel %vm2220, %v2668, -inf
        %v3693 = vsel %vm2221, %v2669, -inf
        %v3694 = vsel %vm2222, %v2670, -inf
        %v3695 = vsel %vm2191, %v2671, -inf
        %v3696 = vsel %vm2192, %v2672, -inf
        %v3697 = vsel %vm2193, %v2673, -inf
        %v3698 = vsel %vm2194, %v2674, -inf
        %v3699 = vsel %vm2195, %v2675, -inf
        %v3700 = vsel %vm2196, %v2676, -inf
        %v3701 = vsel %vm2197, %v2677, -inf
        %v3702 = vsel %vm2198, %v2678, -inf
        %v3703 = vsel %vm2199, %v2679, -inf
        %v3704 = vsel %vm2200, %v2680, -inf
        %v3705 = vsel %vm2201, %v2681, -inf
        %v3706 = vsel %vm2202, %v2682, -inf
        %v3707 = vsel %vm2203, %v2683, -inf
        %v3708 = vsel %vm2204, %v2684, -inf
        %v3709 = vsel %vm2205, %v2685, -inf
        %v3710 = vsel %vm2206, %v2686, -inf
        %v3711 = vsel %vm2207, %v2687, -inf
        %v3712 = vsel %vm2208, %v2688, -inf
        %v3713 = vsel %vm2209, %v2689, -inf
        %v3714 = vsel %vm2210, %v2690, -inf
        %v3715 = vsel %vm2211, %v2691, -inf
        %v3716 = vsel %vm2212, %v2692, -inf
        %v3717 = vsel %vm2213, %v2693, -inf
        %v3718 = vsel %vm2214, %v2694, -inf
        %v3719 = vsel %vm2215, %v2695, -inf
        %v3720 = vsel %vm2216, %v2696, -inf
        %v3721 = vsel %vm2217, %v2697, -inf
        %v3722 = vsel %vm2218, %v2698, -inf
        %v3723 = vsel %vm2219, %v2699, -inf
        %v3724 = vsel %vm2220, %v2700, -inf
        %v3725 = vsel %vm2221, %v2701, -inf
        %v3726 = vsel %vm2222, %v2702, -inf
        %v3727 = vsel %vm2191, %v2703, -inf
        %v3728 = vsel %vm2192, %v2704, -inf
        %v3729 = vsel %vm2193, %v2705, -inf
        %v3730 = vsel %vm2194, %v2706, -inf
        %v3731 = vsel %vm2195, %v2707, -inf
        %v3732 = vsel %vm2196, %v2708, -inf
        %v3733 = vsel %vm2197, %v2709, -inf
        %v3734 = vsel %vm2198, %v2710, -inf
        %v3735 = vsel %vm2199, %v2711, -inf
        %v3736 = vsel %vm2200, %v2712, -inf
        %v3737 = vsel %vm2201, %v2713, -inf
        %v3738 = vsel %vm2202, %v2714, -inf
        %v3739 = vsel %vm2203, %v2715, -inf
        %v3740 = vsel %vm2204, %v2716, -inf
        %v3741 = vsel %vm2205, %v2717, -inf
        %v3742 = vsel %vm2206, %v2718, -inf
        %v3743 = vsel %vm2207, %v2719, -inf
        %v3744 = vsel %vm2208, %v2720, -inf
        %v3745 = vsel %vm2209, %v2721, -inf
        %v3746 = vsel %vm2210, %v2722, -inf
        %v3747 = vsel %vm2211, %v2723, -inf
        %v3748 = vsel %vm2212, %v2724, -inf
        %v3749 = vsel %vm2213, %v2725, -inf
        %v3750 = vsel %vm2214, %v2726, -inf
        %v3751 = vsel %vm2215, %v2727, -inf
        %v3752 = vsel %vm2216, %v2728, -inf
        %v3753 = vsel %vm2217, %v2729, -inf
        %v3754 = vsel %vm2218, %v2730, -inf
        %v3755 = vsel %vm2219, %v2731, -inf
        %v3756 = vsel %vm2220, %v2732, -inf
        %v3757 = vsel %vm2221, %v2733, -inf
        %v3758 = vsel %vm2222, %v2734, -inf
        %v4271 = vrot.slane %v3279, 7
        %vm4272 = vcmask 1041409
        %v4273 = vsel %vm4272, %v4271, %v3247
        %v4274 = vrot.slane %v3311, 6
        %vm4275 = vcmask 1042434
        %v4276 = vsel %vm4275, %v4274, %v4273
        %v4277 = vrot.slane %v3343, 5
        %vm4278 = vcmask 1043459
        %v4279 = vsel %vm4278, %v4277, %v4276
        %v4280 = vrot.slane %v3375, 4
        %vm4281 = vcmask 1044484
        %v4282 = vsel %vm4281, %v4280, %v4279
        %v4283 = vrot.slane %v3407, 3
        %vm4284 = vcmask 1045509
        %v4285 = vsel %vm4284, %v4283, %v4282
        %v4286 = vrot.slane %v3439, 2
        %vm4287 = vcmask 1046534
        %v4288 = vsel %vm4287, %v4286, %v4285
        %v4289 = vrot.slane %v3471, 1
        %vm4290 = vcmask 1047559
        %v4291 = vsel %vm4290, %v4289, %v4288
        %v4292 = vrot.slane %v3280, 7
        %v4293 = vsel %vm4272, %v4292, %v3248
        %v4294 = vrot.slane %v3312, 6
        %v4295 = vsel %vm4275, %v4294, %v4293
        %v4296 = vrot.slane %v3344, 5
        %v4297 = vsel %vm4278, %v4296, %v4295
        %v4298 = vrot.slane %v3376, 4
        %v4299 = vsel %vm4281, %v4298, %v4297
        %v4300 = vrot.slane %v3408, 3
        %v4301 = vsel %vm4284, %v4300, %v4299
        %v4302 = vrot.slane %v3440, 2
        %v4303 = vsel %vm4287, %v4302, %v4301
        %v4304 = vrot.slane %v3472, 1
        %v4305 = vsel %vm4290, %v4304, %v4303
        %v4306 = vrot.slane %v3281, 7
        %v4307 = vsel %vm4272, %v4306, %v3249
        %v4308 = vrot.slane %v3313, 6
        %v4309 = vsel %vm4275, %v4308, %v4307
        %v4310 = vrot.slane %v3345, 5
        %v4311 = vsel %vm4278, %v4310, %v4309
        %v4312 = vrot.slane %v3377, 4
        %v4313 = vsel %vm4281, %v4312, %v4311
        %v4314 = vrot.slane %v3409, 3
        %v4315 = vsel %vm4284, %v4314, %v4313
        %v4316 = vrot.slane %v3441, 2
        %v4317 = vsel %vm4287, %v4316, %v4315
        %v4318 = vrot.slane %v3473, 1
        %v4319 = vsel %vm4290, %v4318, %v4317
        %v4320 = vrot.slane %v3282, 7
        %v4321 = vsel %vm4272, %v4320, %v3250
        %v4322 = vrot.slane %v3314, 6
        %v4323 = vsel %vm4275, %v4322, %v4321
        %v4324 = vrot.slane %v3346, 5
        %v4325 = vsel %vm4278, %v4324, %v4323
        %v4326 = vrot.slane %v3378, 4
        %v4327 = vsel %vm4281, %v4326, %v4325
        %v4328 = vrot.slane %v3410, 3
        %v4329 = vsel %vm4284, %v4328, %v4327
        %v4330 = vrot.slane %v3442, 2
        %v4331 = vsel %vm4287, %v4330, %v4329
        %v4332 = vrot.slane %v3474, 1
        %v4333 = vsel %vm4290, %v4332, %v4331
        %v4334 = vrot.slane %v3283, 7
        %v4335 = vsel %vm4272, %v4334, %v3251
        %v4336 = vrot.slane %v3315, 6
        %v4337 = vsel %vm4275, %v4336, %v4335
        %v4338 = vrot.slane %v3347, 5
        %v4339 = vsel %vm4278, %v4338, %v4337
        %v4340 = vrot.slane %v3379, 4
        %v4341 = vsel %vm4281, %v4340, %v4339
        %v4342 = vrot.slane %v3411, 3
        %v4343 = vsel %vm4284, %v4342, %v4341
        %v4344 = vrot.slane %v3443, 2
        %v4345 = vsel %vm4287, %v4344, %v4343
        %v4346 = vrot.slane %v3475, 1
        %v4347 = vsel %vm4290, %v4346, %v4345
        %v4348 = vrot.slane %v3284, 7
        %v4349 = vsel %vm4272, %v4348, %v3252
        %v4350 = vrot.slane %v3316, 6
        %v4351 = vsel %vm4275, %v4350, %v4349
        %v4352 = vrot.slane %v3348, 5
        %v4353 = vsel %vm4278, %v4352, %v4351
        %v4354 = vrot.slane %v3380, 4
        %v4355 = vsel %vm4281, %v4354, %v4353
        %v4356 = vrot.slane %v3412, 3
        %v4357 = vsel %vm4284, %v4356, %v4355
        %v4358 = vrot.slane %v3444, 2
        %v4359 = vsel %vm4287, %v4358, %v4357
        %v4360 = vrot.slane %v3476, 1
        %v4361 = vsel %vm4290, %v4360, %v4359
        %v4362 = vrot.slane %v3285, 7
        %v4363 = vsel %vm4272, %v4362, %v3253
        %v4364 = vrot.slane %v3317, 6
        %v4365 = vsel %vm4275, %v4364, %v4363
        %v4366 = vrot.slane %v3349, 5
        %v4367 = vsel %vm4278, %v4366, %v4365
        %v4368 = vrot.slane %v3381, 4
        %v4369 = vsel %vm4281, %v4368, %v4367
        %v4370 = vrot.slane %v3413, 3
        %v4371 = vsel %vm4284, %v4370, %v4369
        %v4372 = vrot.slane %v3445, 2
        %v4373 = vsel %vm4287, %v4372, %v4371
        %v4374 = vrot.slane %v3477, 1
        %v4375 = vsel %vm4290, %v4374, %v4373
        %v4376 = vrot.slane %v3286, 7
        %v4377 = vsel %vm4272, %v4376, %v3254
        %v4378 = vrot.slane %v3318, 6
        %v4379 = vsel %vm4275, %v4378, %v4377
        %v4380 = vrot.slane %v3350, 5
        %v4381 = vsel %vm4278, %v4380, %v4379
        %v4382 = vrot.slane %v3382, 4
        %v4383 = vsel %vm4281, %v4382, %v4381
        %v4384 = vrot.slane %v3414, 3
        %v4385 = vsel %vm4284, %v4384, %v4383
        %v4386 = vrot.slane %v3446, 2
        %v4387 = vsel %vm4287, %v4386, %v4385
        %v4388 = vrot.slane %v3478, 1
        %v4389 = vsel %vm4290, %v4388, %v4387
        %v4390 = vrot.slane %v3287, 7
        %v4391 = vsel %vm4272, %v4390, %v3255
        %v4392 = vrot.slane %v3319, 6
        %v4393 = vsel %vm4275, %v4392, %v4391
        %v4394 = vrot.slane %v3351, 5
        %v4395 = vsel %vm4278, %v4394, %v4393
        %v4396 = vrot.slane %v3383, 4
        %v4397 = vsel %vm4281, %v4396, %v4395
        %v4398 = vrot.slane %v3415, 3
        %v4399 = vsel %vm4284, %v4398, %v4397
        %v4400 = vrot.slane %v3447, 2
        %v4401 = vsel %vm4287, %v4400, %v4399
        %v4402 = vrot.slane %v3479, 1
        %v4403 = vsel %vm4290, %v4402, %v4401
        %v4404 = vrot.slane %v3288, 7
        %v4405 = vsel %vm4272, %v4404, %v3256
        %v4406 = vrot.slane %v3320, 6
        %v4407 = vsel %vm4275, %v4406, %v4405
        %v4408 = vrot.slane %v3352, 5
        %v4409 = vsel %vm4278, %v4408, %v4407
        %v4410 = vrot.slane %v3384, 4
        %v4411 = vsel %vm4281, %v4410, %v4409
        %v4412 = vrot.slane %v3416, 3
        %v4413 = vsel %vm4284, %v4412, %v4411
        %v4414 = vrot.slane %v3448, 2
        %v4415 = vsel %vm4287, %v4414, %v4413
        %v4416 = vrot.slane %v3480, 1
        %v4417 = vsel %vm4290, %v4416, %v4415
        %v4418 = vrot.slane %v3289, 7
        %v4419 = vsel %vm4272, %v4418, %v3257
        %v4420 = vrot.slane %v3321, 6
        %v4421 = vsel %vm4275, %v4420, %v4419
        %v4422 = vrot.slane %v3353, 5
        %v4423 = vsel %vm4278, %v4422, %v4421
        %v4424 = vrot.slane %v3385, 4
        %v4425 = vsel %vm4281, %v4424, %v4423
        %v4426 = vrot.slane %v3417, 3
        %v4427 = vsel %vm4284, %v4426, %v4425
        %v4428 = vrot.slane %v3449, 2
        %v4429 = vsel %vm4287, %v4428, %v4427
        %v4430 = vrot.slane %v3481, 1
        %v4431 = vsel %vm4290, %v4430, %v4429
        %v4432 = vrot.slane %v3290, 7
        %v4433 = vsel %vm4272, %v4432, %v3258
        %v4434 = vrot.slane %v3322, 6
        %v4435 = vsel %vm4275, %v4434, %v4433
        %v4436 = vrot.slane %v3354, 5
        %v4437 = vsel %vm4278, %v4436, %v4435
        %v4438 = vrot.slane %v3386, 4
        %v4439 = vsel %vm4281, %v4438, %v4437
        %v4440 = vrot.slane %v3418, 3
        %v4441 = vsel %vm4284, %v4440, %v4439
        %v4442 = vrot.slane %v3450, 2
        %v4443 = vsel %vm4287, %v4442, %v4441
        %v4444 = vrot.slane %v3482, 1
        %v4445 = vsel %vm4290, %v4444, %v4443
        %v4446 = vrot.slane %v3291, 7
        %v4447 = vsel %vm4272, %v4446, %v3259
        %v4448 = vrot.slane %v3323, 6
        %v4449 = vsel %vm4275, %v4448, %v4447
        %v4450 = vrot.slane %v3355, 5
        %v4451 = vsel %vm4278, %v4450, %v4449
        %v4452 = vrot.slane %v3387, 4
        %v4453 = vsel %vm4281, %v4452, %v4451
        %v4454 = vrot.slane %v3419, 3
        %v4455 = vsel %vm4284, %v4454, %v4453
        %v4456 = vrot.slane %v3451, 2
        %v4457 = vsel %vm4287, %v4456, %v4455
        %v4458 = vrot.slane %v3483, 1
        %v4459 = vsel %vm4290, %v4458, %v4457
        %v4460 = vrot.slane %v3292, 7
        %v4461 = vsel %vm4272, %v4460, %v3260
        %v4462 = vrot.slane %v3324, 6
        %v4463 = vsel %vm4275, %v4462, %v4461
        %v4464 = vrot.slane %v3356, 5
        %v4465 = vsel %vm4278, %v4464, %v4463
        %v4466 = vrot.slane %v3388, 4
        %v4467 = vsel %vm4281, %v4466, %v4465
        %v4468 = vrot.slane %v3420, 3
        %v4469 = vsel %vm4284, %v4468, %v4467
        %v4470 = vrot.slane %v3452, 2
        %v4471 = vsel %vm4287, %v4470, %v4469
        %v4472 = vrot.slane %v3484, 1
        %v4473 = vsel %vm4290, %v4472, %v4471
        %v4474 = vrot.slane %v3293, 7
        %v4475 = vsel %vm4272, %v4474, %v3261
        %v4476 = vrot.slane %v3325, 6
        %v4477 = vsel %vm4275, %v4476, %v4475
        %v4478 = vrot.slane %v3357, 5
        %v4479 = vsel %vm4278, %v4478, %v4477
        %v4480 = vrot.slane %v3389, 4
        %v4481 = vsel %vm4281, %v4480, %v4479
        %v4482 = vrot.slane %v3421, 3
        %v4483 = vsel %vm4284, %v4482, %v4481
        %v4484 = vrot.slane %v3453, 2
        %v4485 = vsel %vm4287, %v4484, %v4483
        %v4486 = vrot.slane %v3485, 1
        %v4487 = vsel %vm4290, %v4486, %v4485
        %v4488 = vrot.slane %v3294, 7
        %v4489 = vsel %vm4272, %v4488, %v3262
        %v4490 = vrot.slane %v3326, 6
        %v4491 = vsel %vm4275, %v4490, %v4489
        %v4492 = vrot.slane %v3358, 5
        %v4493 = vsel %vm4278, %v4492, %v4491
        %v4494 = vrot.slane %v3390, 4
        %v4495 = vsel %vm4281, %v4494, %v4493
        %v4496 = vrot.slane %v3422, 3
        %v4497 = vsel %vm4284, %v4496, %v4495
        %v4498 = vrot.slane %v3454, 2
        %v4499 = vsel %vm4287, %v4498, %v4497
        %v4500 = vrot.slane %v3486, 1
        %v4501 = vsel %vm4290, %v4500, %v4499
        %v4502 = vrot.slane %v3295, 7
        %v4503 = vsel %vm4272, %v4502, %v3263
        %v4504 = vrot.slane %v3327, 6
        %v4505 = vsel %vm4275, %v4504, %v4503
        %v4506 = vrot.slane %v3359, 5
        %v4507 = vsel %vm4278, %v4506, %v4505
        %v4508 = vrot.slane %v3391, 4
        %v4509 = vsel %vm4281, %v4508, %v4507
        %v4510 = vrot.slane %v3423, 3
        %v4511 = vsel %vm4284, %v4510, %v4509
        %v4512 = vrot.slane %v3455, 2
        %v4513 = vsel %vm4287, %v4512, %v4511
        %v4514 = vrot.slane %v3487, 1
        %v4515 = vsel %vm4290, %v4514, %v4513
        %v4516 = vrot.slane %v3296, 7
        %v4517 = vsel %vm4272, %v4516, %v3264
        %v4518 = vrot.slane %v3328, 6
        %v4519 = vsel %vm4275, %v4518, %v4517
        %v4520 = vrot.slane %v3360, 5
        %v4521 = vsel %vm4278, %v4520, %v4519
        %v4522 = vrot.slane %v3392, 4
        %v4523 = vsel %vm4281, %v4522, %v4521
        %v4524 = vrot.slane %v3424, 3
        %v4525 = vsel %vm4284, %v4524, %v4523
        %v4526 = vrot.slane %v3456, 2
        %v4527 = vsel %vm4287, %v4526, %v4525
        %v4528 = vrot.slane %v3488, 1
        %v4529 = vsel %vm4290, %v4528, %v4527
        %v4530 = vrot.slane %v3297, 7
        %v4531 = vsel %vm4272, %v4530, %v3265
        %v4532 = vrot.slane %v3329, 6
        %v4533 = vsel %vm4275, %v4532, %v4531
        %v4534 = vrot.slane %v3361, 5
        %v4535 = vsel %vm4278, %v4534, %v4533
        %v4536 = vrot.slane %v3393, 4
        %v4537 = vsel %vm4281, %v4536, %v4535
        %v4538 = vrot.slane %v3425, 3
        %v4539 = vsel %vm4284, %v4538, %v4537
        %v4540 = vrot.slane %v3457, 2
        %v4541 = vsel %vm4287, %v4540, %v4539
        %v4542 = vrot.slane %v3489, 1
        %v4543 = vsel %vm4290, %v4542, %v4541
        %v4544 = vrot.slane %v3298, 7
        %v4545 = vsel %vm4272, %v4544, %v3266
        %v4546 = vrot.slane %v3330, 6
        %v4547 = vsel %vm4275, %v4546, %v4545
        %v4548 = vrot.slane %v3362, 5
        %v4549 = vsel %vm4278, %v4548, %v4547
        %v4550 = vrot.slane %v3394, 4
        %v4551 = vsel %vm4281, %v4550, %v4549
        %v4552 = vrot.slane %v3426, 3
        %v4553 = vsel %vm4284, %v4552, %v4551
        %v4554 = vrot.slane %v3458, 2
        %v4555 = vsel %vm4287, %v4554, %v4553
        %v4556 = vrot.slane %v3490, 1
        %v4557 = vsel %vm4290, %v4556, %v4555
        %v4558 = vrot.slane %v3299, 7
        %v4559 = vsel %vm4272, %v4558, %v3267
        %v4560 = vrot.slane %v3331, 6
        %v4561 = vsel %vm4275, %v4560, %v4559
        %v4562 = vrot.slane %v3363, 5
        %v4563 = vsel %vm4278, %v4562, %v4561
        %v4564 = vrot.slane %v3395, 4
        %v4565 = vsel %vm4281, %v4564, %v4563
        %v4566 = vrot.slane %v3427, 3
        %v4567 = vsel %vm4284, %v4566, %v4565
        %v4568 = vrot.slane %v3459, 2
        %v4569 = vsel %vm4287, %v4568, %v4567
        %v4570 = vrot.slane %v3491, 1
        %v4571 = vsel %vm4290, %v4570, %v4569
        %v4572 = vrot.slane %v3300, 7
        %v4573 = vsel %vm4272, %v4572, %v3268
        %v4574 = vrot.slane %v3332, 6
        %v4575 = vsel %vm4275, %v4574, %v4573
        %v4576 = vrot.slane %v3364, 5
        %v4577 = vsel %vm4278, %v4576, %v4575
        %v4578 = vrot.slane %v3396, 4
        %v4579 = vsel %vm4281, %v4578, %v4577
        %v4580 = vrot.slane %v3428, 3
        %v4581 = vsel %vm4284, %v4580, %v4579
        %v4582 = vrot.slane %v3460, 2
        %v4583 = vsel %vm4287, %v4582, %v4581
        %v4584 = vrot.slane %v3492, 1
        %v4585 = vsel %vm4290, %v4584, %v4583
        %v4586 = vrot.slane %v3301, 7
        %v4587 = vsel %vm4272, %v4586, %v3269
        %v4588 = vrot.slane %v3333, 6
        %v4589 = vsel %vm4275, %v4588, %v4587
        %v4590 = vrot.slane %v3365, 5
        %v4591 = vsel %vm4278, %v4590, %v4589
        %v4592 = vrot.slane %v3397, 4
        %v4593 = vsel %vm4281, %v4592, %v4591
        %v4594 = vrot.slane %v3429, 3
        %v4595 = vsel %vm4284, %v4594, %v4593
        %v4596 = vrot.slane %v3461, 2
        %v4597 = vsel %vm4287, %v4596, %v4595
        %v4598 = vrot.slane %v3493, 1
        %v4599 = vsel %vm4290, %v4598, %v4597
        %v4600 = vrot.slane %v3302, 7
        %v4601 = vsel %vm4272, %v4600, %v3270
        %v4602 = vrot.slane %v3334, 6
        %v4603 = vsel %vm4275, %v4602, %v4601
        %v4604 = vrot.slane %v3366, 5
        %v4605 = vsel %vm4278, %v4604, %v4603
        %v4606 = vrot.slane %v3398, 4
        %v4607 = vsel %vm4281, %v4606, %v4605
        %v4608 = vrot.slane %v3430, 3
        %v4609 = vsel %vm4284, %v4608, %v4607
        %v4610 = vrot.slane %v3462, 2
        %v4611 = vsel %vm4287, %v4610, %v4609
        %v4612 = vrot.slane %v3494, 1
        %v4613 = vsel %vm4290, %v4612, %v4611
        %v4614 = vrot.slane %v3303, 7
        %v4615 = vsel %vm4272, %v4614, %v3271
        %v4616 = vrot.slane %v3335, 6
        %v4617 = vsel %vm4275, %v4616, %v4615
        %v4618 = vrot.slane %v3367, 5
        %v4619 = vsel %vm4278, %v4618, %v4617
        %v4620 = vrot.slane %v3399, 4
        %v4621 = vsel %vm4281, %v4620, %v4619
        %v4622 = vrot.slane %v3431, 3
        %v4623 = vsel %vm4284, %v4622, %v4621
        %v4624 = vrot.slane %v3463, 2
        %v4625 = vsel %vm4287, %v4624, %v4623
        %v4626 = vrot.slane %v3495, 1
        %v4627 = vsel %vm4290, %v4626, %v4625
        %v4628 = vrot.slane %v3304, 7
        %v4629 = vsel %vm4272, %v4628, %v3272
        %v4630 = vrot.slane %v3336, 6
        %v4631 = vsel %vm4275, %v4630, %v4629
        %v4632 = vrot.slane %v3368, 5
        %v4633 = vsel %vm4278, %v4632, %v4631
        %v4634 = vrot.slane %v3400, 4
        %v4635 = vsel %vm4281, %v4634, %v4633
        %v4636 = vrot.slane %v3432, 3
        %v4637 = vsel %vm4284, %v4636, %v4635
        %v4638 = vrot.slane %v3464, 2
        %v4639 = vsel %vm4287, %v4638, %v4637
        %v4640 = vrot.slane %v3496, 1
        %v4641 = vsel %vm4290, %v4640, %v4639
        %v4642 = vrot.slane %v3305, 7
        %v4643 = vsel %vm4272, %v4642, %v3273
        %v4644 = vrot.slane %v3337, 6
        %v4645 = vsel %vm4275, %v4644, %v4643
        %v4646 = vrot.slane %v3369, 5
        %v4647 = vsel %vm4278, %v4646, %v4645
        %v4648 = vrot.slane %v3401, 4
        %v4649 = vsel %vm4281, %v4648, %v4647
        %v4650 = vrot.slane %v3433, 3
        %v4651 = vsel %vm4284, %v4650, %v4649
        %v4652 = vrot.slane %v3465, 2
        %v4653 = vsel %vm4287, %v4652, %v4651
        %v4654 = vrot.slane %v3497, 1
        %v4655 = vsel %vm4290, %v4654, %v4653
        %v4656 = vrot.slane %v3306, 7
        %v4657 = vsel %vm4272, %v4656, %v3274
        %v4658 = vrot.slane %v3338, 6
        %v4659 = vsel %vm4275, %v4658, %v4657
        %v4660 = vrot.slane %v3370, 5
        %v4661 = vsel %vm4278, %v4660, %v4659
        %v4662 = vrot.slane %v3402, 4
        %v4663 = vsel %vm4281, %v4662, %v4661
        %v4664 = vrot.slane %v3434, 3
        %v4665 = vsel %vm4284, %v4664, %v4663
        %v4666 = vrot.slane %v3466, 2
        %v4667 = vsel %vm4287, %v4666, %v4665
        %v4668 = vrot.slane %v3498, 1
        %v4669 = vsel %vm4290, %v4668, %v4667
        %v4670 = vrot.slane %v3307, 7
        %v4671 = vsel %vm4272, %v4670, %v3275
        %v4672 = vrot.slane %v3339, 6
        %v4673 = vsel %vm4275, %v4672, %v4671
        %v4674 = vrot.slane %v3371, 5
        %v4675 = vsel %vm4278, %v4674, %v4673
        %v4676 = vrot.slane %v3403, 4
        %v4677 = vsel %vm4281, %v4676, %v4675
        %v4678 = vrot.slane %v3435, 3
        %v4679 = vsel %vm4284, %v4678, %v4677
        %v4680 = vrot.slane %v3467, 2
        %v4681 = vsel %vm4287, %v4680, %v4679
        %v4682 = vrot.slane %v3499, 1
        %v4683 = vsel %vm4290, %v4682, %v4681
        %v4684 = vrot.slane %v3308, 7
        %v4685 = vsel %vm4272, %v4684, %v3276
        %v4686 = vrot.slane %v3340, 6
        %v4687 = vsel %vm4275, %v4686, %v4685
        %v4688 = vrot.slane %v3372, 5
        %v4689 = vsel %vm4278, %v4688, %v4687
        %v4690 = vrot.slane %v3404, 4
        %v4691 = vsel %vm4281, %v4690, %v4689
        %v4692 = vrot.slane %v3436, 3
        %v4693 = vsel %vm4284, %v4692, %v4691
        %v4694 = vrot.slane %v3468, 2
        %v4695 = vsel %vm4287, %v4694, %v4693
        %v4696 = vrot.slane %v3500, 1
        %v4697 = vsel %vm4290, %v4696, %v4695
        %v4698 = vrot.slane %v3309, 7
        %v4699 = vsel %vm4272, %v4698, %v3277
        %v4700 = vrot.slane %v3341, 6
        %v4701 = vsel %vm4275, %v4700, %v4699
        %v4702 = vrot.slane %v3373, 5
        %v4703 = vsel %vm4278, %v4702, %v4701
        %v4704 = vrot.slane %v3405, 4
        %v4705 = vsel %vm4281, %v4704, %v4703
        %v4706 = vrot.slane %v3437, 3
        %v4707 = vsel %vm4284, %v4706, %v4705
        %v4708 = vrot.slane %v3469, 2
        %v4709 = vsel %vm4287, %v4708, %v4707
        %v4710 = vrot.slane %v3501, 1
        %v4711 = vsel %vm4290, %v4710, %v4709
        %v4712 = vrot.slane %v3310, 7
        %v4713 = vsel %vm4272, %v4712, %v3278
        %v4714 = vrot.slane %v3342, 6
        %v4715 = vsel %vm4275, %v4714, %v4713
        %v4716 = vrot.slane %v3374, 5
        %v4717 = vsel %vm4278, %v4716, %v4715
        %v4718 = vrot.slane %v3406, 4
        %v4719 = vsel %vm4281, %v4718, %v4717
        %v4720 = vrot.slane %v3438, 3
        %v4721 = vsel %vm4284, %v4720, %v4719
        %v4722 = vrot.slane %v3470, 2
        %v4723 = vsel %vm4287, %v4722, %v4721
        %v4724 = vrot.slane %v3502, 1
        %v4725 = vsel %vm4290, %v4724, %v4723
        %v4726 = vrot.slane %v3535, 7
        %v4727 = vsel %vm4272, %v4726, %v3503
        %v4728 = vrot.slane %v3567, 6
        %v4729 = vsel %vm4275, %v4728, %v4727
        %v4730 = vrot.slane %v3599, 5
        %v4731 = vsel %vm4278, %v4730, %v4729
        %v4732 = vrot.slane %v3631, 4
        %v4733 = vsel %vm4281, %v4732, %v4731
        %v4734 = vrot.slane %v3663, 3
        %v4735 = vsel %vm4284, %v4734, %v4733
        %v4736 = vrot.slane %v3695, 2
        %v4737 = vsel %vm4287, %v4736, %v4735
        %v4738 = vrot.slane %v3727, 1
        %v4739 = vsel %vm4290, %v4738, %v4737
        %v4740 = vrot.slane %v3536, 7
        %v4741 = vsel %vm4272, %v4740, %v3504
        %v4742 = vrot.slane %v3568, 6
        %v4743 = vsel %vm4275, %v4742, %v4741
        %v4744 = vrot.slane %v3600, 5
        %v4745 = vsel %vm4278, %v4744, %v4743
        %v4746 = vrot.slane %v3632, 4
        %v4747 = vsel %vm4281, %v4746, %v4745
        %v4748 = vrot.slane %v3664, 3
        %v4749 = vsel %vm4284, %v4748, %v4747
        %v4750 = vrot.slane %v3696, 2
        %v4751 = vsel %vm4287, %v4750, %v4749
        %v4752 = vrot.slane %v3728, 1
        %v4753 = vsel %vm4290, %v4752, %v4751
        %v4754 = vrot.slane %v3537, 7
        %v4755 = vsel %vm4272, %v4754, %v3505
        %v4756 = vrot.slane %v3569, 6
        %v4757 = vsel %vm4275, %v4756, %v4755
        %v4758 = vrot.slane %v3601, 5
        %v4759 = vsel %vm4278, %v4758, %v4757
        %v4760 = vrot.slane %v3633, 4
        %v4761 = vsel %vm4281, %v4760, %v4759
        %v4762 = vrot.slane %v3665, 3
        %v4763 = vsel %vm4284, %v4762, %v4761
        %v4764 = vrot.slane %v3697, 2
        %v4765 = vsel %vm4287, %v4764, %v4763
        %v4766 = vrot.slane %v3729, 1
        %v4767 = vsel %vm4290, %v4766, %v4765
        %v4768 = vrot.slane %v3538, 7
        %v4769 = vsel %vm4272, %v4768, %v3506
        %v4770 = vrot.slane %v3570, 6
        %v4771 = vsel %vm4275, %v4770, %v4769
        %v4772 = vrot.slane %v3602, 5
        %v4773 = vsel %vm4278, %v4772, %v4771
        %v4774 = vrot.slane %v3634, 4
        %v4775 = vsel %vm4281, %v4774, %v4773
        %v4776 = vrot.slane %v3666, 3
        %v4777 = vsel %vm4284, %v4776, %v4775
        %v4778 = vrot.slane %v3698, 2
        %v4779 = vsel %vm4287, %v4778, %v4777
        %v4780 = vrot.slane %v3730, 1
        %v4781 = vsel %vm4290, %v4780, %v4779
        %v4782 = vrot.slane %v3539, 7
        %v4783 = vsel %vm4272, %v4782, %v3507
        %v4784 = vrot.slane %v3571, 6
        %v4785 = vsel %vm4275, %v4784, %v4783
        %v4786 = vrot.slane %v3603, 5
        %v4787 = vsel %vm4278, %v4786, %v4785
        %v4788 = vrot.slane %v3635, 4
        %v4789 = vsel %vm4281, %v4788, %v4787
        %v4790 = vrot.slane %v3667, 3
        %v4791 = vsel %vm4284, %v4790, %v4789
        %v4792 = vrot.slane %v3699, 2
        %v4793 = vsel %vm4287, %v4792, %v4791
        %v4794 = vrot.slane %v3731, 1
        %v4795 = vsel %vm4290, %v4794, %v4793
        %v4796 = vrot.slane %v3540, 7
        %v4797 = vsel %vm4272, %v4796, %v3508
        %v4798 = vrot.slane %v3572, 6
        %v4799 = vsel %vm4275, %v4798, %v4797
        %v4800 = vrot.slane %v3604, 5
        %v4801 = vsel %vm4278, %v4800, %v4799
        %v4802 = vrot.slane %v3636, 4
        %v4803 = vsel %vm4281, %v4802, %v4801
        %v4804 = vrot.slane %v3668, 3
        %v4805 = vsel %vm4284, %v4804, %v4803
        %v4806 = vrot.slane %v3700, 2
        %v4807 = vsel %vm4287, %v4806, %v4805
        %v4808 = vrot.slane %v3732, 1
        %v4809 = vsel %vm4290, %v4808, %v4807
        %v4810 = vrot.slane %v3541, 7
        %v4811 = vsel %vm4272, %v4810, %v3509
        %v4812 = vrot.slane %v3573, 6
        %v4813 = vsel %vm4275, %v4812, %v4811
        %v4814 = vrot.slane %v3605, 5
        %v4815 = vsel %vm4278, %v4814, %v4813
        %v4816 = vrot.slane %v3637, 4
        %v4817 = vsel %vm4281, %v4816, %v4815
        %v4818 = vrot.slane %v3669, 3
        %v4819 = vsel %vm4284, %v4818, %v4817
        %v4820 = vrot.slane %v3701, 2
        %v4821 = vsel %vm4287, %v4820, %v4819
        %v4822 = vrot.slane %v3733, 1
        %v4823 = vsel %vm4290, %v4822, %v4821
        %v4824 = vrot.slane %v3542, 7
        %v4825 = vsel %vm4272, %v4824, %v3510
        %v4826 = vrot.slane %v3574, 6
        %v4827 = vsel %vm4275, %v4826, %v4825
        %v4828 = vrot.slane %v3606, 5
        %v4829 = vsel %vm4278, %v4828, %v4827
        %v4830 = vrot.slane %v3638, 4
        %v4831 = vsel %vm4281, %v4830, %v4829
        %v4832 = vrot.slane %v3670, 3
        %v4833 = vsel %vm4284, %v4832, %v4831
        %v4834 = vrot.slane %v3702, 2
        %v4835 = vsel %vm4287, %v4834, %v4833
        %v4836 = vrot.slane %v3734, 1
        %v4837 = vsel %vm4290, %v4836, %v4835
        %v4838 = vrot.slane %v3543, 7
        %v4839 = vsel %vm4272, %v4838, %v3511
        %v4840 = vrot.slane %v3575, 6
        %v4841 = vsel %vm4275, %v4840, %v4839
        %v4842 = vrot.slane %v3607, 5
        %v4843 = vsel %vm4278, %v4842, %v4841
        %v4844 = vrot.slane %v3639, 4
        %v4845 = vsel %vm4281, %v4844, %v4843
        %v4846 = vrot.slane %v3671, 3
        %v4847 = vsel %vm4284, %v4846, %v4845
        %v4848 = vrot.slane %v3703, 2
        %v4849 = vsel %vm4287, %v4848, %v4847
        %v4850 = vrot.slane %v3735, 1
        %v4851 = vsel %vm4290, %v4850, %v4849
        %v4852 = vrot.slane %v3544, 7
        %v4853 = vsel %vm4272, %v4852, %v3512
        %v4854 = vrot.slane %v3576, 6
        %v4855 = vsel %vm4275, %v4854, %v4853
        %v4856 = vrot.slane %v3608, 5
        %v4857 = vsel %vm4278, %v4856, %v4855
        %v4858 = vrot.slane %v3640, 4
        %v4859 = vsel %vm4281, %v4858, %v4857
        %v4860 = vrot.slane %v3672, 3
        %v4861 = vsel %vm4284, %v4860, %v4859
        %v4862 = vrot.slane %v3704, 2
        %v4863 = vsel %vm4287, %v4862, %v4861
        %v4864 = vrot.slane %v3736, 1
        %v4865 = vsel %vm4290, %v4864, %v4863
        %v4866 = vrot.slane %v3545, 7
        %v4867 = vsel %vm4272, %v4866, %v3513
        %v4868 = vrot.slane %v3577, 6
        %v4869 = vsel %vm4275, %v4868, %v4867
        %v4870 = vrot.slane %v3609, 5
        %v4871 = vsel %vm4278, %v4870, %v4869
        %v4872 = vrot.slane %v3641, 4
        %v4873 = vsel %vm4281, %v4872, %v4871
        %v4874 = vrot.slane %v3673, 3
        %v4875 = vsel %vm4284, %v4874, %v4873
        %v4876 = vrot.slane %v3705, 2
        %v4877 = vsel %vm4287, %v4876, %v4875
        %v4878 = vrot.slane %v3737, 1
        %v4879 = vsel %vm4290, %v4878, %v4877
        %v4880 = vrot.slane %v3546, 7
        %v4881 = vsel %vm4272, %v4880, %v3514
        %v4882 = vrot.slane %v3578, 6
        %v4883 = vsel %vm4275, %v4882, %v4881
        %v4884 = vrot.slane %v3610, 5
        %v4885 = vsel %vm4278, %v4884, %v4883
        %v4886 = vrot.slane %v3642, 4
        %v4887 = vsel %vm4281, %v4886, %v4885
        %v4888 = vrot.slane %v3674, 3
        %v4889 = vsel %vm4284, %v4888, %v4887
        %v4890 = vrot.slane %v3706, 2
        %v4891 = vsel %vm4287, %v4890, %v4889
        %v4892 = vrot.slane %v3738, 1
        %v4893 = vsel %vm4290, %v4892, %v4891
        %v4894 = vrot.slane %v3547, 7
        %v4895 = vsel %vm4272, %v4894, %v3515
        %v4896 = vrot.slane %v3579, 6
        %v4897 = vsel %vm4275, %v4896, %v4895
        %v4898 = vrot.slane %v3611, 5
        %v4899 = vsel %vm4278, %v4898, %v4897
        %v4900 = vrot.slane %v3643, 4
        %v4901 = vsel %vm4281, %v4900, %v4899
        %v4902 = vrot.slane %v3675, 3
        %v4903 = vsel %vm4284, %v4902, %v4901
        %v4904 = vrot.slane %v3707, 2
        %v4905 = vsel %vm4287, %v4904, %v4903
        %v4906 = vrot.slane %v3739, 1
        %v4907 = vsel %vm4290, %v4906, %v4905
        %v4908 = vrot.slane %v3548, 7
        %v4909 = vsel %vm4272, %v4908, %v3516
        %v4910 = vrot.slane %v3580, 6
        %v4911 = vsel %vm4275, %v4910, %v4909
        %v4912 = vrot.slane %v3612, 5
        %v4913 = vsel %vm4278, %v4912, %v4911
        %v4914 = vrot.slane %v3644, 4
        %v4915 = vsel %vm4281, %v4914, %v4913
        %v4916 = vrot.slane %v3676, 3
        %v4917 = vsel %vm4284, %v4916, %v4915
        %v4918 = vrot.slane %v3708, 2
        %v4919 = vsel %vm4287, %v4918, %v4917
        %v4920 = vrot.slane %v3740, 1
        %v4921 = vsel %vm4290, %v4920, %v4919
        %v4922 = vrot.slane %v3549, 7
        %v4923 = vsel %vm4272, %v4922, %v3517
        %v4924 = vrot.slane %v3581, 6
        %v4925 = vsel %vm4275, %v4924, %v4923
        %v4926 = vrot.slane %v3613, 5
        %v4927 = vsel %vm4278, %v4926, %v4925
        %v4928 = vrot.slane %v3645, 4
        %v4929 = vsel %vm4281, %v4928, %v4927
        %v4930 = vrot.slane %v3677, 3
        %v4931 = vsel %vm4284, %v4930, %v4929
        %v4932 = vrot.slane %v3709, 2
        %v4933 = vsel %vm4287, %v4932, %v4931
        %v4934 = vrot.slane %v3741, 1
        %v4935 = vsel %vm4290, %v4934, %v4933
        %v4936 = vrot.slane %v3550, 7
        %v4937 = vsel %vm4272, %v4936, %v3518
        %v4938 = vrot.slane %v3582, 6
        %v4939 = vsel %vm4275, %v4938, %v4937
        %v4940 = vrot.slane %v3614, 5
        %v4941 = vsel %vm4278, %v4940, %v4939
        %v4942 = vrot.slane %v3646, 4
        %v4943 = vsel %vm4281, %v4942, %v4941
        %v4944 = vrot.slane %v3678, 3
        %v4945 = vsel %vm4284, %v4944, %v4943
        %v4946 = vrot.slane %v3710, 2
        %v4947 = vsel %vm4287, %v4946, %v4945
        %v4948 = vrot.slane %v3742, 1
        %v4949 = vsel %vm4290, %v4948, %v4947
        %v4950 = vrot.slane %v3551, 7
        %v4951 = vsel %vm4272, %v4950, %v3519
        %v4952 = vrot.slane %v3583, 6
        %v4953 = vsel %vm4275, %v4952, %v4951
        %v4954 = vrot.slane %v3615, 5
        %v4955 = vsel %vm4278, %v4954, %v4953
        %v4956 = vrot.slane %v3647, 4
        %v4957 = vsel %vm4281, %v4956, %v4955
        %v4958 = vrot.slane %v3679, 3
        %v4959 = vsel %vm4284, %v4958, %v4957
        %v4960 = vrot.slane %v3711, 2
        %v4961 = vsel %vm4287, %v4960, %v4959
        %v4962 = vrot.slane %v3743, 1
        %v4963 = vsel %vm4290, %v4962, %v4961
        %v4964 = vrot.slane %v3552, 7
        %v4965 = vsel %vm4272, %v4964, %v3520
        %v4966 = vrot.slane %v3584, 6
        %v4967 = vsel %vm4275, %v4966, %v4965
        %v4968 = vrot.slane %v3616, 5
        %v4969 = vsel %vm4278, %v4968, %v4967
        %v4970 = vrot.slane %v3648, 4
        %v4971 = vsel %vm4281, %v4970, %v4969
        %v4972 = vrot.slane %v3680, 3
        %v4973 = vsel %vm4284, %v4972, %v4971
        %v4974 = vrot.slane %v3712, 2
        %v4975 = vsel %vm4287, %v4974, %v4973
        %v4976 = vrot.slane %v3744, 1
        %v4977 = vsel %vm4290, %v4976, %v4975
        %v4978 = vrot.slane %v3553, 7
        %v4979 = vsel %vm4272, %v4978, %v3521
        %v4980 = vrot.slane %v3585, 6
        %v4981 = vsel %vm4275, %v4980, %v4979
        %v4982 = vrot.slane %v3617, 5
        %v4983 = vsel %vm4278, %v4982, %v4981
        %v4984 = vrot.slane %v3649, 4
        %v4985 = vsel %vm4281, %v4984, %v4983
        %v4986 = vrot.slane %v3681, 3
        %v4987 = vsel %vm4284, %v4986, %v4985
        %v4988 = vrot.slane %v3713, 2
        %v4989 = vsel %vm4287, %v4988, %v4987
        %v4990 = vrot.slane %v3745, 1
        %v4991 = vsel %vm4290, %v4990, %v4989
        %v4992 = vrot.slane %v3554, 7
        %v4993 = vsel %vm4272, %v4992, %v3522
        %v4994 = vrot.slane %v3586, 6
        %v4995 = vsel %vm4275, %v4994, %v4993
        %v4996 = vrot.slane %v3618, 5
        %v4997 = vsel %vm4278, %v4996, %v4995
        %v4998 = vrot.slane %v3650, 4
        %v4999 = vsel %vm4281, %v4998, %v4997
        %v5000 = vrot.slane %v3682, 3
        %v5001 = vsel %vm4284, %v5000, %v4999
        %v5002 = vrot.slane %v3714, 2
        %v5003 = vsel %vm4287, %v5002, %v5001
        %v5004 = vrot.slane %v3746, 1
        %v5005 = vsel %vm4290, %v5004, %v5003
        %v5006 = vrot.slane %v3555, 7
        %v5007 = vsel %vm4272, %v5006, %v3523
        %v5008 = vrot.slane %v3587, 6
        %v5009 = vsel %vm4275, %v5008, %v5007
        %v5010 = vrot.slane %v3619, 5
        %v5011 = vsel %vm4278, %v5010, %v5009
        %v5012 = vrot.slane %v3651, 4
        %v5013 = vsel %vm4281, %v5012, %v5011
        %v5014 = vrot.slane %v3683, 3
        %v5015 = vsel %vm4284, %v5014, %v5013
        %v5016 = vrot.slane %v3715, 2
        %v5017 = vsel %vm4287, %v5016, %v5015
        %v5018 = vrot.slane %v3747, 1
        %v5019 = vsel %vm4290, %v5018, %v5017
        %v5020 = vrot.slane %v3556, 7
        %v5021 = vsel %vm4272, %v5020, %v3524
        %v5022 = vrot.slane %v3588, 6
        %v5023 = vsel %vm4275, %v5022, %v5021
        %v5024 = vrot.slane %v3620, 5
        %v5025 = vsel %vm4278, %v5024, %v5023
        %v5026 = vrot.slane %v3652, 4
        %v5027 = vsel %vm4281, %v5026, %v5025
        %v5028 = vrot.slane %v3684, 3
        %v5029 = vsel %vm4284, %v5028, %v5027
        %v5030 = vrot.slane %v3716, 2
        %v5031 = vsel %vm4287, %v5030, %v5029
        %v5032 = vrot.slane %v3748, 1
        %v5033 = vsel %vm4290, %v5032, %v5031
        %v5034 = vrot.slane %v3557, 7
        %v5035 = vsel %vm4272, %v5034, %v3525
        %v5036 = vrot.slane %v3589, 6
        %v5037 = vsel %vm4275, %v5036, %v5035
        %v5038 = vrot.slane %v3621, 5
        %v5039 = vsel %vm4278, %v5038, %v5037
        %v5040 = vrot.slane %v3653, 4
        %v5041 = vsel %vm4281, %v5040, %v5039
        %v5042 = vrot.slane %v3685, 3
        %v5043 = vsel %vm4284, %v5042, %v5041
        %v5044 = vrot.slane %v3717, 2
        %v5045 = vsel %vm4287, %v5044, %v5043
        %v5046 = vrot.slane %v3749, 1
        %v5047 = vsel %vm4290, %v5046, %v5045
        %v5048 = vrot.slane %v3558, 7
        %v5049 = vsel %vm4272, %v5048, %v3526
        %v5050 = vrot.slane %v3590, 6
        %v5051 = vsel %vm4275, %v5050, %v5049
        %v5052 = vrot.slane %v3622, 5
        %v5053 = vsel %vm4278, %v5052, %v5051
        %v5054 = vrot.slane %v3654, 4
        %v5055 = vsel %vm4281, %v5054, %v5053
        %v5056 = vrot.slane %v3686, 3
        %v5057 = vsel %vm4284, %v5056, %v5055
        %v5058 = vrot.slane %v3718, 2
        %v5059 = vsel %vm4287, %v5058, %v5057
        %v5060 = vrot.slane %v3750, 1
        %v5061 = vsel %vm4290, %v5060, %v5059
        %v5062 = vrot.slane %v3559, 7
        %v5063 = vsel %vm4272, %v5062, %v3527
        %v5064 = vrot.slane %v3591, 6
        %v5065 = vsel %vm4275, %v5064, %v5063
        %v5066 = vrot.slane %v3623, 5
        %v5067 = vsel %vm4278, %v5066, %v5065
        %v5068 = vrot.slane %v3655, 4
        %v5069 = vsel %vm4281, %v5068, %v5067
        %v5070 = vrot.slane %v3687, 3
        %v5071 = vsel %vm4284, %v5070, %v5069
        %v5072 = vrot.slane %v3719, 2
        %v5073 = vsel %vm4287, %v5072, %v5071
        %v5074 = vrot.slane %v3751, 1
        %v5075 = vsel %vm4290, %v5074, %v5073
        %v5076 = vrot.slane %v3560, 7
        %v5077 = vsel %vm4272, %v5076, %v3528
        %v5078 = vrot.slane %v3592, 6
        %v5079 = vsel %vm4275, %v5078, %v5077
        %v5080 = vrot.slane %v3624, 5
        %v5081 = vsel %vm4278, %v5080, %v5079
        %v5082 = vrot.slane %v3656, 4
        %v5083 = vsel %vm4281, %v5082, %v5081
        %v5084 = vrot.slane %v3688, 3
        %v5085 = vsel %vm4284, %v5084, %v5083
        %v5086 = vrot.slane %v3720, 2
        %v5087 = vsel %vm4287, %v5086, %v5085
        %v5088 = vrot.slane %v3752, 1
        %v5089 = vsel %vm4290, %v5088, %v5087
        %v5090 = vrot.slane %v3561, 7
        %v5091 = vsel %vm4272, %v5090, %v3529
        %v5092 = vrot.slane %v3593, 6
        %v5093 = vsel %vm4275, %v5092, %v5091
        %v5094 = vrot.slane %v3625, 5
        %v5095 = vsel %vm4278, %v5094, %v5093
        %v5096 = vrot.slane %v3657, 4
        %v5097 = vsel %vm4281, %v5096, %v5095
        %v5098 = vrot.slane %v3689, 3
        %v5099 = vsel %vm4284, %v5098, %v5097
        %v5100 = vrot.slane %v3721, 2
        %v5101 = vsel %vm4287, %v5100, %v5099
        %v5102 = vrot.slane %v3753, 1
        %v5103 = vsel %vm4290, %v5102, %v5101
        %v5104 = vrot.slane %v3562, 7
        %v5105 = vsel %vm4272, %v5104, %v3530
        %v5106 = vrot.slane %v3594, 6
        %v5107 = vsel %vm4275, %v5106, %v5105
        %v5108 = vrot.slane %v3626, 5
        %v5109 = vsel %vm4278, %v5108, %v5107
        %v5110 = vrot.slane %v3658, 4
        %v5111 = vsel %vm4281, %v5110, %v5109
        %v5112 = vrot.slane %v3690, 3
        %v5113 = vsel %vm4284, %v5112, %v5111
        %v5114 = vrot.slane %v3722, 2
        %v5115 = vsel %vm4287, %v5114, %v5113
        %v5116 = vrot.slane %v3754, 1
        %v5117 = vsel %vm4290, %v5116, %v5115
        %v5118 = vrot.slane %v3563, 7
        %v5119 = vsel %vm4272, %v5118, %v3531
        %v5120 = vrot.slane %v3595, 6
        %v5121 = vsel %vm4275, %v5120, %v5119
        %v5122 = vrot.slane %v3627, 5
        %v5123 = vsel %vm4278, %v5122, %v5121
        %v5124 = vrot.slane %v3659, 4
        %v5125 = vsel %vm4281, %v5124, %v5123
        %v5126 = vrot.slane %v3691, 3
        %v5127 = vsel %vm4284, %v5126, %v5125
        %v5128 = vrot.slane %v3723, 2
        %v5129 = vsel %vm4287, %v5128, %v5127
        %v5130 = vrot.slane %v3755, 1
        %v5131 = vsel %vm4290, %v5130, %v5129
        %v5132 = vrot.slane %v3564, 7
        %v5133 = vsel %vm4272, %v5132, %v3532
        %v5134 = vrot.slane %v3596, 6
        %v5135 = vsel %vm4275, %v5134, %v5133
        %v5136 = vrot.slane %v3628, 5
        %v5137 = vsel %vm4278, %v5136, %v5135
        %v5138 = vrot.slane %v3660, 4
        %v5139 = vsel %vm4281, %v5138, %v5137
        %v5140 = vrot.slane %v3692, 3
        %v5141 = vsel %vm4284, %v5140, %v5139
        %v5142 = vrot.slane %v3724, 2
        %v5143 = vsel %vm4287, %v5142, %v5141
        %v5144 = vrot.slane %v3756, 1
        %v5145 = vsel %vm4290, %v5144, %v5143
        %v5146 = vrot.slane %v3565, 7
        %v5147 = vsel %vm4272, %v5146, %v3533
        %v5148 = vrot.slane %v3597, 6
        %v5149 = vsel %vm4275, %v5148, %v5147
        %v5150 = vrot.slane %v3629, 5
        %v5151 = vsel %vm4278, %v5150, %v5149
        %v5152 = vrot.slane %v3661, 4
        %v5153 = vsel %vm4281, %v5152, %v5151
        %v5154 = vrot.slane %v3693, 3
        %v5155 = vsel %vm4284, %v5154, %v5153
        %v5156 = vrot.slane %v3725, 2
        %v5157 = vsel %vm4287, %v5156, %v5155
        %v5158 = vrot.slane %v3757, 1
        %v5159 = vsel %vm4290, %v5158, %v5157
        %v5160 = vrot.slane %v3566, 7
        %v5161 = vsel %vm4272, %v5160, %v3534
        %v5162 = vrot.slane %v3598, 6
        %v5163 = vsel %vm4275, %v5162, %v5161
        %v5164 = vrot.slane %v3630, 5
        %v5165 = vsel %vm4278, %v5164, %v5163
        %v5166 = vrot.slane %v3662, 4
        %v5167 = vsel %vm4281, %v5166, %v5165
        %v5168 = vrot.slane %v3694, 3
        %v5169 = vsel %vm4284, %v5168, %v5167
        %v5170 = vrot.slane %v3726, 2
        %v5171 = vsel %vm4287, %v5170, %v5169
        %v5172 = vrot.slane %v3758, 1
        %v5173 = vsel %vm4290, %v5172, %v5171
        %v5238 = vmax.f32 %v4291, %v4319
        %v5239 = vmax.f32 %v4305, %v4333
        %v5240 = vmax.f32 %v5238, %v4347
        %v5241 = vmax.f32 %v5239, %v4361
        %v5242 = vmax.f32 %v5240, %v4375
        %v5243 = vmax.f32 %v5241, %v4389
        %v5244 = vmax.f32 %v5242, %v4403
        %v5245 = vmax.f32 %v5243, %v4417
        %v5246 = vmax.f32 %v5244, %v4431
        %v5247 = vmax.f32 %v5245, %v4445
        %v5248 = vmax.f32 %v5246, %v4459
        %v5249 = vmax.f32 %v5247, %v4473
        %v5250 = vmax.f32 %v5248, %v4487
        %v5251 = vmax.f32 %v5249, %v4501
        %v5252 = vmax.f32 %v5250, %v4515
        %v5253 = vmax.f32 %v5251, %v4529
        %v5254 = vmax.f32 %v5252, %v4543
        %v5255 = vmax.f32 %v5253, %v4557
        %v5256 = vmax.f32 %v5254, %v4571
        %v5257 = vmax.f32 %v5255, %v4585
        %v5258 = vmax.f32 %v5256, %v4599
        %v5259 = vmax.f32 %v5257, %v4613
        %v5260 = vmax.f32 %v5258, %v4627
        %v5261 = vmax.f32 %v5259, %v4641
        %v5262 = vmax.f32 %v5260, %v4655
        %v5263 = vmax.f32 %v5261, %v4669
        %v5264 = vmax.f32 %v5262, %v4683
        %v5265 = vmax.f32 %v5263, %v4697
        %v5266 = vmax.f32 %v5264, %v4711
        %v5267 = vmax.f32 %v5265, %v4725
        %v5268 = vmax.f32 %v5266, %v5267
        %5269 = vmax.xlane.f32.xlu0 %v5268
        %v5270 = vpop.xlane.xlu0 %5269
        %v5271 = vmax.f32 %v4739, %v4767
        %v5272 = vmax.f32 %v4753, %v4781
        %v5273 = vmax.f32 %v5271, %v4795
        %v5274 = vmax.f32 %v5272, %v4809
        %v5275 = vmax.f32 %v5273, %v4823
        %v5276 = vmax.f32 %v5274, %v4837
        %v5277 = vmax.f32 %v5275, %v4851
        %v5278 = vmax.f32 %v5276, %v4865
        %v5279 = vmax.f32 %v5277, %v4879
        %v5280 = vmax.f32 %v5278, %v4893
        %v5281 = vmax.f32 %v5279, %v4907
        %v5282 = vmax.f32 %v5280, %v4921
        %v5283 = vmax.f32 %v5281, %v4935
        %v5284 = vmax.f32 %v5282, %v4949
        %v5285 = vmax.f32 %v5283, %v4963
        %v5286 = vmax.f32 %v5284, %v4977
        %v5287 = vmax.f32 %v5285, %v4991
        %v5288 = vmax.f32 %v5286, %v5005
        %v5289 = vmax.f32 %v5287, %v5019
        %v5290 = vmax.f32 %v5288, %v5033
        %v5291 = vmax.f32 %v5289, %v5047
        %v5292 = vmax.f32 %v5290, %v5061
        %v5293 = vmax.f32 %v5291, %v5075
        %v5294 = vmax.f32 %v5292, %v5089
        %v5295 = vmax.f32 %v5293, %v5103
        %v5296 = vmax.f32 %v5294, %v5117
        %v5297 = vmax.f32 %v5295, %v5131
        %v5298 = vmax.f32 %v5296, %v5145
        %v5299 = vmax.f32 %v5297, %v5159
        %v5300 = vmax.f32 %v5298, %v5173
        %v5301 = vmax.f32 %v5299, %v5300
        %5302 = vmax.xlane.f32.xlu0 %v5301
        %v5303 = vpop.xlane.xlu0 %5302
        %v5304 = vrot.slane %v3247, 7
        %v5305 = vsel %vm4275, %v5304, %v3471
        %v5306 = vrot.slane %v3279, 6
        %v5307 = vsel %vm4278, %v5306, %v5305
        %v5308 = vrot.slane %v3311, 5
        %v5309 = vsel %vm4281, %v5308, %v5307
        %v5310 = vrot.slane %v3343, 4
        %v5311 = vsel %vm4284, %v5310, %v5309
        %v5312 = vrot.slane %v3375, 3
        %v5313 = vsel %vm4287, %v5312, %v5311
        %v5314 = vrot.slane %v3407, 2
        %v5315 = vsel %vm4290, %v5314, %v5313
        %v5316 = vrot.slane %v3248, 7
        %v5317 = vsel %vm4275, %v5316, %v3472
        %v5318 = vrot.slane %v3280, 6
        %v5319 = vsel %vm4278, %v5318, %v5317
        %v5320 = vrot.slane %v3312, 5
        %v5321 = vsel %vm4281, %v5320, %v5319
        %v5322 = vrot.slane %v3344, 4
        %v5323 = vsel %vm4284, %v5322, %v5321
        %v5324 = vrot.slane %v3376, 3
        %v5325 = vsel %vm4287, %v5324, %v5323
        %v5326 = vrot.slane %v3408, 2
        %v5327 = vsel %vm4290, %v5326, %v5325
        %v5328 = vrot.slane %v3249, 7
        %v5329 = vsel %vm4275, %v5328, %v3473
        %v5330 = vrot.slane %v3281, 6
        %v5331 = vsel %vm4278, %v5330, %v5329
        %v5332 = vrot.slane %v3313, 5
        %v5333 = vsel %vm4281, %v5332, %v5331
        %v5334 = vrot.slane %v3345, 4
        %v5335 = vsel %vm4284, %v5334, %v5333
        %v5336 = vrot.slane %v3377, 3
        %v5337 = vsel %vm4287, %v5336, %v5335
        %v5338 = vrot.slane %v3409, 2
        %v5339 = vsel %vm4290, %v5338, %v5337
        %v5340 = vrot.slane %v3250, 7
        %v5341 = vsel %vm4275, %v5340, %v3474
        %v5342 = vrot.slane %v3282, 6
        %v5343 = vsel %vm4278, %v5342, %v5341
        %v5344 = vrot.slane %v3314, 5
        %v5345 = vsel %vm4281, %v5344, %v5343
        %v5346 = vrot.slane %v3346, 4
        %v5347 = vsel %vm4284, %v5346, %v5345
        %v5348 = vrot.slane %v3378, 3
        %v5349 = vsel %vm4287, %v5348, %v5347
        %v5350 = vrot.slane %v3410, 2
        %v5351 = vsel %vm4290, %v5350, %v5349
        %v5352 = vrot.slane %v3251, 7
        %v5353 = vsel %vm4275, %v5352, %v3475
        %v5354 = vrot.slane %v3283, 6
        %v5355 = vsel %vm4278, %v5354, %v5353
        %v5356 = vrot.slane %v3315, 5
        %v5357 = vsel %vm4281, %v5356, %v5355
        %v5358 = vrot.slane %v3347, 4
        %v5359 = vsel %vm4284, %v5358, %v5357
        %v5360 = vrot.slane %v3379, 3
        %v5361 = vsel %vm4287, %v5360, %v5359
        %v5362 = vrot.slane %v3411, 2
        %v5363 = vsel %vm4290, %v5362, %v5361
        %v5364 = vrot.slane %v3252, 7
        %v5365 = vsel %vm4275, %v5364, %v3476
        %v5366 = vrot.slane %v3284, 6
        %v5367 = vsel %vm4278, %v5366, %v5365
        %v5368 = vrot.slane %v3316, 5
        %v5369 = vsel %vm4281, %v5368, %v5367
        %v5370 = vrot.slane %v3348, 4
        %v5371 = vsel %vm4284, %v5370, %v5369
        %v5372 = vrot.slane %v3380, 3
        %v5373 = vsel %vm4287, %v5372, %v5371
        %v5374 = vrot.slane %v3412, 2
        %v5375 = vsel %vm4290, %v5374, %v5373
        %v5376 = vrot.slane %v3253, 7
        %v5377 = vsel %vm4275, %v5376, %v3477
        %v5378 = vrot.slane %v3285, 6
        %v5379 = vsel %vm4278, %v5378, %v5377
        %v5380 = vrot.slane %v3317, 5
        %v5381 = vsel %vm4281, %v5380, %v5379
        %v5382 = vrot.slane %v3349, 4
        %v5383 = vsel %vm4284, %v5382, %v5381
        %v5384 = vrot.slane %v3381, 3
        %v5385 = vsel %vm4287, %v5384, %v5383
        %v5386 = vrot.slane %v3413, 2
        %v5387 = vsel %vm4290, %v5386, %v5385
        %v5388 = vrot.slane %v3254, 7
        %v5389 = vsel %vm4275, %v5388, %v3478
        %v5390 = vrot.slane %v3286, 6
        %v5391 = vsel %vm4278, %v5390, %v5389
        %v5392 = vrot.slane %v3318, 5
        %v5393 = vsel %vm4281, %v5392, %v5391
        %v5394 = vrot.slane %v3350, 4
        %v5395 = vsel %vm4284, %v5394, %v5393
        %v5396 = vrot.slane %v3382, 3
        %v5397 = vsel %vm4287, %v5396, %v5395
        %v5398 = vrot.slane %v3414, 2
        %v5399 = vsel %vm4290, %v5398, %v5397
        %v5400 = vrot.slane %v3255, 7
        %v5401 = vsel %vm4275, %v5400, %v3479
        %v5402 = vrot.slane %v3287, 6
        %v5403 = vsel %vm4278, %v5402, %v5401
        %v5404 = vrot.slane %v3319, 5
        %v5405 = vsel %vm4281, %v5404, %v5403
        %v5406 = vrot.slane %v3351, 4
        %v5407 = vsel %vm4284, %v5406, %v5405
        %v5408 = vrot.slane %v3383, 3
        %v5409 = vsel %vm4287, %v5408, %v5407
        %v5410 = vrot.slane %v3415, 2
        %v5411 = vsel %vm4290, %v5410, %v5409
        %v5412 = vrot.slane %v3256, 7
        %v5413 = vsel %vm4275, %v5412, %v3480
        %v5414 = vrot.slane %v3288, 6
        %v5415 = vsel %vm4278, %v5414, %v5413
        %v5416 = vrot.slane %v3320, 5
        %v5417 = vsel %vm4281, %v5416, %v5415
        %v5418 = vrot.slane %v3352, 4
        %v5419 = vsel %vm4284, %v5418, %v5417
        %v5420 = vrot.slane %v3384, 3
        %v5421 = vsel %vm4287, %v5420, %v5419
        %v5422 = vrot.slane %v3416, 2
        %v5423 = vsel %vm4290, %v5422, %v5421
        %v5424 = vrot.slane %v3257, 7
        %v5425 = vsel %vm4275, %v5424, %v3481
        %v5426 = vrot.slane %v3289, 6
        %v5427 = vsel %vm4278, %v5426, %v5425
        %v5428 = vrot.slane %v3321, 5
        %v5429 = vsel %vm4281, %v5428, %v5427
        %v5430 = vrot.slane %v3353, 4
        %v5431 = vsel %vm4284, %v5430, %v5429
        %v5432 = vrot.slane %v3385, 3
        %v5433 = vsel %vm4287, %v5432, %v5431
        %v5434 = vrot.slane %v3417, 2
        %v5435 = vsel %vm4290, %v5434, %v5433
        %v5436 = vrot.slane %v3258, 7
        %v5437 = vsel %vm4275, %v5436, %v3482
        %v5438 = vrot.slane %v3290, 6
        %v5439 = vsel %vm4278, %v5438, %v5437
        %v5440 = vrot.slane %v3322, 5
        %v5441 = vsel %vm4281, %v5440, %v5439
        %v5442 = vrot.slane %v3354, 4
        %v5443 = vsel %vm4284, %v5442, %v5441
        %v5444 = vrot.slane %v3386, 3
        %v5445 = vsel %vm4287, %v5444, %v5443
        %v5446 = vrot.slane %v3418, 2
        %v5447 = vsel %vm4290, %v5446, %v5445
        %v5448 = vrot.slane %v3259, 7
        %v5449 = vsel %vm4275, %v5448, %v3483
        %v5450 = vrot.slane %v3291, 6
        %v5451 = vsel %vm4278, %v5450, %v5449
        %v5452 = vrot.slane %v3323, 5
        %v5453 = vsel %vm4281, %v5452, %v5451
        %v5454 = vrot.slane %v3355, 4
        %v5455 = vsel %vm4284, %v5454, %v5453
        %v5456 = vrot.slane %v3387, 3
        %v5457 = vsel %vm4287, %v5456, %v5455
        %v5458 = vrot.slane %v3419, 2
        %v5459 = vsel %vm4290, %v5458, %v5457
        %v5460 = vrot.slane %v3260, 7
        %v5461 = vsel %vm4275, %v5460, %v3484
        %v5462 = vrot.slane %v3292, 6
        %v5463 = vsel %vm4278, %v5462, %v5461
        %v5464 = vrot.slane %v3324, 5
        %v5465 = vsel %vm4281, %v5464, %v5463
        %v5466 = vrot.slane %v3356, 4
        %v5467 = vsel %vm4284, %v5466, %v5465
        %v5468 = vrot.slane %v3388, 3
        %v5469 = vsel %vm4287, %v5468, %v5467
        %v5470 = vrot.slane %v3420, 2
        %v5471 = vsel %vm4290, %v5470, %v5469
        %v5472 = vrot.slane %v3261, 7
        %v5473 = vsel %vm4275, %v5472, %v3485
        %v5474 = vrot.slane %v3293, 6
        %v5475 = vsel %vm4278, %v5474, %v5473
        %v5476 = vrot.slane %v3325, 5
        %v5477 = vsel %vm4281, %v5476, %v5475
        %v5478 = vrot.slane %v3357, 4
        %v5479 = vsel %vm4284, %v5478, %v5477
        %v5480 = vrot.slane %v3389, 3
        %v5481 = vsel %vm4287, %v5480, %v5479
        %v5482 = vrot.slane %v3421, 2
        %v5483 = vsel %vm4290, %v5482, %v5481
        %v5484 = vrot.slane %v3262, 7
        %v5485 = vsel %vm4275, %v5484, %v3486
        %v5486 = vrot.slane %v3294, 6
        %v5487 = vsel %vm4278, %v5486, %v5485
        %v5488 = vrot.slane %v3326, 5
        %v5489 = vsel %vm4281, %v5488, %v5487
        %v5490 = vrot.slane %v3358, 4
        %v5491 = vsel %vm4284, %v5490, %v5489
        %v5492 = vrot.slane %v3390, 3
        %v5493 = vsel %vm4287, %v5492, %v5491
        %v5494 = vrot.slane %v3422, 2
        %v5495 = vsel %vm4290, %v5494, %v5493
        %v5496 = vrot.slane %v3263, 7
        %v5497 = vsel %vm4275, %v5496, %v3487
        %v5498 = vrot.slane %v3295, 6
        %v5499 = vsel %vm4278, %v5498, %v5497
        %v5500 = vrot.slane %v3327, 5
        %v5501 = vsel %vm4281, %v5500, %v5499
        %v5502 = vrot.slane %v3359, 4
        %v5503 = vsel %vm4284, %v5502, %v5501
        %v5504 = vrot.slane %v3391, 3
        %v5505 = vsel %vm4287, %v5504, %v5503
        %v5506 = vrot.slane %v3423, 2
        %v5507 = vsel %vm4290, %v5506, %v5505
        %v5508 = vrot.slane %v3264, 7
        %v5509 = vsel %vm4275, %v5508, %v3488
        %v5510 = vrot.slane %v3296, 6
        %v5511 = vsel %vm4278, %v5510, %v5509
        %v5512 = vrot.slane %v3328, 5
        %v5513 = vsel %vm4281, %v5512, %v5511
        %v5514 = vrot.slane %v3360, 4
        %v5515 = vsel %vm4284, %v5514, %v5513
        %v5516 = vrot.slane %v3392, 3
        %v5517 = vsel %vm4287, %v5516, %v5515
        %v5518 = vrot.slane %v3424, 2
        %v5519 = vsel %vm4290, %v5518, %v5517
        %v5520 = vrot.slane %v3265, 7
        %v5521 = vsel %vm4275, %v5520, %v3489
        %v5522 = vrot.slane %v3297, 6
        %v5523 = vsel %vm4278, %v5522, %v5521
        %v5524 = vrot.slane %v3329, 5
        %v5525 = vsel %vm4281, %v5524, %v5523
        %v5526 = vrot.slane %v3361, 4
        %v5527 = vsel %vm4284, %v5526, %v5525
        %v5528 = vrot.slane %v3393, 3
        %v5529 = vsel %vm4287, %v5528, %v5527
        %v5530 = vrot.slane %v3425, 2
        %v5531 = vsel %vm4290, %v5530, %v5529
        %v5532 = vrot.slane %v3266, 7
        %v5533 = vsel %vm4275, %v5532, %v3490
        %v5534 = vrot.slane %v3298, 6
        %v5535 = vsel %vm4278, %v5534, %v5533
        %v5536 = vrot.slane %v3330, 5
        %v5537 = vsel %vm4281, %v5536, %v5535
        %v5538 = vrot.slane %v3362, 4
        %v5539 = vsel %vm4284, %v5538, %v5537
        %v5540 = vrot.slane %v3394, 3
        %v5541 = vsel %vm4287, %v5540, %v5539
        %v5542 = vrot.slane %v3426, 2
        %v5543 = vsel %vm4290, %v5542, %v5541
        %v5544 = vrot.slane %v3267, 7
        %v5545 = vsel %vm4275, %v5544, %v3491
        %v5546 = vrot.slane %v3299, 6
        %v5547 = vsel %vm4278, %v5546, %v5545
        %v5548 = vrot.slane %v3331, 5
        %v5549 = vsel %vm4281, %v5548, %v5547
        %v5550 = vrot.slane %v3363, 4
        %v5551 = vsel %vm4284, %v5550, %v5549
        %v5552 = vrot.slane %v3395, 3
        %v5553 = vsel %vm4287, %v5552, %v5551
        %v5554 = vrot.slane %v3427, 2
        %v5555 = vsel %vm4290, %v5554, %v5553
        %v5556 = vrot.slane %v3268, 7
        %v5557 = vsel %vm4275, %v5556, %v3492
        %v5558 = vrot.slane %v3300, 6
        %v5559 = vsel %vm4278, %v5558, %v5557
        %v5560 = vrot.slane %v3332, 5
        %v5561 = vsel %vm4281, %v5560, %v5559
        %v5562 = vrot.slane %v3364, 4
        %v5563 = vsel %vm4284, %v5562, %v5561
        %v5564 = vrot.slane %v3396, 3
        %v5565 = vsel %vm4287, %v5564, %v5563
        %v5566 = vrot.slane %v3428, 2
        %v5567 = vsel %vm4290, %v5566, %v5565
        %v5568 = vrot.slane %v3269, 7
        %v5569 = vsel %vm4275, %v5568, %v3493
        %v5570 = vrot.slane %v3301, 6
        %v5571 = vsel %vm4278, %v5570, %v5569
        %v5572 = vrot.slane %v3333, 5
        %v5573 = vsel %vm4281, %v5572, %v5571
        %v5574 = vrot.slane %v3365, 4
        %v5575 = vsel %vm4284, %v5574, %v5573
        %v5576 = vrot.slane %v3397, 3
        %v5577 = vsel %vm4287, %v5576, %v5575
        %v5578 = vrot.slane %v3429, 2
        %v5579 = vsel %vm4290, %v5578, %v5577
        %v5580 = vrot.slane %v3270, 7
        %v5581 = vsel %vm4275, %v5580, %v3494
        %v5582 = vrot.slane %v3302, 6
        %v5583 = vsel %vm4278, %v5582, %v5581
        %v5584 = vrot.slane %v3334, 5
        %v5585 = vsel %vm4281, %v5584, %v5583
        %v5586 = vrot.slane %v3366, 4
        %v5587 = vsel %vm4284, %v5586, %v5585
        %v5588 = vrot.slane %v3398, 3
        %v5589 = vsel %vm4287, %v5588, %v5587
        %v5590 = vrot.slane %v3430, 2
        %v5591 = vsel %vm4290, %v5590, %v5589
        %v5592 = vrot.slane %v3271, 7
        %v5593 = vsel %vm4275, %v5592, %v3495
        %v5594 = vrot.slane %v3303, 6
        %v5595 = vsel %vm4278, %v5594, %v5593
        %v5596 = vrot.slane %v3335, 5
        %v5597 = vsel %vm4281, %v5596, %v5595
        %v5598 = vrot.slane %v3367, 4
        %v5599 = vsel %vm4284, %v5598, %v5597
        %v5600 = vrot.slane %v3399, 3
        %v5601 = vsel %vm4287, %v5600, %v5599
        %v5602 = vrot.slane %v3431, 2
        %v5603 = vsel %vm4290, %v5602, %v5601
        %v5604 = vrot.slane %v3272, 7
        %v5605 = vsel %vm4275, %v5604, %v3496
        %v5606 = vrot.slane %v3304, 6
        %v5607 = vsel %vm4278, %v5606, %v5605
        %v5608 = vrot.slane %v3336, 5
        %v5609 = vsel %vm4281, %v5608, %v5607
        %v5610 = vrot.slane %v3368, 4
        %v5611 = vsel %vm4284, %v5610, %v5609
        %v5612 = vrot.slane %v3400, 3
        %v5613 = vsel %vm4287, %v5612, %v5611
        %v5614 = vrot.slane %v3432, 2
        %v5615 = vsel %vm4290, %v5614, %v5613
        %v5616 = vrot.slane %v3273, 7
        %v5617 = vsel %vm4275, %v5616, %v3497
        %v5618 = vrot.slane %v3305, 6
        %v5619 = vsel %vm4278, %v5618, %v5617
        %v5620 = vrot.slane %v3337, 5
        %v5621 = vsel %vm4281, %v5620, %v5619
        %v5622 = vrot.slane %v3369, 4
        %v5623 = vsel %vm4284, %v5622, %v5621
        %v5624 = vrot.slane %v3401, 3
        %v5625 = vsel %vm4287, %v5624, %v5623
        %v5626 = vrot.slane %v3433, 2
        %v5627 = vsel %vm4290, %v5626, %v5625
        %v5628 = vrot.slane %v3274, 7
        %v5629 = vsel %vm4275, %v5628, %v3498
        %v5630 = vrot.slane %v3306, 6
        %v5631 = vsel %vm4278, %v5630, %v5629
        %v5632 = vrot.slane %v3338, 5
        %v5633 = vsel %vm4281, %v5632, %v5631
        %v5634 = vrot.slane %v3370, 4
        %v5635 = vsel %vm4284, %v5634, %v5633
        %v5636 = vrot.slane %v3402, 3
        %v5637 = vsel %vm4287, %v5636, %v5635
        %v5638 = vrot.slane %v3434, 2
        %v5639 = vsel %vm4290, %v5638, %v5637
        %v5640 = vrot.slane %v3275, 7
        %v5641 = vsel %vm4275, %v5640, %v3499
        %v5642 = vrot.slane %v3307, 6
        %v5643 = vsel %vm4278, %v5642, %v5641
        %v5644 = vrot.slane %v3339, 5
        %v5645 = vsel %vm4281, %v5644, %v5643
        %v5646 = vrot.slane %v3371, 4
        %v5647 = vsel %vm4284, %v5646, %v5645
        %v5648 = vrot.slane %v3403, 3
        %v5649 = vsel %vm4287, %v5648, %v5647
        %v5650 = vrot.slane %v3435, 2
        %v5651 = vsel %vm4290, %v5650, %v5649
        %v5652 = vrot.slane %v3276, 7
        %v5653 = vsel %vm4275, %v5652, %v3500
        %v5654 = vrot.slane %v3308, 6
        %v5655 = vsel %vm4278, %v5654, %v5653
        %v5656 = vrot.slane %v3340, 5
        %v5657 = vsel %vm4281, %v5656, %v5655
        %v5658 = vrot.slane %v3372, 4
        %v5659 = vsel %vm4284, %v5658, %v5657
        %v5660 = vrot.slane %v3404, 3
        %v5661 = vsel %vm4287, %v5660, %v5659
        %v5662 = vrot.slane %v3436, 2
        %v5663 = vsel %vm4290, %v5662, %v5661
        %v5664 = vrot.slane %v3277, 7
        %v5665 = vsel %vm4275, %v5664, %v3501
        %v5666 = vrot.slane %v3309, 6
        %v5667 = vsel %vm4278, %v5666, %v5665
        %v5668 = vrot.slane %v3341, 5
        %v5669 = vsel %vm4281, %v5668, %v5667
        %v5670 = vrot.slane %v3373, 4
        %v5671 = vsel %vm4284, %v5670, %v5669
        %v5672 = vrot.slane %v3405, 3
        %v5673 = vsel %vm4287, %v5672, %v5671
        %v5674 = vrot.slane %v3437, 2
        %v5675 = vsel %vm4290, %v5674, %v5673
        %v5676 = vrot.slane %v3278, 7
        %v5677 = vsel %vm4275, %v5676, %v3502
        %v5678 = vrot.slane %v3310, 6
        %v5679 = vsel %vm4278, %v5678, %v5677
        %v5680 = vrot.slane %v3342, 5
        %v5681 = vsel %vm4281, %v5680, %v5679
        %v5682 = vrot.slane %v3374, 4
        %v5683 = vsel %vm4284, %v5682, %v5681
        %v5684 = vrot.slane %v3406, 3
        %v5685 = vsel %vm4287, %v5684, %v5683
        %v5686 = vrot.slane %v3438, 2
        %v5687 = vsel %vm4290, %v5686, %v5685
        %v5688 = vrot.slane %v3439, 1
        %v5689 = vsel %vm4272, %v3727, %v5688
        %v5690 = vrot.slane %v3503, 7
        %v5691 = vsel %vm4275, %v5690, %v5689
        %v5692 = vrot.slane %v3535, 6
        %v5693 = vsel %vm4278, %v5692, %v5691
        %v5694 = vrot.slane %v3567, 5
        %v5695 = vsel %vm4281, %v5694, %v5693
        %v5696 = vrot.slane %v3599, 4
        %v5697 = vsel %vm4284, %v5696, %v5695
        %v5698 = vrot.slane %v3631, 3
        %v5699 = vsel %vm4287, %v5698, %v5697
        %v5700 = vrot.slane %v3663, 2
        %v5701 = vsel %vm4290, %v5700, %v5699
        %v5702 = vrot.slane %v3440, 1
        %v5703 = vsel %vm4272, %v3728, %v5702
        %v5704 = vrot.slane %v3504, 7
        %v5705 = vsel %vm4275, %v5704, %v5703
        %v5706 = vrot.slane %v3536, 6
        %v5707 = vsel %vm4278, %v5706, %v5705
        %v5708 = vrot.slane %v3568, 5
        %v5709 = vsel %vm4281, %v5708, %v5707
        %v5710 = vrot.slane %v3600, 4
        %v5711 = vsel %vm4284, %v5710, %v5709
        %v5712 = vrot.slane %v3632, 3
        %v5713 = vsel %vm4287, %v5712, %v5711
        %v5714 = vrot.slane %v3664, 2
        %v5715 = vsel %vm4290, %v5714, %v5713
        %v5716 = vrot.slane %v3441, 1
        %v5717 = vsel %vm4272, %v3729, %v5716
        %v5718 = vrot.slane %v3505, 7
        %v5719 = vsel %vm4275, %v5718, %v5717
        %v5720 = vrot.slane %v3537, 6
        %v5721 = vsel %vm4278, %v5720, %v5719
        %v5722 = vrot.slane %v3569, 5
        %v5723 = vsel %vm4281, %v5722, %v5721
        %v5724 = vrot.slane %v3601, 4
        %v5725 = vsel %vm4284, %v5724, %v5723
        %v5726 = vrot.slane %v3633, 3
        %v5727 = vsel %vm4287, %v5726, %v5725
        %v5728 = vrot.slane %v3665, 2
        %v5729 = vsel %vm4290, %v5728, %v5727
        %v5730 = vrot.slane %v3442, 1
        %v5731 = vsel %vm4272, %v3730, %v5730
        %v5732 = vrot.slane %v3506, 7
        %v5733 = vsel %vm4275, %v5732, %v5731
        %v5734 = vrot.slane %v3538, 6
        %v5735 = vsel %vm4278, %v5734, %v5733
        %v5736 = vrot.slane %v3570, 5
        %v5737 = vsel %vm4281, %v5736, %v5735
        %v5738 = vrot.slane %v3602, 4
        %v5739 = vsel %vm4284, %v5738, %v5737
        %v5740 = vrot.slane %v3634, 3
        %v5741 = vsel %vm4287, %v5740, %v5739
        %v5742 = vrot.slane %v3666, 2
        %v5743 = vsel %vm4290, %v5742, %v5741
        %v5744 = vrot.slane %v3443, 1
        %v5745 = vsel %vm4272, %v3731, %v5744
        %v5746 = vrot.slane %v3507, 7
        %v5747 = vsel %vm4275, %v5746, %v5745
        %v5748 = vrot.slane %v3539, 6
        %v5749 = vsel %vm4278, %v5748, %v5747
        %v5750 = vrot.slane %v3571, 5
        %v5751 = vsel %vm4281, %v5750, %v5749
        %v5752 = vrot.slane %v3603, 4
        %v5753 = vsel %vm4284, %v5752, %v5751
        %v5754 = vrot.slane %v3635, 3
        %v5755 = vsel %vm4287, %v5754, %v5753
        %v5756 = vrot.slane %v3667, 2
        %v5757 = vsel %vm4290, %v5756, %v5755
        %v5758 = vrot.slane %v3444, 1
        %v5759 = vsel %vm4272, %v3732, %v5758
        %v5760 = vrot.slane %v3508, 7
        %v5761 = vsel %vm4275, %v5760, %v5759
        %v5762 = vrot.slane %v3540, 6
        %v5763 = vsel %vm4278, %v5762, %v5761
        %v5764 = vrot.slane %v3572, 5
        %v5765 = vsel %vm4281, %v5764, %v5763
        %v5766 = vrot.slane %v3604, 4
        %v5767 = vsel %vm4284, %v5766, %v5765
        %v5768 = vrot.slane %v3636, 3
        %v5769 = vsel %vm4287, %v5768, %v5767
        %v5770 = vrot.slane %v3668, 2
        %v5771 = vsel %vm4290, %v5770, %v5769
        %v5772 = vrot.slane %v3445, 1
        %v5773 = vsel %vm4272, %v3733, %v5772
        %v5774 = vrot.slane %v3509, 7
        %v5775 = vsel %vm4275, %v5774, %v5773
        %v5776 = vrot.slane %v3541, 6
        %v5777 = vsel %vm4278, %v5776, %v5775
        %v5778 = vrot.slane %v3573, 5
        %v5779 = vsel %vm4281, %v5778, %v5777
        %v5780 = vrot.slane %v3605, 4
        %v5781 = vsel %vm4284, %v5780, %v5779
        %v5782 = vrot.slane %v3637, 3
        %v5783 = vsel %vm4287, %v5782, %v5781
        %v5784 = vrot.slane %v3669, 2
        %v5785 = vsel %vm4290, %v5784, %v5783
        %v5786 = vrot.slane %v3446, 1
        %v5787 = vsel %vm4272, %v3734, %v5786
        %v5788 = vrot.slane %v3510, 7
        %v5789 = vsel %vm4275, %v5788, %v5787
        %v5790 = vrot.slane %v3542, 6
        %v5791 = vsel %vm4278, %v5790, %v5789
        %v5792 = vrot.slane %v3574, 5
        %v5793 = vsel %vm4281, %v5792, %v5791
        %v5794 = vrot.slane %v3606, 4
        %v5795 = vsel %vm4284, %v5794, %v5793
        %v5796 = vrot.slane %v3638, 3
        %v5797 = vsel %vm4287, %v5796, %v5795
        %v5798 = vrot.slane %v3670, 2
        %v5799 = vsel %vm4290, %v5798, %v5797
        %v5800 = vrot.slane %v3447, 1
        %v5801 = vsel %vm4272, %v3735, %v5800
        %v5802 = vrot.slane %v3511, 7
        %v5803 = vsel %vm4275, %v5802, %v5801
        %v5804 = vrot.slane %v3543, 6
        %v5805 = vsel %vm4278, %v5804, %v5803
        %v5806 = vrot.slane %v3575, 5
        %v5807 = vsel %vm4281, %v5806, %v5805
        %v5808 = vrot.slane %v3607, 4
        %v5809 = vsel %vm4284, %v5808, %v5807
        %v5810 = vrot.slane %v3639, 3
        %v5811 = vsel %vm4287, %v5810, %v5809
        %v5812 = vrot.slane %v3671, 2
        %v5813 = vsel %vm4290, %v5812, %v5811
        %v5814 = vrot.slane %v3448, 1
        %v5815 = vsel %vm4272, %v3736, %v5814
        %v5816 = vrot.slane %v3512, 7
        %v5817 = vsel %vm4275, %v5816, %v5815
        %v5818 = vrot.slane %v3544, 6
        %v5819 = vsel %vm4278, %v5818, %v5817
        %v5820 = vrot.slane %v3576, 5
        %v5821 = vsel %vm4281, %v5820, %v5819
        %v5822 = vrot.slane %v3608, 4
        %v5823 = vsel %vm4284, %v5822, %v5821
        %v5824 = vrot.slane %v3640, 3
        %v5825 = vsel %vm4287, %v5824, %v5823
        %v5826 = vrot.slane %v3672, 2
        %v5827 = vsel %vm4290, %v5826, %v5825
        %v5828 = vrot.slane %v3449, 1
        %v5829 = vsel %vm4272, %v3737, %v5828
        %v5830 = vrot.slane %v3513, 7
        %v5831 = vsel %vm4275, %v5830, %v5829
        %v5832 = vrot.slane %v3545, 6
        %v5833 = vsel %vm4278, %v5832, %v5831
        %v5834 = vrot.slane %v3577, 5
        %v5835 = vsel %vm4281, %v5834, %v5833
        %v5836 = vrot.slane %v3609, 4
        %v5837 = vsel %vm4284, %v5836, %v5835
        %v5838 = vrot.slane %v3641, 3
        %v5839 = vsel %vm4287, %v5838, %v5837
        %v5840 = vrot.slane %v3673, 2
        %v5841 = vsel %vm4290, %v5840, %v5839
        %v5842 = vrot.slane %v3450, 1
        %v5843 = vsel %vm4272, %v3738, %v5842
        %v5844 = vrot.slane %v3514, 7
        %v5845 = vsel %vm4275, %v5844, %v5843
        %v5846 = vrot.slane %v3546, 6
        %v5847 = vsel %vm4278, %v5846, %v5845
        %v5848 = vrot.slane %v3578, 5
        %v5849 = vsel %vm4281, %v5848, %v5847
        %v5850 = vrot.slane %v3610, 4
        %v5851 = vsel %vm4284, %v5850, %v5849
        %v5852 = vrot.slane %v3642, 3
        %v5853 = vsel %vm4287, %v5852, %v5851
        %v5854 = vrot.slane %v3674, 2
        %v5855 = vsel %vm4290, %v5854, %v5853
        %v5856 = vrot.slane %v3451, 1
        %v5857 = vsel %vm4272, %v3739, %v5856
        %v5858 = vrot.slane %v3515, 7
        %v5859 = vsel %vm4275, %v5858, %v5857
        %v5860 = vrot.slane %v3547, 6
        %v5861 = vsel %vm4278, %v5860, %v5859
        %v5862 = vrot.slane %v3579, 5
        %v5863 = vsel %vm4281, %v5862, %v5861
        %v5864 = vrot.slane %v3611, 4
        %v5865 = vsel %vm4284, %v5864, %v5863
        %v5866 = vrot.slane %v3643, 3
        %v5867 = vsel %vm4287, %v5866, %v5865
        %v5868 = vrot.slane %v3675, 2
        %v5869 = vsel %vm4290, %v5868, %v5867
        %v5870 = vrot.slane %v3452, 1
        %v5871 = vsel %vm4272, %v3740, %v5870
        %v5872 = vrot.slane %v3516, 7
        %v5873 = vsel %vm4275, %v5872, %v5871
        %v5874 = vrot.slane %v3548, 6
        %v5875 = vsel %vm4278, %v5874, %v5873
        %v5876 = vrot.slane %v3580, 5
        %v5877 = vsel %vm4281, %v5876, %v5875
        %v5878 = vrot.slane %v3612, 4
        %v5879 = vsel %vm4284, %v5878, %v5877
        %v5880 = vrot.slane %v3644, 3
        %v5881 = vsel %vm4287, %v5880, %v5879
        %v5882 = vrot.slane %v3676, 2
        %v5883 = vsel %vm4290, %v5882, %v5881
        %v5884 = vrot.slane %v3453, 1
        %v5885 = vsel %vm4272, %v3741, %v5884
        %v5886 = vrot.slane %v3517, 7
        %v5887 = vsel %vm4275, %v5886, %v5885
        %v5888 = vrot.slane %v3549, 6
        %v5889 = vsel %vm4278, %v5888, %v5887
        %v5890 = vrot.slane %v3581, 5
        %v5891 = vsel %vm4281, %v5890, %v5889
        %v5892 = vrot.slane %v3613, 4
        %v5893 = vsel %vm4284, %v5892, %v5891
        %v5894 = vrot.slane %v3645, 3
        %v5895 = vsel %vm4287, %v5894, %v5893
        %v5896 = vrot.slane %v3677, 2
        %v5897 = vsel %vm4290, %v5896, %v5895
        %v5898 = vrot.slane %v3454, 1
        %v5899 = vsel %vm4272, %v3742, %v5898
        %v5900 = vrot.slane %v3518, 7
        %v5901 = vsel %vm4275, %v5900, %v5899
        %v5902 = vrot.slane %v3550, 6
        %v5903 = vsel %vm4278, %v5902, %v5901
        %v5904 = vrot.slane %v3582, 5
        %v5905 = vsel %vm4281, %v5904, %v5903
        %v5906 = vrot.slane %v3614, 4
        %v5907 = vsel %vm4284, %v5906, %v5905
        %v5908 = vrot.slane %v3646, 3
        %v5909 = vsel %vm4287, %v5908, %v5907
        %v5910 = vrot.slane %v3678, 2
        %v5911 = vsel %vm4290, %v5910, %v5909
        %v5912 = vrot.slane %v3455, 1
        %v5913 = vsel %vm4272, %v3743, %v5912
        %v5914 = vrot.slane %v3519, 7
        %v5915 = vsel %vm4275, %v5914, %v5913
        %v5916 = vrot.slane %v3551, 6
        %v5917 = vsel %vm4278, %v5916, %v5915
        %v5918 = vrot.slane %v3583, 5
        %v5919 = vsel %vm4281, %v5918, %v5917
        %v5920 = vrot.slane %v3615, 4
        %v5921 = vsel %vm4284, %v5920, %v5919
        %v5922 = vrot.slane %v3647, 3
        %v5923 = vsel %vm4287, %v5922, %v5921
        %v5924 = vrot.slane %v3679, 2
        %v5925 = vsel %vm4290, %v5924, %v5923
        %v5926 = vrot.slane %v3456, 1
        %v5927 = vsel %vm4272, %v3744, %v5926
        %v5928 = vrot.slane %v3520, 7
        %v5929 = vsel %vm4275, %v5928, %v5927
        %v5930 = vrot.slane %v3552, 6
        %v5931 = vsel %vm4278, %v5930, %v5929
        %v5932 = vrot.slane %v3584, 5
        %v5933 = vsel %vm4281, %v5932, %v5931
        %v5934 = vrot.slane %v3616, 4
        %v5935 = vsel %vm4284, %v5934, %v5933
        %v5936 = vrot.slane %v3648, 3
        %v5937 = vsel %vm4287, %v5936, %v5935
        %v5938 = vrot.slane %v3680, 2
        %v5939 = vsel %vm4290, %v5938, %v5937
        %v5940 = vrot.slane %v3457, 1
        %v5941 = vsel %vm4272, %v3745, %v5940
        %v5942 = vrot.slane %v3521, 7
        %v5943 = vsel %vm4275, %v5942, %v5941
        %v5944 = vrot.slane %v3553, 6
        %v5945 = vsel %vm4278, %v5944, %v5943
        %v5946 = vrot.slane %v3585, 5
        %v5947 = vsel %vm4281, %v5946, %v5945
        %v5948 = vrot.slane %v3617, 4
        %v5949 = vsel %vm4284, %v5948, %v5947
        %v5950 = vrot.slane %v3649, 3
        %v5951 = vsel %vm4287, %v5950, %v5949
        %v5952 = vrot.slane %v3681, 2
        %v5953 = vsel %vm4290, %v5952, %v5951
        %v5954 = vrot.slane %v3458, 1
        %v5955 = vsel %vm4272, %v3746, %v5954
        %v5956 = vrot.slane %v3522, 7
        %v5957 = vsel %vm4275, %v5956, %v5955
        %v5958 = vrot.slane %v3554, 6
        %v5959 = vsel %vm4278, %v5958, %v5957
        %v5960 = vrot.slane %v3586, 5
        %v5961 = vsel %vm4281, %v5960, %v5959
        %v5962 = vrot.slane %v3618, 4
        %v5963 = vsel %vm4284, %v5962, %v5961
        %v5964 = vrot.slane %v3650, 3
        %v5965 = vsel %vm4287, %v5964, %v5963
        %v5966 = vrot.slane %v3682, 2
        %v5967 = vsel %vm4290, %v5966, %v5965
        %v5968 = vrot.slane %v3459, 1
        %v5969 = vsel %vm4272, %v3747, %v5968
        %v5970 = vrot.slane %v3523, 7
        %v5971 = vsel %vm4275, %v5970, %v5969
        %v5972 = vrot.slane %v3555, 6
        %v5973 = vsel %vm4278, %v5972, %v5971
        %v5974 = vrot.slane %v3587, 5
        %v5975 = vsel %vm4281, %v5974, %v5973
        %v5976 = vrot.slane %v3619, 4
        %v5977 = vsel %vm4284, %v5976, %v5975
        %v5978 = vrot.slane %v3651, 3
        %v5979 = vsel %vm4287, %v5978, %v5977
        %v5980 = vrot.slane %v3683, 2
        %v5981 = vsel %vm4290, %v5980, %v5979
        %v5982 = vrot.slane %v3460, 1
        %v5983 = vsel %vm4272, %v3748, %v5982
        %v5984 = vrot.slane %v3524, 7
        %v5985 = vsel %vm4275, %v5984, %v5983
        %v5986 = vrot.slane %v3556, 6
        %v5987 = vsel %vm4278, %v5986, %v5985
        %v5988 = vrot.slane %v3588, 5
        %v5989 = vsel %vm4281, %v5988, %v5987
        %v5990 = vrot.slane %v3620, 4
        %v5991 = vsel %vm4284, %v5990, %v5989
        %v5992 = vrot.slane %v3652, 3
        %v5993 = vsel %vm4287, %v5992, %v5991
        %v5994 = vrot.slane %v3684, 2
        %v5995 = vsel %vm4290, %v5994, %v5993
        %v5996 = vrot.slane %v3461, 1
        %v5997 = vsel %vm4272, %v3749, %v5996
        %v5998 = vrot.slane %v3525, 7
        %v5999 = vsel %vm4275, %v5998, %v5997
        %v6000 = vrot.slane %v3557, 6
        %v6001 = vsel %vm4278, %v6000, %v5999
        %v6002 = vrot.slane %v3589, 5
        %v6003 = vsel %vm4281, %v6002, %v6001
        %v6004 = vrot.slane %v3621, 4
        %v6005 = vsel %vm4284, %v6004, %v6003
        %v6006 = vrot.slane %v3653, 3
        %v6007 = vsel %vm4287, %v6006, %v6005
        %v6008 = vrot.slane %v3685, 2
        %v6009 = vsel %vm4290, %v6008, %v6007
        %v6010 = vrot.slane %v3462, 1
        %v6011 = vsel %vm4272, %v3750, %v6010
        %v6012 = vrot.slane %v3526, 7
        %v6013 = vsel %vm4275, %v6012, %v6011
        %v6014 = vrot.slane %v3558, 6
        %v6015 = vsel %vm4278, %v6014, %v6013
        %v6016 = vrot.slane %v3590, 5
        %v6017 = vsel %vm4281, %v6016, %v6015
        %v6018 = vrot.slane %v3622, 4
        %v6019 = vsel %vm4284, %v6018, %v6017
        %v6020 = vrot.slane %v3654, 3
        %v6021 = vsel %vm4287, %v6020, %v6019
        %v6022 = vrot.slane %v3686, 2
        %v6023 = vsel %vm4290, %v6022, %v6021
        %v6024 = vrot.slane %v3463, 1
        %v6025 = vsel %vm4272, %v3751, %v6024
        %v6026 = vrot.slane %v3527, 7
        %v6027 = vsel %vm4275, %v6026, %v6025
        %v6028 = vrot.slane %v3559, 6
        %v6029 = vsel %vm4278, %v6028, %v6027
        %v6030 = vrot.slane %v3591, 5
        %v6031 = vsel %vm4281, %v6030, %v6029
        %v6032 = vrot.slane %v3623, 4
        %v6033 = vsel %vm4284, %v6032, %v6031
        %v6034 = vrot.slane %v3655, 3
        %v6035 = vsel %vm4287, %v6034, %v6033
        %v6036 = vrot.slane %v3687, 2
        %v6037 = vsel %vm4290, %v6036, %v6035
        %v6038 = vrot.slane %v3464, 1
        %v6039 = vsel %vm4272, %v3752, %v6038
        %v6040 = vrot.slane %v3528, 7
        %v6041 = vsel %vm4275, %v6040, %v6039
        %v6042 = vrot.slane %v3560, 6
        %v6043 = vsel %vm4278, %v6042, %v6041
        %v6044 = vrot.slane %v3592, 5
        %v6045 = vsel %vm4281, %v6044, %v6043
        %v6046 = vrot.slane %v3624, 4
        %v6047 = vsel %vm4284, %v6046, %v6045
        %v6048 = vrot.slane %v3656, 3
        %v6049 = vsel %vm4287, %v6048, %v6047
        %v6050 = vrot.slane %v3688, 2
        %v6051 = vsel %vm4290, %v6050, %v6049
        %v6052 = vrot.slane %v3465, 1
        %v6053 = vsel %vm4272, %v3753, %v6052
        %v6054 = vrot.slane %v3529, 7
        %v6055 = vsel %vm4275, %v6054, %v6053
        %v6056 = vrot.slane %v3561, 6
        %v6057 = vsel %vm4278, %v6056, %v6055
        %v6058 = vrot.slane %v3593, 5
        %v6059 = vsel %vm4281, %v6058, %v6057
        %v6060 = vrot.slane %v3625, 4
        %v6061 = vsel %vm4284, %v6060, %v6059
        %v6062 = vrot.slane %v3657, 3
        %v6063 = vsel %vm4287, %v6062, %v6061
        %v6064 = vrot.slane %v3689, 2
        %v6065 = vsel %vm4290, %v6064, %v6063
        %v6066 = vrot.slane %v3466, 1
        %v6067 = vsel %vm4272, %v3754, %v6066
        %v6068 = vrot.slane %v3530, 7
        %v6069 = vsel %vm4275, %v6068, %v6067
        %v6070 = vrot.slane %v3562, 6
        %v6071 = vsel %vm4278, %v6070, %v6069
        %v6072 = vrot.slane %v3594, 5
        %v6073 = vsel %vm4281, %v6072, %v6071
        %v6074 = vrot.slane %v3626, 4
        %v6075 = vsel %vm4284, %v6074, %v6073
        %v6076 = vrot.slane %v3658, 3
        %v6077 = vsel %vm4287, %v6076, %v6075
        %v6078 = vrot.slane %v3690, 2
        %v6079 = vsel %vm4290, %v6078, %v6077
        %v6080 = vrot.slane %v3467, 1
        %v6081 = vsel %vm4272, %v3755, %v6080
        %v6082 = vrot.slane %v3531, 7
        %v6083 = vsel %vm4275, %v6082, %v6081
        %v6084 = vrot.slane %v3563, 6
        %v6085 = vsel %vm4278, %v6084, %v6083
        %v6086 = vrot.slane %v3595, 5
        %v6087 = vsel %vm4281, %v6086, %v6085
        %v6088 = vrot.slane %v3627, 4
        %v6089 = vsel %vm4284, %v6088, %v6087
        %v6090 = vrot.slane %v3659, 3
        %v6091 = vsel %vm4287, %v6090, %v6089
        %v6092 = vrot.slane %v3691, 2
        %v6093 = vsel %vm4290, %v6092, %v6091
        %v6094 = vrot.slane %v3468, 1
        %v6095 = vsel %vm4272, %v3756, %v6094
        %v6096 = vrot.slane %v3532, 7
        %v6097 = vsel %vm4275, %v6096, %v6095
        %v6098 = vrot.slane %v3564, 6
        %v6099 = vsel %vm4278, %v6098, %v6097
        %v6100 = vrot.slane %v3596, 5
        %v6101 = vsel %vm4281, %v6100, %v6099
        %v6102 = vrot.slane %v3628, 4
        %v6103 = vsel %vm4284, %v6102, %v6101
        %v6104 = vrot.slane %v3660, 3
        %v6105 = vsel %vm4287, %v6104, %v6103
        %v6106 = vrot.slane %v3692, 2
        %v6107 = vsel %vm4290, %v6106, %v6105
        %v6108 = vrot.slane %v3469, 1
        %v6109 = vsel %vm4272, %v3757, %v6108
        %v6110 = vrot.slane %v3533, 7
        %v6111 = vsel %vm4275, %v6110, %v6109
        %v6112 = vrot.slane %v3565, 6
        %v6113 = vsel %vm4278, %v6112, %v6111
        %v6114 = vrot.slane %v3597, 5
        %v6115 = vsel %vm4281, %v6114, %v6113
        %v6116 = vrot.slane %v3629, 4
        %v6117 = vsel %vm4284, %v6116, %v6115
        %v6118 = vrot.slane %v3661, 3
        %v6119 = vsel %vm4287, %v6118, %v6117
        %v6120 = vrot.slane %v3693, 2
        %v6121 = vsel %vm4290, %v6120, %v6119
        %v6122 = vrot.slane %v3470, 1
        %v6123 = vsel %vm4272, %v3758, %v6122
        %v6124 = vrot.slane %v3534, 7
        %v6125 = vsel %vm4275, %v6124, %v6123
        %v6126 = vrot.slane %v3566, 6
        %v6127 = vsel %vm4278, %v6126, %v6125
        %v6128 = vrot.slane %v3598, 5
        %v6129 = vsel %vm4281, %v6128, %v6127
        %v6130 = vrot.slane %v3630, 4
        %v6131 = vsel %vm4284, %v6130, %v6129
        %v6132 = vrot.slane %v3662, 3
        %v6133 = vsel %vm4287, %v6132, %v6131
        %v6134 = vrot.slane %v3694, 2
        %v6135 = vsel %vm4290, %v6134, %v6133
        %v6136 = vrot.slane %v3695, 1
        %v6137 = vrot.slane %v3696, 1
        %v6138 = vrot.slane %v3697, 1
        %v6139 = vrot.slane %v3698, 1
        %v6140 = vrot.slane %v3699, 1
        %v6141 = vrot.slane %v3700, 1
        %v6142 = vrot.slane %v3701, 1
        %v6143 = vrot.slane %v3702, 1
        %v6144 = vrot.slane %v3703, 1
        %v6145 = vrot.slane %v3704, 1
        %v6146 = vrot.slane %v3705, 1
        %v6147 = vrot.slane %v3706, 1
        %v6148 = vrot.slane %v3707, 1
        %v6149 = vrot.slane %v3708, 1
        %v6150 = vrot.slane %v3709, 1
        %v6151 = vrot.slane %v3710, 1
        %v6152 = vrot.slane %v3711, 1
        %v6153 = vrot.slane %v3712, 1
        %v6154 = vrot.slane %v3713, 1
        %v6155 = vrot.slane %v3714, 1
        %v6156 = vrot.slane %v3715, 1
        %v6157 = vrot.slane %v3716, 1
        %v6158 = vrot.slane %v3717, 1
        %v6159 = vrot.slane %v3718, 1
        %v6160 = vrot.slane %v3719, 1
        %v6161 = vrot.slane %v3720, 1
        %v6162 = vrot.slane %v3721, 1
        %v6163 = vrot.slane %v3722, 1
        %v6164 = vrot.slane %v3723, 1
        %v6165 = vrot.slane %v3724, 1
        %v6166 = vrot.slane %v3725, 1
        %v6167 = vrot.slane %v3726, 1
        %vm6264 = vcmask 1047553
        %v6265 = vsel %vm6264, %v5315, -inf
        %v6266 = vsel %vm6264, %v5327, -inf
        %v6267 = vsel %vm6264, %v5339, -inf
        %v6268 = vmax.f32 %v6265, %v6267
        %v6269 = vsel %vm6264, %v5351, -inf
        %v6270 = vmax.f32 %v6266, %v6269
        %v6271 = vsel %vm6264, %v5363, -inf
        %v6272 = vmax.f32 %v6268, %v6271
        %v6273 = vsel %vm6264, %v5375, -inf
        %v6274 = vmax.f32 %v6270, %v6273
        %v6275 = vsel %vm6264, %v5387, -inf
        %v6276 = vmax.f32 %v6272, %v6275
        %v6277 = vsel %vm6264, %v5399, -inf
        %v6278 = vmax.f32 %v6274, %v6277
        %v6279 = vsel %vm6264, %v5411, -inf
        %v6280 = vmax.f32 %v6276, %v6279
        %v6281 = vsel %vm6264, %v5423, -inf
        %v6282 = vmax.f32 %v6278, %v6281
        %v6283 = vsel %vm6264, %v5435, -inf
        %v6284 = vmax.f32 %v6280, %v6283
        %v6285 = vsel %vm6264, %v5447, -inf
        %v6286 = vmax.f32 %v6282, %v6285
        %v6287 = vsel %vm6264, %v5459, -inf
        %v6288 = vmax.f32 %v6284, %v6287
        %v6289 = vsel %vm6264, %v5471, -inf
        %v6290 = vmax.f32 %v6286, %v6289
        %v6291 = vsel %vm6264, %v5483, -inf
        %v6292 = vmax.f32 %v6288, %v6291
        %v6293 = vsel %vm6264, %v5495, -inf
        %v6294 = vmax.f32 %v6290, %v6293
        %v6295 = vsel %vm6264, %v5507, -inf
        %v6296 = vmax.f32 %v6292, %v6295
        %v6297 = vsel %vm6264, %v5519, -inf
        %v6298 = vmax.f32 %v6294, %v6297
        %v6299 = vsel %vm6264, %v5531, -inf
        %v6300 = vmax.f32 %v6296, %v6299
        %v6301 = vsel %vm6264, %v5543, -inf
        %v6302 = vmax.f32 %v6298, %v6301
        %v6303 = vsel %vm6264, %v5555, -inf
        %v6304 = vmax.f32 %v6300, %v6303
        %v6305 = vsel %vm6264, %v5567, -inf
        %v6306 = vmax.f32 %v6302, %v6305
        %v6307 = vsel %vm6264, %v5579, -inf
        %v6308 = vmax.f32 %v6304, %v6307
        %v6309 = vsel %vm6264, %v5591, -inf
        %v6310 = vmax.f32 %v6306, %v6309
        %v6311 = vsel %vm6264, %v5603, -inf
        %v6312 = vmax.f32 %v6308, %v6311
        %v6313 = vsel %vm6264, %v5615, -inf
        %v6314 = vmax.f32 %v6310, %v6313
        %v6315 = vsel %vm6264, %v5627, -inf
        %v6316 = vmax.f32 %v6312, %v6315
        %v6317 = vsel %vm6264, %v5639, -inf
        %v6318 = vmax.f32 %v6314, %v6317
        %v6319 = vsel %vm6264, %v5651, -inf
        %v6320 = vmax.f32 %v6316, %v6319
        %v6321 = vsel %vm6264, %v5663, -inf
        %v6322 = vmax.f32 %v6318, %v6321
        %v6323 = vsel %vm6264, %v5675, -inf
        %v6324 = vmax.f32 %v6320, %v6323
        %v6325 = vsel %vm6264, %v5687, -inf
        %v6326 = vmax.f32 %v6322, %v6325
        %v6327 = vmax.f32 %v6324, %v6326
        %6328 = vmax.xlane.f32.xlu0 %v6327
        %v6329 = vpop.xlane.xlu0 %6328
        %v6330 = vmax.f32 %v5701, %v5729
        %v6331 = vmax.f32 %v5715, %v5743
        %v6332 = vmax.f32 %v6330, %v5757
        %v6333 = vmax.f32 %v6331, %v5771
        %v6334 = vmax.f32 %v6332, %v5785
        %v6335 = vmax.f32 %v6333, %v5799
        %v6336 = vmax.f32 %v6334, %v5813
        %v6337 = vmax.f32 %v6335, %v5827
        %v6338 = vmax.f32 %v6336, %v5841
        %v6339 = vmax.f32 %v6337, %v5855
        %v6340 = vmax.f32 %v6338, %v5869
        %v6341 = vmax.f32 %v6339, %v5883
        %v6342 = vmax.f32 %v6340, %v5897
        %v6343 = vmax.f32 %v6341, %v5911
        %v6344 = vmax.f32 %v6342, %v5925
        %v6345 = vmax.f32 %v6343, %v5939
        %v6346 = vmax.f32 %v6344, %v5953
        %v6347 = vmax.f32 %v6345, %v5967
        %v6348 = vmax.f32 %v6346, %v5981
        %v6349 = vmax.f32 %v6347, %v5995
        %v6350 = vmax.f32 %v6348, %v6009
        %v6351 = vmax.f32 %v6349, %v6023
        %v6352 = vmax.f32 %v6350, %v6037
        %v6353 = vmax.f32 %v6351, %v6051
        %v6354 = vmax.f32 %v6352, %v6065
        %v6355 = vmax.f32 %v6353, %v6079
        %v6356 = vmax.f32 %v6354, %v6093
        %v6357 = vmax.f32 %v6355, %v6107
        %v6358 = vmax.f32 %v6356, %v6121
        %v6359 = vmax.f32 %v6357, %v6135
        %v6360 = vmax.f32 %v6358, %v6359
        %6361 = vmax.xlane.f32.xlu0 %v6360
        %v6362 = vpop.xlane.xlu0 %6361
        %vm6363 = vcmask 1040384
        %v6364 = vsel %vm6363, %v6136, -inf
        %v6365 = vsel %vm6363, %v6137, -inf
        %v6366 = vsel %vm6363, %v6138, -inf
        %v6367 = vmax.f32 %v6364, %v6366
        %v6368 = vsel %vm6363, %v6139, -inf
        %v6369 = vmax.f32 %v6365, %v6368
        %v6370 = vsel %vm6363, %v6140, -inf
        %v6371 = vmax.f32 %v6367, %v6370
        %v6372 = vsel %vm6363, %v6141, -inf
        %v6373 = vmax.f32 %v6369, %v6372
        %v6374 = vsel %vm6363, %v6142, -inf
        %v6375 = vmax.f32 %v6371, %v6374
        %v6376 = vsel %vm6363, %v6143, -inf
        %v6377 = vmax.f32 %v6373, %v6376
        %v6378 = vsel %vm6363, %v6144, -inf
        %v6379 = vmax.f32 %v6375, %v6378
        %v6380 = vsel %vm6363, %v6145, -inf
        %v6381 = vmax.f32 %v6377, %v6380
        %v6382 = vsel %vm6363, %v6146, -inf
        %v6383 = vmax.f32 %v6379, %v6382
        %v6384 = vsel %vm6363, %v6147, -inf
        %v6385 = vmax.f32 %v6381, %v6384
        %v6386 = vsel %vm6363, %v6148, -inf
        %v6387 = vmax.f32 %v6383, %v6386
        %v6388 = vsel %vm6363, %v6149, -inf
        %v6389 = vmax.f32 %v6385, %v6388
        %v6390 = vsel %vm6363, %v6150, -inf
        %v6391 = vmax.f32 %v6387, %v6390
        %v6392 = vsel %vm6363, %v6151, -inf
        %v6393 = vmax.f32 %v6389, %v6392
        %v6394 = vsel %vm6363, %v6152, -inf
        %v6395 = vmax.f32 %v6391, %v6394
        %v6396 = vsel %vm6363, %v6153, -inf
        %v6397 = vmax.f32 %v6393, %v6396
        %v6398 = vsel %vm6363, %v6154, -inf
        %v6399 = vmax.f32 %v6395, %v6398
        %v6400 = vsel %vm6363, %v6155, -inf
        %v6401 = vmax.f32 %v6397, %v6400
        %v6402 = vsel %vm6363, %v6156, -inf
        %v6403 = vmax.f32 %v6399, %v6402
        %v6404 = vsel %vm6363, %v6157, -inf
        %v6405 = vmax.f32 %v6401, %v6404
        %v6406 = vsel %vm6363, %v6158, -inf
        %v6407 = vmax.f32 %v6403, %v6406
        %v6408 = vsel %vm6363, %v6159, -inf
        %v6409 = vmax.f32 %v6405, %v6408
        %v6410 = vsel %vm6363, %v6160, -inf
        %v6411 = vmax.f32 %v6407, %v6410
        %v6412 = vsel %vm6363, %v6161, -inf
        %v6413 = vmax.f32 %v6409, %v6412
        %v6414 = vsel %vm6363, %v6162, -inf
        %v6415 = vmax.f32 %v6411, %v6414
        %v6416 = vsel %vm6363, %v6163, -inf
        %v6417 = vmax.f32 %v6413, %v6416
        %v6418 = vsel %vm6363, %v6164, -inf
        %v6419 = vmax.f32 %v6415, %v6418
        %v6420 = vsel %vm6363, %v6165, -inf
        %v6421 = vmax.f32 %v6417, %v6420
        %v6422 = vsel %vm6363, %v6166, -inf
        %v6423 = vmax.f32 %v6419, %v6422
        %v6424 = vsel %vm6363, %v6167, -inf
        %v6425 = vmax.f32 %v6421, %v6424
        %v6426 = vmax.f32 %v6423, %v6425
        %6427 = vmax.xlane.f32.xlu0 %v6426
        %v6428 = vpop.xlane.xlu0 %6427
        %v6429 = vrot.slane %v3471, 7
        %v6430 = vsel %vm4278, %v6429, %v3439
        %v6431 = vrot.slane %v3247, 6
        %v6432 = vsel %vm4281, %v6431, %v6430
        %v6433 = vrot.slane %v3279, 5
        %v6434 = vsel %vm4284, %v6433, %v6432
        %v6435 = vrot.slane %v3311, 4
        %v6436 = vsel %vm4287, %v6435, %v6434
        %v6437 = vrot.slane %v3343, 3
        %v6438 = vsel %vm4290, %v6437, %v6436
        %v6439 = vrot.slane %v3472, 7
        %v6440 = vsel %vm4278, %v6439, %v3440
        %v6441 = vrot.slane %v3248, 6
        %v6442 = vsel %vm4281, %v6441, %v6440
        %v6443 = vrot.slane %v3280, 5
        %v6444 = vsel %vm4284, %v6443, %v6442
        %v6445 = vrot.slane %v3312, 4
        %v6446 = vsel %vm4287, %v6445, %v6444
        %v6447 = vrot.slane %v3344, 3
        %v6448 = vsel %vm4290, %v6447, %v6446
        %v6449 = vrot.slane %v3473, 7
        %v6450 = vsel %vm4278, %v6449, %v3441
        %v6451 = vrot.slane %v3249, 6
        %v6452 = vsel %vm4281, %v6451, %v6450
        %v6453 = vrot.slane %v3281, 5
        %v6454 = vsel %vm4284, %v6453, %v6452
        %v6455 = vrot.slane %v3313, 4
        %v6456 = vsel %vm4287, %v6455, %v6454
        %v6457 = vrot.slane %v3345, 3
        %v6458 = vsel %vm4290, %v6457, %v6456
        %v6459 = vrot.slane %v3474, 7
        %v6460 = vsel %vm4278, %v6459, %v3442
        %v6461 = vrot.slane %v3250, 6
        %v6462 = vsel %vm4281, %v6461, %v6460
        %v6463 = vrot.slane %v3282, 5
        %v6464 = vsel %vm4284, %v6463, %v6462
        %v6465 = vrot.slane %v3314, 4
        %v6466 = vsel %vm4287, %v6465, %v6464
        %v6467 = vrot.slane %v3346, 3
        %v6468 = vsel %vm4290, %v6467, %v6466
        %v6469 = vrot.slane %v3475, 7
        %v6470 = vsel %vm4278, %v6469, %v3443
        %v6471 = vrot.slane %v3251, 6
        %v6472 = vsel %vm4281, %v6471, %v6470
        %v6473 = vrot.slane %v3283, 5
        %v6474 = vsel %vm4284, %v6473, %v6472
        %v6475 = vrot.slane %v3315, 4
        %v6476 = vsel %vm4287, %v6475, %v6474
        %v6477 = vrot.slane %v3347, 3
        %v6478 = vsel %vm4290, %v6477, %v6476
        %v6479 = vrot.slane %v3476, 7
        %v6480 = vsel %vm4278, %v6479, %v3444
        %v6481 = vrot.slane %v3252, 6
        %v6482 = vsel %vm4281, %v6481, %v6480
        %v6483 = vrot.slane %v3284, 5
        %v6484 = vsel %vm4284, %v6483, %v6482
        %v6485 = vrot.slane %v3316, 4
        %v6486 = vsel %vm4287, %v6485, %v6484
        %v6487 = vrot.slane %v3348, 3
        %v6488 = vsel %vm4290, %v6487, %v6486
        %v6489 = vrot.slane %v3477, 7
        %v6490 = vsel %vm4278, %v6489, %v3445
        %v6491 = vrot.slane %v3253, 6
        %v6492 = vsel %vm4281, %v6491, %v6490
        %v6493 = vrot.slane %v3285, 5
        %v6494 = vsel %vm4284, %v6493, %v6492
        %v6495 = vrot.slane %v3317, 4
        %v6496 = vsel %vm4287, %v6495, %v6494
        %v6497 = vrot.slane %v3349, 3
        %v6498 = vsel %vm4290, %v6497, %v6496
        %v6499 = vrot.slane %v3478, 7
        %v6500 = vsel %vm4278, %v6499, %v3446
        %v6501 = vrot.slane %v3254, 6
        %v6502 = vsel %vm4281, %v6501, %v6500
        %v6503 = vrot.slane %v3286, 5
        %v6504 = vsel %vm4284, %v6503, %v6502
        %v6505 = vrot.slane %v3318, 4
        %v6506 = vsel %vm4287, %v6505, %v6504
        %v6507 = vrot.slane %v3350, 3
        %v6508 = vsel %vm4290, %v6507, %v6506
        %v6509 = vrot.slane %v3479, 7
        %v6510 = vsel %vm4278, %v6509, %v3447
        %v6511 = vrot.slane %v3255, 6
        %v6512 = vsel %vm4281, %v6511, %v6510
        %v6513 = vrot.slane %v3287, 5
        %v6514 = vsel %vm4284, %v6513, %v6512
        %v6515 = vrot.slane %v3319, 4
        %v6516 = vsel %vm4287, %v6515, %v6514
        %v6517 = vrot.slane %v3351, 3
        %v6518 = vsel %vm4290, %v6517, %v6516
        %v6519 = vrot.slane %v3480, 7
        %v6520 = vsel %vm4278, %v6519, %v3448
        %v6521 = vrot.slane %v3256, 6
        %v6522 = vsel %vm4281, %v6521, %v6520
        %v6523 = vrot.slane %v3288, 5
        %v6524 = vsel %vm4284, %v6523, %v6522
        %v6525 = vrot.slane %v3320, 4
        %v6526 = vsel %vm4287, %v6525, %v6524
        %v6527 = vrot.slane %v3352, 3
        %v6528 = vsel %vm4290, %v6527, %v6526
        %v6529 = vrot.slane %v3481, 7
        %v6530 = vsel %vm4278, %v6529, %v3449
        %v6531 = vrot.slane %v3257, 6
        %v6532 = vsel %vm4281, %v6531, %v6530
        %v6533 = vrot.slane %v3289, 5
        %v6534 = vsel %vm4284, %v6533, %v6532
        %v6535 = vrot.slane %v3321, 4
        %v6536 = vsel %vm4287, %v6535, %v6534
        %v6537 = vrot.slane %v3353, 3
        %v6538 = vsel %vm4290, %v6537, %v6536
        %v6539 = vrot.slane %v3482, 7
        %v6540 = vsel %vm4278, %v6539, %v3450
        %v6541 = vrot.slane %v3258, 6
        %v6542 = vsel %vm4281, %v6541, %v6540
        %v6543 = vrot.slane %v3290, 5
        %v6544 = vsel %vm4284, %v6543, %v6542
        %v6545 = vrot.slane %v3322, 4
        %v6546 = vsel %vm4287, %v6545, %v6544
        %v6547 = vrot.slane %v3354, 3
        %v6548 = vsel %vm4290, %v6547, %v6546
        %v6549 = vrot.slane %v3483, 7
        %v6550 = vsel %vm4278, %v6549, %v3451
        %v6551 = vrot.slane %v3259, 6
        %v6552 = vsel %vm4281, %v6551, %v6550
        %v6553 = vrot.slane %v3291, 5
        %v6554 = vsel %vm4284, %v6553, %v6552
        %v6555 = vrot.slane %v3323, 4
        %v6556 = vsel %vm4287, %v6555, %v6554
        %v6557 = vrot.slane %v3355, 3
        %v6558 = vsel %vm4290, %v6557, %v6556
        %v6559 = vrot.slane %v3484, 7
        %v6560 = vsel %vm4278, %v6559, %v3452
        %v6561 = vrot.slane %v3260, 6
        %v6562 = vsel %vm4281, %v6561, %v6560
        %v6563 = vrot.slane %v3292, 5
        %v6564 = vsel %vm4284, %v6563, %v6562
        %v6565 = vrot.slane %v3324, 4
        %v6566 = vsel %vm4287, %v6565, %v6564
        %v6567 = vrot.slane %v3356, 3
        %v6568 = vsel %vm4290, %v6567, %v6566
        %v6569 = vrot.slane %v3485, 7
        %v6570 = vsel %vm4278, %v6569, %v3453
        %v6571 = vrot.slane %v3261, 6
        %v6572 = vsel %vm4281, %v6571, %v6570
        %v6573 = vrot.slane %v3293, 5
        %v6574 = vsel %vm4284, %v6573, %v6572
        %v6575 = vrot.slane %v3325, 4
        %v6576 = vsel %vm4287, %v6575, %v6574
        %v6577 = vrot.slane %v3357, 3
        %v6578 = vsel %vm4290, %v6577, %v6576
        %v6579 = vrot.slane %v3486, 7
        %v6580 = vsel %vm4278, %v6579, %v3454
        %v6581 = vrot.slane %v3262, 6
        %v6582 = vsel %vm4281, %v6581, %v6580
        %v6583 = vrot.slane %v3294, 5
        %v6584 = vsel %vm4284, %v6583, %v6582
        %v6585 = vrot.slane %v3326, 4
        %v6586 = vsel %vm4287, %v6585, %v6584
        %v6587 = vrot.slane %v3358, 3
        %v6588 = vsel %vm4290, %v6587, %v6586
        %v6589 = vrot.slane %v3487, 7
        %v6590 = vsel %vm4278, %v6589, %v3455
        %v6591 = vrot.slane %v3263, 6
        %v6592 = vsel %vm4281, %v6591, %v6590
        %v6593 = vrot.slane %v3295, 5
        %v6594 = vsel %vm4284, %v6593, %v6592
        %v6595 = vrot.slane %v3327, 4
        %v6596 = vsel %vm4287, %v6595, %v6594
        %v6597 = vrot.slane %v3359, 3
        %v6598 = vsel %vm4290, %v6597, %v6596
        %v6599 = vrot.slane %v3488, 7
        %v6600 = vsel %vm4278, %v6599, %v3456
        %v6601 = vrot.slane %v3264, 6
        %v6602 = vsel %vm4281, %v6601, %v6600
        %v6603 = vrot.slane %v3296, 5
        %v6604 = vsel %vm4284, %v6603, %v6602
        %v6605 = vrot.slane %v3328, 4
        %v6606 = vsel %vm4287, %v6605, %v6604
        %v6607 = vrot.slane %v3360, 3
        %v6608 = vsel %vm4290, %v6607, %v6606
        %v6609 = vrot.slane %v3489, 7
        %v6610 = vsel %vm4278, %v6609, %v3457
        %v6611 = vrot.slane %v3265, 6
        %v6612 = vsel %vm4281, %v6611, %v6610
        %v6613 = vrot.slane %v3297, 5
        %v6614 = vsel %vm4284, %v6613, %v6612
        %v6615 = vrot.slane %v3329, 4
        %v6616 = vsel %vm4287, %v6615, %v6614
        %v6617 = vrot.slane %v3361, 3
        %v6618 = vsel %vm4290, %v6617, %v6616
        %v6619 = vrot.slane %v3490, 7
        %v6620 = vsel %vm4278, %v6619, %v3458
        %v6621 = vrot.slane %v3266, 6
        %v6622 = vsel %vm4281, %v6621, %v6620
        %v6623 = vrot.slane %v3298, 5
        %v6624 = vsel %vm4284, %v6623, %v6622
        %v6625 = vrot.slane %v3330, 4
        %v6626 = vsel %vm4287, %v6625, %v6624
        %v6627 = vrot.slane %v3362, 3
        %v6628 = vsel %vm4290, %v6627, %v6626
        %v6629 = vrot.slane %v3491, 7
        %v6630 = vsel %vm4278, %v6629, %v3459
        %v6631 = vrot.slane %v3267, 6
        %v6632 = vsel %vm4281, %v6631, %v6630
        %v6633 = vrot.slane %v3299, 5
        %v6634 = vsel %vm4284, %v6633, %v6632
        %v6635 = vrot.slane %v3331, 4
        %v6636 = vsel %vm4287, %v6635, %v6634
        %v6637 = vrot.slane %v3363, 3
        %v6638 = vsel %vm4290, %v6637, %v6636
        %v6639 = vrot.slane %v3492, 7
        %v6640 = vsel %vm4278, %v6639, %v3460
        %v6641 = vrot.slane %v3268, 6
        %v6642 = vsel %vm4281, %v6641, %v6640
        %v6643 = vrot.slane %v3300, 5
        %v6644 = vsel %vm4284, %v6643, %v6642
        %v6645 = vrot.slane %v3332, 4
        %v6646 = vsel %vm4287, %v6645, %v6644
        %v6647 = vrot.slane %v3364, 3
        %v6648 = vsel %vm4290, %v6647, %v6646
        %v6649 = vrot.slane %v3493, 7
        %v6650 = vsel %vm4278, %v6649, %v3461
        %v6651 = vrot.slane %v3269, 6
        %v6652 = vsel %vm4281, %v6651, %v6650
        %v6653 = vrot.slane %v3301, 5
        %v6654 = vsel %vm4284, %v6653, %v6652
        %v6655 = vrot.slane %v3333, 4
        %v6656 = vsel %vm4287, %v6655, %v6654
        %v6657 = vrot.slane %v3365, 3
        %v6658 = vsel %vm4290, %v6657, %v6656
        %v6659 = vrot.slane %v3494, 7
        %v6660 = vsel %vm4278, %v6659, %v3462
        %v6661 = vrot.slane %v3270, 6
        %v6662 = vsel %vm4281, %v6661, %v6660
        %v6663 = vrot.slane %v3302, 5
        %v6664 = vsel %vm4284, %v6663, %v6662
        %v6665 = vrot.slane %v3334, 4
        %v6666 = vsel %vm4287, %v6665, %v6664
        %v6667 = vrot.slane %v3366, 3
        %v6668 = vsel %vm4290, %v6667, %v6666
        %v6669 = vrot.slane %v3495, 7
        %v6670 = vsel %vm4278, %v6669, %v3463
        %v6671 = vrot.slane %v3271, 6
        %v6672 = vsel %vm4281, %v6671, %v6670
        %v6673 = vrot.slane %v3303, 5
        %v6674 = vsel %vm4284, %v6673, %v6672
        %v6675 = vrot.slane %v3335, 4
        %v6676 = vsel %vm4287, %v6675, %v6674
        %v6677 = vrot.slane %v3367, 3
        %v6678 = vsel %vm4290, %v6677, %v6676
        %v6679 = vrot.slane %v3496, 7
        %v6680 = vsel %vm4278, %v6679, %v3464
        %v6681 = vrot.slane %v3272, 6
        %v6682 = vsel %vm4281, %v6681, %v6680
        %v6683 = vrot.slane %v3304, 5
        %v6684 = vsel %vm4284, %v6683, %v6682
        %v6685 = vrot.slane %v3336, 4
        %v6686 = vsel %vm4287, %v6685, %v6684
        %v6687 = vrot.slane %v3368, 3
        %v6688 = vsel %vm4290, %v6687, %v6686
        %v6689 = vrot.slane %v3497, 7
        %v6690 = vsel %vm4278, %v6689, %v3465
        %v6691 = vrot.slane %v3273, 6
        %v6692 = vsel %vm4281, %v6691, %v6690
        %v6693 = vrot.slane %v3305, 5
        %v6694 = vsel %vm4284, %v6693, %v6692
        %v6695 = vrot.slane %v3337, 4
        %v6696 = vsel %vm4287, %v6695, %v6694
        %v6697 = vrot.slane %v3369, 3
        %v6698 = vsel %vm4290, %v6697, %v6696
        %v6699 = vrot.slane %v3498, 7
        %v6700 = vsel %vm4278, %v6699, %v3466
        %v6701 = vrot.slane %v3274, 6
        %v6702 = vsel %vm4281, %v6701, %v6700
        %v6703 = vrot.slane %v3306, 5
        %v6704 = vsel %vm4284, %v6703, %v6702
        %v6705 = vrot.slane %v3338, 4
        %v6706 = vsel %vm4287, %v6705, %v6704
        %v6707 = vrot.slane %v3370, 3
        %v6708 = vsel %vm4290, %v6707, %v6706
        %v6709 = vrot.slane %v3499, 7
        %v6710 = vsel %vm4278, %v6709, %v3467
        %v6711 = vrot.slane %v3275, 6
        %v6712 = vsel %vm4281, %v6711, %v6710
        %v6713 = vrot.slane %v3307, 5
        %v6714 = vsel %vm4284, %v6713, %v6712
        %v6715 = vrot.slane %v3339, 4
        %v6716 = vsel %vm4287, %v6715, %v6714
        %v6717 = vrot.slane %v3371, 3
        %v6718 = vsel %vm4290, %v6717, %v6716
        %v6719 = vrot.slane %v3500, 7
        %v6720 = vsel %vm4278, %v6719, %v3468
        %v6721 = vrot.slane %v3276, 6
        %v6722 = vsel %vm4281, %v6721, %v6720
        %v6723 = vrot.slane %v3308, 5
        %v6724 = vsel %vm4284, %v6723, %v6722
        %v6725 = vrot.slane %v3340, 4
        %v6726 = vsel %vm4287, %v6725, %v6724
        %v6727 = vrot.slane %v3372, 3
        %v6728 = vsel %vm4290, %v6727, %v6726
        %v6729 = vrot.slane %v3501, 7
        %v6730 = vsel %vm4278, %v6729, %v3469
        %v6731 = vrot.slane %v3277, 6
        %v6732 = vsel %vm4281, %v6731, %v6730
        %v6733 = vrot.slane %v3309, 5
        %v6734 = vsel %vm4284, %v6733, %v6732
        %v6735 = vrot.slane %v3341, 4
        %v6736 = vsel %vm4287, %v6735, %v6734
        %v6737 = vrot.slane %v3373, 3
        %v6738 = vsel %vm4290, %v6737, %v6736
        %v6739 = vrot.slane %v3502, 7
        %v6740 = vsel %vm4278, %v6739, %v3470
        %v6741 = vrot.slane %v3278, 6
        %v6742 = vsel %vm4281, %v6741, %v6740
        %v6743 = vrot.slane %v3310, 5
        %v6744 = vsel %vm4284, %v6743, %v6742
        %v6745 = vrot.slane %v3342, 4
        %v6746 = vsel %vm4287, %v6745, %v6744
        %v6747 = vrot.slane %v3374, 3
        %v6748 = vsel %vm4290, %v6747, %v6746
        %v6749 = vrot.slane %v3375, 2
        %v6750 = vrot.slane %v3407, 1
        %v6751 = vsel %vm4272, %v6750, %v6749
        %v6752 = vsel %vm4275, %v3695, %v6751
        %v6753 = vrot.slane %v3727, 7
        %v6754 = vsel %vm4278, %v6753, %v6752
        %v6755 = vrot.slane %v3503, 6
        %v6756 = vsel %vm4281, %v6755, %v6754
        %v6757 = vrot.slane %v3535, 5
        %v6758 = vsel %vm4284, %v6757, %v6756
        %v6759 = vrot.slane %v3567, 4
        %v6760 = vsel %vm4287, %v6759, %v6758
        %v6761 = vrot.slane %v3599, 3
        %v6762 = vsel %vm4290, %v6761, %v6760
        %v6763 = vrot.slane %v3376, 2
        %v6764 = vrot.slane %v3408, 1
        %v6765 = vsel %vm4272, %v6764, %v6763
        %v6766 = vsel %vm4275, %v3696, %v6765
        %v6767 = vrot.slane %v3728, 7
        %v6768 = vsel %vm4278, %v6767, %v6766
        %v6769 = vrot.slane %v3504, 6
        %v6770 = vsel %vm4281, %v6769, %v6768
        %v6771 = vrot.slane %v3536, 5
        %v6772 = vsel %vm4284, %v6771, %v6770
        %v6773 = vrot.slane %v3568, 4
        %v6774 = vsel %vm4287, %v6773, %v6772
        %v6775 = vrot.slane %v3600, 3
        %v6776 = vsel %vm4290, %v6775, %v6774
        %v6777 = vrot.slane %v3377, 2
        %v6778 = vrot.slane %v3409, 1
        %v6779 = vsel %vm4272, %v6778, %v6777
        %v6780 = vsel %vm4275, %v3697, %v6779
        %v6781 = vrot.slane %v3729, 7
        %v6782 = vsel %vm4278, %v6781, %v6780
        %v6783 = vrot.slane %v3505, 6
        %v6784 = vsel %vm4281, %v6783, %v6782
        %v6785 = vrot.slane %v3537, 5
        %v6786 = vsel %vm4284, %v6785, %v6784
        %v6787 = vrot.slane %v3569, 4
        %v6788 = vsel %vm4287, %v6787, %v6786
        %v6789 = vrot.slane %v3601, 3
        %v6790 = vsel %vm4290, %v6789, %v6788
        %v6791 = vrot.slane %v3378, 2
        %v6792 = vrot.slane %v3410, 1
        %v6793 = vsel %vm4272, %v6792, %v6791
        %v6794 = vsel %vm4275, %v3698, %v6793
        %v6795 = vrot.slane %v3730, 7
        %v6796 = vsel %vm4278, %v6795, %v6794
        %v6797 = vrot.slane %v3506, 6
        %v6798 = vsel %vm4281, %v6797, %v6796
        %v6799 = vrot.slane %v3538, 5
        %v6800 = vsel %vm4284, %v6799, %v6798
        %v6801 = vrot.slane %v3570, 4
        %v6802 = vsel %vm4287, %v6801, %v6800
        %v6803 = vrot.slane %v3602, 3
        %v6804 = vsel %vm4290, %v6803, %v6802
        %v6805 = vrot.slane %v3379, 2
        %v6806 = vrot.slane %v3411, 1
        %v6807 = vsel %vm4272, %v6806, %v6805
        %v6808 = vsel %vm4275, %v3699, %v6807
        %v6809 = vrot.slane %v3731, 7
        %v6810 = vsel %vm4278, %v6809, %v6808
        %v6811 = vrot.slane %v3507, 6
        %v6812 = vsel %vm4281, %v6811, %v6810
        %v6813 = vrot.slane %v3539, 5
        %v6814 = vsel %vm4284, %v6813, %v6812
        %v6815 = vrot.slane %v3571, 4
        %v6816 = vsel %vm4287, %v6815, %v6814
        %v6817 = vrot.slane %v3603, 3
        %v6818 = vsel %vm4290, %v6817, %v6816
        %v6819 = vrot.slane %v3380, 2
        %v6820 = vrot.slane %v3412, 1
        %v6821 = vsel %vm4272, %v6820, %v6819
        %v6822 = vsel %vm4275, %v3700, %v6821
        %v6823 = vrot.slane %v3732, 7
        %v6824 = vsel %vm4278, %v6823, %v6822
        %v6825 = vrot.slane %v3508, 6
        %v6826 = vsel %vm4281, %v6825, %v6824
        %v6827 = vrot.slane %v3540, 5
        %v6828 = vsel %vm4284, %v6827, %v6826
        %v6829 = vrot.slane %v3572, 4
        %v6830 = vsel %vm4287, %v6829, %v6828
        %v6831 = vrot.slane %v3604, 3
        %v6832 = vsel %vm4290, %v6831, %v6830
        %v6833 = vrot.slane %v3381, 2
        %v6834 = vrot.slane %v3413, 1
        %v6835 = vsel %vm4272, %v6834, %v6833
        %v6836 = vsel %vm4275, %v3701, %v6835
        %v6837 = vrot.slane %v3733, 7
        %v6838 = vsel %vm4278, %v6837, %v6836
        %v6839 = vrot.slane %v3509, 6
        %v6840 = vsel %vm4281, %v6839, %v6838
        %v6841 = vrot.slane %v3541, 5
        %v6842 = vsel %vm4284, %v6841, %v6840
        %v6843 = vrot.slane %v3573, 4
        %v6844 = vsel %vm4287, %v6843, %v6842
        %v6845 = vrot.slane %v3605, 3
        %v6846 = vsel %vm4290, %v6845, %v6844
        %v6847 = vrot.slane %v3382, 2
        %v6848 = vrot.slane %v3414, 1
        %v6849 = vsel %vm4272, %v6848, %v6847
        %v6850 = vsel %vm4275, %v3702, %v6849
        %v6851 = vrot.slane %v3734, 7
        %v6852 = vsel %vm4278, %v6851, %v6850
        %v6853 = vrot.slane %v3510, 6
        %v6854 = vsel %vm4281, %v6853, %v6852
        %v6855 = vrot.slane %v3542, 5
        %v6856 = vsel %vm4284, %v6855, %v6854
        %v6857 = vrot.slane %v3574, 4
        %v6858 = vsel %vm4287, %v6857, %v6856
        %v6859 = vrot.slane %v3606, 3
        %v6860 = vsel %vm4290, %v6859, %v6858
        %v6861 = vrot.slane %v3383, 2
        %v6862 = vrot.slane %v3415, 1
        %v6863 = vsel %vm4272, %v6862, %v6861
        %v6864 = vsel %vm4275, %v3703, %v6863
        %v6865 = vrot.slane %v3735, 7
        %v6866 = vsel %vm4278, %v6865, %v6864
        %v6867 = vrot.slane %v3511, 6
        %v6868 = vsel %vm4281, %v6867, %v6866
        %v6869 = vrot.slane %v3543, 5
        %v6870 = vsel %vm4284, %v6869, %v6868
        %v6871 = vrot.slane %v3575, 4
        %v6872 = vsel %vm4287, %v6871, %v6870
        %v6873 = vrot.slane %v3607, 3
        %v6874 = vsel %vm4290, %v6873, %v6872
        %v6875 = vrot.slane %v3384, 2
        %v6876 = vrot.slane %v3416, 1
        %v6877 = vsel %vm4272, %v6876, %v6875
        %v6878 = vsel %vm4275, %v3704, %v6877
        %v6879 = vrot.slane %v3736, 7
        %v6880 = vsel %vm4278, %v6879, %v6878
        %v6881 = vrot.slane %v3512, 6
        %v6882 = vsel %vm4281, %v6881, %v6880
        %v6883 = vrot.slane %v3544, 5
        %v6884 = vsel %vm4284, %v6883, %v6882
        %v6885 = vrot.slane %v3576, 4
        %v6886 = vsel %vm4287, %v6885, %v6884
        %v6887 = vrot.slane %v3608, 3
        %v6888 = vsel %vm4290, %v6887, %v6886
        %v6889 = vrot.slane %v3385, 2
        %v6890 = vrot.slane %v3417, 1
        %v6891 = vsel %vm4272, %v6890, %v6889
        %v6892 = vsel %vm4275, %v3705, %v6891
        %v6893 = vrot.slane %v3737, 7
        %v6894 = vsel %vm4278, %v6893, %v6892
        %v6895 = vrot.slane %v3513, 6
        %v6896 = vsel %vm4281, %v6895, %v6894
        %v6897 = vrot.slane %v3545, 5
        %v6898 = vsel %vm4284, %v6897, %v6896
        %v6899 = vrot.slane %v3577, 4
        %v6900 = vsel %vm4287, %v6899, %v6898
        %v6901 = vrot.slane %v3609, 3
        %v6902 = vsel %vm4290, %v6901, %v6900
        %v6903 = vrot.slane %v3386, 2
        %v6904 = vrot.slane %v3418, 1
        %v6905 = vsel %vm4272, %v6904, %v6903
        %v6906 = vsel %vm4275, %v3706, %v6905
        %v6907 = vrot.slane %v3738, 7
        %v6908 = vsel %vm4278, %v6907, %v6906
        %v6909 = vrot.slane %v3514, 6
        %v6910 = vsel %vm4281, %v6909, %v6908
        %v6911 = vrot.slane %v3546, 5
        %v6912 = vsel %vm4284, %v6911, %v6910
        %v6913 = vrot.slane %v3578, 4
        %v6914 = vsel %vm4287, %v6913, %v6912
        %v6915 = vrot.slane %v3610, 3
        %v6916 = vsel %vm4290, %v6915, %v6914
        %v6917 = vrot.slane %v3387, 2
        %v6918 = vrot.slane %v3419, 1
        %v6919 = vsel %vm4272, %v6918, %v6917
        %v6920 = vsel %vm4275, %v3707, %v6919
        %v6921 = vrot.slane %v3739, 7
        %v6922 = vsel %vm4278, %v6921, %v6920
        %v6923 = vrot.slane %v3515, 6
        %v6924 = vsel %vm4281, %v6923, %v6922
        %v6925 = vrot.slane %v3547, 5
        %v6926 = vsel %vm4284, %v6925, %v6924
        %v6927 = vrot.slane %v3579, 4
        %v6928 = vsel %vm4287, %v6927, %v6926
        %v6929 = vrot.slane %v3611, 3
        %v6930 = vsel %vm4290, %v6929, %v6928
        %v6931 = vrot.slane %v3388, 2
        %v6932 = vrot.slane %v3420, 1
        %v6933 = vsel %vm4272, %v6932, %v6931
        %v6934 = vsel %vm4275, %v3708, %v6933
        %v6935 = vrot.slane %v3740, 7
        %v6936 = vsel %vm4278, %v6935, %v6934
        %v6937 = vrot.slane %v3516, 6
        %v6938 = vsel %vm4281, %v6937, %v6936
        %v6939 = vrot.slane %v3548, 5
        %v6940 = vsel %vm4284, %v6939, %v6938
        %v6941 = vrot.slane %v3580, 4
        %v6942 = vsel %vm4287, %v6941, %v6940
        %v6943 = vrot.slane %v3612, 3
        %v6944 = vsel %vm4290, %v6943, %v6942
        %v6945 = vrot.slane %v3389, 2
        %v6946 = vrot.slane %v3421, 1
        %v6947 = vsel %vm4272, %v6946, %v6945
        %v6948 = vsel %vm4275, %v3709, %v6947
        %v6949 = vrot.slane %v3741, 7
        %v6950 = vsel %vm4278, %v6949, %v6948
        %v6951 = vrot.slane %v3517, 6
        %v6952 = vsel %vm4281, %v6951, %v6950
        %v6953 = vrot.slane %v3549, 5
        %v6954 = vsel %vm4284, %v6953, %v6952
        %v6955 = vrot.slane %v3581, 4
        %v6956 = vsel %vm4287, %v6955, %v6954
        %v6957 = vrot.slane %v3613, 3
        %v6958 = vsel %vm4290, %v6957, %v6956
        %v6959 = vrot.slane %v3390, 2
        %v6960 = vrot.slane %v3422, 1
        %v6961 = vsel %vm4272, %v6960, %v6959
        %v6962 = vsel %vm4275, %v3710, %v6961
        %v6963 = vrot.slane %v3742, 7
        %v6964 = vsel %vm4278, %v6963, %v6962
        %v6965 = vrot.slane %v3518, 6
        %v6966 = vsel %vm4281, %v6965, %v6964
        %v6967 = vrot.slane %v3550, 5
        %v6968 = vsel %vm4284, %v6967, %v6966
        %v6969 = vrot.slane %v3582, 4
        %v6970 = vsel %vm4287, %v6969, %v6968
        %v6971 = vrot.slane %v3614, 3
        %v6972 = vsel %vm4290, %v6971, %v6970
        %v6973 = vrot.slane %v3391, 2
        %v6974 = vrot.slane %v3423, 1
        %v6975 = vsel %vm4272, %v6974, %v6973
        %v6976 = vsel %vm4275, %v3711, %v6975
        %v6977 = vrot.slane %v3743, 7
        %v6978 = vsel %vm4278, %v6977, %v6976
        %v6979 = vrot.slane %v3519, 6
        %v6980 = vsel %vm4281, %v6979, %v6978
        %v6981 = vrot.slane %v3551, 5
        %v6982 = vsel %vm4284, %v6981, %v6980
        %v6983 = vrot.slane %v3583, 4
        %v6984 = vsel %vm4287, %v6983, %v6982
        %v6985 = vrot.slane %v3615, 3
        %v6986 = vsel %vm4290, %v6985, %v6984
        %v6987 = vrot.slane %v3392, 2
        %v6988 = vrot.slane %v3424, 1
        %v6989 = vsel %vm4272, %v6988, %v6987
        %v6990 = vsel %vm4275, %v3712, %v6989
        %v6991 = vrot.slane %v3744, 7
        %v6992 = vsel %vm4278, %v6991, %v6990
        %v6993 = vrot.slane %v3520, 6
        %v6994 = vsel %vm4281, %v6993, %v6992
        %v6995 = vrot.slane %v3552, 5
        %v6996 = vsel %vm4284, %v6995, %v6994
        %v6997 = vrot.slane %v3584, 4
        %v6998 = vsel %vm4287, %v6997, %v6996
        %v6999 = vrot.slane %v3616, 3
        %v7000 = vsel %vm4290, %v6999, %v6998
        %v7001 = vrot.slane %v3393, 2
        %v7002 = vrot.slane %v3425, 1
        %v7003 = vsel %vm4272, %v7002, %v7001
        %v7004 = vsel %vm4275, %v3713, %v7003
        %v7005 = vrot.slane %v3745, 7
        %v7006 = vsel %vm4278, %v7005, %v7004
        %v7007 = vrot.slane %v3521, 6
        %v7008 = vsel %vm4281, %v7007, %v7006
        %v7009 = vrot.slane %v3553, 5
        %v7010 = vsel %vm4284, %v7009, %v7008
        %v7011 = vrot.slane %v3585, 4
        %v7012 = vsel %vm4287, %v7011, %v7010
        %v7013 = vrot.slane %v3617, 3
        %v7014 = vsel %vm4290, %v7013, %v7012
        %v7015 = vrot.slane %v3394, 2
        %v7016 = vrot.slane %v3426, 1
        %v7017 = vsel %vm4272, %v7016, %v7015
        %v7018 = vsel %vm4275, %v3714, %v7017
        %v7019 = vrot.slane %v3746, 7
        %v7020 = vsel %vm4278, %v7019, %v7018
        %v7021 = vrot.slane %v3522, 6
        %v7022 = vsel %vm4281, %v7021, %v7020
        %v7023 = vrot.slane %v3554, 5
        %v7024 = vsel %vm4284, %v7023, %v7022
        %v7025 = vrot.slane %v3586, 4
        %v7026 = vsel %vm4287, %v7025, %v7024
        %v7027 = vrot.slane %v3618, 3
        %v7028 = vsel %vm4290, %v7027, %v7026
        %v7029 = vrot.slane %v3395, 2
        %v7030 = vrot.slane %v3427, 1
        %v7031 = vsel %vm4272, %v7030, %v7029
        %v7032 = vsel %vm4275, %v3715, %v7031
        %v7033 = vrot.slane %v3747, 7
        %v7034 = vsel %vm4278, %v7033, %v7032
        %v7035 = vrot.slane %v3523, 6
        %v7036 = vsel %vm4281, %v7035, %v7034
        %v7037 = vrot.slane %v3555, 5
        %v7038 = vsel %vm4284, %v7037, %v7036
        %v7039 = vrot.slane %v3587, 4
        %v7040 = vsel %vm4287, %v7039, %v7038
        %v7041 = vrot.slane %v3619, 3
        %v7042 = vsel %vm4290, %v7041, %v7040
        %v7043 = vrot.slane %v3396, 2
        %v7044 = vrot.slane %v3428, 1
        %v7045 = vsel %vm4272, %v7044, %v7043
        %v7046 = vsel %vm4275, %v3716, %v7045
        %v7047 = vrot.slane %v3748, 7
        %v7048 = vsel %vm4278, %v7047, %v7046
        %v7049 = vrot.slane %v3524, 6
        %v7050 = vsel %vm4281, %v7049, %v7048
        %v7051 = vrot.slane %v3556, 5
        %v7052 = vsel %vm4284, %v7051, %v7050
        %v7053 = vrot.slane %v3588, 4
        %v7054 = vsel %vm4287, %v7053, %v7052
        %v7055 = vrot.slane %v3620, 3
        %v7056 = vsel %vm4290, %v7055, %v7054
        %v7057 = vrot.slane %v3397, 2
        %v7058 = vrot.slane %v3429, 1
        %v7059 = vsel %vm4272, %v7058, %v7057
        %v7060 = vsel %vm4275, %v3717, %v7059
        %v7061 = vrot.slane %v3749, 7
        %v7062 = vsel %vm4278, %v7061, %v7060
        %v7063 = vrot.slane %v3525, 6
        %v7064 = vsel %vm4281, %v7063, %v7062
        %v7065 = vrot.slane %v3557, 5
        %v7066 = vsel %vm4284, %v7065, %v7064
        %v7067 = vrot.slane %v3589, 4
        %v7068 = vsel %vm4287, %v7067, %v7066
        %v7069 = vrot.slane %v3621, 3
        %v7070 = vsel %vm4290, %v7069, %v7068
        %v7071 = vrot.slane %v3398, 2
        %v7072 = vrot.slane %v3430, 1
        %v7073 = vsel %vm4272, %v7072, %v7071
        %v7074 = vsel %vm4275, %v3718, %v7073
        %v7075 = vrot.slane %v3750, 7
        %v7076 = vsel %vm4278, %v7075, %v7074
        %v7077 = vrot.slane %v3526, 6
        %v7078 = vsel %vm4281, %v7077, %v7076
        %v7079 = vrot.slane %v3558, 5
        %v7080 = vsel %vm4284, %v7079, %v7078
        %v7081 = vrot.slane %v3590, 4
        %v7082 = vsel %vm4287, %v7081, %v7080
        %v7083 = vrot.slane %v3622, 3
        %v7084 = vsel %vm4290, %v7083, %v7082
        %v7085 = vrot.slane %v3399, 2
        %v7086 = vrot.slane %v3431, 1
        %v7087 = vsel %vm4272, %v7086, %v7085
        %v7088 = vsel %vm4275, %v3719, %v7087
        %v7089 = vrot.slane %v3751, 7
        %v7090 = vsel %vm4278, %v7089, %v7088
        %v7091 = vrot.slane %v3527, 6
        %v7092 = vsel %vm4281, %v7091, %v7090
        %v7093 = vrot.slane %v3559, 5
        %v7094 = vsel %vm4284, %v7093, %v7092
        %v7095 = vrot.slane %v3591, 4
        %v7096 = vsel %vm4287, %v7095, %v7094
        %v7097 = vrot.slane %v3623, 3
        %v7098 = vsel %vm4290, %v7097, %v7096
        %v7099 = vrot.slane %v3400, 2
        %v7100 = vrot.slane %v3432, 1
        %v7101 = vsel %vm4272, %v7100, %v7099
        %v7102 = vsel %vm4275, %v3720, %v7101
        %v7103 = vrot.slane %v3752, 7
        %v7104 = vsel %vm4278, %v7103, %v7102
        %v7105 = vrot.slane %v3528, 6
        %v7106 = vsel %vm4281, %v7105, %v7104
        %v7107 = vrot.slane %v3560, 5
        %v7108 = vsel %vm4284, %v7107, %v7106
        %v7109 = vrot.slane %v3592, 4
        %v7110 = vsel %vm4287, %v7109, %v7108
        %v7111 = vrot.slane %v3624, 3
        %v7112 = vsel %vm4290, %v7111, %v7110
        %v7113 = vrot.slane %v3401, 2
        %v7114 = vrot.slane %v3433, 1
        %v7115 = vsel %vm4272, %v7114, %v7113
        %v7116 = vsel %vm4275, %v3721, %v7115
        %v7117 = vrot.slane %v3753, 7
        %v7118 = vsel %vm4278, %v7117, %v7116
        %v7119 = vrot.slane %v3529, 6
        %v7120 = vsel %vm4281, %v7119, %v7118
        %v7121 = vrot.slane %v3561, 5
        %v7122 = vsel %vm4284, %v7121, %v7120
        %v7123 = vrot.slane %v3593, 4
        %v7124 = vsel %vm4287, %v7123, %v7122
        %v7125 = vrot.slane %v3625, 3
        %v7126 = vsel %vm4290, %v7125, %v7124
        %v7127 = vrot.slane %v3402, 2
        %v7128 = vrot.slane %v3434, 1
        %v7129 = vsel %vm4272, %v7128, %v7127
        %v7130 = vsel %vm4275, %v3722, %v7129
        %v7131 = vrot.slane %v3754, 7
        %v7132 = vsel %vm4278, %v7131, %v7130
        %v7133 = vrot.slane %v3530, 6
        %v7134 = vsel %vm4281, %v7133, %v7132
        %v7135 = vrot.slane %v3562, 5
        %v7136 = vsel %vm4284, %v7135, %v7134
        %v7137 = vrot.slane %v3594, 4
        %v7138 = vsel %vm4287, %v7137, %v7136
        %v7139 = vrot.slane %v3626, 3
        %v7140 = vsel %vm4290, %v7139, %v7138
        %v7141 = vrot.slane %v3403, 2
        %v7142 = vrot.slane %v3435, 1
        %v7143 = vsel %vm4272, %v7142, %v7141
        %v7144 = vsel %vm4275, %v3723, %v7143
        %v7145 = vrot.slane %v3755, 7
        %v7146 = vsel %vm4278, %v7145, %v7144
        %v7147 = vrot.slane %v3531, 6
        %v7148 = vsel %vm4281, %v7147, %v7146
        %v7149 = vrot.slane %v3563, 5
        %v7150 = vsel %vm4284, %v7149, %v7148
        %v7151 = vrot.slane %v3595, 4
        %v7152 = vsel %vm4287, %v7151, %v7150
        %v7153 = vrot.slane %v3627, 3
        %v7154 = vsel %vm4290, %v7153, %v7152
        %v7155 = vrot.slane %v3404, 2
        %v7156 = vrot.slane %v3436, 1
        %v7157 = vsel %vm4272, %v7156, %v7155
        %v7158 = vsel %vm4275, %v3724, %v7157
        %v7159 = vrot.slane %v3756, 7
        %v7160 = vsel %vm4278, %v7159, %v7158
        %v7161 = vrot.slane %v3532, 6
        %v7162 = vsel %vm4281, %v7161, %v7160
        %v7163 = vrot.slane %v3564, 5
        %v7164 = vsel %vm4284, %v7163, %v7162
        %v7165 = vrot.slane %v3596, 4
        %v7166 = vsel %vm4287, %v7165, %v7164
        %v7167 = vrot.slane %v3628, 3
        %v7168 = vsel %vm4290, %v7167, %v7166
        %v7169 = vrot.slane %v3405, 2
        %v7170 = vrot.slane %v3437, 1
        %v7171 = vsel %vm4272, %v7170, %v7169
        %v7172 = vsel %vm4275, %v3725, %v7171
        %v7173 = vrot.slane %v3757, 7
        %v7174 = vsel %vm4278, %v7173, %v7172
        %v7175 = vrot.slane %v3533, 6
        %v7176 = vsel %vm4281, %v7175, %v7174
        %v7177 = vrot.slane %v3565, 5
        %v7178 = vsel %vm4284, %v7177, %v7176
        %v7179 = vrot.slane %v3597, 4
        %v7180 = vsel %vm4287, %v7179, %v7178
        %v7181 = vrot.slane %v3629, 3
        %v7182 = vsel %vm4290, %v7181, %v7180
        %v7183 = vrot.slane %v3406, 2
        %v7184 = vrot.slane %v3438, 1
        %v7185 = vsel %vm4272, %v7184, %v7183
        %v7186 = vsel %vm4275, %v3726, %v7185
        %v7187 = vrot.slane %v3758, 7
        %v7188 = vsel %vm4278, %v7187, %v7186
        %v7189 = vrot.slane %v3534, 6
        %v7190 = vsel %vm4281, %v7189, %v7188
        %v7191 = vrot.slane %v3566, 5
        %v7192 = vsel %vm4284, %v7191, %v7190
        %v7193 = vrot.slane %v3598, 4
        %v7194 = vsel %vm4287, %v7193, %v7192
        %v7195 = vrot.slane %v3630, 3
        %v7196 = vsel %vm4290, %v7195, %v7194
        %v7197 = vrot.slane %v3631, 2
        %v7198 = vrot.slane %v3663, 1
        %v7199 = vsel %vm4272, %v7198, %v7197
        %v7200 = vrot.slane %v3632, 2
        %v7201 = vrot.slane %v3664, 1
        %v7202 = vsel %vm4272, %v7201, %v7200
        %v7203 = vrot.slane %v3633, 2
        %v7204 = vrot.slane %v3665, 1
        %v7205 = vsel %vm4272, %v7204, %v7203
        %v7206 = vrot.slane %v3634, 2
        %v7207 = vrot.slane %v3666, 1
        %v7208 = vsel %vm4272, %v7207, %v7206
        %v7209 = vrot.slane %v3635, 2
        %v7210 = vrot.slane %v3667, 1
        %v7211 = vsel %vm4272, %v7210, %v7209
        %v7212 = vrot.slane %v3636, 2
        %v7213 = vrot.slane %v3668, 1
        %v7214 = vsel %vm4272, %v7213, %v7212
        %v7215 = vrot.slane %v3637, 2
        %v7216 = vrot.slane %v3669, 1
        %v7217 = vsel %vm4272, %v7216, %v7215
        %v7218 = vrot.slane %v3638, 2
        %v7219 = vrot.slane %v3670, 1
        %v7220 = vsel %vm4272, %v7219, %v7218
        %v7221 = vrot.slane %v3639, 2
        %v7222 = vrot.slane %v3671, 1
        %v7223 = vsel %vm4272, %v7222, %v7221
        %v7224 = vrot.slane %v3640, 2
        %v7225 = vrot.slane %v3672, 1
        %v7226 = vsel %vm4272, %v7225, %v7224
        %v7227 = vrot.slane %v3641, 2
        %v7228 = vrot.slane %v3673, 1
        %v7229 = vsel %vm4272, %v7228, %v7227
        %v7230 = vrot.slane %v3642, 2
        %v7231 = vrot.slane %v3674, 1
        %v7232 = vsel %vm4272, %v7231, %v7230
        %v7233 = vrot.slane %v3643, 2
        %v7234 = vrot.slane %v3675, 1
        %v7235 = vsel %vm4272, %v7234, %v7233
        %v7236 = vrot.slane %v3644, 2
        %v7237 = vrot.slane %v3676, 1
        %v7238 = vsel %vm4272, %v7237, %v7236
        %v7239 = vrot.slane %v3645, 2
        %v7240 = vrot.slane %v3677, 1
        %v7241 = vsel %vm4272, %v7240, %v7239
        %v7242 = vrot.slane %v3646, 2
        %v7243 = vrot.slane %v3678, 1
        %v7244 = vsel %vm4272, %v7243, %v7242
        %v7245 = vrot.slane %v3647, 2
        %v7246 = vrot.slane %v3679, 1
        %v7247 = vsel %vm4272, %v7246, %v7245
        %v7248 = vrot.slane %v3648, 2
        %v7249 = vrot.slane %v3680, 1
        %v7250 = vsel %vm4272, %v7249, %v7248
        %v7251 = vrot.slane %v3649, 2
        %v7252 = vrot.slane %v3681, 1
        %v7253 = vsel %vm4272, %v7252, %v7251
        %v7254 = vrot.slane %v3650, 2
        %v7255 = vrot.slane %v3682, 1
        %v7256 = vsel %vm4272, %v7255, %v7254
        %v7257 = vrot.slane %v3651, 2
        %v7258 = vrot.slane %v3683, 1
        %v7259 = vsel %vm4272, %v7258, %v7257
        %v7260 = vrot.slane %v3652, 2
        %v7261 = vrot.slane %v3684, 1
        %v7262 = vsel %vm4272, %v7261, %v7260
        %v7263 = vrot.slane %v3653, 2
        %v7264 = vrot.slane %v3685, 1
        %v7265 = vsel %vm4272, %v7264, %v7263
        %v7266 = vrot.slane %v3654, 2
        %v7267 = vrot.slane %v3686, 1
        %v7268 = vsel %vm4272, %v7267, %v7266
        %v7269 = vrot.slane %v3655, 2
        %v7270 = vrot.slane %v3687, 1
        %v7271 = vsel %vm4272, %v7270, %v7269
        %v7272 = vrot.slane %v3656, 2
        %v7273 = vrot.slane %v3688, 1
        %v7274 = vsel %vm4272, %v7273, %v7272
        %v7275 = vrot.slane %v3657, 2
        %v7276 = vrot.slane %v3689, 1
        %v7277 = vsel %vm4272, %v7276, %v7275
        %v7278 = vrot.slane %v3658, 2
        %v7279 = vrot.slane %v3690, 1
        %v7280 = vsel %vm4272, %v7279, %v7278
        %v7281 = vrot.slane %v3659, 2
        %v7282 = vrot.slane %v3691, 1
        %v7283 = vsel %vm4272, %v7282, %v7281
        %v7284 = vrot.slane %v3660, 2
        %v7285 = vrot.slane %v3692, 1
        %v7286 = vsel %vm4272, %v7285, %v7284
        %v7287 = vrot.slane %v3661, 2
        %v7288 = vrot.slane %v3693, 1
        %v7289 = vsel %vm4272, %v7288, %v7287
        %v7290 = vrot.slane %v3662, 2
        %v7291 = vrot.slane %v3694, 1
        %v7292 = vsel %vm4272, %v7291, %v7290
        %vm7389 = vcmask 1047554
        %v7390 = vsel %vm7389, %v6438, -inf
        %v7391 = vsel %vm7389, %v6448, -inf
        %v7392 = vsel %vm7389, %v6458, -inf
        %v7393 = vmax.f32 %v7390, %v7392
        %v7394 = vsel %vm7389, %v6468, -inf
        %v7395 = vmax.f32 %v7391, %v7394
        %v7396 = vsel %vm7389, %v6478, -inf
        %v7397 = vmax.f32 %v7393, %v7396
        %v7398 = vsel %vm7389, %v6488, -inf
        %v7399 = vmax.f32 %v7395, %v7398
        %v7400 = vsel %vm7389, %v6498, -inf
        %v7401 = vmax.f32 %v7397, %v7400
        %v7402 = vsel %vm7389, %v6508, -inf
        %v7403 = vmax.f32 %v7399, %v7402
        %v7404 = vsel %vm7389, %v6518, -inf
        %v7405 = vmax.f32 %v7401, %v7404
        %v7406 = vsel %vm7389, %v6528, -inf
        %v7407 = vmax.f32 %v7403, %v7406
        %v7408 = vsel %vm7389, %v6538, -inf
        %v7409 = vmax.f32 %v7405, %v7408
        %v7410 = vsel %vm7389, %v6548, -inf
        %v7411 = vmax.f32 %v7407, %v7410
        %v7412 = vsel %vm7389, %v6558, -inf
        %v7413 = vmax.f32 %v7409, %v7412
        %v7414 = vsel %vm7389, %v6568, -inf
        %v7415 = vmax.f32 %v7411, %v7414
        %v7416 = vsel %vm7389, %v6578, -inf
        %v7417 = vmax.f32 %v7413, %v7416
        %v7418 = vsel %vm7389, %v6588, -inf
        %v7419 = vmax.f32 %v7415, %v7418
        %v7420 = vsel %vm7389, %v6598, -inf
        %v7421 = vmax.f32 %v7417, %v7420
        %v7422 = vsel %vm7389, %v6608, -inf
        %v7423 = vmax.f32 %v7419, %v7422
        %v7424 = vsel %vm7389, %v6618, -inf
        %v7425 = vmax.f32 %v7421, %v7424
        %v7426 = vsel %vm7389, %v6628, -inf
        %v7427 = vmax.f32 %v7423, %v7426
        %v7428 = vsel %vm7389, %v6638, -inf
        %v7429 = vmax.f32 %v7425, %v7428
        %v7430 = vsel %vm7389, %v6648, -inf
        %v7431 = vmax.f32 %v7427, %v7430
        %v7432 = vsel %vm7389, %v6658, -inf
        %v7433 = vmax.f32 %v7429, %v7432
        %v7434 = vsel %vm7389, %v6668, -inf
        %v7435 = vmax.f32 %v7431, %v7434
        %v7436 = vsel %vm7389, %v6678, -inf
        %v7437 = vmax.f32 %v7433, %v7436
        %v7438 = vsel %vm7389, %v6688, -inf
        %v7439 = vmax.f32 %v7435, %v7438
        %v7440 = vsel %vm7389, %v6698, -inf
        %v7441 = vmax.f32 %v7437, %v7440
        %v7442 = vsel %vm7389, %v6708, -inf
        %v7443 = vmax.f32 %v7439, %v7442
        %v7444 = vsel %vm7389, %v6718, -inf
        %v7445 = vmax.f32 %v7441, %v7444
        %v7446 = vsel %vm7389, %v6728, -inf
        %v7447 = vmax.f32 %v7443, %v7446
        %v7448 = vsel %vm7389, %v6738, -inf
        %v7449 = vmax.f32 %v7445, %v7448
        %v7450 = vsel %vm7389, %v6748, -inf
        %v7451 = vmax.f32 %v7447, %v7450
        %v7452 = vmax.f32 %v7449, %v7451
        %7453 = vmax.xlane.f32.xlu0 %v7452
        %v7454 = vpop.xlane.xlu0 %7453
        %v7455 = vmax.f32 %v6762, %v6790
        %v7456 = vmax.f32 %v6776, %v6804
        %v7457 = vmax.f32 %v7455, %v6818
        %v7458 = vmax.f32 %v7456, %v6832
        %v7459 = vmax.f32 %v7457, %v6846
        %v7460 = vmax.f32 %v7458, %v6860
        %v7461 = vmax.f32 %v7459, %v6874
        %v7462 = vmax.f32 %v7460, %v6888
        %v7463 = vmax.f32 %v7461, %v6902
        %v7464 = vmax.f32 %v7462, %v6916
        %v7465 = vmax.f32 %v7463, %v6930
        %v7466 = vmax.f32 %v7464, %v6944
        %v7467 = vmax.f32 %v7465, %v6958
        %v7468 = vmax.f32 %v7466, %v6972
        %v7469 = vmax.f32 %v7467, %v6986
        %v7470 = vmax.f32 %v7468, %v7000
        %v7471 = vmax.f32 %v7469, %v7014
        %v7472 = vmax.f32 %v7470, %v7028
        %v7473 = vmax.f32 %v7471, %v7042
        %v7474 = vmax.f32 %v7472, %v7056
        %v7475 = vmax.f32 %v7473, %v7070
        %v7476 = vmax.f32 %v7474, %v7084
        %v7477 = vmax.f32 %v7475, %v7098
        %v7478 = vmax.f32 %v7476, %v7112
        %v7479 = vmax.f32 %v7477, %v7126
        %v7480 = vmax.f32 %v7478, %v7140
        %v7481 = vmax.f32 %v7479, %v7154
        %v7482 = vmax.f32 %v7480, %v7168
        %v7483 = vmax.f32 %v7481, %v7182
        %v7484 = vmax.f32 %v7482, %v7196
        %v7485 = vmax.f32 %v7483, %v7484
        %7486 = vmax.xlane.f32.xlu0 %v7485
        %v7487 = vpop.xlane.xlu0 %7486
        %vm7488 = vcmask 1041408
        %v7489 = vsel %vm7488, %v7199, -inf
        %v7490 = vsel %vm7488, %v7202, -inf
        %v7491 = vsel %vm7488, %v7205, -inf
        %v7492 = vmax.f32 %v7489, %v7491
        %v7493 = vsel %vm7488, %v7208, -inf
        %v7494 = vmax.f32 %v7490, %v7493
        %v7495 = vsel %vm7488, %v7211, -inf
        %v7496 = vmax.f32 %v7492, %v7495
        %v7497 = vsel %vm7488, %v7214, -inf
        %v7498 = vmax.f32 %v7494, %v7497
        %v7499 = vsel %vm7488, %v7217, -inf
        %v7500 = vmax.f32 %v7496, %v7499
        %v7501 = vsel %vm7488, %v7220, -inf
        %v7502 = vmax.f32 %v7498, %v7501
        %v7503 = vsel %vm7488, %v7223, -inf
        %v7504 = vmax.f32 %v7500, %v7503
        %v7505 = vsel %vm7488, %v7226, -inf
        %v7506 = vmax.f32 %v7502, %v7505
        %v7507 = vsel %vm7488, %v7229, -inf
        %v7508 = vmax.f32 %v7504, %v7507
        %v7509 = vsel %vm7488, %v7232, -inf
        %v7510 = vmax.f32 %v7506, %v7509
        %v7511 = vsel %vm7488, %v7235, -inf
        %v7512 = vmax.f32 %v7508, %v7511
        %v7513 = vsel %vm7488, %v7238, -inf
        %v7514 = vmax.f32 %v7510, %v7513
        %v7515 = vsel %vm7488, %v7241, -inf
        %v7516 = vmax.f32 %v7512, %v7515
        %v7517 = vsel %vm7488, %v7244, -inf
        %v7518 = vmax.f32 %v7514, %v7517
        %v7519 = vsel %vm7488, %v7247, -inf
        %v7520 = vmax.f32 %v7516, %v7519
        %v7521 = vsel %vm7488, %v7250, -inf
        %v7522 = vmax.f32 %v7518, %v7521
        %v7523 = vsel %vm7488, %v7253, -inf
        %v7524 = vmax.f32 %v7520, %v7523
        %v7525 = vsel %vm7488, %v7256, -inf
        %v7526 = vmax.f32 %v7522, %v7525
        %v7527 = vsel %vm7488, %v7259, -inf
        %v7528 = vmax.f32 %v7524, %v7527
        %v7529 = vsel %vm7488, %v7262, -inf
        %v7530 = vmax.f32 %v7526, %v7529
        %v7531 = vsel %vm7488, %v7265, -inf
        %v7532 = vmax.f32 %v7528, %v7531
        %v7533 = vsel %vm7488, %v7268, -inf
        %v7534 = vmax.f32 %v7530, %v7533
        %v7535 = vsel %vm7488, %v7271, -inf
        %v7536 = vmax.f32 %v7532, %v7535
        %v7537 = vsel %vm7488, %v7274, -inf
        %v7538 = vmax.f32 %v7534, %v7537
        %v7539 = vsel %vm7488, %v7277, -inf
        %v7540 = vmax.f32 %v7536, %v7539
        %v7541 = vsel %vm7488, %v7280, -inf
        %v7542 = vmax.f32 %v7538, %v7541
        %v7543 = vsel %vm7488, %v7283, -inf
        %v7544 = vmax.f32 %v7540, %v7543
        %v7545 = vsel %vm7488, %v7286, -inf
        %v7546 = vmax.f32 %v7542, %v7545
        %v7547 = vsel %vm7488, %v7289, -inf
        %v7548 = vmax.f32 %v7544, %v7547
        %v7549 = vsel %vm7488, %v7292, -inf
        %v7550 = vmax.f32 %v7546, %v7549
        %v7551 = vmax.f32 %v7548, %v7550
        %7552 = vmax.xlane.f32.xlu0 %v7551
        %v7553 = vpop.xlane.xlu0 %7552
        %v7554 = vld [vmem:[%s347] sm:$0xff]
        %v7555 = vld [vmem:[%s347 + $0x8] sm:$0xff]
        %vm7559 = vcmask 1046528
        %v7560 = vrot.slane %v6329, 1
        %v7561 = vrot.slane %v6362, 1
        %v7562 = vsel %vm7559, %v7560, %v7561
        %v7563 = vrot.slane %v6428, 1
        %v7564 = vsel %vm7559, %v7561, %v7563
        %vm7570 = vcmask 1045504
        %v7571 = vrot.slane %v7454, 2
        %v7572 = vrot.slane %v7487, 2
        %v7573 = vsel %vm7570, %v7571, %v7572
        %v7574 = vrot.slane %v7553, 2
        %v7575 = vsel %vm7570, %v7572, %v7574
        %vm7578 = vcmask 7168
        %v7579 = vsel %vm7578, %v5270, %v7562
        %v7580 = vsel %vm7578, %v5303, %v7564
        %vm7581 = vcmask 15360
        %v7582 = vsel %vm7581, %v7579, %v7573
        %v7583 = vsel %vm7581, %v7580, %v7575
        %v7584 = vmax.f32 %v7554, %v7582
        %v7585 = vmax.f32 %v7555, %v7583
        %7586 = vst.msk [vmem:[%s347] sm:$0xff] %vm2118, %v7584
        %7587 = vst.msk [vmem:[%s347 + $0x8] sm:$0xff] %vm2118, %v7585
        %p7588 = scmp.lt.s32.totalorder %s23, 0
        %s7589 = scalar_select %p7588, %s23, 0
        %s7590 = smul.addr %s7589, 2
        %s7591 = smul.addr %s7590, 8
        %s7592 = scalar_lea.vmem %s2, %s7591
        %p7593 = scmp.lt.s32.totalorder %s23, 0
        %s7594 = scalar_select %p7593, %s23, 0
        %s7595 = smul.addr %s7594, 4
        %s7596 = scalar_lea.vmem %s3, %s7595
        %p7597 = scmp.lt.s32.totalorder %s23, 0
        %s7598 = scalar_select %p7597, %s23, 0
        %s7599 = smul.addr %s7598, 2
        %s7600 = smul.addr %s7599, 8
        %s7601 = scalar_lea.vmem %s4, %s7600
        // Predicated region
        $region37: #{channel_attention_3d.2} parent=27 // pred_check
          %p7602 = pneg %p117
        $region38: #{channel_attention_3d.2} parent=27 // pred_check_branch
          %7604 = sbr.rel (%p7602) target = $region40
        $region39: #{channel_attention_3d.2} parent=27 // pred_region
          _
        $region40: #{channel_attention_3d.2} parent=27 // pred_fallthru
          _
        // Predicated region
        $region41: #{channel_attention_3d.2} parent=27 // pred_check
          %p7605 = pneg %p143
        $region42: #{channel_attention_3d.2} parent=27 // pred_check_branch
          %7607 = sbr.rel (%p7605) target = $region44
        $region43: #{channel_attention_3d.2} parent=27 // pred_region
          _
        $region44: #{channel_attention_3d.2} parent=27 // pred_fallthru
          _
        // Predicated region
        $region45: #{channel_attention_3d.2} parent=27 // pred_check
          %p7608 = pneg %p169
        $region46: #{channel_attention_3d.2} parent=27 // pred_check_branch
          %7610 = sbr.rel (%p7608) target = $region48
        $region47: #{channel_attention_3d.2} parent=27 // pred_region
          _
        $region48: #{channel_attention_3d.2} parent=27 // pred_fallthru
          _
        // Predicated region
        $region49: #{channel_attention_3d.2} parent=27 // pred_check
          %p7611 = pneg %p117
        $region50: #{channel_attention_3d.2} parent=27 // pred_check_branch
          %7613 = sbr.rel (%p7611) target = $region52
        $region51: #{channel_attention_3d.2} parent=27 // pred_region
          %p7614 = scmp.lt.s32.totalorder %s23, 0
          %s7615 = scalar_select %p7614, %s23, 0
          %s7616 = smul.addr %s7615, 2
          %s7617 = smul.addr %s7616, 8
          %s7618 = scalar_lea.vmem %s2, %s7617
        $region52: #{channel_attention_3d.2} parent=27 // pred_fallthru
          _
        // Predicated region
        $region53: #{channel_attention_3d.2} parent=27 // pred_check
          %p7619 = pneg %p143
        $region54: #{channel_attention_3d.2} parent=27 // pred_check_branch
          %7621 = sbr.rel (%p7619) target = $region56
        $region55: #{channel_attention_3d.2} parent=27 // pred_region
          %p7622 = scmp.lt.s32.totalorder %s23, 0
          %s7623 = scalar_select %p7622, %s23, 0
          %s7624 = smul.addr %s7623, 4
          %s7625 = scalar_lea.vmem %s3, %s7624
        $region56: #{channel_attention_3d.2} parent=27 // pred_fallthru
          _
        // Predicated region
        $region57: #{channel_attention_3d.2} parent=27 // pred_check
          %p7626 = pneg %p169
        $region58: #{channel_attention_3d.2} parent=27 // pred_check_branch
          %7628 = sbr.rel (%p7626) target = $region60
        $region59: #{channel_attention_3d.2} parent=27 // pred_region
          %p7629 = scmp.lt.s32.totalorder %s23, 0
          %s7630 = scalar_select %p7629, %s23, 0
          %s7631 = smul.addr %s7630, 2
          %s7632 = smul.addr %s7631, 8
          %s7633 = scalar_lea.vmem %s4, %s7632
        $region60: #{channel_attention_3d.2} parent=27 // pred_fallthru
          _
      $region28: #{channel_attention_3d.2} parent=5 // pred_fallthru
        _
      %p7634 = scmp.le.s32.totalorder 2, %s14
      // Predicated region
      $region61: #{channel_attention_3d.2} parent=5 // pred_check
        %p7635 = pneg %p7634
      $region62: #{channel_attention_3d.2} parent=5 // pred_check_branch
        %7637 = sbr.rel (%p7635) target = $region64
      $region63: #{channel_attention_3d.2} parent=5 // pred_region
        %s7638 = ssub.s32 %s14, 2
      $region64: #{channel_attention_3d.2} parent=5 // pred_fallthru
        _
    $region6: #{channel_attention_3d.2} parent=1 // loop_footer
      %s18 = sadd.s32 1, %s14
    $region7: #{channel_attention_3d.2} parent=1 // loop_footer_branch
      %13 = sbr.rel target = $region3
    $region8: #{channel_attention_3d.2} parent=1 // loop_exit
      _
    %7639 = vsyncpa [#allocation3], 1
    %s7640 = scalar_lea.sflag [#allocation3], 1
    %7641 = vsyncpa %s7640, 1

</llo_original>
